<compile_context>
chip_gen: v7x
topology: tpu7x:2x2x1
jax: 0.10.0
libtpu: 0.0.40
codegen_flags: <defaults>
</compile_context>

<pallas_src>
import functools
import math

import jax
import jax.numpy as jnp
from jax.experimental import pallas as pl
from jax.experimental.pallas import tpu as pltpu


class Config:
    trans_dim = 32
    depth = 2
    drop_path_rate = 0.1   # unused at inference (DropPath == identity in eval mode)
    cls_dim = 40           # classification head is commented out in the reference module
    num_heads = 2
    group_size = 16
    num_group = 8
    encoder_dims = 64


# ----------------------------- in-kernel math helpers -----------------------------

_GELU_C = math.sqrt(2.0 / math.pi)


def _gelu(x):
    # tanh-approx GELU: tanh goes to the otherwise-idle EUP slot (perf review).
    return 0.5 * x * (1.0 + jnp.tanh(_GELU_C * (x + 0.044715 * x * x * x)))


def _layernorm(x, g, b, eps=1e-5):
    mu = jnp.mean(x, axis=-1, keepdims=True)
    var = jnp.mean((x - mu) ** 2, axis=-1, keepdims=True)
    return (x - mu) * jax.lax.rsqrt(var + eps) * g + b


# ----------------------------- the fused Pallas kernel -----------------------------

def _fused_kernel(G, n, num_heads, depth,
                  nb_ref, ctr_ref,
                  w1, b1, w2, b2, w3g, w3l, b3, w4, b4, wr, br,
                  cls_tok, cls_pos, pw1, pb1, pw2, pb2,
                  *rest):
    blk = rest[:13 * depth]
    norm_g, norm_b, out_ref, x_scr, pos_scr = rest[13 * depth:]

    S, D = x_scr.shape                    # S = G + 1
    hd = D // num_heads
    scale = float(hd) ** -0.5

    # ---------------- Encoder (BN folded, concat-matmul split) + fused reduce_dim ------
    pts = nb_ref[0]                                                        # (G*n, 3)
    h = jnp.dot(pts, w1[...], preferred_element_type=jnp.float32) + b1[...]
    h = jnp.maximum(h, 0.0)
    h = jnp.dot(h.astype(jnp.bfloat16), w2[...],
                preferred_element_type=jnp.float32) + b2[...]              # (G*n, 256)
    gmax = jnp.max(h.reshape(G, n, -1), axis=1)                            # (G, 256)

    # concat([global, local]) @ w3  ==  local @ w3[256:] + global @ w3[:256]
    loc = jnp.dot(h.astype(jnp.bfloat16), w3l[...],
                  preferred_element_type=jnp.float32)                      # (G*n, 512)
    glo = jnp.dot(gmax.astype(jnp.bfloat16), w3g[...],
                  preferred_element_type=jnp.float32) + b3[...]            # (G, 512)
    h2 = jnp.maximum(loc.reshape(G, n, -1) + glo[:, None, :], 0.0)
    h2 = jnp.dot(h2.reshape(G * n, -1).astype(jnp.bfloat16), w4[...],
                 preferred_element_type=jnp.float32) + b4[...]             # (G*n, E)
    feat = jnp.max(h2.reshape(G, n, -1), axis=1)                           # (G, E)
    tok = jnp.dot(feat.astype(jnp.bfloat16), wr[...],
                  preferred_element_type=jnp.float32) + br[...]            # (G, D)

    # ---------------- positional embedding: Linear(3,128) -> GELU -> Linear(128,D) -----
    ctr = ctr_ref[0]                                                       # (G, 3)
    ph = jnp.dot(ctr, pw1[...], preferred_element_type=jnp.float32) + pb1[...]
    ph = _gelu(ph)
    ph = jnp.dot(ph.astype(jnp.bfloat16), pw2[...],
                 preferred_element_type=jnp.float32) + pb2[...]            # (G, D)

    # ---------------- cls layout via row-0 scratch writes (no axis-0 concat) -----------
    x_scr[0:1, :] = cls_tok[...]
    x_scr[1:, :] = tok
    pos_scr[0:1, :] = cls_pos[...]
    pos_scr[1:, :] = ph
    x = x_scr[...]                                                         # (S, D)
    pos = pos_scr[...]                                                     # (S, D)

    # ---------------- Point-BERT TransformerEncoder: x = block(x + pos) ----------------
    for d in range(depth):
        (ln1_g, ln1_b, wq, wk, wv, wpj, b_proj,
         ln2_g, ln2_b, w_fc1, b_fc1, w_fc2, b_fc2) = blk[13 * d:13 * (d + 1)]

        xin = x + pos
        # Attention (pre-norm, qkv_bias=False, qk_scale=None) — head-batched dot_general.
        hN = _layernorm(xin, ln1_g[...], ln1_b[...])
        hb = jnp.broadcast_to(hN.astype(jnp.bfloat16)[None], (num_heads, S, D))
        q = jax.lax.dot_general(hb, wq[...], (((2,), (1,)), ((0,), (0,))),
                                preferred_element_type=jnp.float32)        # (H, S, hd)
        k = jax.lax.dot_general(hb, wk[...], (((2,), (1,)), ((0,), (0,))),
                                preferred_element_type=jnp.float32)
        v = jax.lax.dot_general(hb, wv[...], (((2,), (1,)), ((0,), (0,))),
                                preferred_element_type=jnp.float32)
        a = jax.lax.dot_general(q, k, (((2,), (2,)), ((0,), (0,))),
                                preferred_element_type=jnp.float32) * scale  # (H, S, S)
        a = a - jnp.max(a, axis=-1, keepdims=True)
        e = jnp.exp(a)
        p = e * pl.reciprocal(jnp.sum(e, axis=-1, keepdims=True), approx=True)
        o = jax.lax.dot_general(p, v, (((2,), (1,)), ((0,), (0,))),
                                preferred_element_type=jnp.float32)        # (H, S, hd)
        oh = jax.lax.dot_general(o.astype(jnp.bfloat16), wpj[...],
                                 (((2,), (1,)), ((0,), (0,))),
                                 preferred_element_type=jnp.float32)       # (H, S, D)
        x = xin + jnp.sum(oh, axis=0) + b_proj[...]

        # MLP (pre-norm), hidden = 4*D, GELU
        h3 = _layernorm(x, ln2_g[...], ln2_b[...])
        h3 = jnp.dot(h3.astype(jnp.bfloat16), w_fc1[...],
                     preferred_element_type=jnp.float32) + b_fc1[...]
        h3 = _gelu(h3)
        h3 = jnp.dot(h3.astype(jnp.bfloat16), w_fc2[...],
                     preferred_element_type=jnp.float32) + b_fc2[...]
        x = x + h3

    # ---------------- final LayerNorm + concat(cls token, max over remaining tokens) ---
    hF = _layernorm(x, norm_g[...], norm_b[...])
    cls = hF[0:1, :]
    rest_max = jnp.max(hF[1:, :], axis=0, keepdims=True)
    out_ref[0] = jnp.concatenate([cls, rest_max], axis=-1)                 # (1, 2D), one store


# ----------------------------- Pallas wrapper -----------------------------

def _const_index_map(ndim):
    return lambda b: (0,) * ndim


def fused_point_transformer(nb, ctr, prep, cfg):
    """Whole network in one pallas_call, grid=(B,) parallel."""
    B = nb.shape[0]
    G, n, D = cfg.num_group, cfg.group_size, cfg.trans_dim
    S = G + 1
    weights = prep["weights"]
    w_specs = [pl.BlockSpec(w.shape, _const_index_map(w.ndim)) for w in weights]

    out = pl.pallas_call(
        functools.partial(_fused_kernel, G, n, cfg.num_heads, cfg.depth),
        out_shape=jax.ShapeDtypeStruct((B, 1, 2 * D), jnp.float32),
        grid=(B,),
        in_specs=[pl.BlockSpec((1, G * n, 3), lambda b: (b, 0, 0)),
                  pl.BlockSpec((1, G, 3), lambda b: (b, 0, 0))] + w_specs,
        out_specs=pl.BlockSpec((1, 1, 2 * D), lambda b: (b, 0, 0)),
        scratch_shapes=[pltpu.VMEM((S, D), jnp.float32),
                        pltpu.VMEM((S, D), jnp.float32)],
        compiler_params=pltpu.CompilerParams(dimension_semantics=("parallel",)),
    )(nb, ctr, *weights)
    return out.reshape(B, 2 * D)


# ----------------------------- one-time host-side parameter prep -----------------------------

def prepare_params(params, cfg):
    """Executed ONCE outside jit: BN(eval) fold (general running stats), w3 split,
    per-head attention weight layout, cls reshapes, bf16 casts of matmul weights."""
    D, H = cfg.trans_dim, cfg.num_heads
    hd = D // H
    eps = 1e-5
    bf = jnp.bfloat16

    enc = params["encoder"]
    s1 = enc["bn1_g"] / jnp.sqrt(enc["bn1_var"] + eps)
    w1f = enc["w1"] * s1
    b1f = (enc["b1"] - enc["bn1_mean"]) * s1 + enc["bn1_b"]
    s2 = enc["bn2_g"] / jnp.sqrt(enc["bn2_var"] + eps)
    w3f = enc["w3"] * s2
    b3f = (enc["b3"] - enc["bn2_mean"]) * s2 + enc["bn2_b"]
    half = w3f.shape[0] // 2
    w3g, w3l = w3f[:half].astype(bf), w3f[half:].astype(bf)   # torch cat order: [global, local]

    red, pe = params["reduce_dim"], params["pos_embed"]
    weights = [
        w1f, b1f, enc["w2"].astype(bf), enc["b2"], w3g, w3l, b3f,
        enc["w4"].astype(bf), enc["b4"], red["w"].astype(bf), red["b"],
        params["cls_token"].reshape(1, D), params["cls_pos"].reshape(1, D),
        pe["w1"], pe["b1"], pe["w2"].astype(bf), pe["b2"],
    ]
    for bp in params["blocks"]:
        wqkv = bp["w_qkv"]                                    # (D, 3D): columns = [q | k | v]
        wq = wqkv[:, 0 * D:1 * D].reshape(D, H, hd).transpose(1, 0, 2).astype(bf)   # (H, D, hd)
        wk = wqkv[:, 1 * D:2 * D].reshape(D, H, hd).transpose(1, 0, 2).astype(bf)
        wv = wqkv[:, 2 * D:3 * D].reshape(D, H, hd).transpose(1, 0, 2).astype(bf)
        wpj = bp["w_proj"].reshape(H, hd, D).astype(bf)       # proj rows are head-major
        weights += [bp["ln1_g"], bp["ln1_b"], wq, wk, wv, wpj, bp["b_proj"],
                    bp["ln2_g"], bp["ln2_b"],
                    bp["w_fc1"].astype(bf), bp["b_fc1"],
                    bp["w_fc2"].astype(bf), bp["b_fc2"]]
    weights += [params["norm"]["g"], params["norm"]["b"]]
    return {"weights": tuple(weights)}


# ----------------------------- Grouping (plain-JAX glue) -----------------------------
# TODO(synk): FPS + kNN grouping is a data-dependent gather/top_k with no clean static
#             BlockSpec; kept as plain JAX. Per the perf review this glue is now the likely
#             end-to-end bottleneck and a candidate for a scalar-prefetch gather kernel.

def farthest_point_sample(xyz, n_samples):
    def one(x):
        N = x.shape[0]

        def body(i, carry):
            idxs, dists, last = carry
            d = jnp.sum((x - x[last]) ** 2, axis=-1)
            dists = jnp.minimum(dists, d)
            nxt = jnp.argmax(dists).astype(jnp.int32)
            return idxs.at[i].set(nxt), dists, nxt

        idxs = jnp.zeros((n_samples,), jnp.int32)
        dists = jnp.full((N,), 1e10, jnp.float32)
        idxs, _, _ = jax.lax.fori_loop(1, n_samples, body, (idxs, dists, jnp.int32(0)))
        return idxs

    return jax.vmap(one)(xyz)


def group_divider(pts, num_group, group_size):
    fps_idx = farthest_point_sample(pts, num_group)                        # (B, G)
    center = jax.vmap(lambda x, i: x[i])(pts, fps_idx)                     # (B, G, 3)
    d = jnp.sum((center[:, :, None, :] - pts[:, None, :, :]) ** 2, axis=-1)  # (B, G, N)
    _, knn_idx = jax.lax.top_k(-d, group_size)                             # (B, G, k)
    neighborhood = jax.vmap(lambda x, i: x[i])(pts, knn_idx)               # (B, G, k, 3)
    neighborhood = neighborhood - center[:, :, None, :]                    # center-normalized
    return neighborhood, center


# ----------------------------- full forward -----------------------------

def point_transformer_forward(prep, pts, cfg):
    B = pts.shape[0]
    G, n = cfg.num_group, cfg.group_size
    neighborhood, center = group_divider(pts, G, n)                        # (B,G,n,3), (B,G,3)
    nb = neighborhood.reshape(B, G * n, 3)
    return fused_point_transformer(nb, center, prep, cfg)                  # (B, 2*D)


# ----------------------------- deterministic parameter init -----------------------------

def init_params(key, cfg):
    D, E = cfg.trans_dim, cfg.encoder_dims
    hidden = 4 * D
    keys = iter(jax.random.split(key, 64))

    def w(shape, scale=0.02):
        return scale * jax.random.normal(next(keys), shape, jnp.float32)

    params = {
        "encoder": {
            "w1": w((3, 128)), "b1": jnp.zeros((1, 128), jnp.float32),
            "bn1_g": jnp.ones((1, 128), jnp.float32), "bn1_b": jnp.zeros((1, 128), jnp.float32),
            "bn1_mean": jnp.zeros((1, 128), jnp.float32), "bn1_var": jnp.ones((1, 128), jnp.float32),
            "w2": w((128, 256)), "b2": jnp.zeros((1, 256), jnp.float32),
            "w3": w((512, 512)), "b3": jnp.zeros((1, 512), jnp.float32),
            "bn2_g": jnp.ones((1, 512), jnp.float32), "bn2_b": jnp.zeros((1, 512), jnp.float32),
            "bn2_mean": jnp.zeros((1, 512), jnp.float32), "bn2_var": jnp.ones((1, 512), jnp.float32),
            "w4": w((512, E)), "b4": jnp.zeros((1, E), jnp.float32),
        },
        "reduce_dim": {"w": w((E, D)), "b": jnp.zeros((1, D), jnp.float32)},
        "cls_token": jnp.zeros((1, 1, D), jnp.float32),                      # nn.Parameter(zeros)
        "cls_pos": jax.random.normal(next(keys), (1, 1, D), jnp.float32),    # nn.Parameter(randn)
        "pos_embed": {"w1": w((3, 128)), "b1": jnp.zeros((1, 128), jnp.float32),
                      "w2": w((128, D)), "b2": jnp.zeros((1, D), jnp.float32)},
        "blocks": [],
        "norm": {"g": jnp.ones((1, D), jnp.float32), "b": jnp.zeros((1, D), jnp.float32)},
    }
    for _ in range(cfg.depth):
        params["blocks"].append({
            "ln1_g": jnp.ones((1, D), jnp.float32), "ln1_b": jnp.zeros((1, D), jnp.float32),
            "w_qkv": w((D, 3 * D)),                                          # qkv_bias=False
            "w_proj": w((D, D)), "b_proj": jnp.zeros((1, D), jnp.float32),
            "ln2_g": jnp.ones((1, D), jnp.float32), "ln2_b": jnp.zeros((1, D), jnp.float32),
            "w_fc1": w((D, hidden)), "b_fc1": jnp.zeros((1, hidden), jnp.float32),
            "w_fc2": w((hidden, D)), "b_fc2": jnp.zeros((1, D), jnp.float32),
        })
    return params


if __name__ == "__main__":
    cfg = Config()
    key = jax.random.PRNGKey(0)
    pkey, dkey = jax.random.split(key)
    params = init_params(pkey, cfg)
    prep = prepare_params(params, cfg)     # one-time host-side weight prep (outside jit)

    B, N = 2, 128
    pts = jax.random.normal(dkey, (B, N, 3), jnp.float32)

    fwd = jax.jit(lambda pr, x: point_transformer_forward(pr, x, cfg))
    feature = fwd(prep, pts)
    feature = jax.block_until_ready(feature)
    assert feature.shape == (B, 2 * cfg.trans_dim), feature.shape
    assert bool(jnp.all(jnp.isfinite(feature)))
    print("KERNEL_OK")
</pallas_src>

<mosaic_0001>
module attributes {stable_mosaic.version = 11 : i64} {
  func.func @_fused_kernel(%arg0: i32, %arg1: memref<1x128x3xf32, #tpu.memory_space<vmem>>, %arg2: memref<1x8x3xf32, #tpu.memory_space<vmem>>, %arg3: memref<3x128xf32, #tpu.memory_space<vmem>>, %arg4: memref<1x128xf32, #tpu.memory_space<vmem>>, %arg5: memref<128x256xbf16, #tpu.memory_space<vmem>>, %arg6: memref<1x256xf32, #tpu.memory_space<vmem>>, %arg7: memref<256x512xbf16, #tpu.memory_space<vmem>>, %arg8: memref<256x512xbf16, #tpu.memory_space<vmem>>, %arg9: memref<1x512xf32, #tpu.memory_space<vmem>>, %arg10: memref<512x64xbf16, #tpu.memory_space<vmem>>, %arg11: memref<1x64xf32, #tpu.memory_space<vmem>>, %arg12: memref<64x32xbf16, #tpu.memory_space<vmem>>, %arg13: memref<1x32xf32, #tpu.memory_space<vmem>>, %arg14: memref<1x32xf32, #tpu.memory_space<vmem>>, %arg15: memref<1x32xf32, #tpu.memory_space<vmem>>, %arg16: memref<3x128xf32, #tpu.memory_space<vmem>>, %arg17: memref<1x128xf32, #tpu.memory_space<vmem>>, %arg18: memref<128x32xbf16, #tpu.memory_space<vmem>>, %arg19: memref<1x32xf32, #tpu.memory_space<vmem>>, %arg20: memref<1x32xf32, #tpu.memory_space<vmem>>, %arg21: memref<1x32xf32, #tpu.memory_space<vmem>>, %arg22: memref<2x32x16xbf16, #tpu.memory_space<vmem>>, %arg23: memref<2x32x16xbf16, #tpu.memory_space<vmem>>, %arg24: memref<2x32x16xbf16, #tpu.memory_space<vmem>>, %arg25: memref<2x16x32xbf16, #tpu.memory_space<vmem>>, %arg26: memref<1x32xf32, #tpu.memory_space<vmem>>, %arg27: memref<1x32xf32, #tpu.memory_space<vmem>>, %arg28: memref<1x32xf32, #tpu.memory_space<vmem>>, %arg29: memref<32x128xbf16, #tpu.memory_space<vmem>>, %arg30: memref<1x128xf32, #tpu.memory_space<vmem>>, %arg31: memref<128x32xbf16, #tpu.memory_space<vmem>>, %arg32: memref<1x32xf32, #tpu.memory_space<vmem>>, %arg33: memref<1x32xf32, #tpu.memory_space<vmem>>, %arg34: memref<1x32xf32, #tpu.memory_space<vmem>>, %arg35: memref<2x32x16xbf16, #tpu.memory_space<vmem>>, %arg36: memref<2x32x16xbf16, #tpu.memory_space<vmem>>, %arg37: memref<2x32x16xbf16, #tpu.memory_space<vmem>>, %arg38: memref<2x16x32xbf16, #tpu.memory_space<vmem>>, %arg39: memref<1x32xf32, #tpu.memory_space<vmem>>, %arg40: memref<1x32xf32, #tpu.memory_space<vmem>>, %arg41: memref<1x32xf32, #tpu.memory_space<vmem>>, %arg42: memref<32x128xbf16, #tpu.memory_space<vmem>>, %arg43: memref<1x128xf32, #tpu.memory_space<vmem>>, %arg44: memref<128x32xbf16, #tpu.memory_space<vmem>>, %arg45: memref<1x32xf32, #tpu.memory_space<vmem>>, %arg46: memref<1x32xf32, #tpu.memory_space<vmem>>, %arg47: memref<1x32xf32, #tpu.memory_space<vmem>>, %arg48: memref<1x1x64xf32, #tpu.memory_space<vmem>>, %arg49: memref<9x32xf32, #tpu.memory_space<vmem>>, %arg50: memref<9x32xf32, #tpu.memory_space<vmem>>) attributes {dimension_semantics = [#tpu.dimension_semantics<parallel>], iteration_bounds = array<i64: 2>, scalar_prefetch = 0 : i64, scratch_operands = 2 : i64, tpu.core_type = #tpu.core_type<tc>, window_params = [{transform_indices = @transform_0, window_bounds = array<i64: 1, 128, 3>}, {transform_indices = @transform_1, window_bounds = array<i64: 1, 8, 3>}, {pipeline_mode = #tpu.pipeline_mode<synchronous>, transform_indices = @transform_2, window_bounds = array<i64: 3, 128>}, {pipeline_mode = #tpu.pipeline_mode<synchronous>, transform_indices = @transform_3, window_bounds = array<i64: 1, 128>}, {pipeline_mode = #tpu.pipeline_mode<synchronous>, transform_indices = @transform_4, window_bounds = array<i64: 128, 256>}, {pipeline_mode = #tpu.pipeline_mode<synchronous>, transform_indices = @transform_5, window_bounds = array<i64: 1, 256>}, {pipeline_mode = #tpu.pipeline_mode<synchronous>, transform_indices = @transform_6, window_bounds = array<i64: 256, 512>}, {pipeline_mode = #tpu.pipeline_mode<synchronous>, transform_indices = @transform_7, window_bounds = array<i64: 256, 512>}, {pipeline_mode = #tpu.pipeline_mode<synchronous>, transform_indices = @transform_8, window_bounds = array<i64: 1, 512>}, {pipeline_mode = #tpu.pipeline_mode<synchronous>, transform_indices = @transform_9, window_bounds = array<i64: 512, 64>}, {pipeline_mode = #tpu.pipeline_mode<synchronous>, transform_indices = @transform_10, window_bounds = array<i64: 1, 64>}, {pipeline_mode = #tpu.pipeline_mode<synchronous>, transform_indices = @transform_11, window_bounds = array<i64: 64, 32>}, {pipeline_mode = #tpu.pipeline_mode<synchronous>, transform_indices = @transform_12, window_bounds = array<i64: 1, 32>}, {pipeline_mode = #tpu.pipeline_mode<synchronous>, transform_indices = @transform_13, window_bounds = array<i64: 1, 32>}, {pipeline_mode = #tpu.pipeline_mode<synchronous>, transform_indices = @transform_14, window_bounds = array<i64: 1, 32>}, {pipeline_mode = #tpu.pipeline_mode<synchronous>, transform_indices = @transform_15, window_bounds = array<i64: 3, 128>}, {pipeline_mode = #tpu.pipeline_mode<synchronous>, transform_indices = @transform_16, window_bounds = array<i64: 1, 128>}, {pipeline_mode = #tpu.pipeline_mode<synchronous>, transform_indices = @transform_17, window_bounds = array<i64: 128, 32>}, {pipeline_mode = #tpu.pipeline_mode<synchronous>, transform_indices = @transform_18, window_bounds = array<i64: 1, 32>}, {pipeline_mode = #tpu.pipeline_mode<synchronous>, transform_indices = @transform_19, window_bounds = array<i64: 1, 32>}, {pipeline_mode = #tpu.pipeline_mode<synchronous>, transform_indices = @transform_20, window_bounds = array<i64: 1, 32>}, {pipeline_mode = #tpu.pipeline_mode<synchronous>, transform_indices = @transform_21, window_bounds = array<i64: 2, 32, 16>}, {pipeline_mode = #tpu.pipeline_mode<synchronous>, transform_indices = @transform_22, window_bounds = array<i64: 2, 32, 16>}, {pipeline_mode = #tpu.pipeline_mode<synchronous>, transform_indices = @transform_23, window_bounds = array<i64: 2, 32, 16>}, {pipeline_mode = #tpu.pipeline_mode<synchronous>, transform_indices = @transform_24, window_bounds = array<i64: 2, 16, 32>}, {pipeline_mode = #tpu.pipeline_mode<synchronous>, transform_indices = @transform_25, window_bounds = array<i64: 1, 32>}, {pipeline_mode = #tpu.pipeline_mode<synchronous>, transform_indices = @transform_26, window_bounds = array<i64: 1, 32>}, {pipeline_mode = #tpu.pipeline_mode<synchronous>, transform_indices = @transform_27, window_bounds = array<i64: 1, 32>}, {pipeline_mode = #tpu.pipeline_mode<synchronous>, transform_indices = @transform_28, window_bounds = array<i64: 32, 128>}, {pipeline_mode = #tpu.pipeline_mode<synchronous>, transform_indices = @transform_29, window_bounds = array<i64: 1, 128>}, {pipeline_mode = #tpu.pipeline_mode<synchronous>, transform_indices = @transform_30, window_bounds = array<i64: 128, 32>}, {pipeline_mode = #tpu.pipeline_mode<synchronous>, transform_indices = @transform_31, window_bounds = array<i64: 1, 32>}, {pipeline_mode = #tpu.pipeline_mode<synchronous>, transform_indices = @transform_32, window_bounds = array<i64: 1, 32>}, {pipeline_mode = #tpu.pipeline_mode<synchronous>, transform_indices = @transform_33, window_bounds = array<i64: 1, 32>}, {pipeline_mode = #tpu.pipeline_mode<synchronous>, transform_indices = @transform_34, window_bounds = array<i64: 2, 32, 16>}, {pipeline_mode = #tpu.pipeline_mode<synchronous>, transform_indices = @transform_35, window_bounds = array<i64: 2, 32, 16>}, {pipeline_mode = #tpu.pipeline_mode<synchronous>, transform_indices = @transform_36, window_bounds = array<i64: 2, 32, 16>}, {pipeline_mode = #tpu.pipeline_mode<synchronous>, transform_indices = @transform_37, window_bounds = array<i64: 2, 16, 32>}, {pipeline_mode = #tpu.pipeline_mode<synchronous>, transform_indices = @transform_38, window_bounds = array<i64: 1, 32>}, {pipeline_mode = #tpu.pipeline_mode<synchronous>, transform_indices = @transform_39, window_bounds = array<i64: 1, 32>}, {pipeline_mode = #tpu.pipeline_mode<synchronous>, transform_indices = @transform_40, window_bounds = array<i64: 1, 32>}, {pipeline_mode = #tpu.pipeline_mode<synchronous>, transform_indices = @transform_41, window_bounds = array<i64: 32, 128>}, {pipeline_mode = #tpu.pipeline_mode<synchronous>, transform_indices = @transform_42, window_bounds = array<i64: 1, 128>}, {pipeline_mode = #tpu.pipeline_mode<synchronous>, transform_indices = @transform_43, window_bounds = array<i64: 128, 32>}, {pipeline_mode = #tpu.pipeline_mode<synchronous>, transform_indices = @transform_44, window_bounds = array<i64: 1, 32>}, {pipeline_mode = #tpu.pipeline_mode<synchronous>, transform_indices = @transform_45, window_bounds = array<i64: 1, 32>}, {pipeline_mode = #tpu.pipeline_mode<synchronous>, transform_indices = @transform_46, window_bounds = array<i64: 1, 32>}, {transform_indices = @transform_47, window_bounds = array<i64: 1, 1, 64>}]} {
    %c0 = arith.constant 0 : index
    %c0_0 = arith.constant 0 : index
    %c0_1 = arith.constant 0 : index
    %0 = vector.load %arg1[%c0, %c0_0, %c0_1] : memref<1x128x3xf32, #tpu.memory_space<vmem>>, vector<1x128x3xf32>
    %1 = vector.shape_cast %0 : vector<1x128x3xf32> to vector<128x3xf32>
    %c0_2 = arith.constant 0 : index
    %c0_3 = arith.constant 0 : index
    %2 = vector.load %arg3[%c0_2, %c0_3] : memref<3x128xf32, #tpu.memory_space<vmem>>, vector<3x128xf32>
    %cst = arith.constant dense<0.000000e+00> : vector<128x128xf32>
    %3 = tpu.matmul %1, %2, %cst {dimension_numbers = #tpu.dot_dimension_numbers<[1], [0], [0], [1], [0, 0, 1, 1], [], []>} : vector<128x3xf32>, vector<3x128xf32>, vector<128x128xf32> -> vector<128x128xf32>
    %c0_4 = arith.constant 0 : index
    %c0_5 = arith.constant 0 : index
    %4 = vector.load %arg4[%c0_4, %c0_5] : memref<1x128xf32, #tpu.memory_space<vmem>>, vector<1x128xf32>
    %5 = vector.broadcast %4 : vector<1x128xf32> to vector<128x128xf32>
    %6 = arith.addf %3, %5 : vector<128x128xf32>
    %cst_6 = arith.constant 0.000000e+00 : f32
    %7 = vector.broadcast %cst_6 : f32 to vector<128x128xf32>
    %8 = arith.maximumf %6, %7 : vector<128x128xf32>
    %9 = arith.truncf %8 : vector<128x128xf32> to vector<128x128xbf16>
    %c0_7 = arith.constant 0 : index
    %c0_8 = arith.constant 0 : index
    %10 = vector.load %arg5[%c0_7, %c0_8] : memref<128x256xbf16, #tpu.memory_space<vmem>>, vector<128x256xbf16>
    %cst_9 = arith.constant dense<0.000000e+00> : vector<128x256xf32>
    %11 = tpu.matmul %9, %10, %cst_9 {dimension_numbers = #tpu.dot_dimension_numbers<[1], [0], [0], [1], [0, 0, 1, 1], [], []>} : vector<128x128xbf16>, vector<128x256xbf16>, vector<128x256xf32> -> vector<128x256xf32>
    %c0_10 = arith.constant 0 : index
    %c0_11 = arith.constant 0 : index
    %12 = vector.load %arg6[%c0_10, %c0_11] : memref<1x256xf32, #tpu.memory_space<vmem>>, vector<1x256xf32>
    %13 = vector.broadcast %12 : vector<1x256xf32> to vector<128x256xf32>
    %14 = arith.addf %11, %13 : vector<128x256xf32>
    %15 = vector.shape_cast %14 : vector<128x256xf32> to vector<8x16x256xf32>
    %cst_12 = arith.constant dense<0xFF800000> : vector<8x256xf32>
    %16 = vector.multi_reduction <maximumf>, %15, %cst_12 [1] : vector<8x16x256xf32> to vector<8x256xf32>
    %17 = arith.truncf %14 : vector<128x256xf32> to vector<128x256xbf16>
    %c0_13 = arith.constant 0 : index
    %c0_14 = arith.constant 0 : index
    %18 = vector.load %arg8[%c0_13, %c0_14] : memref<256x512xbf16, #tpu.memory_space<vmem>>, vector<256x512xbf16>
    %cst_15 = arith.constant dense<0.000000e+00> : vector<128x512xf32>
    %19 = tpu.matmul %17, %18, %cst_15 {dimension_numbers = #tpu.dot_dimension_numbers<[1], [0], [0], [1], [0, 0, 1, 1], [], []>} : vector<128x256xbf16>, vector<256x512xbf16>, vector<128x512xf32> -> vector<128x512xf32>
    %20 = arith.truncf %16 : vector<8x256xf32> to vector<8x256xbf16>
    %c0_16 = arith.constant 0 : index
    %c0_17 = arith.constant 0 : index
    %21 = vector.load %arg7[%c0_16, %c0_17] : memref<256x512xbf16, #tpu.memory_space<vmem>>, vector<256x512xbf16>
    %cst_18 = arith.constant dense<0.000000e+00> : vector<8x512xf32>
    %22 = tpu.matmul %20, %21, %cst_18 {dimension_numbers = #tpu.dot_dimension_numbers<[1], [0], [0], [1], [0, 0, 1, 1], [], []>} : vector<8x256xbf16>, vector<256x512xbf16>, vector<8x512xf32> -> vector<8x512xf32>
    %c0_19 = arith.constant 0 : index
    %c0_20 = arith.constant 0 : index
    %23 = vector.load %arg9[%c0_19, %c0_20] : memref<1x512xf32, #tpu.memory_space<vmem>>, vector<1x512xf32>
    %24 = vector.broadcast %23 : vector<1x512xf32> to vector<8x512xf32>
    %25 = arith.addf %22, %24 : vector<8x512xf32>
    %26 = vector.shape_cast %19 : vector<128x512xf32> to vector<8x16x512xf32>
    %27 = vector.shape_cast %25 : vector<8x512xf32> to vector<8x1x512xf32>
    %28 = vector.broadcast %27 : vector<8x1x512xf32> to vector<8x16x512xf32>
    %29 = arith.addf %26, %28 : vector<8x16x512xf32>
    %cst_21 = arith.constant 0.000000e+00 : f32
    %30 = vector.broadcast %cst_21 : f32 to vector<8x16x512xf32>
    %31 = arith.maximumf %29, %30 : vector<8x16x512xf32>
    %32 = vector.shape_cast %31 : vector<8x16x512xf32> to vector<128x512xf32>
    %33 = arith.truncf %32 : vector<128x512xf32> to vector<128x512xbf16>
    %c0_22 = arith.constant 0 : index
    %c0_23 = arith.constant 0 : index
    %34 = vector.load %arg10[%c0_22, %c0_23] : memref<512x64xbf16, #tpu.memory_space<vmem>>, vector<512x64xbf16>
    %cst_24 = arith.constant dense<0.000000e+00> : vector<128x64xf32>
    %35 = tpu.matmul %33, %34, %cst_24 {dimension_numbers = #tpu.dot_dimension_numbers<[1], [0], [0], [1], [0, 0, 1, 1], [], []>} : vector<128x512xbf16>, vector<512x64xbf16>, vector<128x64xf32> -> vector<128x64xf32>
    %c0_25 = arith.constant 0 : index
    %c0_26 = arith.constant 0 : index
    %36 = vector.load %arg11[%c0_25, %c0_26] : memref<1x64xf32, #tpu.memory_space<vmem>>, vector<1x64xf32>
    %37 = vector.broadcast %36 : vector<1x64xf32> to vector<128x64xf32>
    %38 = arith.addf %35, %37 : vector<128x64xf32>
    %39 = vector.shape_cast %38 : vector<128x64xf32> to vector<8x16x64xf32>
    %cst_27 = arith.constant dense<0xFF800000> : vector<8x64xf32>
    %40 = vector.multi_reduction <maximumf>, %39, %cst_27 [1] : vector<8x16x64xf32> to vector<8x64xf32>
    %41 = arith.truncf %40 : vector<8x64xf32> to vector<8x64xbf16>
    %c0_28 = arith.constant 0 : index
    %c0_29 = arith.constant 0 : index
    %42 = vector.load %arg12[%c0_28, %c0_29] : memref<64x32xbf16, #tpu.memory_space<vmem>>, vector<64x32xbf16>
    %cst_30 = arith.constant dense<0.000000e+00> : vector<8x32xf32>
    %43 = tpu.matmul %41, %42, %cst_30 {dimension_numbers = #tpu.dot_dimension_numbers<[1], [0], [0], [1], [0, 0, 1, 1], [], []>} : vector<8x64xbf16>, vector<64x32xbf16>, vector<8x32xf32> -> vector<8x32xf32>
    %c0_31 = arith.constant 0 : index
    %c0_32 = arith.constant 0 : index
    %44 = vector.load %arg13[%c0_31, %c0_32] : memref<1x32xf32, #tpu.memory_space<vmem>>, vector<1x32xf32>
    %45 = vector.broadcast %44 : vector<1x32xf32> to vector<8x32xf32>
    %46 = arith.addf %43, %45 : vector<8x32xf32>
    %c0_33 = arith.constant 0 : index
    %c0_34 = arith.constant 0 : index
    %c0_35 = arith.constant 0 : index
    %47 = vector.load %arg2[%c0_33, %c0_34, %c0_35] : memref<1x8x3xf32, #tpu.memory_space<vmem>>, vector<1x8x3xf32>
    %48 = vector.shape_cast %47 : vector<1x8x3xf32> to vector<8x3xf32>
    %c0_36 = arith.constant 0 : index
    %c0_37 = arith.constant 0 : index
    %49 = vector.load %arg16[%c0_36, %c0_37] : memref<3x128xf32, #tpu.memory_space<vmem>>, vector<3x128xf32>
    %cst_38 = arith.constant dense<0.000000e+00> : vector<8x128xf32>
    %50 = tpu.matmul %48, %49, %cst_38 {dimension_numbers = #tpu.dot_dimension_numbers<[1], [0], [0], [1], [0, 0, 1, 1], [], []>} : vector<8x3xf32>, vector<3x128xf32>, vector<8x128xf32> -> vector<8x128xf32>
    %c0_39 = arith.constant 0 : index
    %c0_40 = arith.constant 0 : index
    %51 = vector.load %arg17[%c0_39, %c0_40] : memref<1x128xf32, #tpu.memory_space<vmem>>, vector<1x128xf32>
    %52 = vector.broadcast %51 : vector<1x128xf32> to vector<8x128xf32>
    %53 = arith.addf %50, %52 : vector<8x128xf32>
    %cst_41 = arith.constant 5.000000e-01 : f32
    %54 = vector.broadcast %cst_41 : f32 to vector<8x128xf32>
    %55 = arith.mulf %54, %53 : vector<8x128xf32>
    %cst_42 = arith.constant 4.471500e-02 : f32
    %56 = vector.broadcast %cst_42 : f32 to vector<8x128xf32>
    %57 = arith.mulf %56, %53 : vector<8x128xf32>
    %58 = arith.mulf %57, %53 : vector<8x128xf32>
    %59 = arith.mulf %58, %53 : vector<8x128xf32>
    %60 = arith.addf %53, %59 : vector<8x128xf32>
    %cst_43 = arith.constant 0.797884583 : f32
    %61 = vector.broadcast %cst_43 : f32 to vector<8x128xf32>
    %62 = arith.mulf %61, %60 : vector<8x128xf32>
    %63 = math.tanh %62 : vector<8x128xf32>
    %cst_44 = arith.constant 1.000000e+00 : f32
    %64 = vector.broadcast %cst_44 : f32 to vector<8x128xf32>
    %65 = arith.addf %64, %63 : vector<8x128xf32>
    %66 = arith.mulf %55, %65 : vector<8x128xf32>
    %67 = arith.truncf %66 : vector<8x128xf32> to vector<8x128xbf16>
    %c0_45 = arith.constant 0 : index
    %c0_46 = arith.constant 0 : index
    %68 = vector.load %arg18[%c0_45, %c0_46] : memref<128x32xbf16, #tpu.memory_space<vmem>>, vector<128x32xbf16>
    %cst_47 = arith.constant dense<0.000000e+00> : vector<8x32xf32>
    %69 = tpu.matmul %67, %68, %cst_47 {dimension_numbers = #tpu.dot_dimension_numbers<[1], [0], [0], [1], [0, 0, 1, 1], [], []>} : vector<8x128xbf16>, vector<128x32xbf16>, vector<8x32xf32> -> vector<8x32xf32>
    %c0_48 = arith.constant 0 : index
    %c0_49 = arith.constant 0 : index
    %70 = vector.load %arg19[%c0_48, %c0_49] : memref<1x32xf32, #tpu.memory_space<vmem>>, vector<1x32xf32>
    %71 = vector.broadcast %70 : vector<1x32xf32> to vector<8x32xf32>
    %72 = arith.addf %69, %71 : vector<8x32xf32>
    %c0_50 = arith.constant 0 : index
    %c0_51 = arith.constant 0 : index
    %73 = vector.load %arg14[%c0_50, %c0_51] : memref<1x32xf32, #tpu.memory_space<vmem>>, vector<1x32xf32>
    %c0_52 = arith.constant 0 : index
    %c0_53 = arith.constant 0 : index
    %74 = vector.load %arg49[%c0_52, %c0_53] : memref<9x32xf32, #tpu.memory_space<vmem>>, vector<1x32xf32>
    tpu.vector_store %arg49[%c0_52, %c0_53], %73 {strides = array<i32>} : memref<9x32xf32, #tpu.memory_space<vmem>>, vector<1x32xf32>,
    %c1 = arith.constant 1 : index
    %c0_54 = arith.constant 0 : index
    %75 = vector.load %arg49[%c1, %c0_54] : memref<9x32xf32, #tpu.memory_space<vmem>>, vector<8x32xf32>
    tpu.vector_store %arg49[%c1, %c0_54], %46 {strides = array<i32>} : memref<9x32xf32, #tpu.memory_space<vmem>>, vector<8x32xf32>,
    %c0_55 = arith.constant 0 : index
    %c0_56 = arith.constant 0 : index
    %76 = vector.load %arg15[%c0_55, %c0_56] : memref<1x32xf32, #tpu.memory_space<vmem>>, vector<1x32xf32>
    %c0_57 = arith.constant 0 : index
    %c0_58 = arith.constant 0 : index
    %77 = vector.load %arg50[%c0_57, %c0_58] : memref<9x32xf32, #tpu.memory_space<vmem>>, vector<1x32xf32>
    tpu.vector_store %arg50[%c0_57, %c0_58], %76 {strides = array<i32>} : memref<9x32xf32, #tpu.memory_space<vmem>>, vector<1x32xf32>,
    %c1_59 = arith.constant 1 : index
    %c0_60 = arith.constant 0 : index
    %78 = vector.load %arg50[%c1_59, %c0_60] : memref<9x32xf32, #tpu.memory_space<vmem>>, vector<8x32xf32>
    tpu.vector_store %arg50[%c1_59, %c0_60], %72 {strides = array<i32>} : memref<9x32xf32, #tpu.memory_space<vmem>>, vector<8x32xf32>,
    %c0_61 = arith.constant 0 : index
    %c0_62 = arith.constant 0 : index
    %79 = vector.load %arg49[%c0_61, %c0_62] : memref<9x32xf32, #tpu.memory_space<vmem>>, vector<9x32xf32>
    %c0_63 = arith.constant 0 : index
    %c0_64 = arith.constant 0 : index
    %80 = vector.load %arg50[%c0_63, %c0_64] : memref<9x32xf32, #tpu.memory_space<vmem>>, vector<9x32xf32>
    %81 = arith.addf %79, %80 : vector<9x32xf32>
    %c0_65 = arith.constant 0 : index
    %c0_66 = arith.constant 0 : index
    %82 = vector.load %arg20[%c0_65, %c0_66] : memref<1x32xf32, #tpu.memory_space<vmem>>, vector<1x32xf32>
    %c0_67 = arith.constant 0 : index
    %c0_68 = arith.constant 0 : index
    %83 = vector.load %arg21[%c0_67, %c0_68] : memref<1x32xf32, #tpu.memory_space<vmem>>, vector<1x32xf32>
    %cst_69 = arith.constant dense<0.000000e+00> : vector<9xf32>
    %84 = vector.multi_reduction <add>, %81, %cst_69 [1] : vector<9x32xf32> to vector<9xf32>
    %85 = vector.shape_cast %84 : vector<9xf32> to vector<9x1xf32>
    %cst_70 = arith.constant 3.200000e+01 : f32
    %86 = vector.broadcast %cst_70 : f32 to vector<9x1xf32>
    %87 = arith.divf %85, %86 : vector<9x1xf32>
    %88 = vector.broadcast %87 : vector<9x1xf32> to vector<9x32xf32>
    %89 = arith.subf %81, %88 : vector<9x32xf32>
    %90 = arith.mulf %89, %89 : vector<9x32xf32>
    %cst_71 = arith.constant dense<0.000000e+00> : vector<9xf32>
    %91 = vector.multi_reduction <add>, %90, %cst_71 [1] : vector<9x32xf32> to vector<9xf32>
    %92 = vector.shape_cast %91 : vector<9xf32> to vector<9x1xf32>
    %cst_72 = arith.constant 3.200000e+01 : f32
    %93 = vector.broadcast %cst_72 : f32 to vector<9x1xf32>
    %94 = arith.divf %92, %93 : vector<9x1xf32>
    %95 = vector.broadcast %87 : vector<9x1xf32> to vector<9x32xf32>
    %96 = arith.subf %81, %95 : vector<9x32xf32>
    %cst_73 = arith.constant 9.99999974E-6 : f32
    %97 = vector.broadcast %cst_73 : f32 to vector<9x1xf32>
    %98 = arith.addf %94, %97 : vector<9x1xf32>
    %99 = math.rsqrt %98 : vector<9x1xf32>
    %100 = vector.broadcast %99 : vector<9x1xf32> to vector<9x32xf32>
    %101 = arith.mulf %96, %100 : vector<9x32xf32>
    %102 = vector.broadcast %82 : vector<1x32xf32> to vector<9x32xf32>
    %103 = arith.mulf %101, %102 : vector<9x32xf32>
    %104 = vector.broadcast %83 : vector<1x32xf32> to vector<9x32xf32>
    %105 = arith.addf %103, %104 : vector<9x32xf32>
    %106 = arith.truncf %105 : vector<9x32xf32> to vector<9x32xbf16>
    %107 = vector.shape_cast %106 : vector<9x32xbf16> to vector<1x9x32xbf16>
    %108 = vector.shape_cast %107 : vector<1x9x32xbf16> to vector<1x9x32xbf16>
    %109 = vector.broadcast %108 : vector<1x9x32xbf16> to vector<2x9x32xbf16>
    %c0_74 = arith.constant 0 : index
    %c0_75 = arith.constant 0 : index
    %c0_76 = arith.constant 0 : index
    %110 = vector.load %arg22[%c0_74, %c0_75, %c0_76] : memref<2x32x16xbf16, #tpu.memory_space<vmem>>, vector<2x32x16xbf16>
    %cst_77 = arith.constant dense<0.000000e+00> : vector<2x9x16xf32>
    %111 = tpu.matmul %109, %110, %cst_77 {dimension_numbers = #tpu.dot_dimension_numbers<[2], [1], [1], [2], [0, 0, 0, 1, 1, 2], [0], [0]>} : vector<2x9x32xbf16>, vector<2x32x16xbf16>, vector<2x9x16xf32> -> vector<2x9x16xf32>
    %c0_78 = arith.constant 0 : index
    %c0_79 = arith.constant 0 : index
    %c0_80 = arith.constant 0 : index
    %112 = vector.load %arg23[%c0_78, %c0_79, %c0_80] : memref<2x32x16xbf16, #tpu.memory_space<vmem>>, vector<2x32x16xbf16>
    %cst_81 = arith.constant dense<0.000000e+00> : vector<2x9x16xf32>
    %113 = tpu.matmul %109, %112, %cst_81 {dimension_numbers = #tpu.dot_dimension_numbers<[2], [1], [1], [2], [0, 0, 0, 1, 1, 2], [0], [0]>} : vector<2x9x32xbf16>, vector<2x32x16xbf16>, vector<2x9x16xf32> -> vector<2x9x16xf32>
    %c0_82 = arith.constant 0 : index
    %c0_83 = arith.constant 0 : index
    %c0_84 = arith.constant 0 : index
    %114 = vector.load %arg24[%c0_82, %c0_83, %c0_84] : memref<2x32x16xbf16, #tpu.memory_space<vmem>>, vector<2x32x16xbf16>
    %cst_85 = arith.constant dense<0.000000e+00> : vector<2x9x16xf32>
    %115 = tpu.matmul %109, %114, %cst_85 {dimension_numbers = #tpu.dot_dimension_numbers<[2], [1], [1], [2], [0, 0, 0, 1, 1, 2], [0], [0]>} : vector<2x9x32xbf16>, vector<2x32x16xbf16>, vector<2x9x16xf32> -> vector<2x9x16xf32>
    %cst_86 = arith.constant dense<0.000000e+00> : vector<2x9x9xf32>
    %116 = tpu.matmul %111, %113, %cst_86 {dimension_numbers = #tpu.dot_dimension_numbers<[2], [2], [1], [1], [0, 0, 0, 1, 1, 1], [0], [0]>} : vector<2x9x16xf32>, vector<2x9x16xf32>, vector<2x9x9xf32> -> vector<2x9x9xf32>
    %cst_87 = arith.constant 2.500000e-01 : f32
    %117 = vector.broadcast %cst_87 : f32 to vector<2x9x9xf32>
    %118 = arith.mulf %116, %117 : vector<2x9x9xf32>
    %cst_88 = arith.constant dense<0xFF800000> : vector<2x9xf32>
    %119 = vector.multi_reduction <maximumf>, %118, %cst_88 [2] : vector<2x9x9xf32> to vector<2x9xf32>
    %120 = vector.shape_cast %119 : vector<2x9xf32> to vector<2x9x1xf32>
    %121 = vector.broadcast %120 : vector<2x9x1xf32> to vector<2x9x9xf32>
    %122 = arith.subf %118, %121 : vector<2x9x9xf32>
    %123 = math.exp %122 : vector<2x9x9xf32>
    %cst_89 = arith.constant dense<0.000000e+00> : vector<2x9xf32>
    %124 = vector.multi_reduction <add>, %123, %cst_89 [2] : vector<2x9x9xf32> to vector<2x9xf32>
    %125 = vector.shape_cast %124 : vector<2x9xf32> to vector<2x9x1xf32>
    %126 = tpu.reciprocal %125 {approx = true} : vector<2x9x1xf32> -> vector<2x9x1xf32>
    %127 = vector.broadcast %126 : vector<2x9x1xf32> to vector<2x9x9xf32>
    %128 = arith.mulf %123, %127 : vector<2x9x9xf32>
    %cst_90 = arith.constant dense<0.000000e+00> : vector<2x9x16xf32>
    %129 = tpu.matmul %128, %115, %cst_90 {dimension_numbers = #tpu.dot_dimension_numbers<[2], [1], [1], [2], [0, 0, 0, 1, 1, 2], [0], [0]>} : vector<2x9x9xf32>, vector<2x9x16xf32>, vector<2x9x16xf32> -> vector<2x9x16xf32>
    %130 = arith.truncf %129 : vector<2x9x16xf32> to vector<2x9x16xbf16>
    %c0_91 = arith.constant 0 : index
    %c0_92 = arith.constant 0 : index
    %c0_93 = arith.constant 0 : index
    %131 = vector.load %arg25[%c0_91, %c0_92, %c0_93] : memref<2x16x32xbf16, #tpu.memory_space<vmem>>, vector<2x16x32xbf16>
    %cst_94 = arith.constant dense<0.000000e+00> : vector<2x9x32xf32>
    %132 = tpu.matmul %130, %131, %cst_94 {dimension_numbers = #tpu.dot_dimension_numbers<[2], [1], [1], [2], [0, 0, 0, 1, 1, 2], [0], [0]>} : vector<2x9x16xbf16>, vector<2x16x32xbf16>, vector<2x9x32xf32> -> vector<2x9x32xf32>
    %cst_95 = arith.constant dense<0.000000e+00> : vector<9x32xf32>
    %133 = vector.multi_reduction <add>, %132, %cst_95 [0] : vector<2x9x32xf32> to vector<9x32xf32>
    %134 = arith.addf %81, %133 : vector<9x32xf32>
    %c0_96 = arith.constant 0 : index
    %c0_97 = arith.constant 0 : index
    %135 = vector.load %arg26[%c0_96, %c0_97] : memref<1x32xf32, #tpu.memory_space<vmem>>, vector<1x32xf32>
    %136 = vector.broadcast %135 : vector<1x32xf32> to vector<9x32xf32>
    %137 = arith.addf %134, %136 : vector<9x32xf32>
    %c0_98 = arith.constant 0 : index
    %c0_99 = arith.constant 0 : index
    %138 = vector.load %arg27[%c0_98, %c0_99] : memref<1x32xf32, #tpu.memory_space<vmem>>, vector<1x32xf32>
    %c0_100 = arith.constant 0 : index
    %c0_101 = arith.constant 0 : index
    %139 = vector.load %arg28[%c0_100, %c0_101] : memref<1x32xf32, #tpu.memory_space<vmem>>, vector<1x32xf32>
    %cst_102 = arith.constant dense<0.000000e+00> : vector<9xf32>
    %140 = vector.multi_reduction <add>, %137, %cst_102 [1] : vector<9x32xf32> to vector<9xf32>
    %141 = vector.shape_cast %140 : vector<9xf32> to vector<9x1xf32>
    %cst_103 = arith.constant 3.200000e+01 : f32
    %142 = vector.broadcast %cst_103 : f32 to vector<9x1xf32>
    %143 = arith.divf %141, %142 : vector<9x1xf32>
    %144 = vector.broadcast %143 : vector<9x1xf32> to vector<9x32xf32>
    %145 = arith.subf %137, %144 : vector<9x32xf32>
    %146 = arith.mulf %145, %145 : vector<9x32xf32>
    %cst_104 = arith.constant dense<0.000000e+00> : vector<9xf32>
    %147 = vector.multi_reduction <add>, %146, %cst_104 [1] : vector<9x32xf32> to vector<9xf32>
    %148 = vector.shape_cast %147 : vector<9xf32> to vector<9x1xf32>
    %cst_105 = arith.constant 3.200000e+01 : f32
    %149 = vector.broadcast %cst_105 : f32 to vector<9x1xf32>
    %150 = arith.divf %148, %149 : vector<9x1xf32>
    %151 = vector.broadcast %143 : vector<9x1xf32> to vector<9x32xf32>
    %152 = arith.subf %137, %151 : vector<9x32xf32>
    %cst_106 = arith.constant 9.99999974E-6 : f32
    %153 = vector.broadcast %cst_106 : f32 to vector<9x1xf32>
    %154 = arith.addf %150, %153 : vector<9x1xf32>
    %155 = math.rsqrt %154 : vector<9x1xf32>
    %156 = vector.broadcast %155 : vector<9x1xf32> to vector<9x32xf32>
    %157 = arith.mulf %152, %156 : vector<9x32xf32>
    %158 = vector.broadcast %138 : vector<1x32xf32> to vector<9x32xf32>
    %159 = arith.mulf %157, %158 : vector<9x32xf32>
    %160 = vector.broadcast %139 : vector<1x32xf32> to vector<9x32xf32>
    %161 = arith.addf %159, %160 : vector<9x32xf32>
    %162 = arith.truncf %161 : vector<9x32xf32> to vector<9x32xbf16>
    %c0_107 = arith.constant 0 : index
    %c0_108 = arith.constant 0 : index
    %163 = vector.load %arg29[%c0_107, %c0_108] : memref<32x128xbf16, #tpu.memory_space<vmem>>, vector<32x128xbf16>
    %cst_109 = arith.constant dense<0.000000e+00> : vector<9x128xf32>
    %164 = tpu.matmul %162, %163, %cst_109 {dimension_numbers = #tpu.dot_dimension_numbers<[1], [0], [0], [1], [0, 0, 1, 1], [], []>} : vector<9x32xbf16>, vector<32x128xbf16>, vector<9x128xf32> -> vector<9x128xf32>
    %c0_110 = arith.constant 0 : index
    %c0_111 = arith.constant 0 : index
    %165 = vector.load %arg30[%c0_110, %c0_111] : memref<1x128xf32, #tpu.memory_space<vmem>>, vector<1x128xf32>
    %166 = vector.broadcast %165 : vector<1x128xf32> to vector<9x128xf32>
    %167 = arith.addf %164, %166 : vector<9x128xf32>
    %cst_112 = arith.constant 5.000000e-01 : f32
    %168 = vector.broadcast %cst_112 : f32 to vector<9x128xf32>
    %169 = arith.mulf %168, %167 : vector<9x128xf32>
    %cst_113 = arith.constant 4.471500e-02 : f32
    %170 = vector.broadcast %cst_113 : f32 to vector<9x128xf32>
    %171 = arith.mulf %170, %167 : vector<9x128xf32>
    %172 = arith.mulf %171, %167 : vector<9x128xf32>
    %173 = arith.mulf %172, %167 : vector<9x128xf32>
    %174 = arith.addf %167, %173 : vector<9x128xf32>
    %cst_114 = arith.constant 0.797884583 : f32
    %175 = vector.broadcast %cst_114 : f32 to vector<9x128xf32>
    %176 = arith.mulf %175, %174 : vector<9x128xf32>
    %177 = math.tanh %176 : vector<9x128xf32>
    %cst_115 = arith.constant 1.000000e+00 : f32
    %178 = vector.broadcast %cst_115 : f32 to vector<9x128xf32>
    %179 = arith.addf %178, %177 : vector<9x128xf32>
    %180 = arith.mulf %169, %179 : vector<9x128xf32>
    %181 = arith.truncf %180 : vector<9x128xf32> to vector<9x128xbf16>
    %c0_116 = arith.constant 0 : index
    %c0_117 = arith.constant 0 : index
    %182 = vector.load %arg31[%c0_116, %c0_117] : memref<128x32xbf16, #tpu.memory_space<vmem>>, vector<128x32xbf16>
    %cst_118 = arith.constant dense<0.000000e+00> : vector<9x32xf32>
    %183 = tpu.matmul %181, %182, %cst_118 {dimension_numbers = #tpu.dot_dimension_numbers<[1], [0], [0], [1], [0, 0, 1, 1], [], []>} : vector<9x128xbf16>, vector<128x32xbf16>, vector<9x32xf32> -> vector<9x32xf32>
    %c0_119 = arith.constant 0 : index
    %c0_120 = arith.constant 0 : index
    %184 = vector.load %arg32[%c0_119, %c0_120] : memref<1x32xf32, #tpu.memory_space<vmem>>, vector<1x32xf32>
    %185 = vector.broadcast %184 : vector<1x32xf32> to vector<9x32xf32>
    %186 = arith.addf %183, %185 : vector<9x32xf32>
    %187 = arith.addf %137, %186 : vector<9x32xf32>
    %188 = arith.addf %187, %80 : vector<9x32xf32>
    %c0_121 = arith.constant 0 : index
    %c0_122 = arith.constant 0 : index
    %189 = vector.load %arg33[%c0_121, %c0_122] : memref<1x32xf32, #tpu.memory_space<vmem>>, vector<1x32xf32>
    %c0_123 = arith.constant 0 : index
    %c0_124 = arith.constant 0 : index
    %190 = vector.load %arg34[%c0_123, %c0_124] : memref<1x32xf32, #tpu.memory_space<vmem>>, vector<1x32xf32>
    %cst_125 = arith.constant dense<0.000000e+00> : vector<9xf32>
    %191 = vector.multi_reduction <add>, %188, %cst_125 [1] : vector<9x32xf32> to vector<9xf32>
    %192 = vector.shape_cast %191 : vector<9xf32> to vector<9x1xf32>
    %cst_126 = arith.constant 3.200000e+01 : f32
    %193 = vector.broadcast %cst_126 : f32 to vector<9x1xf32>
    %194 = arith.divf %192, %193 : vector<9x1xf32>
    %195 = vector.broadcast %194 : vector<9x1xf32> to vector<9x32xf32>
    %196 = arith.subf %188, %195 : vector<9x32xf32>
    %197 = arith.mulf %196, %196 : vector<9x32xf32>
    %cst_127 = arith.constant dense<0.000000e+00> : vector<9xf32>
    %198 = vector.multi_reduction <add>, %197, %cst_127 [1] : vector<9x32xf32> to vector<9xf32>
    %199 = vector.shape_cast %198 : vector<9xf32> to vector<9x1xf32>
    %cst_128 = arith.constant 3.200000e+01 : f32
    %200 = vector.broadcast %cst_128 : f32 to vector<9x1xf32>
    %201 = arith.divf %199, %200 : vector<9x1xf32>
    %202 = vector.broadcast %194 : vector<9x1xf32> to vector<9x32xf32>
    %203 = arith.subf %188, %202 : vector<9x32xf32>
    %cst_129 = arith.constant 9.99999974E-6 : f32
    %204 = vector.broadcast %cst_129 : f32 to vector<9x1xf32>
    %205 = arith.addf %201, %204 : vector<9x1xf32>
    %206 = math.rsqrt %205 : vector<9x1xf32>
    %207 = vector.broadcast %206 : vector<9x1xf32> to vector<9x32xf32>
    %208 = arith.mulf %203, %207 : vector<9x32xf32>
    %209 = vector.broadcast %189 : vector<1x32xf32> to vector<9x32xf32>
    %210 = arith.mulf %208, %209 : vector<9x32xf32>
    %211 = vector.broadcast %190 : vector<1x32xf32> to vector<9x32xf32>
    %212 = arith.addf %210, %211 : vector<9x32xf32>
    %213 = arith.truncf %212 : vector<9x32xf32> to vector<9x32xbf16>
    %214 = vector.shape_cast %213 : vector<9x32xbf16> to vector<1x9x32xbf16>
    %215 = vector.shape_cast %214 : vector<1x9x32xbf16> to vector<1x9x32xbf16>
    %216 = vector.broadcast %215 : vector<1x9x32xbf16> to vector<2x9x32xbf16>
    %c0_130 = arith.constant 0 : index
    %c0_131 = arith.constant 0 : index
    %c0_132 = arith.constant 0 : index
    %217 = vector.load %arg35[%c0_130, %c0_131, %c0_132] : memref<2x32x16xbf16, #tpu.memory_space<vmem>>, vector<2x32x16xbf16>
    %cst_133 = arith.constant dense<0.000000e+00> : vector<2x9x16xf32>
    %218 = tpu.matmul %216, %217, %cst_133 {dimension_numbers = #tpu.dot_dimension_numbers<[2], [1], [1], [2], [0, 0, 0, 1, 1, 2], [0], [0]>} : vector<2x9x32xbf16>, vector<2x32x16xbf16>, vector<2x9x16xf32> -> vector<2x9x16xf32>
    %c0_134 = arith.constant 0 : index
    %c0_135 = arith.constant 0 : index
    %c0_136 = arith.constant 0 : index
    %219 = vector.load %arg36[%c0_134, %c0_135, %c0_136] : memref<2x32x16xbf16, #tpu.memory_space<vmem>>, vector<2x32x16xbf16>
    %cst_137 = arith.constant dense<0.000000e+00> : vector<2x9x16xf32>
    %220 = tpu.matmul %216, %219, %cst_137 {dimension_numbers = #tpu.dot_dimension_numbers<[2], [1], [1], [2], [0, 0, 0, 1, 1, 2], [0], [0]>} : vector<2x9x32xbf16>, vector<2x32x16xbf16>, vector<2x9x16xf32> -> vector<2x9x16xf32>
    %c0_138 = arith.constant 0 : index
    %c0_139 = arith.constant 0 : index
    %c0_140 = arith.constant 0 : index
    %221 = vector.load %arg37[%c0_138, %c0_139, %c0_140] : memref<2x32x16xbf16, #tpu.memory_space<vmem>>, vector<2x32x16xbf16>
    %cst_141 = arith.constant dense<0.000000e+00> : vector<2x9x16xf32>
    %222 = tpu.matmul %216, %221, %cst_141 {dimension_numbers = #tpu.dot_dimension_numbers<[2], [1], [1], [2], [0, 0, 0, 1, 1, 2], [0], [0]>} : vector<2x9x32xbf16>, vector<2x32x16xbf16>, vector<2x9x16xf32> -> vector<2x9x16xf32>
    %cst_142 = arith.constant dense<0.000000e+00> : vector<2x9x9xf32>
    %223 = tpu.matmul %218, %220, %cst_142 {dimension_numbers = #tpu.dot_dimension_numbers<[2], [2], [1], [1], [0, 0, 0, 1, 1, 1], [0], [0]>} : vector<2x9x16xf32>, vector<2x9x16xf32>, vector<2x9x9xf32> -> vector<2x9x9xf32>
    %cst_143 = arith.constant 2.500000e-01 : f32
    %224 = vector.broadcast %cst_143 : f32 to vector<2x9x9xf32>
    %225 = arith.mulf %223, %224 : vector<2x9x9xf32>
    %cst_144 = arith.constant dense<0xFF800000> : vector<2x9xf32>
    %226 = vector.multi_reduction <maximumf>, %225, %cst_144 [2] : vector<2x9x9xf32> to vector<2x9xf32>
    %227 = vector.shape_cast %226 : vector<2x9xf32> to vector<2x9x1xf32>
    %228 = vector.broadcast %227 : vector<2x9x1xf32> to vector<2x9x9xf32>
    %229 = arith.subf %225, %228 : vector<2x9x9xf32>
    %230 = math.exp %229 : vector<2x9x9xf32>
    %cst_145 = arith.constant dense<0.000000e+00> : vector<2x9xf32>
    %231 = vector.multi_reduction <add>, %230, %cst_145 [2] : vector<2x9x9xf32> to vector<2x9xf32>
    %232 = vector.shape_cast %231 : vector<2x9xf32> to vector<2x9x1xf32>
    %233 = tpu.reciprocal %232 {approx = true} : vector<2x9x1xf32> -> vector<2x9x1xf32>
    %234 = vector.broadcast %233 : vector<2x9x1xf32> to vector<2x9x9xf32>
    %235 = arith.mulf %230, %234 : vector<2x9x9xf32>
    %cst_146 = arith.constant dense<0.000000e+00> : vector<2x9x16xf32>
    %236 = tpu.matmul %235, %222, %cst_146 {dimension_numbers = #tpu.dot_dimension_numbers<[2], [1], [1], [2], [0, 0, 0, 1, 1, 2], [0], [0]>} : vector<2x9x9xf32>, vector<2x9x16xf32>, vector<2x9x16xf32> -> vector<2x9x16xf32>
    %237 = arith.truncf %236 : vector<2x9x16xf32> to vector<2x9x16xbf16>
    %c0_147 = arith.constant 0 : index
    %c0_148 = arith.constant 0 : index
    %c0_149 = arith.constant 0 : index
    %238 = vector.load %arg38[%c0_147, %c0_148, %c0_149] : memref<2x16x32xbf16, #tpu.memory_space<vmem>>, vector<2x16x32xbf16>
    %cst_150 = arith.constant dense<0.000000e+00> : vector<2x9x32xf32>
    %239 = tpu.matmul %237, %238, %cst_150 {dimension_numbers = #tpu.dot_dimension_numbers<[2], [1], [1], [2], [0, 0, 0, 1, 1, 2], [0], [0]>} : vector<2x9x16xbf16>, vector<2x16x32xbf16>, vector<2x9x32xf32> -> vector<2x9x32xf32>
    %cst_151 = arith.constant dense<0.000000e+00> : vector<9x32xf32>
    %240 = vector.multi_reduction <add>, %239, %cst_151 [0] : vector<2x9x32xf32> to vector<9x32xf32>
    %241 = arith.addf %188, %240 : vector<9x32xf32>
    %c0_152 = arith.constant 0 : index
    %c0_153 = arith.constant 0 : index
    %242 = vector.load %arg39[%c0_152, %c0_153] : memref<1x32xf32, #tpu.memory_space<vmem>>, vector<1x32xf32>
    %243 = vector.broadcast %242 : vector<1x32xf32> to vector<9x32xf32>
    %244 = arith.addf %241, %243 : vector<9x32xf32>
    %c0_154 = arith.constant 0 : index
    %c0_155 = arith.constant 0 : index
    %245 = vector.load %arg40[%c0_154, %c0_155] : memref<1x32xf32, #tpu.memory_space<vmem>>, vector<1x32xf32>
    %c0_156 = arith.constant 0 : index
    %c0_157 = arith.constant 0 : index
    %246 = vector.load %arg41[%c0_156, %c0_157] : memref<1x32xf32, #tpu.memory_space<vmem>>, vector<1x32xf32>
    %cst_158 = arith.constant dense<0.000000e+00> : vector<9xf32>
    %247 = vector.multi_reduction <add>, %244, %cst_158 [1] : vector<9x32xf32> to vector<9xf32>
    %248 = vector.shape_cast %247 : vector<9xf32> to vector<9x1xf32>
    %cst_159 = arith.constant 3.200000e+01 : f32
    %249 = vector.broadcast %cst_159 : f32 to vector<9x1xf32>
    %250 = arith.divf %248, %249 : vector<9x1xf32>
    %251 = vector.broadcast %250 : vector<9x1xf32> to vector<9x32xf32>
    %252 = arith.subf %244, %251 : vector<9x32xf32>
    %253 = arith.mulf %252, %252 : vector<9x32xf32>
    %cst_160 = arith.constant dense<0.000000e+00> : vector<9xf32>
    %254 = vector.multi_reduction <add>, %253, %cst_160 [1] : vector<9x32xf32> to vector<9xf32>
    %255 = vector.shape_cast %254 : vector<9xf32> to vector<9x1xf32>
    %cst_161 = arith.constant 3.200000e+01 : f32
    %256 = vector.broadcast %cst_161 : f32 to vector<9x1xf32>
    %257 = arith.divf %255, %256 : vector<9x1xf32>
    %258 = vector.broadcast %250 : vector<9x1xf32> to vector<9x32xf32>
    %259 = arith.subf %244, %258 : vector<9x32xf32>
    %cst_162 = arith.constant 9.99999974E-6 : f32
    %260 = vector.broadcast %cst_162 : f32 to vector<9x1xf32>
    %261 = arith.addf %257, %260 : vector<9x1xf32>
    %262 = math.rsqrt %261 : vector<9x1xf32>
    %263 = vector.broadcast %262 : vector<9x1xf32> to vector<9x32xf32>
    %264 = arith.mulf %259, %263 : vector<9x32xf32>
    %265 = vector.broadcast %245 : vector<1x32xf32> to vector<9x32xf32>
    %266 = arith.mulf %264, %265 : vector<9x32xf32>
    %267 = vector.broadcast %246 : vector<1x32xf32> to vector<9x32xf32>
    %268 = arith.addf %266, %267 : vector<9x32xf32>
    %269 = arith.truncf %268 : vector<9x32xf32> to vector<9x32xbf16>
    %c0_163 = arith.constant 0 : index
    %c0_164 = arith.constant 0 : index
    %270 = vector.load %arg42[%c0_163, %c0_164] : memref<32x128xbf16, #tpu.memory_space<vmem>>, vector<32x128xbf16>
    %cst_165 = arith.constant dense<0.000000e+00> : vector<9x128xf32>
    %271 = tpu.matmul %269, %270, %cst_165 {dimension_numbers = #tpu.dot_dimension_numbers<[1], [0], [0], [1], [0, 0, 1, 1], [], []>} : vector<9x32xbf16>, vector<32x128xbf16>, vector<9x128xf32> -> vector<9x128xf32>
    %c0_166 = arith.constant 0 : index
    %c0_167 = arith.constant 0 : index
    %272 = vector.load %arg43[%c0_166, %c0_167] : memref<1x128xf32, #tpu.memory_space<vmem>>, vector<1x128xf32>
    %273 = vector.broadcast %272 : vector<1x128xf32> to vector<9x128xf32>
    %274 = arith.addf %271, %273 : vector<9x128xf32>
    %cst_168 = arith.constant 5.000000e-01 : f32
    %275 = vector.broadcast %cst_168 : f32 to vector<9x128xf32>
    %276 = arith.mulf %275, %274 : vector<9x128xf32>
    %cst_169 = arith.constant 4.471500e-02 : f32
    %277 = vector.broadcast %cst_169 : f32 to vector<9x128xf32>
    %278 = arith.mulf %277, %274 : vector<9x128xf32>
    %279 = arith.mulf %278, %274 : vector<9x128xf32>
    %280 = arith.mulf %279, %274 : vector<9x128xf32>
    %281 = arith.addf %274, %280 : vector<9x128xf32>
    %cst_170 = arith.constant 0.797884583 : f32
    %282 = vector.broadcast %cst_170 : f32 to vector<9x128xf32>
    %283 = arith.mulf %282, %281 : vector<9x128xf32>
    %284 = math.tanh %283 : vector<9x128xf32>
    %cst_171 = arith.constant 1.000000e+00 : f32
    %285 = vector.broadcast %cst_171 : f32 to vector<9x128xf32>
    %286 = arith.addf %285, %284 : vector<9x128xf32>
    %287 = arith.mulf %276, %286 : vector<9x128xf32>
    %288 = arith.truncf %287 : vector<9x128xf32> to vector<9x128xbf16>
    %c0_172 = arith.constant 0 : index
    %c0_173 = arith.constant 0 : index
    %289 = vector.load %arg44[%c0_172, %c0_173] : memref<128x32xbf16, #tpu.memory_space<vmem>>, vector<128x32xbf16>
    %cst_174 = arith.constant dense<0.000000e+00> : vector<9x32xf32>
    %290 = tpu.matmul %288, %289, %cst_174 {dimension_numbers = #tpu.dot_dimension_numbers<[1], [0], [0], [1], [0, 0, 1, 1], [], []>} : vector<9x128xbf16>, vector<128x32xbf16>, vector<9x32xf32> -> vector<9x32xf32>
    %c0_175 = arith.constant 0 : index
    %c0_176 = arith.constant 0 : index
    %291 = vector.load %arg45[%c0_175, %c0_176] : memref<1x32xf32, #tpu.memory_space<vmem>>, vector<1x32xf32>
    %292 = vector.broadcast %291 : vector<1x32xf32> to vector<9x32xf32>
    %293 = arith.addf %290, %292 : vector<9x32xf32>
    %294 = arith.addf %244, %293 : vector<9x32xf32>
    %c0_177 = arith.constant 0 : index
    %c0_178 = arith.constant 0 : index
    %295 = vector.load %arg46[%c0_177, %c0_178] : memref<1x32xf32, #tpu.memory_space<vmem>>, vector<1x32xf32>
    %c0_179 = arith.constant 0 : index
    %c0_180 = arith.constant 0 : index
    %296 = vector.load %arg47[%c0_179, %c0_180] : memref<1x32xf32, #tpu.memory_space<vmem>>, vector<1x32xf32>
    %cst_181 = arith.constant dense<0.000000e+00> : vector<9xf32>
    %297 = vector.multi_reduction <add>, %294, %cst_181 [1] : vector<9x32xf32> to vector<9xf32>
    %298 = vector.shape_cast %297 : vector<9xf32> to vector<9x1xf32>
    %cst_182 = arith.constant 3.200000e+01 : f32
    %299 = vector.broadcast %cst_182 : f32 to vector<9x1xf32>
    %300 = arith.divf %298, %299 : vector<9x1xf32>
    %301 = vector.broadcast %300 : vector<9x1xf32> to vector<9x32xf32>
    %302 = arith.subf %294, %301 : vector<9x32xf32>
    %303 = arith.mulf %302, %302 : vector<9x32xf32>
    %cst_183 = arith.constant dense<0.000000e+00> : vector<9xf32>
    %304 = vector.multi_reduction <add>, %303, %cst_183 [1] : vector<9x32xf32> to vector<9xf32>
    %305 = vector.shape_cast %304 : vector<9xf32> to vector<9x1xf32>
    %cst_184 = arith.constant 3.200000e+01 : f32
    %306 = vector.broadcast %cst_184 : f32 to vector<9x1xf32>
    %307 = arith.divf %305, %306 : vector<9x1xf32>
    %308 = vector.broadcast %300 : vector<9x1xf32> to vector<9x32xf32>
    %309 = arith.subf %294, %308 : vector<9x32xf32>
    %cst_185 = arith.constant 9.99999974E-6 : f32
    %310 = vector.broadcast %cst_185 : f32 to vector<9x1xf32>
    %311 = arith.addf %307, %310 : vector<9x1xf32>
    %312 = math.rsqrt %311 : vector<9x1xf32>
    %313 = vector.broadcast %312 : vector<9x1xf32> to vector<9x32xf32>
    %314 = arith.mulf %309, %313 : vector<9x32xf32>
    %315 = vector.broadcast %295 : vector<1x32xf32> to vector<9x32xf32>
    %316 = arith.mulf %314, %315 : vector<9x32xf32>
    %317 = vector.broadcast %296 : vector<1x32xf32> to vector<9x32xf32>
    %318 = arith.addf %316, %317 : vector<9x32xf32>
    %319 = vector.extract_strided_slice %318 {offsets = [0, 0], sizes = [1, 32], strides = [1, 1]} : vector<9x32xf32> to vector<1x32xf32>
    %320 = vector.extract_strided_slice %318 {offsets = [1, 0], sizes = [8, 32], strides = [1, 1]} : vector<9x32xf32> to vector<8x32xf32>
    %cst_186 = arith.constant dense<0xFF800000> : vector<32xf32>
    %321 = vector.multi_reduction <maximumf>, %320, %cst_186 [0] : vector<8x32xf32> to vector<32xf32>
    %322 = vector.shape_cast %321 : vector<32xf32> to vector<1x32xf32>
    %323 = tpu.concatenate %319, %322 in 1 : vector<1x32xf32>, vector<1x32xf32> -> vector<1x64xf32>
    %c0_187 = arith.constant 0 : index
    %c0_188 = arith.constant 0 : index
    %c0_189 = arith.constant 0 : index
    %324 = vector.load %arg48[%c0_187, %c0_188, %c0_189] : memref<1x1x64xf32, #tpu.memory_space<vmem>>, vector<1x1x64xf32>
    %325 = vector.shape_cast %324 : vector<1x1x64xf32> to vector<1x64xf32>
    %326 = vector.shape_cast %323 : vector<1x64xf32> to vector<1x1x64xf32>
    tpu.vector_store %arg48[%c0_187, %c0_188, %c0_189], %326 {strides = array<i32>} : memref<1x1x64xf32, #tpu.memory_space<vmem>>, vector<1x1x64xf32>,
    return
  }
  func.func @transform_0(%arg0: i32) -> (i32, i32, i32) {
    %c0_i32 = arith.constant 0 : i32
    %c0_i32_0 = arith.constant 0 : i32
    %c0_i32_1 = arith.constant 0 : i32
    return %arg0, %c0_i32, %c0_i32_0 : i32, i32, i32
  }
  func.func @transform_1(%arg0: i32) -> (i32, i32, i32) {
    %c0_i32 = arith.constant 0 : i32
    %c0_i32_0 = arith.constant 0 : i32
    %c0_i32_1 = arith.constant 0 : i32
    return %arg0, %c0_i32, %c0_i32_0 : i32, i32, i32
  }
  func.func @transform_2(%arg0: i32) -> (i32, i32) {
    %c0_i32 = arith.constant 0 : i32
    %c0_i32_0 = arith.constant 0 : i32
    %c0_i32_1 = arith.constant 0 : i32
    return %c0_i32, %c0_i32_0 : i32, i32
  }
  func.func @transform_3(%arg0: i32) -> (i32, i32) {
    %c0_i32 = arith.constant 0 : i32
    %c0_i32_0 = arith.constant 0 : i32
    %c0_i32_1 = arith.constant 0 : i32
    return %c0_i32, %c0_i32_0 : i32, i32
  }
  func.func @transform_4(%arg0: i32) -> (i32, i32) {
    %c0_i32 = arith.constant 0 : i32
    %c0_i32_0 = arith.constant 0 : i32
    %c0_i32_1 = arith.constant 0 : i32
    return %c0_i32, %c0_i32_0 : i32, i32
  }
  func.func @transform_5(%arg0: i32) -> (i32, i32) {
    %c0_i32 = arith.constant 0 : i32
    %c0_i32_0 = arith.constant 0 : i32
    %c0_i32_1 = arith.constant 0 : i32
    return %c0_i32, %c0_i32_0 : i32, i32
  }
  func.func @transform_6(%arg0: i32) -> (i32, i32) {
    %c0_i32 = arith.constant 0 : i32
    %c0_i32_0 = arith.constant 0 : i32
    %c0_i32_1 = arith.constant 0 : i32
    return %c0_i32, %c0_i32_0 : i32, i32
  }
  func.func @transform_7(%arg0: i32) -> (i32, i32) {
    %c0_i32 = arith.constant 0 : i32
    %c0_i32_0 = arith.constant 0 : i32
    %c0_i32_1 = arith.constant 0 : i32
    return %c0_i32, %c0_i32_0 : i32, i32
  }
  func.func @transform_8(%arg0: i32) -> (i32, i32) {
    %c0_i32 = arith.constant 0 : i32
    %c0_i32_0 = arith.constant 0 : i32
    %c0_i32_1 = arith.constant 0 : i32
    return %c0_i32, %c0_i32_0 : i32, i32
  }
  func.func @transform_9(%arg0: i32) -> (i32, i32) {
    %c0_i32 = arith.constant 0 : i32
    %c0_i32_0 = arith.constant 0 : i32
    %c0_i32_1 = arith.constant 0 : i32
    return %c0_i32, %c0_i32_0 : i32, i32
  }
  func.func @transform_10(%arg0: i32) -> (i32, i32) {
    %c0_i32 = arith.constant 0 : i32
    %c0_i32_0 = arith.constant 0 : i32
    %c0_i32_1 = arith.constant 0 : i32
    return %c0_i32, %c0_i32_0 : i32, i32
  }
  func.func @transform_11(%arg0: i32) -> (i32, i32) {
    %c0_i32 = arith.constant 0 : i32
    %c0_i32_0 = arith.constant 0 : i32
    %c0_i32_1 = arith.constant 0 : i32
    return %c0_i32, %c0_i32_0 : i32, i32
  }
  func.func @transform_12(%arg0: i32) -> (i32, i32) {
    %c0_i32 = arith.constant 0 : i32
    %c0_i32_0 = arith.constant 0 : i32
    %c0_i32_1 = arith.constant 0 : i32
    return %c0_i32, %c0_i32_0 : i32, i32
  }
  func.func @transform_13(%arg0: i32) -> (i32, i32) {
    %c0_i32 = arith.constant 0 : i32
    %c0_i32_0 = arith.constant 0 : i32
    %c0_i32_1 = arith.constant 0 : i32
    return %c0_i32, %c0_i32_0 : i32, i32
  }
  func.func @transform_14(%arg0: i32) -> (i32, i32) {
    %c0_i32 = arith.constant 0 : i32
    %c0_i32_0 = arith.constant 0 : i32
    %c0_i32_1 = arith.constant 0 : i32
    return %c0_i32, %c0_i32_0 : i32, i32
  }
  func.func @transform_15(%arg0: i32) -> (i32, i32) {
    %c0_i32 = arith.constant 0 : i32
    %c0_i32_0 = arith.constant 0 : i32
    %c0_i32_1 = arith.constant 0 : i32
    return %c0_i32, %c0_i32_0 : i32, i32
  }
  func.func @transform_16(%arg0: i32) -> (i32, i32) {
    %c0_i32 = arith.constant 0 : i32
    %c0_i32_0 = arith.constant 0 : i32
    %c0_i32_1 = arith.constant 0 : i32
    return %c0_i32, %c0_i32_0 : i32, i32
  }
  func.func @transform_17(%arg0: i32) -> (i32, i32) {
    %c0_i32 = arith.constant 0 : i32
    %c0_i32_0 = arith.constant 0 : i32
    %c0_i32_1 = arith.constant 0 : i32
    return %c0_i32, %c0_i32_0 : i32, i32
  }
  func.func @transform_18(%arg0: i32) -> (i32, i32) {
    %c0_i32 = arith.constant 0 : i32
    %c0_i32_0 = arith.constant 0 : i32
    %c0_i32_1 = arith.constant 0 : i32
    return %c0_i32, %c0_i32_0 : i32, i32
  }
  func.func @transform_19(%arg0: i32) -> (i32, i32) {
    %c0_i32 = arith.constant 0 : i32
    %c0_i32_0 = arith.constant 0 : i32
    %c0_i32_1 = arith.constant 0 : i32
    return %c0_i32, %c0_i32_0 : i32, i32
  }
  func.func @transform_20(%arg0: i32) -> (i32, i32) {
    %c0_i32 = arith.constant 0 : i32
    %c0_i32_0 = arith.constant 0 : i32
    %c0_i32_1 = arith.constant 0 : i32
    return %c0_i32, %c0_i32_0 : i32, i32
  }
  func.func @transform_21(%arg0: i32) -> (i32, i32, i32) {
    %c0_i32 = arith.constant 0 : i32
    %c0_i32_0 = arith.constant 0 : i32
    %c0_i32_1 = arith.constant 0 : i32
    %c0_i32_2 = arith.constant 0 : i32
    return %c0_i32, %c0_i32_0, %c0_i32_1 : i32, i32, i32
  }
  func.func @transform_22(%arg0: i32) -> (i32, i32, i32) {
    %c0_i32 = arith.constant 0 : i32
    %c0_i32_0 = arith.constant 0 : i32
    %c0_i32_1 = arith.constant 0 : i32
    %c0_i32_2 = arith.constant 0 : i32
    return %c0_i32, %c0_i32_0, %c0_i32_1 : i32, i32, i32
  }
  func.func @transform_23(%arg0: i32) -> (i32, i32, i32) {
    %c0_i32 = arith.constant 0 : i32
    %c0_i32_0 = arith.constant 0 : i32
    %c0_i32_1 = arith.constant 0 : i32
    %c0_i32_2 = arith.constant 0 : i32
    return %c0_i32, %c0_i32_0, %c0_i32_1 : i32, i32, i32
  }
  func.func @transform_24(%arg0: i32) -> (i32, i32, i32) {
    %c0_i32 = arith.constant 0 : i32
    %c0_i32_0 = arith.constant 0 : i32
    %c0_i32_1 = arith.constant 0 : i32
    %c0_i32_2 = arith.constant 0 : i32
    return %c0_i32, %c0_i32_0, %c0_i32_1 : i32, i32, i32
  }
  func.func @transform_25(%arg0: i32) -> (i32, i32) {
    %c0_i32 = arith.constant 0 : i32
    %c0_i32_0 = arith.constant 0 : i32
    %c0_i32_1 = arith.constant 0 : i32
    return %c0_i32, %c0_i32_0 : i32, i32
  }
  func.func @transform_26(%arg0: i32) -> (i32, i32) {
    %c0_i32 = arith.constant 0 : i32
    %c0_i32_0 = arith.constant 0 : i32
    %c0_i32_1 = arith.constant 0 : i32
    return %c0_i32, %c0_i32_0 : i32, i32
  }
  func.func @transform_27(%arg0: i32) -> (i32, i32) {
    %c0_i32 = arith.constant 0 : i32
    %c0_i32_0 = arith.constant 0 : i32
    %c0_i32_1 = arith.constant 0 : i32
    return %c0_i32, %c0_i32_0 : i32, i32
  }
  func.func @transform_28(%arg0: i32) -> (i32, i32) {
    %c0_i32 = arith.constant 0 : i32
    %c0_i32_0 = arith.constant 0 : i32
    %c0_i32_1 = arith.constant 0 : i32
    return %c0_i32, %c0_i32_0 : i32, i32
  }
  func.func @transform_29(%arg0: i32) -> (i32, i32) {
    %c0_i32 = arith.constant 0 : i32
    %c0_i32_0 = arith.constant 0 : i32
    %c0_i32_1 = arith.constant 0 : i32
    return %c0_i32, %c0_i32_0 : i32, i32
  }
  func.func @transform_30(%arg0: i32) -> (i32, i32) {
    %c0_i32 = arith.constant 0 : i32
    %c0_i32_0 = arith.constant 0 : i32
    %c0_i32_1 = arith.constant 0 : i32
    return %c0_i32, %c0_i32_0 : i32, i32
  }
  func.func @transform_31(%arg0: i32) -> (i32, i32) {
    %c0_i32 = arith.constant 0 : i32
    %c0_i32_0 = arith.constant 0 : i32
    %c0_i32_1 = arith.constant 0 : i32
    return %c0_i32, %c0_i32_0 : i32, i32
  }
  func.func @transform_32(%arg0: i32) -> (i32, i32) {
    %c0_i32 = arith.constant 0 : i32
    %c0_i32_0 = arith.constant 0 : i32
    %c0_i32_1 = arith.constant 0 : i32
    return %c0_i32, %c0_i32_0 : i32, i32
  }
  func.func @transform_33(%arg0: i32) -> (i32, i32) {
    %c0_i32 = arith.constant 0 : i32
    %c0_i32_0 = arith.constant 0 : i32
    %c0_i32_1 = arith.constant 0 : i32
    return %c0_i32, %c0_i32_0 : i32, i32
  }
  func.func @transform_34(%arg0: i32) -> (i32, i32, i32) {
    %c0_i32 = arith.constant 0 : i32
    %c0_i32_0 = arith.constant 0 : i32
    %c0_i32_1 = arith.constant 0 : i32
    %c0_i32_2 = arith.constant 0 : i32
    return %c0_i32, %c0_i32_0, %c0_i32_1 : i32, i32, i32
  }
  func.func @transform_35(%arg0: i32) -> (i32, i32, i32) {
    %c0_i32 = arith.constant 0 : i32
    %c0_i32_0 = arith.constant 0 : i32
    %c0_i32_1 = arith.constant 0 : i32
    %c0_i32_2 = arith.constant 0 : i32
    return %c0_i32, %c0_i32_0, %c0_i32_1 : i32, i32, i32
  }
  func.func @transform_36(%arg0: i32) -> (i32, i32, i32) {
    %c0_i32 = arith.constant 0 : i32
    %c0_i32_0 = arith.constant 0 : i32
    %c0_i32_1 = arith.constant 0 : i32
    %c0_i32_2 = arith.constant 0 : i32
    return %c0_i32, %c0_i32_0, %c0_i32_1 : i32, i32, i32
  }
  func.func @transform_37(%arg0: i32) -> (i32, i32, i32) {
    %c0_i32 = arith.constant 0 : i32
    %c0_i32_0 = arith.constant 0 : i32
    %c0_i32_1 = arith.constant 0 : i32
    %c0_i32_2 = arith.constant 0 : i32
    return %c0_i32, %c0_i32_0, %c0_i32_1 : i32, i32, i32
  }
  func.func @transform_38(%arg0: i32) -> (i32, i32) {
    %c0_i32 = arith.constant 0 : i32
    %c0_i32_0 = arith.constant 0 : i32
    %c0_i32_1 = arith.constant 0 : i32
    return %c0_i32, %c0_i32_0 : i32, i32
  }
  func.func @transform_39(%arg0: i32) -> (i32, i32) {
    %c0_i32 = arith.constant 0 : i32
    %c0_i32_0 = arith.constant 0 : i32
    %c0_i32_1 = arith.constant 0 : i32
    return %c0_i32, %c0_i32_0 : i32, i32
  }
  func.func @transform_40(%arg0: i32) -> (i32, i32) {
    %c0_i32 = arith.constant 0 : i32
    %c0_i32_0 = arith.constant 0 : i32
    %c0_i32_1 = arith.constant 0 : i32
    return %c0_i32, %c0_i32_0 : i32, i32
  }
  func.func @transform_41(%arg0: i32) -> (i32, i32) {
    %c0_i32 = arith.constant 0 : i32
    %c0_i32_0 = arith.constant 0 : i32
    %c0_i32_1 = arith.constant 0 : i32
    return %c0_i32, %c0_i32_0 : i32, i32
  }
  func.func @transform_42(%arg0: i32) -> (i32, i32) {
    %c0_i32 = arith.constant 0 : i32
    %c0_i32_0 = arith.constant 0 : i32
    %c0_i32_1 = arith.constant 0 : i32
    return %c0_i32, %c0_i32_0 : i32, i32
  }
  func.func @transform_43(%arg0: i32) -> (i32, i32) {
    %c0_i32 = arith.constant 0 : i32
    %c0_i32_0 = arith.constant 0 : i32
    %c0_i32_1 = arith.constant 0 : i32
    return %c0_i32, %c0_i32_0 : i32, i32
  }
  func.func @transform_44(%arg0: i32) -> (i32, i32) {
    %c0_i32 = arith.constant 0 : i32
    %c0_i32_0 = arith.constant 0 : i32
    %c0_i32_1 = arith.constant 0 : i32
    return %c0_i32, %c0_i32_0 : i32, i32
  }
  func.func @transform_45(%arg0: i32) -> (i32, i32) {
    %c0_i32 = arith.constant 0 : i32
    %c0_i32_0 = arith.constant 0 : i32
    %c0_i32_1 = arith.constant 0 : i32
    return %c0_i32, %c0_i32_0 : i32, i32
  }
  func.func @transform_46(%arg0: i32) -> (i32, i32) {
    %c0_i32 = arith.constant 0 : i32
    %c0_i32_0 = arith.constant 0 : i32
    %c0_i32_1 = arith.constant 0 : i32
    return %c0_i32, %c0_i32_0 : i32, i32
  }
  func.func @transform_47(%arg0: i32) -> (i32, i32, i32) {
    %c0_i32 = arith.constant 0 : i32
    %c0_i32_0 = arith.constant 0 : i32
    %c0_i32_1 = arith.constant 0 : i32
    return %arg0, %c0_i32, %c0_i32_0 : i32, i32, i32
  }
}

</mosaic_0001>

<llo_original>
// kernel: custom-call.6
$region0: #{custom-call.6}
  %s0 = inlined_call_operand.vmem [shape: f32[2,128], index: 0, kind: output, shape index: {}]

// kernel: neg.1
$region0: #{neg.1}
  #allocation0 [shape = 's32[1]{0}', space=sflag, size = 0x4, scoped, tag = 'scoped memory for neg.1']
  %s0 = inlined_call_operand.vmem [shape: f32[2,8,128], index: 0, kind: input, shape index: {}]
  %s1 = inlined_call_operand.vmem [shape: f32[2,8,128], index: 1, kind: output, shape index: {}]
  %v2 = vld [vmem:[%s0] sm:$0xff]
  %3 = xla_tuple %v2
  %4 = xla_tuple %3
  %v5 = vxor.u32 %v2, 2147483648
  %6 = xla_tuple %v5
  %7 = vst [vmem:[%s1] sm:$0xff] %v5
  %s8 = scalar_lea.vmem %s0, 8
  %v9 = vld [vmem:[%s8] sm:$0xff]
  %10 = xla_tuple %v9
  %11 = xla_tuple %10
  %v12 = vxor.u32 %v9, 2147483648
  %13 = xla_tuple %v12
  %s14 = scalar_lea.vmem %s1, 8
  %15 = vst [vmem:[%s14] sm:$0xff] %v12

// kernel: _lambda_.1
$region0: #{_lambda_.1}
  #allocation0 [shape = 'u32[]', space=smem, size = 0x4, offset = 0x4, fixed_abs, tag = 'smem constant byte address 0x4 - core index']
  #allocation1 [shape = 'u32[144,128]{1,0:T(1,128)}', space=vmem, size = 0x12000, scoped, tag = 'internal scratch']
  #allocation2 [shape = 'f32[9,32]{1,0:T(8,128)}', space=vmem, size = 0x2000, scoped, tag = 'scratch operand']
  #allocation3 [shape = 'f32[9,32]{1,0:T(8,128)}', space=vmem, size = 0x2000, scoped, tag = 'scratch operand']
  %s0 = inlined_call_operand.smem [shape: u32[48], index: -1, kind: input, shape index: {}]
  %s1 = sld [smem:[%s0]]
  %s2 = scalar_lea.smem %s0, 1
  %s3 = sld [smem:[%s2]]
  %s4 = scalar_lea.smem %s0, 2
  %s5 = sld [smem:[%s4]]
  %s6 = scalar_lea.smem %s0, 3
  %s7 = sld [smem:[%s6]]
  %s8 = scalar_lea.smem %s0, 4
  %s9 = sld [smem:[%s8]]
  %s10 = scalar_lea.smem %s0, 5
  %s11 = sld [smem:[%s10]]
  %s12 = scalar_lea.smem %s0, 6
  %s13 = sld [smem:[%s12]]
  %s14 = scalar_lea.smem %s0, 7
  %s15 = sld [smem:[%s14]]
  %s16 = scalar_lea.smem %s0, 8
  %s17 = sld [smem:[%s16]]
  %s18 = scalar_lea.smem %s0, 9
  %s19 = sld [smem:[%s18]]
  %s20 = scalar_lea.smem %s0, 10
  %s21 = sld [smem:[%s20]]
  %s22 = scalar_lea.smem %s0, 11
  %s23 = sld [smem:[%s22]]
  %s24 = scalar_lea.smem %s0, 12
  %s25 = sld [smem:[%s24]]
  %s26 = scalar_lea.smem %s0, 13
  %s27 = sld [smem:[%s26]]
  %s28 = scalar_lea.smem %s0, 14
  %s29 = sld [smem:[%s28]]
  %s30 = scalar_lea.smem %s0, 15
  %s31 = sld [smem:[%s30]]
  %s32 = scalar_lea.smem %s0, 16
  %s33 = sld [smem:[%s32]]
  %s34 = scalar_lea.smem %s0, 17
  %s35 = sld [smem:[%s34]]
  %s36 = scalar_lea.smem %s0, 18
  %s37 = sld [smem:[%s36]]
  %s38 = scalar_lea.smem %s0, 19
  %s39 = sld [smem:[%s38]]
  %s40 = scalar_lea.smem %s0, 20
  %s41 = sld [smem:[%s40]]
  %s42 = scalar_lea.smem %s0, 21
  %s43 = sld [smem:[%s42]]
  %s44 = scalar_lea.smem %s0, 22
  %s45 = sld [smem:[%s44]]
  %s46 = scalar_lea.smem %s0, 23
  %s47 = sld [smem:[%s46]]
  %s48 = scalar_lea.smem %s0, 24
  %s49 = sld [smem:[%s48]]
  %s50 = scalar_lea.smem %s0, 25
  %s51 = sld [smem:[%s50]]
  %s52 = scalar_lea.smem %s0, 26
  %s53 = sld [smem:[%s52]]
  %s54 = scalar_lea.smem %s0, 27
  %s55 = sld [smem:[%s54]]
  %s56 = scalar_lea.smem %s0, 28
  %s57 = sld [smem:[%s56]]
  %s58 = scalar_lea.smem %s0, 29
  %s59 = sld [smem:[%s58]]
  %s60 = scalar_lea.smem %s0, 30
  %s61 = sld [smem:[%s60]]
  %s62 = scalar_lea.smem %s0, 31
  %s63 = sld [smem:[%s62]]
  %s64 = scalar_lea.smem %s0, 32
  %s65 = sld [smem:[%s64]]
  %s66 = scalar_lea.smem %s0, 33
  %s67 = sld [smem:[%s66]]
  %s68 = scalar_lea.smem %s0, 34
  %s69 = sld [smem:[%s68]]
  %s70 = scalar_lea.smem %s0, 35
  %s71 = sld [smem:[%s70]]
  %s72 = scalar_lea.smem %s0, 36
  %s73 = sld [smem:[%s72]]
  %s74 = scalar_lea.smem %s0, 37
  %s75 = sld [smem:[%s74]]
  %s76 = scalar_lea.smem %s0, 38
  %s77 = sld [smem:[%s76]]
  %s78 = scalar_lea.smem %s0, 39
  %s79 = sld [smem:[%s78]]
  %s80 = scalar_lea.smem %s0, 40
  %s81 = sld [smem:[%s80]]
  %s82 = scalar_lea.smem %s0, 41
  %s83 = sld [smem:[%s82]]
  %s84 = scalar_lea.smem %s0, 42
  %s85 = sld [smem:[%s84]]
  %s86 = scalar_lea.smem %s0, 43
  %s87 = sld [smem:[%s86]]
  %s88 = scalar_lea.smem %s0, 44
  %s89 = sld [smem:[%s88]]
  %s90 = scalar_lea.smem %s0, 45
  %s91 = sld [smem:[%s90]]
  %s92 = scalar_lea.smem %s0, 46
  %s93 = sld [smem:[%s92]]
  %s94 = scalar_lea.smem %s0, 47
  %s95 = sld [smem:[%s94]]
  %s96 = sld [smem:[#allocation0]]
  $region229: #{_lambda_.1} parent=0
    _
  %s98 = ssub.s32 1, %s96
  %s99 = scalar_select 0, %s98, %s96
  $region1: #{_lambda_.1} parent=0
    #allocation4 [shape = 'u8[512]{0}', space=vmem, size = 0x400, scoped, tag = 'input window, operand 45, single buffered']
    #allocation5 [shape = 's32[2]{0}', space=sflag, size = 0x8, scoped, tag = 'scoped memory for _lambda_.1']
    #allocation6 [shape = 's32[2]{0}', space=sflag, size = 0x8, scoped, tag = 'scoped memory for _lambda_.1']
    #allocation7 [shape = 'u8[512]{0}', space=vmem, size = 0x400, scoped, tag = 'input window, operand 46, single buffered']
    #allocation8 [shape = 's32[1]{0}', space=sflag, size = 0x4, scoped, tag = 'scoped memory for _lambda_.1']
    #allocation9 [shape = 'u8[1024]{0}', space=vmem, size = 0x400, scoped, tag = 'output window, operand 0']
    %100 = vsyncpa [#allocation5], 0
    %101 = vsyncpa [#allocation8], 0
    %102 = vsyncpa [#allocation6], 0
    %s103 = scalar_lea.sflag [#allocation6], 1
    %104 = vsyncpa %s103, 0
    loop: start=0, step=1, limit=4
    $region2: #{_lambda_.1} parent=1 // loop_pre_header
      _
    $region3: #{_lambda_.1} parent=1 // loop_header
      %s106 = sphi 0, %s110
      %p107 = scmp.ge.s32.totalorder %s106, 4
      %s116 = sphi 0, %s118
      %s119 = sphi 0, %s116
      %s120 = sphi 0, %s119
      %s136 = sphi 0, %s120
      %s142 = sphi 0, %s144
      %s145 = sphi 0, %s142
      %s146 = sphi 0, %s145
      %s162 = sphi 0, %s146
      %s166 = sphi 0, %s166
      %s168 = sphi 0, %s166
      %s169 = sphi 0, %s168
      %s183 = sphi 0, %s169
      %s187 = sphi 0, %s187
      %s189 = sphi 0, %s187
      %s190 = sphi 0, %s189
      %s204 = sphi 0, %s190
      %s208 = sphi 0, %s208
      %s210 = sphi 0, %s208
      %s211 = sphi 0, %s210
      %s225 = sphi 0, %s211
      %s229 = sphi 0, %s229
      %s231 = sphi 0, %s229
      %s232 = sphi 0, %s231
      %s246 = sphi 0, %s232
      %s250 = sphi 0, %s250
      %s252 = sphi 0, %s250
      %s253 = sphi 0, %s252
      %s267 = sphi 0, %s253
      %s271 = sphi 0, %s271
      %s273 = sphi 0, %s271
      %s274 = sphi 0, %s273
      %s288 = sphi 0, %s274
      %s292 = sphi 0, %s292
      %s294 = sphi 0, %s292
      %s295 = sphi 0, %s294
      %s309 = sphi 0, %s295
      %s313 = sphi 0, %s313
      %s315 = sphi 0, %s313
      %s316 = sphi 0, %s315
      %s330 = sphi 0, %s316
      %s334 = sphi 0, %s334
      %s336 = sphi 0, %s334
      %s337 = sphi 0, %s336
      %s351 = sphi 0, %s337
      %s355 = sphi 0, %s355
      %s357 = sphi 0, %s355
      %s358 = sphi 0, %s357
      %s372 = sphi 0, %s358
      %s376 = sphi 0, %s376
      %s378 = sphi 0, %s376
      %s379 = sphi 0, %s378
      %s393 = sphi 0, %s379
      %s397 = sphi 0, %s397
      %s399 = sphi 0, %s397
      %s400 = sphi 0, %s399
      %s414 = sphi 0, %s400
      %s418 = sphi 0, %s418
      %s420 = sphi 0, %s418
      %s421 = sphi 0, %s420
      %s435 = sphi 0, %s421
      %s439 = sphi 0, %s439
      %s441 = sphi 0, %s439
      %s442 = sphi 0, %s441
      %s456 = sphi 0, %s442
      %s460 = sphi 0, %s460
      %s462 = sphi 0, %s460
      %s463 = sphi 0, %s462
      %s477 = sphi 0, %s463
      %s481 = sphi 0, %s481
      %s483 = sphi 0, %s481
      %s484 = sphi 0, %s483
      %s498 = sphi 0, %s484
      %s502 = sphi 0, %s502
      %s504 = sphi 0, %s502
      %s505 = sphi 0, %s504
      %s519 = sphi 0, %s505
      %s523 = sphi 0, %s523
      %s525 = sphi 0, %s523
      %s526 = sphi 0, %s525
      %s540 = sphi 0, %s526
      %s544 = sphi 0, %s544
      %s546 = sphi 0, %s544
      %s547 = sphi 0, %s546
      %s561 = sphi 0, %s547
      %s565 = sphi 0, %s565
      %s567 = sphi 0, %s565
      %s568 = sphi 0, %s567
      %s582 = sphi 0, %s568
      %s586 = sphi 0, %s586
      %s588 = sphi 0, %s586
      %s589 = sphi 0, %s588
      %s603 = sphi 0, %s589
      %s607 = sphi 0, %s607
      %s609 = sphi 0, %s607
      %s610 = sphi 0, %s609
      %s624 = sphi 0, %s610
      %s628 = sphi 0, %s628
      %s630 = sphi 0, %s628
      %s631 = sphi 0, %s630
      %s645 = sphi 0, %s631
      %s649 = sphi 0, %s649
      %s651 = sphi 0, %s649
      %s652 = sphi 0, %s651
      %s666 = sphi 0, %s652
      %s670 = sphi 0, %s670
      %s672 = sphi 0, %s670
      %s673 = sphi 0, %s672
      %s687 = sphi 0, %s673
      %s691 = sphi 0, %s691
      %s693 = sphi 0, %s691
      %s694 = sphi 0, %s693
      %s708 = sphi 0, %s694
      %s712 = sphi 0, %s712
      %s714 = sphi 0, %s712
      %s715 = sphi 0, %s714
      %s729 = sphi 0, %s715
      %s733 = sphi 0, %s733
      %s735 = sphi 0, %s733
      %s736 = sphi 0, %s735
      %s750 = sphi 0, %s736
      %s754 = sphi 0, %s754
      %s756 = sphi 0, %s754
      %s757 = sphi 0, %s756
      %s771 = sphi 0, %s757
      %s775 = sphi 0, %s775
      %s777 = sphi 0, %s775
      %s778 = sphi 0, %s777
      %s792 = sphi 0, %s778
      %s796 = sphi 0, %s796
      %s798 = sphi 0, %s796
      %s799 = sphi 0, %s798
      %s813 = sphi 0, %s799
      %s817 = sphi 0, %s817
      %s819 = sphi 0, %s817
      %s820 = sphi 0, %s819
      %s834 = sphi 0, %s820
      %s838 = sphi 0, %s838
      %s840 = sphi 0, %s838
      %s841 = sphi 0, %s840
      %s855 = sphi 0, %s841
      %s859 = sphi 0, %s859
      %s861 = sphi 0, %s859
      %s862 = sphi 0, %s861
      %s876 = sphi 0, %s862
      %s880 = sphi 0, %s880
      %s882 = sphi 0, %s880
      %s883 = sphi 0, %s882
      %s897 = sphi 0, %s883
      %s901 = sphi 0, %s901
      %s903 = sphi 0, %s901
      %s904 = sphi 0, %s903
      %s918 = sphi 0, %s904
      %s922 = sphi 0, %s922
      %s924 = sphi 0, %s922
      %s925 = sphi 0, %s924
      %s939 = sphi 0, %s925
      %s943 = sphi 0, %s943
      %s945 = sphi 0, %s943
      %s946 = sphi 0, %s945
      %s960 = sphi 0, %s946
      %s964 = sphi 0, %s964
      %s966 = sphi 0, %s964
      %s967 = sphi 0, %s966
      %s981 = sphi 0, %s967
      %s985 = sphi 0, %s985
      %s987 = sphi 0, %s985
      %s988 = sphi 0, %s987
      %s1002 = sphi 0, %s988
      %s1006 = sphi 0, %s1006
      %s1008 = sphi 0, %s1006
      %s1009 = sphi 0, %s1008
      %s1023 = sphi 0, %s1009
      %s1027 = sphi 0, %s1027
      %s1029 = sphi 0, %s1027
      %s1030 = sphi 0, %s1029
      %s1044 = sphi 0, %s1030
      %s1048 = sphi 0, %s1048
      %s1050 = sphi 0, %s1048
      %s1051 = sphi 0, %s1050
      %s1065 = sphi 0, %s1051
      %s1069 = sphi 0, %s1069
      %s1071 = sphi 0, %s1069
      %s1072 = sphi 0, %s1071
      %s1086 = sphi 0, %s1072
      %s1090 = sphi 0, %s1090
      %s1092 = sphi 0, %s1090
      %s1093 = sphi 0, %s1092
      %s1107 = sphi 0, %s1093
      %s1113 = sphi 0, %s1115
      %s1116 = sphi 0, %s1113
      %s1117 = sphi 0, %s1116
      %s1133 = sphi 0, %s1117
    $region4: #{_lambda_.1} parent=1 // loop_header_branch
      %109 = sbr.rel (%p107) target = $region8
    $region5: #{_lambda_.1} parent=1 // loop_body
      %s111 = ssub.s32 %s106, 1
      %s112 = ssub.s32 %s106, 2
      %s113 = sadd.s32 %s106, 1
      %s114 = ssub.s32 %s106, %s113
      %p115 = scmp.eq.s32.totalorder %s114, 0
      %s117 = sadd.s32 %s116, 1
      %s118 = scalar_select %p115, %s116, %s117
      %p121 = pneg %p115
      %p122 = scmp.eq.s32.totalorder %s106, 1
      %p123 = por %p121, %p122
      %p124 = scmp.ne.s32.totalorder %s116, %s119
      %p125 = scmp.eq.s32.totalorder %s106, 0
      %p126 = por %p124, %p125
      %p127 = scmp.ne.s32.totalorder %s116, %s119
      %p128 = scmp.eq.s32.totalorder %s111, 1
      %p129 = por %p127, %p128
      %p130 = scmp.ne.s32.totalorder %s119, %s120
      %p131 = scmp.eq.s32.totalorder %s111, 0
      %p132 = por %p130, %p131
      %p133 = scmp.ne.s32.totalorder %s119, %s120
      %p134 = scmp.eq.s32.totalorder %s112, 1
      %p135 = por %p133, %p134
      %p137 = scmp.ne.s32.totalorder %s120, %s136
      %p138 = scmp.eq.s32.totalorder %s112, 0
      %p139 = por %p137, %p138
      %s140 = ssub.s32 %s106, %s113
      %p141 = scmp.eq.s32.totalorder %s140, 0
      %s143 = sadd.s32 %s142, 1
      %s144 = scalar_select %p141, %s142, %s143
      %p147 = pneg %p141
      %p148 = scmp.eq.s32.totalorder %s106, 1
      %p149 = por %p147, %p148
      %p150 = scmp.ne.s32.totalorder %s142, %s145
      %p151 = scmp.eq.s32.totalorder %s106, 0
      %p152 = por %p150, %p151
      %p153 = scmp.ne.s32.totalorder %s142, %s145
      %p154 = scmp.eq.s32.totalorder %s111, 1
      %p155 = por %p153, %p154
      %p156 = scmp.ne.s32.totalorder %s145, %s146
      %p157 = scmp.eq.s32.totalorder %s111, 0
      %p158 = por %p156, %p157
      %p159 = scmp.ne.s32.totalorder %s145, %s146
      %p160 = scmp.eq.s32.totalorder %s112, 1
      %p161 = por %p159, %p160
      %p163 = scmp.ne.s32.totalorder %s146, %s162
      %p164 = scmp.eq.s32.totalorder %s112, 0
      %p165 = por %p163, %p164
      %s167 = sadd.s32 %s166, 1
      %p170 = scmp.eq.s32.totalorder %s106, 1
      %p171 = scmp.ne.s32.totalorder %s166, %s168
      %p172 = scmp.eq.s32.totalorder %s106, 0
      %p173 = por %p171, %p172
      %p174 = scmp.ne.s32.totalorder %s166, %s168
      %p175 = scmp.eq.s32.totalorder %s111, 1
      %p176 = por %p174, %p175
      %p177 = scmp.ne.s32.totalorder %s168, %s169
      %p178 = scmp.eq.s32.totalorder %s111, 0
      %p179 = por %p177, %p178
      %p180 = scmp.ne.s32.totalorder %s168, %s169
      %p181 = scmp.eq.s32.totalorder %s112, 1
      %p182 = por %p180, %p181
      %p184 = scmp.ne.s32.totalorder %s169, %s183
      %p185 = scmp.eq.s32.totalorder %s112, 0
      %p186 = por %p184, %p185
      %s188 = sadd.s32 %s187, 1
      %p191 = scmp.eq.s32.totalorder %s106, 1
      %p192 = scmp.ne.s32.totalorder %s187, %s189
      %p193 = scmp.eq.s32.totalorder %s106, 0
      %p194 = por %p192, %p193
      %p195 = scmp.ne.s32.totalorder %s187, %s189
      %p196 = scmp.eq.s32.totalorder %s111, 1
      %p197 = por %p195, %p196
      %p198 = scmp.ne.s32.totalorder %s189, %s190
      %p199 = scmp.eq.s32.totalorder %s111, 0
      %p200 = por %p198, %p199
      %p201 = scmp.ne.s32.totalorder %s189, %s190
      %p202 = scmp.eq.s32.totalorder %s112, 1
      %p203 = por %p201, %p202
      %p205 = scmp.ne.s32.totalorder %s190, %s204
      %p206 = scmp.eq.s32.totalorder %s112, 0
      %p207 = por %p205, %p206
      %s209 = sadd.s32 %s208, 1
      %p212 = scmp.eq.s32.totalorder %s106, 1
      %p213 = scmp.ne.s32.totalorder %s208, %s210
      %p214 = scmp.eq.s32.totalorder %s106, 0
      %p215 = por %p213, %p214
      %p216 = scmp.ne.s32.totalorder %s208, %s210
      %p217 = scmp.eq.s32.totalorder %s111, 1
      %p218 = por %p216, %p217
      %p219 = scmp.ne.s32.totalorder %s210, %s211
      %p220 = scmp.eq.s32.totalorder %s111, 0
      %p221 = por %p219, %p220
      %p222 = scmp.ne.s32.totalorder %s210, %s211
      %p223 = scmp.eq.s32.totalorder %s112, 1
      %p224 = por %p222, %p223
      %p226 = scmp.ne.s32.totalorder %s211, %s225
      %p227 = scmp.eq.s32.totalorder %s112, 0
      %p228 = por %p226, %p227
      %s230 = sadd.s32 %s229, 1
      %p233 = scmp.eq.s32.totalorder %s106, 1
      %p234 = scmp.ne.s32.totalorder %s229, %s231
      %p235 = scmp.eq.s32.totalorder %s106, 0
      %p236 = por %p234, %p235
      %p237 = scmp.ne.s32.totalorder %s229, %s231
      %p238 = scmp.eq.s32.totalorder %s111, 1
      %p239 = por %p237, %p238
      %p240 = scmp.ne.s32.totalorder %s231, %s232
      %p241 = scmp.eq.s32.totalorder %s111, 0
      %p242 = por %p240, %p241
      %p243 = scmp.ne.s32.totalorder %s231, %s232
      %p244 = scmp.eq.s32.totalorder %s112, 1
      %p245 = por %p243, %p244
      %p247 = scmp.ne.s32.totalorder %s232, %s246
      %p248 = scmp.eq.s32.totalorder %s112, 0
      %p249 = por %p247, %p248
      %s251 = sadd.s32 %s250, 1
      %p254 = scmp.eq.s32.totalorder %s106, 1
      %p255 = scmp.ne.s32.totalorder %s250, %s252
      %p256 = scmp.eq.s32.totalorder %s106, 0
      %p257 = por %p255, %p256
      %p258 = scmp.ne.s32.totalorder %s250, %s252
      %p259 = scmp.eq.s32.totalorder %s111, 1
      %p260 = por %p258, %p259
      %p261 = scmp.ne.s32.totalorder %s252, %s253
      %p262 = scmp.eq.s32.totalorder %s111, 0
      %p263 = por %p261, %p262
      %p264 = scmp.ne.s32.totalorder %s252, %s253
      %p265 = scmp.eq.s32.totalorder %s112, 1
      %p266 = por %p264, %p265
      %p268 = scmp.ne.s32.totalorder %s253, %s267
      %p269 = scmp.eq.s32.totalorder %s112, 0
      %p270 = por %p268, %p269
      %s272 = sadd.s32 %s271, 1
      %p275 = scmp.eq.s32.totalorder %s106, 1
      %p276 = scmp.ne.s32.totalorder %s271, %s273
      %p277 = scmp.eq.s32.totalorder %s106, 0
      %p278 = por %p276, %p277
      %p279 = scmp.ne.s32.totalorder %s271, %s273
      %p280 = scmp.eq.s32.totalorder %s111, 1
      %p281 = por %p279, %p280
      %p282 = scmp.ne.s32.totalorder %s273, %s274
      %p283 = scmp.eq.s32.totalorder %s111, 0
      %p284 = por %p282, %p283
      %p285 = scmp.ne.s32.totalorder %s273, %s274
      %p286 = scmp.eq.s32.totalorder %s112, 1
      %p287 = por %p285, %p286
      %p289 = scmp.ne.s32.totalorder %s274, %s288
      %p290 = scmp.eq.s32.totalorder %s112, 0
      %p291 = por %p289, %p290
      %s293 = sadd.s32 %s292, 1
      %p296 = scmp.eq.s32.totalorder %s106, 1
      %p297 = scmp.ne.s32.totalorder %s292, %s294
      %p298 = scmp.eq.s32.totalorder %s106, 0
      %p299 = por %p297, %p298
      %p300 = scmp.ne.s32.totalorder %s292, %s294
      %p301 = scmp.eq.s32.totalorder %s111, 1
      %p302 = por %p300, %p301
      %p303 = scmp.ne.s32.totalorder %s294, %s295
      %p304 = scmp.eq.s32.totalorder %s111, 0
      %p305 = por %p303, %p304
      %p306 = scmp.ne.s32.totalorder %s294, %s295
      %p307 = scmp.eq.s32.totalorder %s112, 1
      %p308 = por %p306, %p307
      %p310 = scmp.ne.s32.totalorder %s295, %s309
      %p311 = scmp.eq.s32.totalorder %s112, 0
      %p312 = por %p310, %p311
      %s314 = sadd.s32 %s313, 1
      %p317 = scmp.eq.s32.totalorder %s106, 1
      %p318 = scmp.ne.s32.totalorder %s313, %s315
      %p319 = scmp.eq.s32.totalorder %s106, 0
      %p320 = por %p318, %p319
      %p321 = scmp.ne.s32.totalorder %s313, %s315
      %p322 = scmp.eq.s32.totalorder %s111, 1
      %p323 = por %p321, %p322
      %p324 = scmp.ne.s32.totalorder %s315, %s316
      %p325 = scmp.eq.s32.totalorder %s111, 0
      %p326 = por %p324, %p325
      %p327 = scmp.ne.s32.totalorder %s315, %s316
      %p328 = scmp.eq.s32.totalorder %s112, 1
      %p329 = por %p327, %p328
      %p331 = scmp.ne.s32.totalorder %s316, %s330
      %p332 = scmp.eq.s32.totalorder %s112, 0
      %p333 = por %p331, %p332
      %s335 = sadd.s32 %s334, 1
      %p338 = scmp.eq.s32.totalorder %s106, 1
      %p339 = scmp.ne.s32.totalorder %s334, %s336
      %p340 = scmp.eq.s32.totalorder %s106, 0
      %p341 = por %p339, %p340
      %p342 = scmp.ne.s32.totalorder %s334, %s336
      %p343 = scmp.eq.s32.totalorder %s111, 1
      %p344 = por %p342, %p343
      %p345 = scmp.ne.s32.totalorder %s336, %s337
      %p346 = scmp.eq.s32.totalorder %s111, 0
      %p347 = por %p345, %p346
      %p348 = scmp.ne.s32.totalorder %s336, %s337
      %p349 = scmp.eq.s32.totalorder %s112, 1
      %p350 = por %p348, %p349
      %p352 = scmp.ne.s32.totalorder %s337, %s351
      %p353 = scmp.eq.s32.totalorder %s112, 0
      %p354 = por %p352, %p353
      %s356 = sadd.s32 %s355, 1
      %p359 = scmp.eq.s32.totalorder %s106, 1
      %p360 = scmp.ne.s32.totalorder %s355, %s357
      %p361 = scmp.eq.s32.totalorder %s106, 0
      %p362 = por %p360, %p361
      %p363 = scmp.ne.s32.totalorder %s355, %s357
      %p364 = scmp.eq.s32.totalorder %s111, 1
      %p365 = por %p363, %p364
      %p366 = scmp.ne.s32.totalorder %s357, %s358
      %p367 = scmp.eq.s32.totalorder %s111, 0
      %p368 = por %p366, %p367
      %p369 = scmp.ne.s32.totalorder %s357, %s358
      %p370 = scmp.eq.s32.totalorder %s112, 1
      %p371 = por %p369, %p370
      %p373 = scmp.ne.s32.totalorder %s358, %s372
      %p374 = scmp.eq.s32.totalorder %s112, 0
      %p375 = por %p373, %p374
      %s377 = sadd.s32 %s376, 1
      %p380 = scmp.eq.s32.totalorder %s106, 1
      %p381 = scmp.ne.s32.totalorder %s376, %s378
      %p382 = scmp.eq.s32.totalorder %s106, 0
      %p383 = por %p381, %p382
      %p384 = scmp.ne.s32.totalorder %s376, %s378
      %p385 = scmp.eq.s32.totalorder %s111, 1
      %p386 = por %p384, %p385
      %p387 = scmp.ne.s32.totalorder %s378, %s379
      %p388 = scmp.eq.s32.totalorder %s111, 0
      %p389 = por %p387, %p388
      %p390 = scmp.ne.s32.totalorder %s378, %s379
      %p391 = scmp.eq.s32.totalorder %s112, 1
      %p392 = por %p390, %p391
      %p394 = scmp.ne.s32.totalorder %s379, %s393
      %p395 = scmp.eq.s32.totalorder %s112, 0
      %p396 = por %p394, %p395
      %s398 = sadd.s32 %s397, 1
      %p401 = scmp.eq.s32.totalorder %s106, 1
      %p402 = scmp.ne.s32.totalorder %s397, %s399
      %p403 = scmp.eq.s32.totalorder %s106, 0
      %p404 = por %p402, %p403
      %p405 = scmp.ne.s32.totalorder %s397, %s399
      %p406 = scmp.eq.s32.totalorder %s111, 1
      %p407 = por %p405, %p406
      %p408 = scmp.ne.s32.totalorder %s399, %s400
      %p409 = scmp.eq.s32.totalorder %s111, 0
      %p410 = por %p408, %p409
      %p411 = scmp.ne.s32.totalorder %s399, %s400
      %p412 = scmp.eq.s32.totalorder %s112, 1
      %p413 = por %p411, %p412
      %p415 = scmp.ne.s32.totalorder %s400, %s414
      %p416 = scmp.eq.s32.totalorder %s112, 0
      %p417 = por %p415, %p416
      %s419 = sadd.s32 %s418, 1
      %p422 = scmp.eq.s32.totalorder %s106, 1
      %p423 = scmp.ne.s32.totalorder %s418, %s420
      %p424 = scmp.eq.s32.totalorder %s106, 0
      %p425 = por %p423, %p424
      %p426 = scmp.ne.s32.totalorder %s418, %s420
      %p427 = scmp.eq.s32.totalorder %s111, 1
      %p428 = por %p426, %p427
      %p429 = scmp.ne.s32.totalorder %s420, %s421
      %p430 = scmp.eq.s32.totalorder %s111, 0
      %p431 = por %p429, %p430
      %p432 = scmp.ne.s32.totalorder %s420, %s421
      %p433 = scmp.eq.s32.totalorder %s112, 1
      %p434 = por %p432, %p433
      %p436 = scmp.ne.s32.totalorder %s421, %s435
      %p437 = scmp.eq.s32.totalorder %s112, 0
      %p438 = por %p436, %p437
      %s440 = sadd.s32 %s439, 1
      %p443 = scmp.eq.s32.totalorder %s106, 1
      %p444 = scmp.ne.s32.totalorder %s439, %s441
      %p445 = scmp.eq.s32.totalorder %s106, 0
      %p446 = por %p444, %p445
      %p447 = scmp.ne.s32.totalorder %s439, %s441
      %p448 = scmp.eq.s32.totalorder %s111, 1
      %p449 = por %p447, %p448
      %p450 = scmp.ne.s32.totalorder %s441, %s442
      %p451 = scmp.eq.s32.totalorder %s111, 0
      %p452 = por %p450, %p451
      %p453 = scmp.ne.s32.totalorder %s441, %s442
      %p454 = scmp.eq.s32.totalorder %s112, 1
      %p455 = por %p453, %p454
      %p457 = scmp.ne.s32.totalorder %s442, %s456
      %p458 = scmp.eq.s32.totalorder %s112, 0
      %p459 = por %p457, %p458
      %s461 = sadd.s32 %s460, 1
      %p464 = scmp.eq.s32.totalorder %s106, 1
      %p465 = scmp.ne.s32.totalorder %s460, %s462
      %p466 = scmp.eq.s32.totalorder %s106, 0
      %p467 = por %p465, %p466
      %p468 = scmp.ne.s32.totalorder %s460, %s462
      %p469 = scmp.eq.s32.totalorder %s111, 1
      %p470 = por %p468, %p469
      %p471 = scmp.ne.s32.totalorder %s462, %s463
      %p472 = scmp.eq.s32.totalorder %s111, 0
      %p473 = por %p471, %p472
      %p474 = scmp.ne.s32.totalorder %s462, %s463
      %p475 = scmp.eq.s32.totalorder %s112, 1
      %p476 = por %p474, %p475
      %p478 = scmp.ne.s32.totalorder %s463, %s477
      %p479 = scmp.eq.s32.totalorder %s112, 0
      %p480 = por %p478, %p479
      %s482 = sadd.s32 %s481, 1
      %p485 = scmp.eq.s32.totalorder %s106, 1
      %p486 = scmp.ne.s32.totalorder %s481, %s483
      %p487 = scmp.eq.s32.totalorder %s106, 0
      %p488 = por %p486, %p487
      %p489 = scmp.ne.s32.totalorder %s481, %s483
      %p490 = scmp.eq.s32.totalorder %s111, 1
      %p491 = por %p489, %p490
      %p492 = scmp.ne.s32.totalorder %s483, %s484
      %p493 = scmp.eq.s32.totalorder %s111, 0
      %p494 = por %p492, %p493
      %p495 = scmp.ne.s32.totalorder %s483, %s484
      %p496 = scmp.eq.s32.totalorder %s112, 1
      %p497 = por %p495, %p496
      %p499 = scmp.ne.s32.totalorder %s484, %s498
      %p500 = scmp.eq.s32.totalorder %s112, 0
      %p501 = por %p499, %p500
      %s503 = sadd.s32 %s502, 1
      %p506 = scmp.eq.s32.totalorder %s106, 1
      %p507 = scmp.ne.s32.totalorder %s502, %s504
      %p508 = scmp.eq.s32.totalorder %s106, 0
      %p509 = por %p507, %p508
      %p510 = scmp.ne.s32.totalorder %s502, %s504
      %p511 = scmp.eq.s32.totalorder %s111, 1
      %p512 = por %p510, %p511
      %p513 = scmp.ne.s32.totalorder %s504, %s505
      %p514 = scmp.eq.s32.totalorder %s111, 0
      %p515 = por %p513, %p514
      %p516 = scmp.ne.s32.totalorder %s504, %s505
      %p517 = scmp.eq.s32.totalorder %s112, 1
      %p518 = por %p516, %p517
      %p520 = scmp.ne.s32.totalorder %s505, %s519
      %p521 = scmp.eq.s32.totalorder %s112, 0
      %p522 = por %p520, %p521
      %s524 = sadd.s32 %s523, 1
      %p527 = scmp.eq.s32.totalorder %s106, 1
      %p528 = scmp.ne.s32.totalorder %s523, %s525
      %p529 = scmp.eq.s32.totalorder %s106, 0
      %p530 = por %p528, %p529
      %p531 = scmp.ne.s32.totalorder %s523, %s525
      %p532 = scmp.eq.s32.totalorder %s111, 1
      %p533 = por %p531, %p532
      %p534 = scmp.ne.s32.totalorder %s525, %s526
      %p535 = scmp.eq.s32.totalorder %s111, 0
      %p536 = por %p534, %p535
      %p537 = scmp.ne.s32.totalorder %s525, %s526
      %p538 = scmp.eq.s32.totalorder %s112, 1
      %p539 = por %p537, %p538
      %p541 = scmp.ne.s32.totalorder %s526, %s540
      %p542 = scmp.eq.s32.totalorder %s112, 0
      %p543 = por %p541, %p542
      %s545 = sadd.s32 %s544, 1
      %p548 = scmp.eq.s32.totalorder %s106, 1
      %p549 = scmp.ne.s32.totalorder %s544, %s546
      %p550 = scmp.eq.s32.totalorder %s106, 0
      %p551 = por %p549, %p550
      %p552 = scmp.ne.s32.totalorder %s544, %s546
      %p553 = scmp.eq.s32.totalorder %s111, 1
      %p554 = por %p552, %p553
      %p555 = scmp.ne.s32.totalorder %s546, %s547
      %p556 = scmp.eq.s32.totalorder %s111, 0
      %p557 = por %p555, %p556
      %p558 = scmp.ne.s32.totalorder %s546, %s547
      %p559 = scmp.eq.s32.totalorder %s112, 1
      %p560 = por %p558, %p559
      %p562 = scmp.ne.s32.totalorder %s547, %s561
      %p563 = scmp.eq.s32.totalorder %s112, 0
      %p564 = por %p562, %p563
      %s566 = sadd.s32 %s565, 1
      %p569 = scmp.eq.s32.totalorder %s106, 1
      %p570 = scmp.ne.s32.totalorder %s565, %s567
      %p571 = scmp.eq.s32.totalorder %s106, 0
      %p572 = por %p570, %p571
      %p573 = scmp.ne.s32.totalorder %s565, %s567
      %p574 = scmp.eq.s32.totalorder %s111, 1
      %p575 = por %p573, %p574
      %p576 = scmp.ne.s32.totalorder %s567, %s568
      %p577 = scmp.eq.s32.totalorder %s111, 0
      %p578 = por %p576, %p577
      %p579 = scmp.ne.s32.totalorder %s567, %s568
      %p580 = scmp.eq.s32.totalorder %s112, 1
      %p581 = por %p579, %p580
      %p583 = scmp.ne.s32.totalorder %s568, %s582
      %p584 = scmp.eq.s32.totalorder %s112, 0
      %p585 = por %p583, %p584
      %s587 = sadd.s32 %s586, 1
      %p590 = scmp.eq.s32.totalorder %s106, 1
      %p591 = scmp.ne.s32.totalorder %s586, %s588
      %p592 = scmp.eq.s32.totalorder %s106, 0
      %p593 = por %p591, %p592
      %p594 = scmp.ne.s32.totalorder %s586, %s588
      %p595 = scmp.eq.s32.totalorder %s111, 1
      %p596 = por %p594, %p595
      %p597 = scmp.ne.s32.totalorder %s588, %s589
      %p598 = scmp.eq.s32.totalorder %s111, 0
      %p599 = por %p597, %p598
      %p600 = scmp.ne.s32.totalorder %s588, %s589
      %p601 = scmp.eq.s32.totalorder %s112, 1
      %p602 = por %p600, %p601
      %p604 = scmp.ne.s32.totalorder %s589, %s603
      %p605 = scmp.eq.s32.totalorder %s112, 0
      %p606 = por %p604, %p605
      %s608 = sadd.s32 %s607, 1
      %p611 = scmp.eq.s32.totalorder %s106, 1
      %p612 = scmp.ne.s32.totalorder %s607, %s609
      %p613 = scmp.eq.s32.totalorder %s106, 0
      %p614 = por %p612, %p613
      %p615 = scmp.ne.s32.totalorder %s607, %s609
      %p616 = scmp.eq.s32.totalorder %s111, 1
      %p617 = por %p615, %p616
      %p618 = scmp.ne.s32.totalorder %s609, %s610
      %p619 = scmp.eq.s32.totalorder %s111, 0
      %p620 = por %p618, %p619
      %p621 = scmp.ne.s32.totalorder %s609, %s610
      %p622 = scmp.eq.s32.totalorder %s112, 1
      %p623 = por %p621, %p622
      %p625 = scmp.ne.s32.totalorder %s610, %s624
      %p626 = scmp.eq.s32.totalorder %s112, 0
      %p627 = por %p625, %p626
      %s629 = sadd.s32 %s628, 1
      %p632 = scmp.eq.s32.totalorder %s106, 1
      %p633 = scmp.ne.s32.totalorder %s628, %s630
      %p634 = scmp.eq.s32.totalorder %s106, 0
      %p635 = por %p633, %p634
      %p636 = scmp.ne.s32.totalorder %s628, %s630
      %p637 = scmp.eq.s32.totalorder %s111, 1
      %p638 = por %p636, %p637
      %p639 = scmp.ne.s32.totalorder %s630, %s631
      %p640 = scmp.eq.s32.totalorder %s111, 0
      %p641 = por %p639, %p640
      %p642 = scmp.ne.s32.totalorder %s630, %s631
      %p643 = scmp.eq.s32.totalorder %s112, 1
      %p644 = por %p642, %p643
      %p646 = scmp.ne.s32.totalorder %s631, %s645
      %p647 = scmp.eq.s32.totalorder %s112, 0
      %p648 = por %p646, %p647
      %s650 = sadd.s32 %s649, 1
      %p653 = scmp.eq.s32.totalorder %s106, 1
      %p654 = scmp.ne.s32.totalorder %s649, %s651
      %p655 = scmp.eq.s32.totalorder %s106, 0
      %p656 = por %p654, %p655
      %p657 = scmp.ne.s32.totalorder %s649, %s651
      %p658 = scmp.eq.s32.totalorder %s111, 1
      %p659 = por %p657, %p658
      %p660 = scmp.ne.s32.totalorder %s651, %s652
      %p661 = scmp.eq.s32.totalorder %s111, 0
      %p662 = por %p660, %p661
      %p663 = scmp.ne.s32.totalorder %s651, %s652
      %p664 = scmp.eq.s32.totalorder %s112, 1
      %p665 = por %p663, %p664
      %p667 = scmp.ne.s32.totalorder %s652, %s666
      %p668 = scmp.eq.s32.totalorder %s112, 0
      %p669 = por %p667, %p668
      %s671 = sadd.s32 %s670, 1
      %p674 = scmp.eq.s32.totalorder %s106, 1
      %p675 = scmp.ne.s32.totalorder %s670, %s672
      %p676 = scmp.eq.s32.totalorder %s106, 0
      %p677 = por %p675, %p676
      %p678 = scmp.ne.s32.totalorder %s670, %s672
      %p679 = scmp.eq.s32.totalorder %s111, 1
      %p680 = por %p678, %p679
      %p681 = scmp.ne.s32.totalorder %s672, %s673
      %p682 = scmp.eq.s32.totalorder %s111, 0
      %p683 = por %p681, %p682
      %p684 = scmp.ne.s32.totalorder %s672, %s673
      %p685 = scmp.eq.s32.totalorder %s112, 1
      %p686 = por %p684, %p685
      %p688 = scmp.ne.s32.totalorder %s673, %s687
      %p689 = scmp.eq.s32.totalorder %s112, 0
      %p690 = por %p688, %p689
      %s692 = sadd.s32 %s691, 1
      %p695 = scmp.eq.s32.totalorder %s106, 1
      %p696 = scmp.ne.s32.totalorder %s691, %s693
      %p697 = scmp.eq.s32.totalorder %s106, 0
      %p698 = por %p696, %p697
      %p699 = scmp.ne.s32.totalorder %s691, %s693
      %p700 = scmp.eq.s32.totalorder %s111, 1
      %p701 = por %p699, %p700
      %p702 = scmp.ne.s32.totalorder %s693, %s694
      %p703 = scmp.eq.s32.totalorder %s111, 0
      %p704 = por %p702, %p703
      %p705 = scmp.ne.s32.totalorder %s693, %s694
      %p706 = scmp.eq.s32.totalorder %s112, 1
      %p707 = por %p705, %p706
      %p709 = scmp.ne.s32.totalorder %s694, %s708
      %p710 = scmp.eq.s32.totalorder %s112, 0
      %p711 = por %p709, %p710
      %s713 = sadd.s32 %s712, 1
      %p716 = scmp.eq.s32.totalorder %s106, 1
      %p717 = scmp.ne.s32.totalorder %s712, %s714
      %p718 = scmp.eq.s32.totalorder %s106, 0
      %p719 = por %p717, %p718
      %p720 = scmp.ne.s32.totalorder %s712, %s714
      %p721 = scmp.eq.s32.totalorder %s111, 1
      %p722 = por %p720, %p721
      %p723 = scmp.ne.s32.totalorder %s714, %s715
      %p724 = scmp.eq.s32.totalorder %s111, 0
      %p725 = por %p723, %p724
      %p726 = scmp.ne.s32.totalorder %s714, %s715
      %p727 = scmp.eq.s32.totalorder %s112, 1
      %p728 = por %p726, %p727
      %p730 = scmp.ne.s32.totalorder %s715, %s729
      %p731 = scmp.eq.s32.totalorder %s112, 0
      %p732 = por %p730, %p731
      %s734 = sadd.s32 %s733, 1
      %p737 = scmp.eq.s32.totalorder %s106, 1
      %p738 = scmp.ne.s32.totalorder %s733, %s735
      %p739 = scmp.eq.s32.totalorder %s106, 0
      %p740 = por %p738, %p739
      %p741 = scmp.ne.s32.totalorder %s733, %s735
      %p742 = scmp.eq.s32.totalorder %s111, 1
      %p743 = por %p741, %p742
      %p744 = scmp.ne.s32.totalorder %s735, %s736
      %p745 = scmp.eq.s32.totalorder %s111, 0
      %p746 = por %p744, %p745
      %p747 = scmp.ne.s32.totalorder %s735, %s736
      %p748 = scmp.eq.s32.totalorder %s112, 1
      %p749 = por %p747, %p748
      %p751 = scmp.ne.s32.totalorder %s736, %s750
      %p752 = scmp.eq.s32.totalorder %s112, 0
      %p753 = por %p751, %p752
      %s755 = sadd.s32 %s754, 1
      %p758 = scmp.eq.s32.totalorder %s106, 1
      %p759 = scmp.ne.s32.totalorder %s754, %s756
      %p760 = scmp.eq.s32.totalorder %s106, 0
      %p761 = por %p759, %p760
      %p762 = scmp.ne.s32.totalorder %s754, %s756
      %p763 = scmp.eq.s32.totalorder %s111, 1
      %p764 = por %p762, %p763
      %p765 = scmp.ne.s32.totalorder %s756, %s757
      %p766 = scmp.eq.s32.totalorder %s111, 0
      %p767 = por %p765, %p766
      %p768 = scmp.ne.s32.totalorder %s756, %s757
      %p769 = scmp.eq.s32.totalorder %s112, 1
      %p770 = por %p768, %p769
      %p772 = scmp.ne.s32.totalorder %s757, %s771
      %p773 = scmp.eq.s32.totalorder %s112, 0
      %p774 = por %p772, %p773
      %s776 = sadd.s32 %s775, 1
      %p779 = scmp.eq.s32.totalorder %s106, 1
      %p780 = scmp.ne.s32.totalorder %s775, %s777
      %p781 = scmp.eq.s32.totalorder %s106, 0
      %p782 = por %p780, %p781
      %p783 = scmp.ne.s32.totalorder %s775, %s777
      %p784 = scmp.eq.s32.totalorder %s111, 1
      %p785 = por %p783, %p784
      %p786 = scmp.ne.s32.totalorder %s777, %s778
      %p787 = scmp.eq.s32.totalorder %s111, 0
      %p788 = por %p786, %p787
      %p789 = scmp.ne.s32.totalorder %s777, %s778
      %p790 = scmp.eq.s32.totalorder %s112, 1
      %p791 = por %p789, %p790
      %p793 = scmp.ne.s32.totalorder %s778, %s792
      %p794 = scmp.eq.s32.totalorder %s112, 0
      %p795 = por %p793, %p794
      %s797 = sadd.s32 %s796, 1
      %p800 = scmp.eq.s32.totalorder %s106, 1
      %p801 = scmp.ne.s32.totalorder %s796, %s798
      %p802 = scmp.eq.s32.totalorder %s106, 0
      %p803 = por %p801, %p802
      %p804 = scmp.ne.s32.totalorder %s796, %s798
      %p805 = scmp.eq.s32.totalorder %s111, 1
      %p806 = por %p804, %p805
      %p807 = scmp.ne.s32.totalorder %s798, %s799
      %p808 = scmp.eq.s32.totalorder %s111, 0
      %p809 = por %p807, %p808
      %p810 = scmp.ne.s32.totalorder %s798, %s799
      %p811 = scmp.eq.s32.totalorder %s112, 1
      %p812 = por %p810, %p811
      %p814 = scmp.ne.s32.totalorder %s799, %s813
      %p815 = scmp.eq.s32.totalorder %s112, 0
      %p816 = por %p814, %p815
      %s818 = sadd.s32 %s817, 1
      %p821 = scmp.eq.s32.totalorder %s106, 1
      %p822 = scmp.ne.s32.totalorder %s817, %s819
      %p823 = scmp.eq.s32.totalorder %s106, 0
      %p824 = por %p822, %p823
      %p825 = scmp.ne.s32.totalorder %s817, %s819
      %p826 = scmp.eq.s32.totalorder %s111, 1
      %p827 = por %p825, %p826
      %p828 = scmp.ne.s32.totalorder %s819, %s820
      %p829 = scmp.eq.s32.totalorder %s111, 0
      %p830 = por %p828, %p829
      %p831 = scmp.ne.s32.totalorder %s819, %s820
      %p832 = scmp.eq.s32.totalorder %s112, 1
      %p833 = por %p831, %p832
      %p835 = scmp.ne.s32.totalorder %s820, %s834
      %p836 = scmp.eq.s32.totalorder %s112, 0
      %p837 = por %p835, %p836
      %s839 = sadd.s32 %s838, 1
      %p842 = scmp.eq.s32.totalorder %s106, 1
      %p843 = scmp.ne.s32.totalorder %s838, %s840
      %p844 = scmp.eq.s32.totalorder %s106, 0
      %p845 = por %p843, %p844
      %p846 = scmp.ne.s32.totalorder %s838, %s840
      %p847 = scmp.eq.s32.totalorder %s111, 1
      %p848 = por %p846, %p847
      %p849 = scmp.ne.s32.totalorder %s840, %s841
      %p850 = scmp.eq.s32.totalorder %s111, 0
      %p851 = por %p849, %p850
      %p852 = scmp.ne.s32.totalorder %s840, %s841
      %p853 = scmp.eq.s32.totalorder %s112, 1
      %p854 = por %p852, %p853
      %p856 = scmp.ne.s32.totalorder %s841, %s855
      %p857 = scmp.eq.s32.totalorder %s112, 0
      %p858 = por %p856, %p857
      %s860 = sadd.s32 %s859, 1
      %p863 = scmp.eq.s32.totalorder %s106, 1
      %p864 = scmp.ne.s32.totalorder %s859, %s861
      %p865 = scmp.eq.s32.totalorder %s106, 0
      %p866 = por %p864, %p865
      %p867 = scmp.ne.s32.totalorder %s859, %s861
      %p868 = scmp.eq.s32.totalorder %s111, 1
      %p869 = por %p867, %p868
      %p870 = scmp.ne.s32.totalorder %s861, %s862
      %p871 = scmp.eq.s32.totalorder %s111, 0
      %p872 = por %p870, %p871
      %p873 = scmp.ne.s32.totalorder %s861, %s862
      %p874 = scmp.eq.s32.totalorder %s112, 1
      %p875 = por %p873, %p874
      %p877 = scmp.ne.s32.totalorder %s862, %s876
      %p878 = scmp.eq.s32.totalorder %s112, 0
      %p879 = por %p877, %p878
      %s881 = sadd.s32 %s880, 1
      %p884 = scmp.eq.s32.totalorder %s106, 1
      %p885 = scmp.ne.s32.totalorder %s880, %s882
      %p886 = scmp.eq.s32.totalorder %s106, 0
      %p887 = por %p885, %p886
      %p888 = scmp.ne.s32.totalorder %s880, %s882
      %p889 = scmp.eq.s32.totalorder %s111, 1
      %p890 = por %p888, %p889
      %p891 = scmp.ne.s32.totalorder %s882, %s883
      %p892 = scmp.eq.s32.totalorder %s111, 0
      %p893 = por %p891, %p892
      %p894 = scmp.ne.s32.totalorder %s882, %s883
      %p895 = scmp.eq.s32.totalorder %s112, 1
      %p896 = por %p894, %p895
      %p898 = scmp.ne.s32.totalorder %s883, %s897
      %p899 = scmp.eq.s32.totalorder %s112, 0
      %p900 = por %p898, %p899
      %s902 = sadd.s32 %s901, 1
      %p905 = scmp.eq.s32.totalorder %s106, 1
      %p906 = scmp.ne.s32.totalorder %s901, %s903
      %p907 = scmp.eq.s32.totalorder %s106, 0
      %p908 = por %p906, %p907
      %p909 = scmp.ne.s32.totalorder %s901, %s903
      %p910 = scmp.eq.s32.totalorder %s111, 1
      %p911 = por %p909, %p910
      %p912 = scmp.ne.s32.totalorder %s903, %s904
      %p913 = scmp.eq.s32.totalorder %s111, 0
      %p914 = por %p912, %p913
      %p915 = scmp.ne.s32.totalorder %s903, %s904
      %p916 = scmp.eq.s32.totalorder %s112, 1
      %p917 = por %p915, %p916
      %p919 = scmp.ne.s32.totalorder %s904, %s918
      %p920 = scmp.eq.s32.totalorder %s112, 0
      %p921 = por %p919, %p920
      %s923 = sadd.s32 %s922, 1
      %p926 = scmp.eq.s32.totalorder %s106, 1
      %p927 = scmp.ne.s32.totalorder %s922, %s924
      %p928 = scmp.eq.s32.totalorder %s106, 0
      %p929 = por %p927, %p928
      %p930 = scmp.ne.s32.totalorder %s922, %s924
      %p931 = scmp.eq.s32.totalorder %s111, 1
      %p932 = por %p930, %p931
      %p933 = scmp.ne.s32.totalorder %s924, %s925
      %p934 = scmp.eq.s32.totalorder %s111, 0
      %p935 = por %p933, %p934
      %p936 = scmp.ne.s32.totalorder %s924, %s925
      %p937 = scmp.eq.s32.totalorder %s112, 1
      %p938 = por %p936, %p937
      %p940 = scmp.ne.s32.totalorder %s925, %s939
      %p941 = scmp.eq.s32.totalorder %s112, 0
      %p942 = por %p940, %p941
      %s944 = sadd.s32 %s943, 1
      %p947 = scmp.eq.s32.totalorder %s106, 1
      %p948 = scmp.ne.s32.totalorder %s943, %s945
      %p949 = scmp.eq.s32.totalorder %s106, 0
      %p950 = por %p948, %p949
      %p951 = scmp.ne.s32.totalorder %s943, %s945
      %p952 = scmp.eq.s32.totalorder %s111, 1
      %p953 = por %p951, %p952
      %p954 = scmp.ne.s32.totalorder %s945, %s946
      %p955 = scmp.eq.s32.totalorder %s111, 0
      %p956 = por %p954, %p955
      %p957 = scmp.ne.s32.totalorder %s945, %s946
      %p958 = scmp.eq.s32.totalorder %s112, 1
      %p959 = por %p957, %p958
      %p961 = scmp.ne.s32.totalorder %s946, %s960
      %p962 = scmp.eq.s32.totalorder %s112, 0
      %p963 = por %p961, %p962
      %s965 = sadd.s32 %s964, 1
      %p968 = scmp.eq.s32.totalorder %s106, 1
      %p969 = scmp.ne.s32.totalorder %s964, %s966
      %p970 = scmp.eq.s32.totalorder %s106, 0
      %p971 = por %p969, %p970
      %p972 = scmp.ne.s32.totalorder %s964, %s966
      %p973 = scmp.eq.s32.totalorder %s111, 1
      %p974 = por %p972, %p973
      %p975 = scmp.ne.s32.totalorder %s966, %s967
      %p976 = scmp.eq.s32.totalorder %s111, 0
      %p977 = por %p975, %p976
      %p978 = scmp.ne.s32.totalorder %s966, %s967
      %p979 = scmp.eq.s32.totalorder %s112, 1
      %p980 = por %p978, %p979
      %p982 = scmp.ne.s32.totalorder %s967, %s981
      %p983 = scmp.eq.s32.totalorder %s112, 0
      %p984 = por %p982, %p983
      %s986 = sadd.s32 %s985, 1
      %p989 = scmp.eq.s32.totalorder %s106, 1
      %p990 = scmp.ne.s32.totalorder %s985, %s987
      %p991 = scmp.eq.s32.totalorder %s106, 0
      %p992 = por %p990, %p991
      %p993 = scmp.ne.s32.totalorder %s985, %s987
      %p994 = scmp.eq.s32.totalorder %s111, 1
      %p995 = por %p993, %p994
      %p996 = scmp.ne.s32.totalorder %s987, %s988
      %p997 = scmp.eq.s32.totalorder %s111, 0
      %p998 = por %p996, %p997
      %p999 = scmp.ne.s32.totalorder %s987, %s988
      %p1000 = scmp.eq.s32.totalorder %s112, 1
      %p1001 = por %p999, %p1000
      %p1003 = scmp.ne.s32.totalorder %s988, %s1002
      %p1004 = scmp.eq.s32.totalorder %s112, 0
      %p1005 = por %p1003, %p1004
      %s1007 = sadd.s32 %s1006, 1
      %p1010 = scmp.eq.s32.totalorder %s106, 1
      %p1011 = scmp.ne.s32.totalorder %s1006, %s1008
      %p1012 = scmp.eq.s32.totalorder %s106, 0
      %p1013 = por %p1011, %p1012
      %p1014 = scmp.ne.s32.totalorder %s1006, %s1008
      %p1015 = scmp.eq.s32.totalorder %s111, 1
      %p1016 = por %p1014, %p1015
      %p1017 = scmp.ne.s32.totalorder %s1008, %s1009
      %p1018 = scmp.eq.s32.totalorder %s111, 0
      %p1019 = por %p1017, %p1018
      %p1020 = scmp.ne.s32.totalorder %s1008, %s1009
      %p1021 = scmp.eq.s32.totalorder %s112, 1
      %p1022 = por %p1020, %p1021
      %p1024 = scmp.ne.s32.totalorder %s1009, %s1023
      %p1025 = scmp.eq.s32.totalorder %s112, 0
      %p1026 = por %p1024, %p1025
      %s1028 = sadd.s32 %s1027, 1
      %p1031 = scmp.eq.s32.totalorder %s106, 1
      %p1032 = scmp.ne.s32.totalorder %s1027, %s1029
      %p1033 = scmp.eq.s32.totalorder %s106, 0
      %p1034 = por %p1032, %p1033
      %p1035 = scmp.ne.s32.totalorder %s1027, %s1029
      %p1036 = scmp.eq.s32.totalorder %s111, 1
      %p1037 = por %p1035, %p1036
      %p1038 = scmp.ne.s32.totalorder %s1029, %s1030
      %p1039 = scmp.eq.s32.totalorder %s111, 0
      %p1040 = por %p1038, %p1039
      %p1041 = scmp.ne.s32.totalorder %s1029, %s1030
      %p1042 = scmp.eq.s32.totalorder %s112, 1
      %p1043 = por %p1041, %p1042
      %p1045 = scmp.ne.s32.totalorder %s1030, %s1044
      %p1046 = scmp.eq.s32.totalorder %s112, 0
      %p1047 = por %p1045, %p1046
      %s1049 = sadd.s32 %s1048, 1
      %p1052 = scmp.eq.s32.totalorder %s106, 1
      %p1053 = scmp.ne.s32.totalorder %s1048, %s1050
      %p1054 = scmp.eq.s32.totalorder %s106, 0
      %p1055 = por %p1053, %p1054
      %p1056 = scmp.ne.s32.totalorder %s1048, %s1050
      %p1057 = scmp.eq.s32.totalorder %s111, 1
      %p1058 = por %p1056, %p1057
      %p1059 = scmp.ne.s32.totalorder %s1050, %s1051
      %p1060 = scmp.eq.s32.totalorder %s111, 0
      %p1061 = por %p1059, %p1060
      %p1062 = scmp.ne.s32.totalorder %s1050, %s1051
      %p1063 = scmp.eq.s32.totalorder %s112, 1
      %p1064 = por %p1062, %p1063
      %p1066 = scmp.ne.s32.totalorder %s1051, %s1065
      %p1067 = scmp.eq.s32.totalorder %s112, 0
      %p1068 = por %p1066, %p1067
      %s1070 = sadd.s32 %s1069, 1
      %p1073 = scmp.eq.s32.totalorder %s106, 1
      %p1074 = scmp.ne.s32.totalorder %s1069, %s1071
      %p1075 = scmp.eq.s32.totalorder %s106, 0
      %p1076 = por %p1074, %p1075
      %p1077 = scmp.ne.s32.totalorder %s1069, %s1071
      %p1078 = scmp.eq.s32.totalorder %s111, 1
      %p1079 = por %p1077, %p1078
      %p1080 = scmp.ne.s32.totalorder %s1071, %s1072
      %p1081 = scmp.eq.s32.totalorder %s111, 0
      %p1082 = por %p1080, %p1081
      %p1083 = scmp.ne.s32.totalorder %s1071, %s1072
      %p1084 = scmp.eq.s32.totalorder %s112, 1
      %p1085 = por %p1083, %p1084
      %p1087 = scmp.ne.s32.totalorder %s1072, %s1086
      %p1088 = scmp.eq.s32.totalorder %s112, 0
      %p1089 = por %p1087, %p1088
      %s1091 = sadd.s32 %s1090, 1
      %p1094 = scmp.eq.s32.totalorder %s106, 1
      %p1095 = scmp.ne.s32.totalorder %s1090, %s1092
      %p1096 = scmp.eq.s32.totalorder %s106, 0
      %p1097 = por %p1095, %p1096
      %p1098 = scmp.ne.s32.totalorder %s1090, %s1092
      %p1099 = scmp.eq.s32.totalorder %s111, 1
      %p1100 = por %p1098, %p1099
      %p1101 = scmp.ne.s32.totalorder %s1092, %s1093
      %p1102 = scmp.eq.s32.totalorder %s111, 0
      %p1103 = por %p1101, %p1102
      %p1104 = scmp.ne.s32.totalorder %s1092, %s1093
      %p1105 = scmp.eq.s32.totalorder %s112, 1
      %p1106 = por %p1104, %p1105
      %p1108 = scmp.ne.s32.totalorder %s1093, %s1107
      %p1109 = scmp.eq.s32.totalorder %s112, 0
      %p1110 = por %p1108, %p1109
      %s1111 = ssub.s32 %s106, %s113
      %p1112 = scmp.eq.s32.totalorder %s1111, 0
      %s1114 = sadd.s32 %s1113, 1
      %s1115 = scalar_select %p1112, %s1113, %s1114
      %p1118 = pneg %p1112
      %p1119 = scmp.eq.s32.totalorder %s106, 1
      %p1120 = por %p1118, %p1119
      %p1121 = scmp.ne.s32.totalorder %s1113, %s1116
      %p1122 = scmp.eq.s32.totalorder %s106, 0
      %p1123 = por %p1121, %p1122
      %p1124 = scmp.ne.s32.totalorder %s1113, %s1116
      %p1125 = scmp.eq.s32.totalorder %s111, 1
      %p1126 = por %p1124, %p1125
      %p1127 = scmp.ne.s32.totalorder %s1116, %s1117
      %p1128 = scmp.eq.s32.totalorder %s111, 0
      %p1129 = por %p1127, %p1128
      %p1130 = scmp.ne.s32.totalorder %s1116, %s1117
      %p1131 = scmp.eq.s32.totalorder %s112, 1
      %p1132 = por %p1130, %p1131
      %p1134 = scmp.ne.s32.totalorder %s1117, %s1133
      %p1135 = scmp.eq.s32.totalorder %s112, 0
      %p1136 = por %p1134, %p1135
      %p1137 = scmp.le.s32.totalorder 1, %s106
      %p1138 = scmp.lt.s32.totalorder %s106, 3
      %p1139 = pnand %p1137, %p1138
      %p1140 = pneg %p1139
      // Predicated region
      $region9: #{_lambda_.1} parent=5 // pred_check
        _
      $region10: #{_lambda_.1} parent=5 // pred_check_branch
        %1142 = sbr.rel (%p1139) target = $region12
      $region11: #{_lambda_.1} parent=5 // pred_region
        %s1143 = ssub.s32 %s106, 1
        // Predicated region
        $region13: #{_lambda_.1} parent=11 // pred_check
          %p1144 = pneg %p179
        $region14: #{_lambda_.1} parent=11 // pred_check_branch
          %1146 = sbr.rel (%p1144) target = $region16
        $region15: #{_lambda_.1} parent=11 // pred_region
          _
        $region16: #{_lambda_.1} parent=11 // pred_fallthru
          _
        // Predicated region
        $region17: #{_lambda_.1} parent=11 // pred_check
          %p1147 = pneg %p200
        $region18: #{_lambda_.1} parent=11 // pred_check_branch
          %1149 = sbr.rel (%p1147) target = $region20
        $region19: #{_lambda_.1} parent=11 // pred_region
          _
        $region20: #{_lambda_.1} parent=11 // pred_fallthru
          _
        // Predicated region
        $region21: #{_lambda_.1} parent=11 // pred_check
          %p1150 = pneg %p221
        $region22: #{_lambda_.1} parent=11 // pred_check_branch
          %1152 = sbr.rel (%p1150) target = $region24
        $region23: #{_lambda_.1} parent=11 // pred_region
          _
        $region24: #{_lambda_.1} parent=11 // pred_fallthru
          _
        // Predicated region
        $region25: #{_lambda_.1} parent=11 // pred_check
          %p1153 = pneg %p242
        $region26: #{_lambda_.1} parent=11 // pred_check_branch
          %1155 = sbr.rel (%p1153) target = $region28
        $region27: #{_lambda_.1} parent=11 // pred_region
          _
        $region28: #{_lambda_.1} parent=11 // pred_fallthru
          _
        // Predicated region
        $region29: #{_lambda_.1} parent=11 // pred_check
          %p1156 = pneg %p263
        $region30: #{_lambda_.1} parent=11 // pred_check_branch
          %1158 = sbr.rel (%p1156) target = $region32
        $region31: #{_lambda_.1} parent=11 // pred_region
          _
        $region32: #{_lambda_.1} parent=11 // pred_fallthru
          _
        // Predicated region
        $region33: #{_lambda_.1} parent=11 // pred_check
          %p1159 = pneg %p284
        $region34: #{_lambda_.1} parent=11 // pred_check_branch
          %1161 = sbr.rel (%p1159) target = $region36
        $region35: #{_lambda_.1} parent=11 // pred_region
          _
        $region36: #{_lambda_.1} parent=11 // pred_fallthru
          _
        // Predicated region
        $region37: #{_lambda_.1} parent=11 // pred_check
          %p1162 = pneg %p305
        $region38: #{_lambda_.1} parent=11 // pred_check_branch
          %1164 = sbr.rel (%p1162) target = $region40
        $region39: #{_lambda_.1} parent=11 // pred_region
          _
        $region40: #{_lambda_.1} parent=11 // pred_fallthru
          _
        // Predicated region
        $region41: #{_lambda_.1} parent=11 // pred_check
          %p1165 = pneg %p326
        $region42: #{_lambda_.1} parent=11 // pred_check_branch
          %1167 = sbr.rel (%p1165) target = $region44
        $region43: #{_lambda_.1} parent=11 // pred_region
          _
        $region44: #{_lambda_.1} parent=11 // pred_fallthru
          _
        // Predicated region
        $region45: #{_lambda_.1} parent=11 // pred_check
          %p1168 = pneg %p347
        $region46: #{_lambda_.1} parent=11 // pred_check_branch
          %1170 = sbr.rel (%p1168) target = $region48
        $region47: #{_lambda_.1} parent=11 // pred_region
          _
        $region48: #{_lambda_.1} parent=11 // pred_fallthru
          _
        // Predicated region
        $region49: #{_lambda_.1} parent=11 // pred_check
          %p1171 = pneg %p368
        $region50: #{_lambda_.1} parent=11 // pred_check_branch
          %1173 = sbr.rel (%p1171) target = $region52
        $region51: #{_lambda_.1} parent=11 // pred_region
          _
        $region52: #{_lambda_.1} parent=11 // pred_fallthru
          _
        // Predicated region
        $region53: #{_lambda_.1} parent=11 // pred_check
          %p1174 = pneg %p389
        $region54: #{_lambda_.1} parent=11 // pred_check_branch
          %1176 = sbr.rel (%p1174) target = $region56
        $region55: #{_lambda_.1} parent=11 // pred_region
          _
        $region56: #{_lambda_.1} parent=11 // pred_fallthru
          _
        // Predicated region
        $region57: #{_lambda_.1} parent=11 // pred_check
          %p1177 = pneg %p410
        $region58: #{_lambda_.1} parent=11 // pred_check_branch
          %1179 = sbr.rel (%p1177) target = $region60
        $region59: #{_lambda_.1} parent=11 // pred_region
          _
        $region60: #{_lambda_.1} parent=11 // pred_fallthru
          _
        // Predicated region
        $region61: #{_lambda_.1} parent=11 // pred_check
          %p1180 = pneg %p431
        $region62: #{_lambda_.1} parent=11 // pred_check_branch
          %1182 = sbr.rel (%p1180) target = $region64
        $region63: #{_lambda_.1} parent=11 // pred_region
          _
        $region64: #{_lambda_.1} parent=11 // pred_fallthru
          _
        // Predicated region
        $region65: #{_lambda_.1} parent=11 // pred_check
          %p1183 = pneg %p452
        $region66: #{_lambda_.1} parent=11 // pred_check_branch
          %1185 = sbr.rel (%p1183) target = $region68
        $region67: #{_lambda_.1} parent=11 // pred_region
          _
        $region68: #{_lambda_.1} parent=11 // pred_fallthru
          _
        // Predicated region
        $region69: #{_lambda_.1} parent=11 // pred_check
          %p1186 = pneg %p473
        $region70: #{_lambda_.1} parent=11 // pred_check_branch
          %1188 = sbr.rel (%p1186) target = $region72
        $region71: #{_lambda_.1} parent=11 // pred_region
          _
        $region72: #{_lambda_.1} parent=11 // pred_fallthru
          _
        // Predicated region
        $region73: #{_lambda_.1} parent=11 // pred_check
          %p1189 = pneg %p494
        $region74: #{_lambda_.1} parent=11 // pred_check_branch
          %1191 = sbr.rel (%p1189) target = $region76
        $region75: #{_lambda_.1} parent=11 // pred_region
          _
        $region76: #{_lambda_.1} parent=11 // pred_fallthru
          _
        // Predicated region
        $region77: #{_lambda_.1} parent=11 // pred_check
          %p1192 = pneg %p515
        $region78: #{_lambda_.1} parent=11 // pred_check_branch
          %1194 = sbr.rel (%p1192) target = $region80
        $region79: #{_lambda_.1} parent=11 // pred_region
          _
        $region80: #{_lambda_.1} parent=11 // pred_fallthru
          _
        // Predicated region
        $region81: #{_lambda_.1} parent=11 // pred_check
          %p1195 = pneg %p536
        $region82: #{_lambda_.1} parent=11 // pred_check_branch
          %1197 = sbr.rel (%p1195) target = $region84
        $region83: #{_lambda_.1} parent=11 // pred_region
          _
        $region84: #{_lambda_.1} parent=11 // pred_fallthru
          _
        // Predicated region
        $region85: #{_lambda_.1} parent=11 // pred_check
          %p1198 = pneg %p557
        $region86: #{_lambda_.1} parent=11 // pred_check_branch
          %1200 = sbr.rel (%p1198) target = $region88
        $region87: #{_lambda_.1} parent=11 // pred_region
          _
        $region88: #{_lambda_.1} parent=11 // pred_fallthru
          _
        // Predicated region
        $region89: #{_lambda_.1} parent=11 // pred_check
          %p1201 = pneg %p578
        $region90: #{_lambda_.1} parent=11 // pred_check_branch
          %1203 = sbr.rel (%p1201) target = $region92
        $region91: #{_lambda_.1} parent=11 // pred_region
          _
        $region92: #{_lambda_.1} parent=11 // pred_fallthru
          _
        // Predicated region
        $region93: #{_lambda_.1} parent=11 // pred_check
          %p1204 = pneg %p599
        $region94: #{_lambda_.1} parent=11 // pred_check_branch
          %1206 = sbr.rel (%p1204) target = $region96
        $region95: #{_lambda_.1} parent=11 // pred_region
          _
        $region96: #{_lambda_.1} parent=11 // pred_fallthru
          _
        // Predicated region
        $region97: #{_lambda_.1} parent=11 // pred_check
          %p1207 = pneg %p620
        $region98: #{_lambda_.1} parent=11 // pred_check_branch
          %1209 = sbr.rel (%p1207) target = $region100
        $region99: #{_lambda_.1} parent=11 // pred_region
          _
        $region100: #{_lambda_.1} parent=11 // pred_fallthru
          _
        // Predicated region
        $region101: #{_lambda_.1} parent=11 // pred_check
          %p1210 = pneg %p641
        $region102: #{_lambda_.1} parent=11 // pred_check_branch
          %1212 = sbr.rel (%p1210) target = $region104
        $region103: #{_lambda_.1} parent=11 // pred_region
          _
        $region104: #{_lambda_.1} parent=11 // pred_fallthru
          _
        // Predicated region
        $region105: #{_lambda_.1} parent=11 // pred_check
          %p1213 = pneg %p662
        $region106: #{_lambda_.1} parent=11 // pred_check_branch
          %1215 = sbr.rel (%p1213) target = $region108
        $region107: #{_lambda_.1} parent=11 // pred_region
          _
        $region108: #{_lambda_.1} parent=11 // pred_fallthru
          _
        // Predicated region
        $region109: #{_lambda_.1} parent=11 // pred_check
          %p1216 = pneg %p683
        $region110: #{_lambda_.1} parent=11 // pred_check_branch
          %1218 = sbr.rel (%p1216) target = $region112
        $region111: #{_lambda_.1} parent=11 // pred_region
          _
        $region112: #{_lambda_.1} parent=11 // pred_fallthru
          _
        // Predicated region
        $region113: #{_lambda_.1} parent=11 // pred_check
          %p1219 = pneg %p704
        $region114: #{_lambda_.1} parent=11 // pred_check_branch
          %1221 = sbr.rel (%p1219) target = $region116
        $region115: #{_lambda_.1} parent=11 // pred_region
          _
        $region116: #{_lambda_.1} parent=11 // pred_fallthru
          _
        // Predicated region
        $region117: #{_lambda_.1} parent=11 // pred_check
          %p1222 = pneg %p725
        $region118: #{_lambda_.1} parent=11 // pred_check_branch
          %1224 = sbr.rel (%p1222) target = $region120
        $region119: #{_lambda_.1} parent=11 // pred_region
          _
        $region120: #{_lambda_.1} parent=11 // pred_fallthru
          _
        // Predicated region
        $region121: #{_lambda_.1} parent=11 // pred_check
          %p1225 = pneg %p746
        $region122: #{_lambda_.1} parent=11 // pred_check_branch
          %1227 = sbr.rel (%p1225) target = $region124
        $region123: #{_lambda_.1} parent=11 // pred_region
          _
        $region124: #{_lambda_.1} parent=11 // pred_fallthru
          _
        // Predicated region
        $region125: #{_lambda_.1} parent=11 // pred_check
          %p1228 = pneg %p767
        $region126: #{_lambda_.1} parent=11 // pred_check_branch
          %1230 = sbr.rel (%p1228) target = $region128
        $region127: #{_lambda_.1} parent=11 // pred_region
          _
        $region128: #{_lambda_.1} parent=11 // pred_fallthru
          _
        // Predicated region
        $region129: #{_lambda_.1} parent=11 // pred_check
          %p1231 = pneg %p788
        $region130: #{_lambda_.1} parent=11 // pred_check_branch
          %1233 = sbr.rel (%p1231) target = $region132
        $region131: #{_lambda_.1} parent=11 // pred_region
          _
        $region132: #{_lambda_.1} parent=11 // pred_fallthru
          _
        // Predicated region
        $region133: #{_lambda_.1} parent=11 // pred_check
          %p1234 = pneg %p809
        $region134: #{_lambda_.1} parent=11 // pred_check_branch
          %1236 = sbr.rel (%p1234) target = $region136
        $region135: #{_lambda_.1} parent=11 // pred_region
          _
        $region136: #{_lambda_.1} parent=11 // pred_fallthru
          _
        // Predicated region
        $region137: #{_lambda_.1} parent=11 // pred_check
          %p1237 = pneg %p830
        $region138: #{_lambda_.1} parent=11 // pred_check_branch
          %1239 = sbr.rel (%p1237) target = $region140
        $region139: #{_lambda_.1} parent=11 // pred_region
          _
        $region140: #{_lambda_.1} parent=11 // pred_fallthru
          _
        // Predicated region
        $region141: #{_lambda_.1} parent=11 // pred_check
          %p1240 = pneg %p851
        $region142: #{_lambda_.1} parent=11 // pred_check_branch
          %1242 = sbr.rel (%p1240) target = $region144
        $region143: #{_lambda_.1} parent=11 // pred_region
          _
        $region144: #{_lambda_.1} parent=11 // pred_fallthru
          _
        // Predicated region
        $region145: #{_lambda_.1} parent=11 // pred_check
          %p1243 = pneg %p872
        $region146: #{_lambda_.1} parent=11 // pred_check_branch
          %1245 = sbr.rel (%p1243) target = $region148
        $region147: #{_lambda_.1} parent=11 // pred_region
          _
        $region148: #{_lambda_.1} parent=11 // pred_fallthru
          _
        // Predicated region
        $region149: #{_lambda_.1} parent=11 // pred_check
          %p1246 = pneg %p893
        $region150: #{_lambda_.1} parent=11 // pred_check_branch
          %1248 = sbr.rel (%p1246) target = $region152
        $region151: #{_lambda_.1} parent=11 // pred_region
          _
        $region152: #{_lambda_.1} parent=11 // pred_fallthru
          _
        // Predicated region
        $region153: #{_lambda_.1} parent=11 // pred_check
          %p1249 = pneg %p914
        $region154: #{_lambda_.1} parent=11 // pred_check_branch
          %1251 = sbr.rel (%p1249) target = $region156
        $region155: #{_lambda_.1} parent=11 // pred_region
          _
        $region156: #{_lambda_.1} parent=11 // pred_fallthru
          _
        // Predicated region
        $region157: #{_lambda_.1} parent=11 // pred_check
          %p1252 = pneg %p935
        $region158: #{_lambda_.1} parent=11 // pred_check_branch
          %1254 = sbr.rel (%p1252) target = $region160
        $region159: #{_lambda_.1} parent=11 // pred_region
          _
        $region160: #{_lambda_.1} parent=11 // pred_fallthru
          _
        // Predicated region
        $region161: #{_lambda_.1} parent=11 // pred_check
          %p1255 = pneg %p956
        $region162: #{_lambda_.1} parent=11 // pred_check_branch
          %1257 = sbr.rel (%p1255) target = $region164
        $region163: #{_lambda_.1} parent=11 // pred_region
          _
        $region164: #{_lambda_.1} parent=11 // pred_fallthru
          _
        // Predicated region
        $region165: #{_lambda_.1} parent=11 // pred_check
          %p1258 = pneg %p977
        $region166: #{_lambda_.1} parent=11 // pred_check_branch
          %1260 = sbr.rel (%p1258) target = $region168
        $region167: #{_lambda_.1} parent=11 // pred_region
          _
        $region168: #{_lambda_.1} parent=11 // pred_fallthru
          _
        // Predicated region
        $region169: #{_lambda_.1} parent=11 // pred_check
          %p1261 = pneg %p998
        $region170: #{_lambda_.1} parent=11 // pred_check_branch
          %1263 = sbr.rel (%p1261) target = $region172
        $region171: #{_lambda_.1} parent=11 // pred_region
          _
        $region172: #{_lambda_.1} parent=11 // pred_fallthru
          _
        // Predicated region
        $region173: #{_lambda_.1} parent=11 // pred_check
          %p1264 = pneg %p1019
        $region174: #{_lambda_.1} parent=11 // pred_check_branch
          %1266 = sbr.rel (%p1264) target = $region176
        $region175: #{_lambda_.1} parent=11 // pred_region
          _
        $region176: #{_lambda_.1} parent=11 // pred_fallthru
          _
        // Predicated region
        $region177: #{_lambda_.1} parent=11 // pred_check
          %p1267 = pneg %p1040
        $region178: #{_lambda_.1} parent=11 // pred_check_branch
          %1269 = sbr.rel (%p1267) target = $region180
        $region179: #{_lambda_.1} parent=11 // pred_region
          _
        $region180: #{_lambda_.1} parent=11 // pred_fallthru
          _
        // Predicated region
        $region181: #{_lambda_.1} parent=11 // pred_check
          %p1270 = pneg %p1061
        $region182: #{_lambda_.1} parent=11 // pred_check_branch
          %1272 = sbr.rel (%p1270) target = $region184
        $region183: #{_lambda_.1} parent=11 // pred_region
          _
        $region184: #{_lambda_.1} parent=11 // pred_fallthru
          _
        // Predicated region
        $region185: #{_lambda_.1} parent=11 // pred_check
          %p1273 = pneg %p1082
        $region186: #{_lambda_.1} parent=11 // pred_check_branch
          %1275 = sbr.rel (%p1273) target = $region188
        $region187: #{_lambda_.1} parent=11 // pred_region
          %s1277 = ssub.s32 16, 16
          %1278 = vsyncadd [#allocation5], %s1277
          %s1280 = sshll.u32 [#allocation4], 4
          %s1281 = int_to_ptr.vmem [resolvable:$true] %s1280
          %1283 = dma.hbm_to_vmem [thread:$0]  %s91, 16, %s1281, [#allocation5]
        $region188: #{_lambda_.1} parent=11 // pred_fallthru
          _
        // Predicated region
        $region189: #{_lambda_.1} parent=11 // pred_check
          %p1284 = pneg %p1103
        $region190: #{_lambda_.1} parent=11 // pred_check_branch
          %1286 = sbr.rel (%p1284) target = $region192
        $region191: #{_lambda_.1} parent=11 // pred_region
          %s1288 = ssub.s32 16, 16
          %1289 = vsyncadd [#allocation8], %s1288
          %s1291 = sshll.u32 [#allocation7], 4
          %s1292 = int_to_ptr.vmem [resolvable:$true] %s1291
          %1294 = dma.hbm_to_vmem [thread:$0]  %s93, 16, %s1292, [#allocation8]
        $region192: #{_lambda_.1} parent=11 // pred_fallthru
          _
      $region12: #{_lambda_.1} parent=5 // pred_fallthru
        _
      %p1295 = scmp.lt.s32.totalorder %s106, 2
      // Predicated region
      $region193: #{_lambda_.1} parent=5 // pred_check
        %p1296 = pneg %p1295
      $region194: #{_lambda_.1} parent=5 // pred_check_branch
        %1298 = sbr.rel (%p1296) target = $region196
      $region195: #{_lambda_.1} parent=5 // pred_region
        // Predicated region
        $region197: #{_lambda_.1} parent=195 // pred_check
          %p1299 = pneg %p126
        $region198: #{_lambda_.1} parent=195 // pred_check_branch
          %1301 = sbr.rel (%p1299) target = $region200
        $region199: #{_lambda_.1} parent=195 // pred_region
          %p1302 = scmp.lt.s32.totalorder %s106, 1
          %s1303 = scalar_select %p1302, %s106, 1
          %s1304 = smul.addr %s1303, 16
          %s1305 = smul.addr %s1304, 8
          %s1306 = scalar_lea.vmem %s1, %s1305
        $region200: #{_lambda_.1} parent=195 // pred_fallthru
          _
        // Predicated region
        $region201: #{_lambda_.1} parent=195 // pred_check
          %p1307 = pneg %p152
        $region202: #{_lambda_.1} parent=195 // pred_check_branch
          %1309 = sbr.rel (%p1307) target = $region204
        $region203: #{_lambda_.1} parent=195 // pred_region
          %p1310 = scmp.lt.s32.totalorder %s106, 1
          %s1311 = scalar_select %p1310, %s106, 1
          %s1312 = smul.addr %s1311, 8
          %s1313 = scalar_lea.vmem %s3, %s1312
        $region204: #{_lambda_.1} parent=195 // pred_fallthru
          _
      $region196: #{_lambda_.1} parent=5 // pred_fallthru
        _
      %p1314 = scmp.le.s32.totalorder 1, %s106
      %p1315 = scmp.lt.s32.totalorder %s106, 3
      %p1316 = pnand %p1314, %p1315
      %p1317 = pneg %p1316
      // Predicated region
      $region205: #{_lambda_.1} parent=5 // pred_check
        _
      $region206: #{_lambda_.1} parent=5 // pred_check_branch
        %1319 = sbr.rel (%p1316) target = $region208
      $region207: #{_lambda_.1} parent=5 // pred_region
        %s1320 = ssub.s32 %s106, 1
        // Predicated region
        $region209: #{_lambda_.1} parent=207 // pred_check
          %p1321 = pneg %p1082
        $region210: #{_lambda_.1} parent=207 // pred_check_branch
          %1323 = sbr.rel (%p1321) target = $region212
        $region211: #{_lambda_.1} parent=207 // pred_region
          %1324 = dma.done [#allocation5], 16
        $region212: #{_lambda_.1} parent=207 // pred_fallthru
          _
        // Predicated region
        $region213: #{_lambda_.1} parent=207 // pred_check
          %p1325 = pneg %p1103
        $region214: #{_lambda_.1} parent=207 // pred_check_branch
          %1327 = sbr.rel (%p1325) target = $region216
        $region215: #{_lambda_.1} parent=207 // pred_region
          %1328 = dma.done [#allocation8], 16
        $region216: #{_lambda_.1} parent=207 // pred_fallthru
          _
        %p1329 = scmp.lt.s32.totalorder %s111, 1
        %s1330 = scalar_select %p1329, %s111, 1
        %s1331 = smul.addr %s1330, 16
        %s1332 = smul.addr %s1331, 8
        %s1333 = scalar_lea.vmem %s1, %s1332
        %p1334 = pneg %p132
        %p1335 = pneg %p129
        %p1336 = scmp.lt.s32.totalorder %s111, 1
        %s1337 = scalar_select %p1336, %s111, 1
        %s1338 = smul.addr %s1337, 8
        %s1339 = scalar_lea.vmem %s3, %s1338
        %p1340 = pneg %p158
        %p1341 = pneg %p155
        %p1342 = pneg %p179
        %p1343 = pneg %p176
        %p1344 = pneg %p200
        %p1345 = pneg %p197
        %p1346 = pneg %p221
        %p1347 = pneg %p218
        %p1348 = pneg %p242
        %p1349 = pneg %p239
        %p1350 = pneg %p263
        %p1351 = pneg %p260
        %p1352 = pneg %p284
        %p1353 = pneg %p281
        %p1354 = pneg %p305
        %p1355 = pneg %p302
        %p1356 = pneg %p326
        %p1357 = pneg %p323
        %p1358 = pneg %p347
        %p1359 = pneg %p344
        %p1360 = pneg %p368
        %p1361 = pneg %p365
        %p1362 = pneg %p389
        %p1363 = pneg %p386
        %p1364 = pneg %p410
        %p1365 = pneg %p407
        %p1366 = pneg %p431
        %p1367 = pneg %p428
        %p1368 = pneg %p452
        %p1369 = pneg %p449
        %p1370 = pneg %p473
        %p1371 = pneg %p470
        %p1372 = pneg %p494
        %p1373 = pneg %p491
        %p1374 = pneg %p515
        %p1375 = pneg %p512
        %p1376 = pneg %p536
        %p1377 = pneg %p533
        %p1378 = pneg %p557
        %p1379 = pneg %p554
        %p1380 = pneg %p578
        %p1381 = pneg %p575
        %p1382 = pneg %p599
        %p1383 = pneg %p596
        %p1384 = pneg %p620
        %p1385 = pneg %p617
        %p1386 = pneg %p641
        %p1387 = pneg %p638
        %p1388 = pneg %p662
        %p1389 = pneg %p659
        %p1390 = pneg %p683
        %p1391 = pneg %p680
        %p1392 = pneg %p704
        %p1393 = pneg %p701
        %p1394 = pneg %p725
        %p1395 = pneg %p722
        %p1396 = pneg %p746
        %p1397 = pneg %p743
        %p1398 = pneg %p767
        %p1399 = pneg %p764
        %p1400 = pneg %p788
        %p1401 = pneg %p785
        %p1402 = pneg %p809
        %p1403 = pneg %p806
        %p1404 = pneg %p830
        %p1405 = pneg %p827
        %p1406 = pneg %p851
        %p1407 = pneg %p848
        %p1408 = pneg %p872
        %p1409 = pneg %p869
        %p1410 = pneg %p893
        %p1411 = pneg %p890
        %p1412 = pneg %p914
        %p1413 = pneg %p911
        %p1414 = pneg %p935
        %p1415 = pneg %p932
        %p1416 = pneg %p956
        %p1417 = pneg %p953
        %p1418 = pneg %p977
        %p1419 = pneg %p974
        %p1420 = pneg %p998
        %p1421 = pneg %p995
        %p1422 = pneg %p1019
        %p1423 = pneg %p1016
        %p1424 = pneg %p1040
        %p1425 = pneg %p1037
        %p1426 = pneg %p1061
        %p1427 = pneg %p1058
        %p1428 = pneg %p1082
        %p1429 = pneg %p1079
        %p1430 = pneg %p1103
        %p1431 = pneg %p1100
        %p1432 = pneg %p1129
        %p1433 = pneg %p1126
        %s1434 = sand.u32 %s1116, 1
        %s1435 = scalar_lea.sflag [#allocation6], %s1434
        %s1436 = sand.u32 %s1116, 1
        %s1437 = scalar_lea.vmem [#allocation9], %s1436
        %p1438 = scmp.lt.s32.totalorder %s111, 1
        %s1439 = scalar_select %p1438, %s111, 1
        %s1440 = smul.addr %s1439, 16
        %s1441 = smul.addr %s1440, 8
        %s1442 = scalar_lea.vmem %s1, %s1441
        %p1443 = scmp.lt.s32.totalorder %s111, 1
        %s1444 = scalar_select %p1443, %s111, 1
        %s1445 = smul.addr %s1444, 8
        %s1446 = scalar_lea.vmem %s3, %s1445
        %v1448 = vld [vmem:[%s1442] sm:$0xff]
        %v1449 = vld [vmem:[%s1442 + $0x8] sm:$0xff]
        %v1450 = vld [vmem:[%s1442 + $0x10] sm:$0xff]
        %v1451 = vld [vmem:[%s1442 + $0x18] sm:$0xff]
        %v1452 = vld [vmem:[%s1442 + $0x20] sm:$0xff]
        %v1453 = vld [vmem:[%s1442 + $0x28] sm:$0xff]
        %v1454 = vld [vmem:[%s1442 + $0x30] sm:$0xff]
        %v1455 = vld [vmem:[%s1442 + $0x38] sm:$0xff]
        %v1456 = vld [vmem:[%s1442 + $0x40] sm:$0xff]
        %v1457 = vld [vmem:[%s1442 + $0x48] sm:$0xff]
        %v1458 = vld [vmem:[%s1442 + $0x50] sm:$0xff]
        %v1459 = vld [vmem:[%s1442 + $0x58] sm:$0xff]
        %v1460 = vld [vmem:[%s1442 + $0x60] sm:$0xff]
        %v1461 = vld [vmem:[%s1442 + $0x68] sm:$0xff]
        %v1462 = vld [vmem:[%s1442 + $0x70] sm:$0xff]
        %v1463 = vld [vmem:[%s1442 + $0x78] sm:$0xff]
        %v1464 = vld [vmem:[%s5] sm:$0x7]
        %v1465 = vld [vmem:[%s7] sm:$0x1]
        %v1467 = vlaneseq
        %v1468 = vshrl.u32 %v1467, 7
        %v1469 = vsub.s32 0, %v1468
        %v1470 = vrot.slane %v1465, %v1469
        %vm1472 = vcmask 23552
        %v1474 = vsel %vm1472, %v1448, 0
        %v1477 = vsel %vm1472, %v1449, 0
        %v1480 = vsel %vm1472, %v1450, 0
        %v1483 = vsel %vm1472, %v1451, 0
        %v1486 = vsel %vm1472, %v1452, 0
        %v1489 = vsel %vm1472, %v1453, 0
        %v1492 = vsel %vm1472, %v1454, 0
        %v1495 = vsel %vm1472, %v1455, 0
        %v1498 = vsel %vm1472, %v1456, 0
        %v1501 = vsel %vm1472, %v1457, 0
        %v1504 = vsel %vm1472, %v1458, 0
        %v1507 = vsel %vm1472, %v1459, 0
        %v1510 = vsel %vm1472, %v1460, 0
        %v1513 = vsel %vm1472, %v1461, 0
        %v1516 = vsel %vm1472, %v1462, 0
        %v1519 = vsel %vm1472, %v1463, 0
        %vm1521 = vcmask 1042432
        %v1523 = vsel %vm1521, %v1464, 0
        %1525 = vmatprep.subr.mxu0 0.0
        %1526 = vmatpush1.msra.mxu0 %v1523
        %1527 = vmatprep.subr.mxu0 0.0
        %1528 = vmatpush1.msra.mxu0 0.0
        %1529 = vmatprep.subr.mxu0 0.0
        %1530 = vmatpush1.msra.mxu0 0.0
        %1531 = vmatprep.subr.mxu0 0.0
        %1532 = vmatpush1.msra.mxu0 0.0
        %1533 = vmatprep.subr.mxu0 0.0
        %1534 = vmatpush1.msra.mxu0 0.0
        %1535 = vmatprep.subr.mxu0 0.0
        %1536 = vmatpush1.msra.mxu0 0.0
        %1537 = vmatprep.subr.mxu0 0.0
        %1538 = vmatpush1.msra.mxu0 0.0
        %1539 = vmatprep.subr.mxu0 0.0
        %1540 = vmatpush1.msra.mxu0 0.0
        %1541 = vmatprep.subr.mxu0 0.0
        %1542 = vmatpush1.msra.mxu0 0.0
        %1543 = vmatprep.subr.mxu0 0.0
        %1544 = vmatpush1.msra.mxu0 0.0
        %1545 = vmatprep.subr.mxu0 0.0
        %1546 = vmatpush1.msra.mxu0 0.0
        %1547 = vmatprep.subr.mxu0 0.0
        %1548 = vmatpush1.msra.mxu0 0.0
        %1549 = vmatprep.subr.mxu0 0.0
        %1550 = vmatpush1.msra.mxu0 0.0
        %1551 = vmatprep.subr.mxu0 0.0
        %1552 = vmatpush1.msra.mxu0 0.0
        %1553 = vmatprep.subr.mxu0 0.0
        %1554 = vmatpush1.msra.mxu0 0.0
        %1555 = vmatprep.subr.mxu0 0.0
        %1556 = vmatpush1.msra.mxu0 0.0
        %1557 = vmatprep.subr.mxu0 0.0
        %1558 = vmatpush1.msra.mxu0 0.0
        %1559 = vmatprep.subr.mxu0 0.0
        %1560 = vmatpush1.msra.mxu0 0.0
        %1561 = vmatprep.subr.mxu0 0.0
        %1562 = vmatpush1.msra.mxu0 0.0
        %1563 = vmatprep.subr.mxu0 0.0
        %1564 = vmatpush1.msra.mxu0 0.0
        %1565 = vmatprep.subr.mxu0 0.0
        %1566 = vmatpush1.msra.mxu0 0.0
        %1567 = vmatprep.subr.mxu0 0.0
        %1568 = vmatpush1.msra.mxu0 0.0
        %1569 = vmatprep.subr.mxu0 0.0
        %1570 = vmatpush1.msra.mxu0 0.0
        %1571 = vmatprep.subr.mxu0 0.0
        %1572 = vmatpush1.msra.mxu0 0.0
        %1573 = vmatprep.subr.mxu0 0.0
        %1574 = vmatpush1.msra.mxu0 0.0
        %1575 = vmatprep.subr.mxu0 0.0
        %1576 = vmatpush1.msra.mxu0 0.0
        %1577 = vmatprep.subr.mxu0 0.0
        %1578 = vmatpush1.msra.mxu0 0.0
        %1579 = vmatprep.subr.mxu0 0.0
        %1580 = vmatpush1.msra.mxu0 0.0
        %1581 = vmatprep.subr.mxu0 0.0
        %1582 = vmatpush1.msra.mxu0 0.0
        %1583 = vmatprep.subr.mxu0 0.0
        %1584 = vmatpush1.msra.mxu0 0.0
        %1585 = vmatprep.subr.mxu0 0.0
        %1586 = vmatpush1.msra.mxu0 0.0
        %1587 = vmatprep.subr.mxu0 0.0
        %1588 = vmatpush1.msra.mxu0 0.0
        %1589 = vmatprep.mubr.f32.mxu0 0.0
        %1590 = vmatmul.mubr.f32.gmra.mrb[0].mxu0 %v1474
        %v1591 = vpop.f32.mrb[0].mxu0
        %v1592 = vadd.f32 %v1470, %v1591
        %v1593 = vpop.f32.mrb[0].mxu0
        %1594 = vmatprep.mubr.f32.mxu0 0.0
        %1595 = vmatmul.mubr.f32.gmra.mrb[0].mxu0 %v1477
        %v1596 = vpop.f32.mrb[0].mxu0
        %v1597 = vadd.f32 %v1470, %v1596
        %v1598 = vpop.f32.mrb[0].mxu0
        %1599 = vmatprep.mubr.f32.mxu0 0.0
        %1600 = vmatmul.mubr.f32.gmra.mrb[0].mxu0 %v1480
        %v1601 = vpop.f32.mrb[0].mxu0
        %v1602 = vadd.f32 %v1470, %v1601
        %v1603 = vpop.f32.mrb[0].mxu0
        %1604 = vmatprep.mubr.f32.mxu0 0.0
        %1605 = vmatmul.mubr.f32.gmra.mrb[0].mxu0 %v1483
        %v1606 = vpop.f32.mrb[0].mxu0
        %v1607 = vadd.f32 %v1470, %v1606
        %v1608 = vpop.f32.mrb[0].mxu0
        %1609 = vmatprep.mubr.f32.mxu0 0.0
        %1610 = vmatmul.mubr.f32.gmra.mrb[0].mxu0 %v1486
        %v1611 = vpop.f32.mrb[0].mxu0
        %v1612 = vadd.f32 %v1470, %v1611
        %v1613 = vpop.f32.mrb[0].mxu0
        %1614 = vmatprep.mubr.f32.mxu0 0.0
        %1615 = vmatmul.mubr.f32.gmra.mrb[0].mxu0 %v1489
        %v1616 = vpop.f32.mrb[0].mxu0
        %v1617 = vadd.f32 %v1470, %v1616
        %v1618 = vpop.f32.mrb[0].mxu0
        %1619 = vmatprep.mubr.f32.mxu0 0.0
        %1620 = vmatmul.mubr.f32.gmra.mrb[0].mxu0 %v1492
        %v1621 = vpop.f32.mrb[0].mxu0
        %v1622 = vadd.f32 %v1470, %v1621
        %v1623 = vpop.f32.mrb[0].mxu0
        %1624 = vmatprep.mubr.f32.mxu0 0.0
        %1625 = vmatmul.mubr.f32.gmra.mrb[0].mxu0 %v1495
        %v1626 = vpop.f32.mrb[0].mxu0
        %v1627 = vadd.f32 %v1470, %v1626
        %v1628 = vpop.f32.mrb[0].mxu0
        %1629 = vmatprep.mubr.f32.mxu0 0.0
        %1630 = vmatmul.mubr.f32.gmra.mrb[0].mxu0 %v1498
        %v1631 = vpop.f32.mrb[0].mxu0
        %v1632 = vadd.f32 %v1470, %v1631
        %v1633 = vpop.f32.mrb[0].mxu0
        %1634 = vmatprep.mubr.f32.mxu0 0.0
        %1635 = vmatmul.mubr.f32.gmra.mrb[0].mxu0 %v1501
        %v1636 = vpop.f32.mrb[0].mxu0
        %v1637 = vadd.f32 %v1470, %v1636
        %v1638 = vpop.f32.mrb[0].mxu0
        %1639 = vmatprep.mubr.f32.mxu0 0.0
        %1640 = vmatmul.mubr.f32.gmra.mrb[0].mxu0 %v1504
        %v1641 = vpop.f32.mrb[0].mxu0
        %v1642 = vadd.f32 %v1470, %v1641
        %v1643 = vpop.f32.mrb[0].mxu0
        %1644 = vmatprep.mubr.f32.mxu0 0.0
        %1645 = vmatmul.mubr.f32.gmra.mrb[0].mxu0 %v1507
        %v1646 = vpop.f32.mrb[0].mxu0
        %v1647 = vadd.f32 %v1470, %v1646
        %v1648 = vpop.f32.mrb[0].mxu0
        %1649 = vmatprep.mubr.f32.mxu0 0.0
        %1650 = vmatmul.mubr.f32.gmra.mrb[0].mxu0 %v1510
        %v1651 = vpop.f32.mrb[0].mxu0
        %v1652 = vadd.f32 %v1470, %v1651
        %v1653 = vpop.f32.mrb[0].mxu0
        %1654 = vmatprep.mubr.f32.mxu0 0.0
        %1655 = vmatmul.mubr.f32.gmra.mrb[0].mxu0 %v1513
        %v1656 = vpop.f32.mrb[0].mxu0
        %v1657 = vadd.f32 %v1470, %v1656
        %v1658 = vpop.f32.mrb[0].mxu0
        %1659 = vmatprep.mubr.f32.mxu0 0.0
        %1660 = vmatmul.mubr.f32.gmra.mrb[0].mxu0 %v1516
        %v1661 = vpop.f32.mrb[0].mxu0
        %v1662 = vadd.f32 %v1470, %v1661
        %v1663 = vpop.f32.mrb[0].mxu0
        %1664 = vmatprep.mubr.f32.mxu0 0.0
        %1665 = vmatmul.mubr.f32.gmra.mrb[0].mxu0 %v1519
        %v1666 = vpop.f32.mrb[0].mxu0
        %v1667 = vadd.f32 %v1470, %v1666
        %v1668 = vpop.f32.mrb[0].mxu0
        %1669 = vdwg.mxu0
        %v1670 = vmax.f32 %v1592, 0.0
        %v1671 = vmax.f32 %v1597, 0.0
        %v1672 = vmax.f32 %v1602, 0.0
        %v1673 = vmax.f32 %v1607, 0.0
        %v1674 = vmax.f32 %v1612, 0.0
        %v1675 = vmax.f32 %v1617, 0.0
        %v1676 = vmax.f32 %v1622, 0.0
        %v1677 = vmax.f32 %v1627, 0.0
        %v1678 = vmax.f32 %v1632, 0.0
        %v1679 = vmax.f32 %v1637, 0.0
        %v1680 = vmax.f32 %v1642, 0.0
        %v1681 = vmax.f32 %v1647, 0.0
        %v1682 = vmax.f32 %v1652, 0.0
        %v1683 = vmax.f32 %v1657, 0.0
        %v1684 = vmax.f32 %v1662, 0.0
        %v1685 = vmax.f32 %v1667, 0.0
        %v1686 = vpack.c.bf16 %v1671, %v1670
        %v1687 = vpack.c.bf16 %v1673, %v1672
        %v1688 = vpack.c.bf16 %v1675, %v1674
        %v1689 = vpack.c.bf16 %v1677, %v1676
        %v1690 = vpack.c.bf16 %v1679, %v1678
        %v1691 = vpack.c.bf16 %v1681, %v1680
        %v1692 = vpack.c.bf16 %v1683, %v1682
        %v1693 = vpack.c.bf16 %v1685, %v1684
        %v1694 = vld [vmem:[%s9] sm:$0xff]
        %v1695 = vld [vmem:[%s9 + $0x8] sm:$0xff]
        %v1696 = vld [vmem:[%s9 + $0x10] sm:$0xff]
        %v1697 = vld [vmem:[%s9 + $0x18] sm:$0xff]
        %v1698 = vld [vmem:[%s9 + $0x20] sm:$0xff]
        %v1699 = vld [vmem:[%s9 + $0x28] sm:$0xff]
        %v1700 = vld [vmem:[%s9 + $0x30] sm:$0xff]
        %v1701 = vld [vmem:[%s9 + $0x38] sm:$0xff]
        %v1702 = vld [vmem:[%s9 + $0x40] sm:$0xff]
        %v1703 = vld [vmem:[%s9 + $0x48] sm:$0xff]
        %v1704 = vld [vmem:[%s9 + $0x50] sm:$0xff]
        %v1705 = vld [vmem:[%s9 + $0x58] sm:$0xff]
        %v1706 = vld [vmem:[%s9 + $0x60] sm:$0xff]
        %v1707 = vld [vmem:[%s9 + $0x68] sm:$0xff]
        %v1708 = vld [vmem:[%s9 + $0x70] sm:$0xff]
        %v1709 = vld [vmem:[%s9 + $0x78] sm:$0xff]
        %v1710 = vld [vmem:[%s11] sm:$0x3]
        %v1712 = vlaneseq
        %v1713 = vshrl.u32 %v1712, 7
        %v1714 = vsub.s32 0, %v1713
        %v1715 = vrot.slane %v1710, %v1714
        %v1716 = vlaneseq
        %v1717 = vshrl.u32 %v1716, 7
        %v1718 = vsub.s32 1, %v1717
        %v1719 = vrot.slane %v1710, %v1718
        %v1738 = vunpack.c.l.b16 %v1694
        %v1739 = vunpack.c.h.b16 %v1694
        %v1740 = vunpack.c.l.b16 %v1695
        %v1741 = vunpack.c.h.b16 %v1695
        %v1742 = vunpack.c.l.b16 %v1696
        %v1743 = vunpack.c.h.b16 %v1696
        %v1744 = vunpack.c.l.b16 %v1697
        %v1745 = vunpack.c.h.b16 %v1697
        %v1746 = vunpack.c.l.b16 %v1698
        %v1747 = vunpack.c.h.b16 %v1698
        %v1748 = vunpack.c.l.b16 %v1699
        %v1749 = vunpack.c.h.b16 %v1699
        %v1750 = vunpack.c.l.b16 %v1700
        %v1751 = vunpack.c.h.b16 %v1700
        %v1752 = vunpack.c.l.b16 %v1701
        %v1753 = vunpack.c.h.b16 %v1701
        %v1754 = vunpack.c.l.b16 %v1702
        %v1755 = vunpack.c.h.b16 %v1702
        %v1756 = vunpack.c.l.b16 %v1703
        %v1757 = vunpack.c.h.b16 %v1703
        %v1758 = vunpack.c.l.b16 %v1704
        %v1759 = vunpack.c.h.b16 %v1704
        %v1760 = vunpack.c.l.b16 %v1705
        %v1761 = vunpack.c.h.b16 %v1705
        %v1762 = vunpack.c.l.b16 %v1706
        %v1763 = vunpack.c.h.b16 %v1706
        %v1764 = vunpack.c.l.b16 %v1707
        %v1765 = vunpack.c.h.b16 %v1707
        %v1766 = vunpack.c.l.b16 %v1708
        %v1767 = vunpack.c.h.b16 %v1708
        %v1768 = vunpack.c.l.b16 %v1709
        %v1769 = vunpack.c.h.b16 %v1709
        %v1770 = vpack.c.b16 %v1740, %v1738
        %v1771 = vpack.c.b16 %v1741, %v1739
        %v1772 = vpack.c.b16 %v1744, %v1742
        %v1773 = vpack.c.b16 %v1745, %v1743
        %v1774 = vpack.c.b16 %v1748, %v1746
        %v1775 = vpack.c.b16 %v1749, %v1747
        %v1776 = vpack.c.b16 %v1752, %v1750
        %v1777 = vpack.c.b16 %v1753, %v1751
        %v1778 = vpack.c.b16 %v1756, %v1754
        %v1779 = vpack.c.b16 %v1757, %v1755
        %v1780 = vpack.c.b16 %v1760, %v1758
        %v1781 = vpack.c.b16 %v1761, %v1759
        %v1782 = vpack.c.b16 %v1764, %v1762
        %v1783 = vpack.c.b16 %v1765, %v1763
        %v1784 = vpack.c.b16 %v1768, %v1766
        %v1785 = vpack.c.b16 %v1769, %v1767
        %1802 = vmatprep.subr.bf16.mxu0 %v1771
        %1803 = vmatpush1.bf16.msra.mxu0 %v1770
        %1804 = vmatprep.subr.bf16.mxu0 %v1773
        %1805 = vmatpush1.bf16.msra.mxu0 %v1772
        %1806 = vmatprep.subr.bf16.mxu0 %v1775
        %1807 = vmatpush1.bf16.msra.mxu0 %v1774
        %1808 = vmatprep.subr.bf16.mxu0 %v1777
        %1809 = vmatpush1.bf16.msra.mxu0 %v1776
        %1810 = vmatprep.subr.bf16.mxu0 %v1779
        %1811 = vmatpush1.bf16.msra.mxu0 %v1778
        %1812 = vmatprep.subr.bf16.mxu0 %v1781
        %1813 = vmatpush1.bf16.msra.mxu0 %v1780
        %1814 = vmatprep.subr.bf16.mxu0 %v1783
        %1815 = vmatpush1.bf16.msra.mxu0 %v1782
        %1816 = vmatprep.subr.bf16.mxu0 %v1785
        %1817 = vmatpush1.bf16.msra.mxu0 %v1784
        %1818 = vmatprep.subr.bf16.mxu0 0
        %1819 = vmatpush1.bf16.msra.mxu0 0
        %1820 = vmatprep.subr.bf16.mxu0 0
        %1821 = vmatpush1.bf16.msra.mxu0 0
        %1822 = vmatprep.subr.bf16.mxu0 0
        %1823 = vmatpush1.bf16.msra.mxu0 0
        %1824 = vmatprep.subr.bf16.mxu0 0
        %1825 = vmatpush1.bf16.msra.mxu0 0
        %1826 = vmatprep.subr.bf16.mxu0 0
        %1827 = vmatpush1.bf16.msra.mxu0 0
        %1828 = vmatprep.subr.bf16.mxu0 0
        %1829 = vmatpush1.bf16.msra.mxu0 0
        %1830 = vmatprep.subr.bf16.mxu0 0
        %1831 = vmatpush1.bf16.msra.mxu0 0
        %1832 = vmatprep.subr.bf16.mxu0 0
        %1833 = vmatpush1.bf16.msra.mxu0 0
        %1834 = vmatprep.mubr.bf16.mxu0 0
        %1835 = vmatmul.mubr.bf16.gmra.mrb[0].mxu0 %v1686
        %v1836 = vpop.f32.mrb[0].mxu0
        %v1837 = vadd.f32 %v1715, %v1836
        %v1838 = vpop.f32.mrb[0].mxu0
        %v1839 = vadd.f32 %v1719, %v1838
        %v1840 = vpop.f32.mrb[0].mxu0
        %v1841 = vadd.f32 %v1715, %v1840
        %v1842 = vpop.f32.mrb[0].mxu0
        %v1843 = vadd.f32 %v1719, %v1842
        %1844 = vmatprep.mubr.bf16.mxu0 0
        %1845 = vmatmul.mubr.bf16.gmra.mrb[0].mxu0 %v1687
        %v1846 = vpop.f32.mrb[0].mxu0
        %v1847 = vadd.f32 %v1715, %v1846
        %v1848 = vpop.f32.mrb[0].mxu0
        %v1849 = vadd.f32 %v1719, %v1848
        %v1850 = vpop.f32.mrb[0].mxu0
        %v1851 = vadd.f32 %v1715, %v1850
        %v1852 = vpop.f32.mrb[0].mxu0
        %v1853 = vadd.f32 %v1719, %v1852
        %1854 = vmatprep.mubr.bf16.mxu0 0
        %1855 = vmatmul.mubr.bf16.gmra.mrb[0].mxu0 %v1688
        %v1856 = vpop.f32.mrb[0].mxu0
        %v1857 = vadd.f32 %v1715, %v1856
        %v1858 = vpop.f32.mrb[0].mxu0
        %v1859 = vadd.f32 %v1719, %v1858
        %v1860 = vpop.f32.mrb[0].mxu0
        %v1861 = vadd.f32 %v1715, %v1860
        %v1862 = vpop.f32.mrb[0].mxu0
        %v1863 = vadd.f32 %v1719, %v1862
        %1864 = vmatprep.mubr.bf16.mxu0 0
        %1865 = vmatmul.mubr.bf16.gmra.mrb[0].mxu0 %v1689
        %v1866 = vpop.f32.mrb[0].mxu0
        %v1867 = vadd.f32 %v1715, %v1866
        %v1868 = vpop.f32.mrb[0].mxu0
        %v1869 = vadd.f32 %v1719, %v1868
        %v1870 = vpop.f32.mrb[0].mxu0
        %v1871 = vadd.f32 %v1715, %v1870
        %v1872 = vpop.f32.mrb[0].mxu0
        %v1873 = vadd.f32 %v1719, %v1872
        %1874 = vmatprep.mubr.bf16.mxu0 0
        %1875 = vmatmul.mubr.bf16.gmra.mrb[0].mxu0 %v1690
        %v1876 = vpop.f32.mrb[0].mxu0
        %v1877 = vadd.f32 %v1715, %v1876
        %v1878 = vpop.f32.mrb[0].mxu0
        %v1879 = vadd.f32 %v1719, %v1878
        %v1880 = vpop.f32.mrb[0].mxu0
        %v1881 = vadd.f32 %v1715, %v1880
        %v1882 = vpop.f32.mrb[0].mxu0
        %v1883 = vadd.f32 %v1719, %v1882
        %1884 = vmatprep.mubr.bf16.mxu0 0
        %1885 = vmatmul.mubr.bf16.gmra.mrb[0].mxu0 %v1691
        %v1886 = vpop.f32.mrb[0].mxu0
        %v1887 = vadd.f32 %v1715, %v1886
        %v1888 = vpop.f32.mrb[0].mxu0
        %v1889 = vadd.f32 %v1719, %v1888
        %v1890 = vpop.f32.mrb[0].mxu0
        %v1891 = vadd.f32 %v1715, %v1890
        %v1892 = vpop.f32.mrb[0].mxu0
        %v1893 = vadd.f32 %v1719, %v1892
        %1894 = vmatprep.mubr.bf16.mxu0 0
        %1895 = vmatmul.mubr.bf16.gmra.mrb[0].mxu0 %v1692
        %v1896 = vpop.f32.mrb[0].mxu0
        %v1897 = vadd.f32 %v1715, %v1896
        %v1898 = vpop.f32.mrb[0].mxu0
        %v1899 = vadd.f32 %v1719, %v1898
        %v1900 = vpop.f32.mrb[0].mxu0
        %v1901 = vadd.f32 %v1715, %v1900
        %v1902 = vpop.f32.mrb[0].mxu0
        %v1903 = vadd.f32 %v1719, %v1902
        %1904 = vmatprep.mubr.bf16.mxu0 0
        %1905 = vmatmul.mubr.bf16.gmra.mrb[0].mxu0 %v1693
        %v1906 = vpop.f32.mrb[0].mxu0
        %v1907 = vadd.f32 %v1715, %v1906
        %v1908 = vpop.f32.mrb[0].mxu0
        %v1909 = vadd.f32 %v1719, %v1908
        %v1910 = vpop.f32.mrb[0].mxu0
        %v1911 = vadd.f32 %v1715, %v1910
        %v1912 = vpop.f32.mrb[0].mxu0
        %v1913 = vadd.f32 %v1719, %v1912
        %1914 = vdwg.mxu0
        %v1915 = vmax.f32 %v1837, %v1841
        %v1916 = vrot.slane %v1915, 4
        %v1917 = vmax.f32 %v1915, %v1916
        %v1918 = vrot.slane %v1917, 2
        %v1919 = vmax.f32 %v1917, %v1918
        %v1920 = vrot.slane %v1919, 1
        %v1921 = vmax.f32 %v1919, %v1920
        %v1922 = vmax.f32 %v1839, %v1843
        %v1923 = vrot.slane %v1922, 4
        %v1924 = vmax.f32 %v1922, %v1923
        %v1925 = vrot.slane %v1924, 2
        %v1926 = vmax.f32 %v1924, %v1925
        %v1927 = vrot.slane %v1926, 1
        %v1928 = vmax.f32 %v1926, %v1927
        %v1929 = vmax.f32 %v1847, %v1851
        %v1930 = vrot.slane %v1929, 4
        %v1931 = vmax.f32 %v1929, %v1930
        %v1932 = vrot.slane %v1931, 2
        %v1933 = vmax.f32 %v1931, %v1932
        %v1934 = vrot.slane %v1933, 1
        %v1935 = vmax.f32 %v1933, %v1934
        %v1936 = vmax.f32 %v1849, %v1853
        %v1937 = vrot.slane %v1936, 4
        %v1938 = vmax.f32 %v1936, %v1937
        %v1939 = vrot.slane %v1938, 2
        %v1940 = vmax.f32 %v1938, %v1939
        %v1941 = vrot.slane %v1940, 1
        %v1942 = vmax.f32 %v1940, %v1941
        %v1943 = vmax.f32 %v1857, %v1861
        %v1944 = vrot.slane %v1943, 4
        %v1945 = vmax.f32 %v1943, %v1944
        %v1946 = vrot.slane %v1945, 2
        %v1947 = vmax.f32 %v1945, %v1946
        %v1948 = vrot.slane %v1947, 1
        %v1949 = vmax.f32 %v1947, %v1948
        %v1950 = vmax.f32 %v1859, %v1863
        %v1951 = vrot.slane %v1950, 4
        %v1952 = vmax.f32 %v1950, %v1951
        %v1953 = vrot.slane %v1952, 2
        %v1954 = vmax.f32 %v1952, %v1953
        %v1955 = vrot.slane %v1954, 1
        %v1956 = vmax.f32 %v1954, %v1955
        %v1957 = vmax.f32 %v1867, %v1871
        %v1958 = vrot.slane %v1957, 4
        %v1959 = vmax.f32 %v1957, %v1958
        %v1960 = vrot.slane %v1959, 2
        %v1961 = vmax.f32 %v1959, %v1960
        %v1962 = vrot.slane %v1961, 1
        %v1963 = vmax.f32 %v1961, %v1962
        %v1964 = vmax.f32 %v1869, %v1873
        %v1965 = vrot.slane %v1964, 4
        %v1966 = vmax.f32 %v1964, %v1965
        %v1967 = vrot.slane %v1966, 2
        %v1968 = vmax.f32 %v1966, %v1967
        %v1969 = vrot.slane %v1968, 1
        %v1970 = vmax.f32 %v1968, %v1969
        %v1971 = vmax.f32 %v1877, %v1881
        %v1972 = vrot.slane %v1971, 4
        %v1973 = vmax.f32 %v1971, %v1972
        %v1974 = vrot.slane %v1973, 2
        %v1975 = vmax.f32 %v1973, %v1974
        %v1976 = vrot.slane %v1975, 1
        %v1977 = vmax.f32 %v1975, %v1976
        %v1978 = vmax.f32 %v1879, %v1883
        %v1979 = vrot.slane %v1978, 4
        %v1980 = vmax.f32 %v1978, %v1979
        %v1981 = vrot.slane %v1980, 2
        %v1982 = vmax.f32 %v1980, %v1981
        %v1983 = vrot.slane %v1982, 1
        %v1984 = vmax.f32 %v1982, %v1983
        %v1985 = vmax.f32 %v1887, %v1891
        %v1986 = vrot.slane %v1985, 4
        %v1987 = vmax.f32 %v1985, %v1986
        %v1988 = vrot.slane %v1987, 2
        %v1989 = vmax.f32 %v1987, %v1988
        %v1990 = vrot.slane %v1989, 1
        %v1991 = vmax.f32 %v1989, %v1990
        %v1992 = vmax.f32 %v1889, %v1893
        %v1993 = vrot.slane %v1992, 4
        %v1994 = vmax.f32 %v1992, %v1993
        %v1995 = vrot.slane %v1994, 2
        %v1996 = vmax.f32 %v1994, %v1995
        %v1997 = vrot.slane %v1996, 1
        %v1998 = vmax.f32 %v1996, %v1997
        %v1999 = vmax.f32 %v1897, %v1901
        %v2000 = vrot.slane %v1999, 4
        %v2001 = vmax.f32 %v1999, %v2000
        %v2002 = vrot.slane %v2001, 2
        %v2003 = vmax.f32 %v2001, %v2002
        %v2004 = vrot.slane %v2003, 1
        %v2005 = vmax.f32 %v2003, %v2004
        %v2006 = vmax.f32 %v1899, %v1903
        %v2007 = vrot.slane %v2006, 4
        %v2008 = vmax.f32 %v2006, %v2007
        %v2009 = vrot.slane %v2008, 2
        %v2010 = vmax.f32 %v2008, %v2009
        %v2011 = vrot.slane %v2010, 1
        %v2012 = vmax.f32 %v2010, %v2011
        %v2013 = vmax.f32 %v1907, %v1911
        %v2014 = vrot.slane %v2013, 4
        %v2015 = vmax.f32 %v2013, %v2014
        %v2016 = vrot.slane %v2015, 2
        %v2017 = vmax.f32 %v2015, %v2016
        %v2018 = vrot.slane %v2017, 1
        %v2019 = vmax.f32 %v2017, %v2018
        %v2020 = vmax.f32 %v1909, %v1913
        %v2021 = vrot.slane %v2020, 4
        %v2022 = vmax.f32 %v2020, %v2021
        %v2023 = vrot.slane %v2022, 2
        %v2024 = vmax.f32 %v2022, %v2023
        %v2025 = vrot.slane %v2024, 1
        %v2026 = vmax.f32 %v2024, %v2025
        %v2027 = vpack.c.bf16 %v1841, %v1837
        %v2028 = vpack.c.bf16 %v1843, %v1839
        %v2029 = vpack.c.bf16 %v1851, %v1847
        %v2030 = vpack.c.bf16 %v1853, %v1849
        %v2031 = vpack.c.bf16 %v1861, %v1857
        %v2032 = vpack.c.bf16 %v1863, %v1859
        %v2033 = vpack.c.bf16 %v1871, %v1867
        %v2034 = vpack.c.bf16 %v1873, %v1869
        %v2035 = vpack.c.bf16 %v1881, %v1877
        %v2036 = vpack.c.bf16 %v1883, %v1879
        %v2037 = vpack.c.bf16 %v1891, %v1887
        %v2038 = vpack.c.bf16 %v1893, %v1889
        %v2039 = vpack.c.bf16 %v1901, %v1897
        %v2040 = vpack.c.bf16 %v1903, %v1899
        %v2041 = vpack.c.bf16 %v1911, %v1907
        %v2042 = vpack.c.bf16 %v1913, %v1909
        %v2043 = vld [vmem:[%s15] sm:$0xff]
        %v2044 = vld [vmem:[%s15 + $0x8] sm:$0xff]
        %v2045 = vld [vmem:[%s15 + $0x10] sm:$0xff]
        %v2046 = vld [vmem:[%s15 + $0x18] sm:$0xff]
        %v2047 = vld [vmem:[%s15 + $0x20] sm:$0xff]
        %v2048 = vld [vmem:[%s15 + $0x28] sm:$0xff]
        %v2049 = vld [vmem:[%s15 + $0x30] sm:$0xff]
        %v2050 = vld [vmem:[%s15 + $0x38] sm:$0xff]
        %v2051 = vld [vmem:[%s15 + $0x40] sm:$0xff]
        %v2052 = vld [vmem:[%s15 + $0x48] sm:$0xff]
        %v2053 = vld [vmem:[%s15 + $0x50] sm:$0xff]
        %v2054 = vld [vmem:[%s15 + $0x58] sm:$0xff]
        %v2055 = vld [vmem:[%s15 + $0x60] sm:$0xff]
        %v2056 = vld [vmem:[%s15 + $0x68] sm:$0xff]
        %v2057 = vld [vmem:[%s15 + $0x70] sm:$0xff]
        %v2058 = vld [vmem:[%s15 + $0x78] sm:$0xff]
        %v2059 = vld [vmem:[%s15 + $0x80] sm:$0xff]
        %v2060 = vld [vmem:[%s15 + $0x88] sm:$0xff]
        %v2061 = vld [vmem:[%s15 + $0x90] sm:$0xff]
        %v2062 = vld [vmem:[%s15 + $0x98] sm:$0xff]
        %v2063 = vld [vmem:[%s15 + $0xa0] sm:$0xff]
        %v2064 = vld [vmem:[%s15 + $0xa8] sm:$0xff]
        %v2065 = vld [vmem:[%s15 + $0xb0] sm:$0xff]
        %v2066 = vld [vmem:[%s15 + $0xb8] sm:$0xff]
        %v2067 = vld [vmem:[%s15 + $0xc0] sm:$0xff]
        %v2068 = vld [vmem:[%s15 + $0xc8] sm:$0xff]
        %v2069 = vld [vmem:[%s15 + $0xd0] sm:$0xff]
        %v2070 = vld [vmem:[%s15 + $0xd8] sm:$0xff]
        %v2071 = vld [vmem:[%s15 + $0xe0] sm:$0xff]
        %v2072 = vld [vmem:[%s15 + $0xe8] sm:$0xff]
        %v2073 = vld [vmem:[%s15 + $0xf0] sm:$0xff]
        %v2074 = vld [vmem:[%s15 + $0xf8] sm:$0xff]
        %v2075 = vld [vmem:[%s15 + $0x100] sm:$0xff]
        %v2076 = vld [vmem:[%s15 + $0x108] sm:$0xff]
        %v2077 = vld [vmem:[%s15 + $0x110] sm:$0xff]
        %v2078 = vld [vmem:[%s15 + $0x118] sm:$0xff]
        %v2079 = vld [vmem:[%s15 + $0x120] sm:$0xff]
        %v2080 = vld [vmem:[%s15 + $0x128] sm:$0xff]
        %v2081 = vld [vmem:[%s15 + $0x130] sm:$0xff]
        %v2082 = vld [vmem:[%s15 + $0x138] sm:$0xff]
        %v2083 = vld [vmem:[%s15 + $0x140] sm:$0xff]
        %v2084 = vld [vmem:[%s15 + $0x148] sm:$0xff]
        %v2085 = vld [vmem:[%s15 + $0x150] sm:$0xff]
        %v2086 = vld [vmem:[%s15 + $0x158] sm:$0xff]
        %v2087 = vld [vmem:[%s15 + $0x160] sm:$0xff]
        %v2088 = vld [vmem:[%s15 + $0x168] sm:$0xff]
        %v2089 = vld [vmem:[%s15 + $0x170] sm:$0xff]
        %v2090 = vld [vmem:[%s15 + $0x178] sm:$0xff]
        %v2091 = vld [vmem:[%s15 + $0x180] sm:$0xff]
        %v2092 = vld [vmem:[%s15 + $0x188] sm:$0xff]
        %v2093 = vld [vmem:[%s15 + $0x190] sm:$0xff]
        %v2094 = vld [vmem:[%s15 + $0x198] sm:$0xff]
        %v2095 = vld [vmem:[%s15 + $0x1a0] sm:$0xff]
        %v2096 = vld [vmem:[%s15 + $0x1a8] sm:$0xff]
        %v2097 = vld [vmem:[%s15 + $0x1b0] sm:$0xff]
        %v2098 = vld [vmem:[%s15 + $0x1b8] sm:$0xff]
        %v2099 = vld [vmem:[%s15 + $0x1c0] sm:$0xff]
        %v2100 = vld [vmem:[%s15 + $0x1c8] sm:$0xff]
        %v2101 = vld [vmem:[%s15 + $0x1d0] sm:$0xff]
        %v2102 = vld [vmem:[%s15 + $0x1d8] sm:$0xff]
        %v2103 = vld [vmem:[%s15 + $0x1e0] sm:$0xff]
        %v2104 = vld [vmem:[%s15 + $0x1e8] sm:$0xff]
        %v2105 = vld [vmem:[%s15 + $0x1f0] sm:$0xff]
        %v2106 = vld [vmem:[%s15 + $0x1f8] sm:$0xff]
        %v2171 = vunpack.c.l.b16 %v2043
        %v2172 = vunpack.c.h.b16 %v2043
        %v2173 = vunpack.c.l.b16 %v2044
        %v2174 = vunpack.c.h.b16 %v2044
        %v2175 = vunpack.c.l.b16 %v2045
        %v2176 = vunpack.c.h.b16 %v2045
        %v2177 = vunpack.c.l.b16 %v2046
        %v2178 = vunpack.c.h.b16 %v2046
        %v2179 = vunpack.c.l.b16 %v2047
        %v2180 = vunpack.c.h.b16 %v2047
        %v2181 = vunpack.c.l.b16 %v2048
        %v2182 = vunpack.c.h.b16 %v2048
        %v2183 = vunpack.c.l.b16 %v2049
        %v2184 = vunpack.c.h.b16 %v2049
        %v2185 = vunpack.c.l.b16 %v2050
        %v2186 = vunpack.c.h.b16 %v2050
        %v2187 = vunpack.c.l.b16 %v2051
        %v2188 = vunpack.c.h.b16 %v2051
        %v2189 = vunpack.c.l.b16 %v2052
        %v2190 = vunpack.c.h.b16 %v2052
        %v2191 = vunpack.c.l.b16 %v2053
        %v2192 = vunpack.c.h.b16 %v2053
        %v2193 = vunpack.c.l.b16 %v2054
        %v2194 = vunpack.c.h.b16 %v2054
        %v2195 = vunpack.c.l.b16 %v2055
        %v2196 = vunpack.c.h.b16 %v2055
        %v2197 = vunpack.c.l.b16 %v2056
        %v2198 = vunpack.c.h.b16 %v2056
        %v2199 = vunpack.c.l.b16 %v2057
        %v2200 = vunpack.c.h.b16 %v2057
        %v2201 = vunpack.c.l.b16 %v2058
        %v2202 = vunpack.c.h.b16 %v2058
        %v2203 = vunpack.c.l.b16 %v2059
        %v2204 = vunpack.c.h.b16 %v2059
        %v2205 = vunpack.c.l.b16 %v2060
        %v2206 = vunpack.c.h.b16 %v2060
        %v2207 = vunpack.c.l.b16 %v2061
        %v2208 = vunpack.c.h.b16 %v2061
        %v2209 = vunpack.c.l.b16 %v2062
        %v2210 = vunpack.c.h.b16 %v2062
        %v2211 = vunpack.c.l.b16 %v2063
        %v2212 = vunpack.c.h.b16 %v2063
        %v2213 = vunpack.c.l.b16 %v2064
        %v2214 = vunpack.c.h.b16 %v2064
        %v2215 = vunpack.c.l.b16 %v2065
        %v2216 = vunpack.c.h.b16 %v2065
        %v2217 = vunpack.c.l.b16 %v2066
        %v2218 = vunpack.c.h.b16 %v2066
        %v2219 = vunpack.c.l.b16 %v2067
        %v2220 = vunpack.c.h.b16 %v2067
        %v2221 = vunpack.c.l.b16 %v2068
        %v2222 = vunpack.c.h.b16 %v2068
        %v2223 = vunpack.c.l.b16 %v2069
        %v2224 = vunpack.c.h.b16 %v2069
        %v2225 = vunpack.c.l.b16 %v2070
        %v2226 = vunpack.c.h.b16 %v2070
        %v2227 = vunpack.c.l.b16 %v2071
        %v2228 = vunpack.c.h.b16 %v2071
        %v2229 = vunpack.c.l.b16 %v2072
        %v2230 = vunpack.c.h.b16 %v2072
        %v2231 = vunpack.c.l.b16 %v2073
        %v2232 = vunpack.c.h.b16 %v2073
        %v2233 = vunpack.c.l.b16 %v2074
        %v2234 = vunpack.c.h.b16 %v2074
        %v2235 = vunpack.c.l.b16 %v2075
        %v2236 = vunpack.c.h.b16 %v2075
        %v2237 = vunpack.c.l.b16 %v2076
        %v2238 = vunpack.c.h.b16 %v2076
        %v2239 = vunpack.c.l.b16 %v2077
        %v2240 = vunpack.c.h.b16 %v2077
        %v2241 = vunpack.c.l.b16 %v2078
        %v2242 = vunpack.c.h.b16 %v2078
        %v2243 = vunpack.c.l.b16 %v2079
        %v2244 = vunpack.c.h.b16 %v2079
        %v2245 = vunpack.c.l.b16 %v2080
        %v2246 = vunpack.c.h.b16 %v2080
        %v2247 = vunpack.c.l.b16 %v2081
        %v2248 = vunpack.c.h.b16 %v2081
        %v2249 = vunpack.c.l.b16 %v2082
        %v2250 = vunpack.c.h.b16 %v2082
        %v2251 = vunpack.c.l.b16 %v2083
        %v2252 = vunpack.c.h.b16 %v2083
        %v2253 = vunpack.c.l.b16 %v2084
        %v2254 = vunpack.c.h.b16 %v2084
        %v2255 = vunpack.c.l.b16 %v2085
        %v2256 = vunpack.c.h.b16 %v2085
        %v2257 = vunpack.c.l.b16 %v2086
        %v2258 = vunpack.c.h.b16 %v2086
        %v2259 = vunpack.c.l.b16 %v2087
        %v2260 = vunpack.c.h.b16 %v2087
        %v2261 = vunpack.c.l.b16 %v2088
        %v2262 = vunpack.c.h.b16 %v2088
        %v2263 = vunpack.c.l.b16 %v2089
        %v2264 = vunpack.c.h.b16 %v2089
        %v2265 = vunpack.c.l.b16 %v2090
        %v2266 = vunpack.c.h.b16 %v2090
        %v2267 = vunpack.c.l.b16 %v2091
        %v2268 = vunpack.c.h.b16 %v2091
        %v2269 = vunpack.c.l.b16 %v2092
        %v2270 = vunpack.c.h.b16 %v2092
        %v2271 = vunpack.c.l.b16 %v2093
        %v2272 = vunpack.c.h.b16 %v2093
        %v2273 = vunpack.c.l.b16 %v2094
        %v2274 = vunpack.c.h.b16 %v2094
        %v2275 = vunpack.c.l.b16 %v2095
        %v2276 = vunpack.c.h.b16 %v2095
        %v2277 = vunpack.c.l.b16 %v2096
        %v2278 = vunpack.c.h.b16 %v2096
        %v2279 = vunpack.c.l.b16 %v2097
        %v2280 = vunpack.c.h.b16 %v2097
        %v2281 = vunpack.c.l.b16 %v2098
        %v2282 = vunpack.c.h.b16 %v2098
        %v2283 = vunpack.c.l.b16 %v2099
        %v2284 = vunpack.c.h.b16 %v2099
        %v2285 = vunpack.c.l.b16 %v2100
        %v2286 = vunpack.c.h.b16 %v2100
        %v2287 = vunpack.c.l.b16 %v2101
        %v2288 = vunpack.c.h.b16 %v2101
        %v2289 = vunpack.c.l.b16 %v2102
        %v2290 = vunpack.c.h.b16 %v2102
        %v2291 = vunpack.c.l.b16 %v2103
        %v2292 = vunpack.c.h.b16 %v2103
        %v2293 = vunpack.c.l.b16 %v2104
        %v2294 = vunpack.c.h.b16 %v2104
        %v2295 = vunpack.c.l.b16 %v2105
        %v2296 = vunpack.c.h.b16 %v2105
        %v2297 = vunpack.c.l.b16 %v2106
        %v2298 = vunpack.c.h.b16 %v2106
        %v2299 = vpack.c.b16 %v2175, %v2171
        %v2300 = vpack.c.b16 %v2176, %v2172
        %v2301 = vpack.c.b16 %v2177, %v2173
        %v2302 = vpack.c.b16 %v2178, %v2174
        %v2303 = vpack.c.b16 %v2183, %v2179
        %v2304 = vpack.c.b16 %v2184, %v2180
        %v2305 = vpack.c.b16 %v2185, %v2181
        %v2306 = vpack.c.b16 %v2186, %v2182
        %v2307 = vpack.c.b16 %v2191, %v2187
        %v2308 = vpack.c.b16 %v2192, %v2188
        %v2309 = vpack.c.b16 %v2193, %v2189
        %v2310 = vpack.c.b16 %v2194, %v2190
        %v2311 = vpack.c.b16 %v2199, %v2195
        %v2312 = vpack.c.b16 %v2200, %v2196
        %v2313 = vpack.c.b16 %v2201, %v2197
        %v2314 = vpack.c.b16 %v2202, %v2198
        %v2315 = vpack.c.b16 %v2207, %v2203
        %v2316 = vpack.c.b16 %v2208, %v2204
        %v2317 = vpack.c.b16 %v2209, %v2205
        %v2318 = vpack.c.b16 %v2210, %v2206
        %v2319 = vpack.c.b16 %v2215, %v2211
        %v2320 = vpack.c.b16 %v2216, %v2212
        %v2321 = vpack.c.b16 %v2217, %v2213
        %v2322 = vpack.c.b16 %v2218, %v2214
        %v2323 = vpack.c.b16 %v2223, %v2219
        %v2324 = vpack.c.b16 %v2224, %v2220
        %v2325 = vpack.c.b16 %v2225, %v2221
        %v2326 = vpack.c.b16 %v2226, %v2222
        %v2327 = vpack.c.b16 %v2231, %v2227
        %v2328 = vpack.c.b16 %v2232, %v2228
        %v2329 = vpack.c.b16 %v2233, %v2229
        %v2330 = vpack.c.b16 %v2234, %v2230
        %v2331 = vpack.c.b16 %v2239, %v2235
        %v2332 = vpack.c.b16 %v2240, %v2236
        %v2333 = vpack.c.b16 %v2241, %v2237
        %v2334 = vpack.c.b16 %v2242, %v2238
        %v2335 = vpack.c.b16 %v2247, %v2243
        %v2336 = vpack.c.b16 %v2248, %v2244
        %v2337 = vpack.c.b16 %v2249, %v2245
        %v2338 = vpack.c.b16 %v2250, %v2246
        %v2339 = vpack.c.b16 %v2255, %v2251
        %v2340 = vpack.c.b16 %v2256, %v2252
        %v2341 = vpack.c.b16 %v2257, %v2253
        %v2342 = vpack.c.b16 %v2258, %v2254
        %v2343 = vpack.c.b16 %v2263, %v2259
        %v2344 = vpack.c.b16 %v2264, %v2260
        %v2345 = vpack.c.b16 %v2265, %v2261
        %v2346 = vpack.c.b16 %v2266, %v2262
        %v2347 = vpack.c.b16 %v2271, %v2267
        %v2348 = vpack.c.b16 %v2272, %v2268
        %v2349 = vpack.c.b16 %v2273, %v2269
        %v2350 = vpack.c.b16 %v2274, %v2270
        %v2351 = vpack.c.b16 %v2279, %v2275
        %v2352 = vpack.c.b16 %v2280, %v2276
        %v2353 = vpack.c.b16 %v2281, %v2277
        %v2354 = vpack.c.b16 %v2282, %v2278
        %v2355 = vpack.c.b16 %v2287, %v2283
        %v2356 = vpack.c.b16 %v2288, %v2284
        %v2357 = vpack.c.b16 %v2289, %v2285
        %v2358 = vpack.c.b16 %v2290, %v2286
        %v2359 = vpack.c.b16 %v2295, %v2291
        %v2360 = vpack.c.b16 %v2296, %v2292
        %v2361 = vpack.c.b16 %v2297, %v2293
        %v2362 = vpack.c.b16 %v2298, %v2294
        %2427 = vmatprep.subr.bf16.mxu0 %v2300
        %2428 = vmatpush1.bf16.msra.mxu0 %v2299
        %2429 = vmatprep.subr.bf16.mxu0 %v2304
        %2430 = vmatpush1.bf16.msra.mxu0 %v2303
        %2431 = vmatprep.subr.bf16.mxu0 %v2308
        %2432 = vmatpush1.bf16.msra.mxu0 %v2307
        %2433 = vmatprep.subr.bf16.mxu0 %v2312
        %2434 = vmatpush1.bf16.msra.mxu0 %v2311
        %2435 = vmatprep.subr.bf16.mxu0 %v2316
        %2436 = vmatpush1.bf16.msra.mxu0 %v2315
        %2437 = vmatprep.subr.bf16.mxu0 %v2320
        %2438 = vmatpush1.bf16.msra.mxu0 %v2319
        %2439 = vmatprep.subr.bf16.mxu0 %v2324
        %2440 = vmatpush1.bf16.msra.mxu0 %v2323
        %2441 = vmatprep.subr.bf16.mxu0 %v2328
        %2442 = vmatpush1.bf16.msra.mxu0 %v2327
        %2443 = vmatprep.subr.bf16.mxu0 %v2332
        %2444 = vmatpush1.bf16.msra.mxu0 %v2331
        %2445 = vmatprep.subr.bf16.mxu0 %v2336
        %2446 = vmatpush1.bf16.msra.mxu0 %v2335
        %2447 = vmatprep.subr.bf16.mxu0 %v2340
        %2448 = vmatpush1.bf16.msra.mxu0 %v2339
        %2449 = vmatprep.subr.bf16.mxu0 %v2344
        %2450 = vmatpush1.bf16.msra.mxu0 %v2343
        %2451 = vmatprep.subr.bf16.mxu0 %v2348
        %2452 = vmatpush1.bf16.msra.mxu0 %v2347
        %2453 = vmatprep.subr.bf16.mxu0 %v2352
        %2454 = vmatpush1.bf16.msra.mxu0 %v2351
        %2455 = vmatprep.subr.bf16.mxu0 %v2356
        %2456 = vmatpush1.bf16.msra.mxu0 %v2355
        %2457 = vmatprep.subr.bf16.mxu0 %v2360
        %2458 = vmatpush1.bf16.msra.mxu0 %v2359
        %2459 = vmatprep.mubr.bf16.mxu0 %v2028
        %2460 = vmatmul.mubr.bf16.gmra.mrb[0].mxu0 %v2027
        %v2461 = vpop.f32.mrb[0].mxu0
        %v2462 = vadd.f32 0.0, %v2461
        %v2463 = vpop.f32.mrb[0].mxu0
        %v2464 = vadd.f32 0.0, %v2463
        %v2465 = vpop.f32.mrb[0].mxu0
        %v2466 = vadd.f32 0.0, %v2465
        %v2467 = vpop.f32.mrb[0].mxu0
        %v2468 = vadd.f32 0.0, %v2467
        %2469 = vmatprep.mubr.bf16.mxu0 %v2030
        %2470 = vmatmul.mubr.bf16.gmra.mrb[0].mxu0 %v2029
        %v2471 = vpop.f32.mrb[0].mxu0
        %v2472 = vadd.f32 0.0, %v2471
        %v2473 = vpop.f32.mrb[0].mxu0
        %v2474 = vadd.f32 0.0, %v2473
        %v2475 = vpop.f32.mrb[0].mxu0
        %v2476 = vadd.f32 0.0, %v2475
        %v2477 = vpop.f32.mrb[0].mxu0
        %v2478 = vadd.f32 0.0, %v2477
        %2479 = vmatprep.mubr.bf16.mxu0 %v2032
        %2480 = vmatmul.mubr.bf16.gmra.mrb[0].mxu0 %v2031
        %v2481 = vpop.f32.mrb[0].mxu0
        %v2482 = vadd.f32 0.0, %v2481
        %v2483 = vpop.f32.mrb[0].mxu0
        %v2484 = vadd.f32 0.0, %v2483
        %v2485 = vpop.f32.mrb[0].mxu0
        %v2486 = vadd.f32 0.0, %v2485
        %v2487 = vpop.f32.mrb[0].mxu0
        %v2488 = vadd.f32 0.0, %v2487
        %2489 = vmatprep.mubr.bf16.mxu0 %v2034
        %2490 = vmatmul.mubr.bf16.gmra.mrb[0].mxu0 %v2033
        %v2491 = vpop.f32.mrb[0].mxu0
        %v2492 = vadd.f32 0.0, %v2491
        %v2493 = vpop.f32.mrb[0].mxu0
        %v2494 = vadd.f32 0.0, %v2493
        %v2495 = vpop.f32.mrb[0].mxu0
        %v2496 = vadd.f32 0.0, %v2495
        %v2497 = vpop.f32.mrb[0].mxu0
        %v2498 = vadd.f32 0.0, %v2497
        %2499 = vmatprep.mubr.bf16.mxu0 %v2036
        %2500 = vmatmul.mubr.bf16.gmra.mrb[0].mxu0 %v2035
        %v2501 = vpop.f32.mrb[0].mxu0
        %v2502 = vadd.f32 0.0, %v2501
        %v2503 = vpop.f32.mrb[0].mxu0
        %v2504 = vadd.f32 0.0, %v2503
        %v2505 = vpop.f32.mrb[0].mxu0
        %v2506 = vadd.f32 0.0, %v2505
        %v2507 = vpop.f32.mrb[0].mxu0
        %v2508 = vadd.f32 0.0, %v2507
        %2509 = vmatprep.mubr.bf16.mxu0 %v2038
        %2510 = vmatmul.mubr.bf16.gmra.mrb[0].mxu0 %v2037
        %v2511 = vpop.f32.mrb[0].mxu0
        %v2512 = vadd.f32 0.0, %v2511
        %v2513 = vpop.f32.mrb[0].mxu0
        %v2514 = vadd.f32 0.0, %v2513
        %v2515 = vpop.f32.mrb[0].mxu0
        %v2516 = vadd.f32 0.0, %v2515
        %v2517 = vpop.f32.mrb[0].mxu0
        %v2518 = vadd.f32 0.0, %v2517
        %2519 = vmatprep.mubr.bf16.mxu0 %v2040
        %2520 = vmatmul.mubr.bf16.gmra.mrb[0].mxu0 %v2039
        %v2521 = vpop.f32.mrb[0].mxu0
        %v2522 = vadd.f32 0.0, %v2521
        %v2523 = vpop.f32.mrb[0].mxu0
        %v2524 = vadd.f32 0.0, %v2523
        %v2525 = vpop.f32.mrb[0].mxu0
        %v2526 = vadd.f32 0.0, %v2525
        %v2527 = vpop.f32.mrb[0].mxu0
        %v2528 = vadd.f32 0.0, %v2527
        %2529 = vmatprep.mubr.bf16.mxu0 %v2042
        %2530 = vmatmul.mubr.bf16.gmra.mrb[0].mxu0 %v2041
        %v2531 = vpop.f32.mrb[0].mxu0
        %v2532 = vadd.f32 0.0, %v2531
        %v2533 = vpop.f32.mrb[0].mxu0
        %v2534 = vadd.f32 0.0, %v2533
        %v2535 = vpop.f32.mrb[0].mxu0
        %v2536 = vadd.f32 0.0, %v2535
        %v2537 = vpop.f32.mrb[0].mxu0
        %v2538 = vadd.f32 0.0, %v2537
        %2539 = vdwg.mxu0
        %2540 = vmatprep.subr.bf16.mxu0 %v2302
        %2541 = vmatpush1.bf16.msra.mxu0 %v2301
        %2542 = vmatprep.subr.bf16.mxu0 %v2306
        %2543 = vmatpush1.bf16.msra.mxu0 %v2305
        %2544 = vmatprep.subr.bf16.mxu0 %v2310
        %2545 = vmatpush1.bf16.msra.mxu0 %v2309
        %2546 = vmatprep.subr.bf16.mxu0 %v2314
        %2547 = vmatpush1.bf16.msra.mxu0 %v2313
        %2548 = vmatprep.subr.bf16.mxu0 %v2318
        %2549 = vmatpush1.bf16.msra.mxu0 %v2317
        %2550 = vmatprep.subr.bf16.mxu0 %v2322
        %2551 = vmatpush1.bf16.msra.mxu0 %v2321
        %2552 = vmatprep.subr.bf16.mxu0 %v2326
        %2553 = vmatpush1.bf16.msra.mxu0 %v2325
        %2554 = vmatprep.subr.bf16.mxu0 %v2330
        %2555 = vmatpush1.bf16.msra.mxu0 %v2329
        %2556 = vmatprep.subr.bf16.mxu0 %v2334
        %2557 = vmatpush1.bf16.msra.mxu0 %v2333
        %2558 = vmatprep.subr.bf16.mxu0 %v2338
        %2559 = vmatpush1.bf16.msra.mxu0 %v2337
        %2560 = vmatprep.subr.bf16.mxu0 %v2342
        %2561 = vmatpush1.bf16.msra.mxu0 %v2341
        %2562 = vmatprep.subr.bf16.mxu0 %v2346
        %2563 = vmatpush1.bf16.msra.mxu0 %v2345
        %2564 = vmatprep.subr.bf16.mxu0 %v2350
        %2565 = vmatpush1.bf16.msra.mxu0 %v2349
        %2566 = vmatprep.subr.bf16.mxu0 %v2354
        %2567 = vmatpush1.bf16.msra.mxu0 %v2353
        %2568 = vmatprep.subr.bf16.mxu0 %v2358
        %2569 = vmatpush1.bf16.msra.mxu0 %v2357
        %2570 = vmatprep.subr.bf16.mxu0 %v2362
        %2571 = vmatpush1.bf16.msra.mxu0 %v2361
        %2572 = vmatprep.mubr.bf16.mxu0 %v2028
        %2573 = vmatmul.mubr.bf16.gmra.mrb[0].mxu0 %v2027
        %v2574 = vpop.f32.mrb[0].mxu0
        %v2575 = vadd.f32 0.0, %v2574
        %v2576 = vpop.f32.mrb[0].mxu0
        %v2577 = vadd.f32 0.0, %v2576
        %v2578 = vpop.f32.mrb[0].mxu0
        %v2579 = vadd.f32 0.0, %v2578
        %v2580 = vpop.f32.mrb[0].mxu0
        %v2581 = vadd.f32 0.0, %v2580
        %2582 = vmatprep.mubr.bf16.mxu0 %v2030
        %2583 = vmatmul.mubr.bf16.gmra.mrb[0].mxu0 %v2029
        %v2584 = vpop.f32.mrb[0].mxu0
        %v2585 = vadd.f32 0.0, %v2584
        %v2586 = vpop.f32.mrb[0].mxu0
        %v2587 = vadd.f32 0.0, %v2586
        %v2588 = vpop.f32.mrb[0].mxu0
        %v2589 = vadd.f32 0.0, %v2588
        %v2590 = vpop.f32.mrb[0].mxu0
        %v2591 = vadd.f32 0.0, %v2590
        %2592 = vmatprep.mubr.bf16.mxu0 %v2032
        %2593 = vmatmul.mubr.bf16.gmra.mrb[0].mxu0 %v2031
        %v2594 = vpop.f32.mrb[0].mxu0
        %v2595 = vadd.f32 0.0, %v2594
        %v2596 = vpop.f32.mrb[0].mxu0
        %v2597 = vadd.f32 0.0, %v2596
        %v2598 = vpop.f32.mrb[0].mxu0
        %v2599 = vadd.f32 0.0, %v2598
        %v2600 = vpop.f32.mrb[0].mxu0
        %v2601 = vadd.f32 0.0, %v2600
        %2602 = vmatprep.mubr.bf16.mxu0 %v2034
        %2603 = vmatmul.mubr.bf16.gmra.mrb[0].mxu0 %v2033
        %v2604 = vpop.f32.mrb[0].mxu0
        %v2605 = vadd.f32 0.0, %v2604
        %v2606 = vpop.f32.mrb[0].mxu0
        %v2607 = vadd.f32 0.0, %v2606
        %v2608 = vpop.f32.mrb[0].mxu0
        %v2609 = vadd.f32 0.0, %v2608
        %v2610 = vpop.f32.mrb[0].mxu0
        %v2611 = vadd.f32 0.0, %v2610
        %2612 = vmatprep.mubr.bf16.mxu0 %v2036
        %2613 = vmatmul.mubr.bf16.gmra.mrb[0].mxu0 %v2035
        %v2614 = vpop.f32.mrb[0].mxu0
        %v2615 = vadd.f32 0.0, %v2614
        %v2616 = vpop.f32.mrb[0].mxu0
        %v2617 = vadd.f32 0.0, %v2616
        %v2618 = vpop.f32.mrb[0].mxu0
        %v2619 = vadd.f32 0.0, %v2618
        %v2620 = vpop.f32.mrb[0].mxu0
        %v2621 = vadd.f32 0.0, %v2620
        %2622 = vmatprep.mubr.bf16.mxu0 %v2038
        %2623 = vmatmul.mubr.bf16.gmra.mrb[0].mxu0 %v2037
        %v2624 = vpop.f32.mrb[0].mxu0
        %v2625 = vadd.f32 0.0, %v2624
        %v2626 = vpop.f32.mrb[0].mxu0
        %v2627 = vadd.f32 0.0, %v2626
        %v2628 = vpop.f32.mrb[0].mxu0
        %v2629 = vadd.f32 0.0, %v2628
        %v2630 = vpop.f32.mrb[0].mxu0
        %v2631 = vadd.f32 0.0, %v2630
        %2632 = vmatprep.mubr.bf16.mxu0 %v2040
        %2633 = vmatmul.mubr.bf16.gmra.mrb[0].mxu0 %v2039
        %v2634 = vpop.f32.mrb[0].mxu0
        %v2635 = vadd.f32 0.0, %v2634
        %v2636 = vpop.f32.mrb[0].mxu0
        %v2637 = vadd.f32 0.0, %v2636
        %v2638 = vpop.f32.mrb[0].mxu0
        %v2639 = vadd.f32 0.0, %v2638
        %v2640 = vpop.f32.mrb[0].mxu0
        %v2641 = vadd.f32 0.0, %v2640
        %2642 = vmatprep.mubr.bf16.mxu0 %v2042
        %2643 = vmatmul.mubr.bf16.gmra.mrb[0].mxu0 %v2041
        %v2644 = vpop.f32.mrb[0].mxu0
        %v2645 = vadd.f32 0.0, %v2644
        %v2646 = vpop.f32.mrb[0].mxu0
        %v2647 = vadd.f32 0.0, %v2646
        %v2648 = vpop.f32.mrb[0].mxu0
        %v2649 = vadd.f32 0.0, %v2648
        %v2650 = vpop.f32.mrb[0].mxu0
        %v2651 = vadd.f32 0.0, %v2650
        %2652 = vdwg.mxu0
        %v2653 = vpack.c.bf16 %v1921, %v1921
        %v2654 = vpack.c.bf16 %v1928, %v1928
        %v2655 = vpack.c.bf16 %v1935, %v1935
        %v2656 = vpack.c.bf16 %v1942, %v1942
        %v2657 = vpack.c.bf16 %v1949, %v1949
        %v2658 = vpack.c.bf16 %v1956, %v1956
        %v2659 = vpack.c.bf16 %v1963, %v1963
        %v2660 = vpack.c.bf16 %v1970, %v1970
        %v2661 = vpack.c.bf16 %v1977, %v1977
        %v2662 = vpack.c.bf16 %v1984, %v1984
        %v2663 = vpack.c.bf16 %v1991, %v1991
        %v2664 = vpack.c.bf16 %v1998, %v1998
        %v2665 = vpack.c.bf16 %v2005, %v2005
        %v2666 = vpack.c.bf16 %v2012, %v2012
        %v2667 = vpack.c.bf16 %v2019, %v2019
        %v2668 = vpack.c.bf16 %v2026, %v2026
        %v2669 = vld [vmem:[%s13] sm:$0xff]
        %v2670 = vld [vmem:[%s13 + $0x8] sm:$0xff]
        %v2671 = vld [vmem:[%s13 + $0x10] sm:$0xff]
        %v2672 = vld [vmem:[%s13 + $0x18] sm:$0xff]
        %v2673 = vld [vmem:[%s13 + $0x20] sm:$0xff]
        %v2674 = vld [vmem:[%s13 + $0x28] sm:$0xff]
        %v2675 = vld [vmem:[%s13 + $0x30] sm:$0xff]
        %v2676 = vld [vmem:[%s13 + $0x38] sm:$0xff]
        %v2677 = vld [vmem:[%s13 + $0x40] sm:$0xff]
        %v2678 = vld [vmem:[%s13 + $0x48] sm:$0xff]
        %v2679 = vld [vmem:[%s13 + $0x50] sm:$0xff]
        %v2680 = vld [vmem:[%s13 + $0x58] sm:$0xff]
        %v2681 = vld [vmem:[%s13 + $0x60] sm:$0xff]
        %v2682 = vld [vmem:[%s13 + $0x68] sm:$0xff]
        %v2683 = vld [vmem:[%s13 + $0x70] sm:$0xff]
        %v2684 = vld [vmem:[%s13 + $0x78] sm:$0xff]
        %v2685 = vld [vmem:[%s13 + $0x80] sm:$0xff]
        %v2686 = vld [vmem:[%s13 + $0x88] sm:$0xff]
        %v2687 = vld [vmem:[%s13 + $0x90] sm:$0xff]
        %v2688 = vld [vmem:[%s13 + $0x98] sm:$0xff]
        %v2689 = vld [vmem:[%s13 + $0xa0] sm:$0xff]
        %v2690 = vld [vmem:[%s13 + $0xa8] sm:$0xff]
        %v2691 = vld [vmem:[%s13 + $0xb0] sm:$0xff]
        %v2692 = vld [vmem:[%s13 + $0xb8] sm:$0xff]
        %v2693 = vld [vmem:[%s13 + $0xc0] sm:$0xff]
        %v2694 = vld [vmem:[%s13 + $0xc8] sm:$0xff]
        %v2695 = vld [vmem:[%s13 + $0xd0] sm:$0xff]
        %v2696 = vld [vmem:[%s13 + $0xd8] sm:$0xff]
        %v2697 = vld [vmem:[%s13 + $0xe0] sm:$0xff]
        %v2698 = vld [vmem:[%s13 + $0xe8] sm:$0xff]
        %v2699 = vld [vmem:[%s13 + $0xf0] sm:$0xff]
        %v2700 = vld [vmem:[%s13 + $0xf8] sm:$0xff]
        %v2701 = vld [vmem:[%s13 + $0x100] sm:$0xff]
        %v2702 = vld [vmem:[%s13 + $0x108] sm:$0xff]
        %v2703 = vld [vmem:[%s13 + $0x110] sm:$0xff]
        %v2704 = vld [vmem:[%s13 + $0x118] sm:$0xff]
        %v2705 = vld [vmem:[%s13 + $0x120] sm:$0xff]
        %v2706 = vld [vmem:[%s13 + $0x128] sm:$0xff]
        %v2707 = vld [vmem:[%s13 + $0x130] sm:$0xff]
        %v2708 = vld [vmem:[%s13 + $0x138] sm:$0xff]
        %v2709 = vld [vmem:[%s13 + $0x140] sm:$0xff]
        %v2710 = vld [vmem:[%s13 + $0x148] sm:$0xff]
        %v2711 = vld [vmem:[%s13 + $0x150] sm:$0xff]
        %v2712 = vld [vmem:[%s13 + $0x158] sm:$0xff]
        %v2713 = vld [vmem:[%s13 + $0x160] sm:$0xff]
        %v2714 = vld [vmem:[%s13 + $0x168] sm:$0xff]
        %v2715 = vld [vmem:[%s13 + $0x170] sm:$0xff]
        %v2716 = vld [vmem:[%s13 + $0x178] sm:$0xff]
        %v2717 = vld [vmem:[%s13 + $0x180] sm:$0xff]
        %v2718 = vld [vmem:[%s13 + $0x188] sm:$0xff]
        %v2719 = vld [vmem:[%s13 + $0x190] sm:$0xff]
        %v2720 = vld [vmem:[%s13 + $0x198] sm:$0xff]
        %v2721 = vld [vmem:[%s13 + $0x1a0] sm:$0xff]
        %v2722 = vld [vmem:[%s13 + $0x1a8] sm:$0xff]
        %v2723 = vld [vmem:[%s13 + $0x1b0] sm:$0xff]
        %v2724 = vld [vmem:[%s13 + $0x1b8] sm:$0xff]
        %v2725 = vld [vmem:[%s13 + $0x1c0] sm:$0xff]
        %v2726 = vld [vmem:[%s13 + $0x1c8] sm:$0xff]
        %v2727 = vld [vmem:[%s13 + $0x1d0] sm:$0xff]
        %v2728 = vld [vmem:[%s13 + $0x1d8] sm:$0xff]
        %v2729 = vld [vmem:[%s13 + $0x1e0] sm:$0xff]
        %v2730 = vld [vmem:[%s13 + $0x1e8] sm:$0xff]
        %v2731 = vld [vmem:[%s13 + $0x1f0] sm:$0xff]
        %v2732 = vld [vmem:[%s13 + $0x1f8] sm:$0xff]
        %v2733 = vld [vmem:[%s17] sm:$0xf]
        %v2735 = vlaneseq
        %v2736 = vshrl.u32 %v2735, 7
        %v2737 = vsub.s32 0, %v2736
        %v2738 = vrot.slane %v2733, %v2737
        %v2739 = vlaneseq
        %v2740 = vshrl.u32 %v2739, 7
        %v2741 = vsub.s32 1, %v2740
        %v2742 = vrot.slane %v2733, %v2741
        %v2743 = vlaneseq
        %v2744 = vshrl.u32 %v2743, 7
        %v2745 = vsub.s32 2, %v2744
        %v2746 = vrot.slane %v2733, %v2745
        %v2747 = vlaneseq
        %v2748 = vshrl.u32 %v2747, 7
        %v2749 = vsub.s32 3, %v2748
        %v2750 = vrot.slane %v2733, %v2749
        %v2771 = vunpack.c.l.b16 %v2653
        %v2772 = vunpack.c.l.b16 %v2654
        %v2773 = vunpack.c.l.b16 %v2655
        %v2774 = vunpack.c.l.b16 %v2656
        %v2775 = vunpack.c.l.b16 %v2657
        %v2776 = vunpack.c.l.b16 %v2658
        %v2777 = vunpack.c.l.b16 %v2659
        %v2778 = vunpack.c.l.b16 %v2660
        %v2779 = vunpack.c.l.b16 %v2661
        %v2780 = vunpack.c.l.b16 %v2662
        %v2781 = vunpack.c.l.b16 %v2663
        %v2782 = vunpack.c.l.b16 %v2664
        %v2783 = vunpack.c.l.b16 %v2665
        %v2784 = vunpack.c.l.b16 %v2666
        %v2785 = vunpack.c.l.b16 %v2667
        %v2786 = vunpack.c.l.b16 %v2668
        %vm2787 = vcmask 1041409
        %v2788 = vsel %vm2787, %v2773, %v2771
        %vm2789 = vcmask 1042434
        %v2790 = vsel %vm2789, %v2775, %v2788
        %vm2791 = vcmask 1043459
        %v2792 = vsel %vm2791, %v2777, %v2790
        %vm2793 = vcmask 1044484
        %v2794 = vsel %vm2793, %v2779, %v2792
        %vm2795 = vcmask 1045509
        %v2796 = vsel %vm2795, %v2781, %v2794
        %vm2797 = vcmask 1046534
        %v2798 = vsel %vm2797, %v2783, %v2796
        %vm2799 = vcmask 1047559
        %v2800 = vsel %vm2799, %v2785, %v2798
        %v2801 = vsel %vm2787, %v2774, %v2772
        %v2802 = vsel %vm2789, %v2776, %v2801
        %v2803 = vsel %vm2791, %v2778, %v2802
        %v2804 = vsel %vm2793, %v2780, %v2803
        %v2805 = vsel %vm2795, %v2782, %v2804
        %v2806 = vsel %vm2797, %v2784, %v2805
        %v2807 = vsel %vm2799, %v2786, %v2806
        %v2808 = vpack.c.b16 %v2800, %v2800
        %v2809 = vpack.c.b16 %v2807, %v2807
        %v2876 = vunpack.c.l.b16 %v2669
        %v2877 = vunpack.c.h.b16 %v2669
        %v2878 = vunpack.c.l.b16 %v2670
        %v2879 = vunpack.c.h.b16 %v2670
        %v2880 = vunpack.c.l.b16 %v2671
        %v2881 = vunpack.c.h.b16 %v2671
        %v2882 = vunpack.c.l.b16 %v2672
        %v2883 = vunpack.c.h.b16 %v2672
        %v2884 = vunpack.c.l.b16 %v2673
        %v2885 = vunpack.c.h.b16 %v2673
        %v2886 = vunpack.c.l.b16 %v2674
        %v2887 = vunpack.c.h.b16 %v2674
        %v2888 = vunpack.c.l.b16 %v2675
        %v2889 = vunpack.c.h.b16 %v2675
        %v2890 = vunpack.c.l.b16 %v2676
        %v2891 = vunpack.c.h.b16 %v2676
        %v2892 = vunpack.c.l.b16 %v2677
        %v2893 = vunpack.c.h.b16 %v2677
        %v2894 = vunpack.c.l.b16 %v2678
        %v2895 = vunpack.c.h.b16 %v2678
        %v2896 = vunpack.c.l.b16 %v2679
        %v2897 = vunpack.c.h.b16 %v2679
        %v2898 = vunpack.c.l.b16 %v2680
        %v2899 = vunpack.c.h.b16 %v2680
        %v2900 = vunpack.c.l.b16 %v2681
        %v2901 = vunpack.c.h.b16 %v2681
        %v2902 = vunpack.c.l.b16 %v2682
        %v2903 = vunpack.c.h.b16 %v2682
        %v2904 = vunpack.c.l.b16 %v2683
        %v2905 = vunpack.c.h.b16 %v2683
        %v2906 = vunpack.c.l.b16 %v2684
        %v2907 = vunpack.c.h.b16 %v2684
        %v2908 = vunpack.c.l.b16 %v2685
        %v2909 = vunpack.c.h.b16 %v2685
        %v2910 = vunpack.c.l.b16 %v2686
        %v2911 = vunpack.c.h.b16 %v2686
        %v2912 = vunpack.c.l.b16 %v2687
        %v2913 = vunpack.c.h.b16 %v2687
        %v2914 = vunpack.c.l.b16 %v2688
        %v2915 = vunpack.c.h.b16 %v2688
        %v2916 = vunpack.c.l.b16 %v2689
        %v2917 = vunpack.c.h.b16 %v2689
        %v2918 = vunpack.c.l.b16 %v2690
        %v2919 = vunpack.c.h.b16 %v2690
        %v2920 = vunpack.c.l.b16 %v2691
        %v2921 = vunpack.c.h.b16 %v2691
        %v2922 = vunpack.c.l.b16 %v2692
        %v2923 = vunpack.c.h.b16 %v2692
        %v2924 = vunpack.c.l.b16 %v2693
        %v2925 = vunpack.c.h.b16 %v2693
        %v2926 = vunpack.c.l.b16 %v2694
        %v2927 = vunpack.c.h.b16 %v2694
        %v2928 = vunpack.c.l.b16 %v2695
        %v2929 = vunpack.c.h.b16 %v2695
        %v2930 = vunpack.c.l.b16 %v2696
        %v2931 = vunpack.c.h.b16 %v2696
        %v2932 = vunpack.c.l.b16 %v2697
        %v2933 = vunpack.c.h.b16 %v2697
        %v2934 = vunpack.c.l.b16 %v2698
        %v2935 = vunpack.c.h.b16 %v2698
        %v2936 = vunpack.c.l.b16 %v2699
        %v2937 = vunpack.c.h.b16 %v2699
        %v2938 = vunpack.c.l.b16 %v2700
        %v2939 = vunpack.c.h.b16 %v2700
        %v2940 = vunpack.c.l.b16 %v2701
        %v2941 = vunpack.c.h.b16 %v2701
        %v2942 = vunpack.c.l.b16 %v2702
        %v2943 = vunpack.c.h.b16 %v2702
        %v2944 = vunpack.c.l.b16 %v2703
        %v2945 = vunpack.c.h.b16 %v2703
        %v2946 = vunpack.c.l.b16 %v2704
        %v2947 = vunpack.c.h.b16 %v2704
        %v2948 = vunpack.c.l.b16 %v2705
        %v2949 = vunpack.c.h.b16 %v2705
        %v2950 = vunpack.c.l.b16 %v2706
        %v2951 = vunpack.c.h.b16 %v2706
        %v2952 = vunpack.c.l.b16 %v2707
        %v2953 = vunpack.c.h.b16 %v2707
        %v2954 = vunpack.c.l.b16 %v2708
        %v2955 = vunpack.c.h.b16 %v2708
        %v2956 = vunpack.c.l.b16 %v2709
        %v2957 = vunpack.c.h.b16 %v2709
        %v2958 = vunpack.c.l.b16 %v2710
        %v2959 = vunpack.c.h.b16 %v2710
        %v2960 = vunpack.c.l.b16 %v2711
        %v2961 = vunpack.c.h.b16 %v2711
        %v2962 = vunpack.c.l.b16 %v2712
        %v2963 = vunpack.c.h.b16 %v2712
        %v2964 = vunpack.c.l.b16 %v2713
        %v2965 = vunpack.c.h.b16 %v2713
        %v2966 = vunpack.c.l.b16 %v2714
        %v2967 = vunpack.c.h.b16 %v2714
        %v2968 = vunpack.c.l.b16 %v2715
        %v2969 = vunpack.c.h.b16 %v2715
        %v2970 = vunpack.c.l.b16 %v2716
        %v2971 = vunpack.c.h.b16 %v2716
        %v2972 = vunpack.c.l.b16 %v2717
        %v2973 = vunpack.c.h.b16 %v2717
        %v2974 = vunpack.c.l.b16 %v2718
        %v2975 = vunpack.c.h.b16 %v2718
        %v2976 = vunpack.c.l.b16 %v2719
        %v2977 = vunpack.c.h.b16 %v2719
        %v2978 = vunpack.c.l.b16 %v2720
        %v2979 = vunpack.c.h.b16 %v2720
        %v2980 = vunpack.c.l.b16 %v2721
        %v2981 = vunpack.c.h.b16 %v2721
        %v2982 = vunpack.c.l.b16 %v2722
        %v2983 = vunpack.c.h.b16 %v2722
        %v2984 = vunpack.c.l.b16 %v2723
        %v2985 = vunpack.c.h.b16 %v2723
        %v2986 = vunpack.c.l.b16 %v2724
        %v2987 = vunpack.c.h.b16 %v2724
        %v2988 = vunpack.c.l.b16 %v2725
        %v2989 = vunpack.c.h.b16 %v2725
        %v2990 = vunpack.c.l.b16 %v2726
        %v2991 = vunpack.c.h.b16 %v2726
        %v2992 = vunpack.c.l.b16 %v2727
        %v2993 = vunpack.c.h.b16 %v2727
        %v2994 = vunpack.c.l.b16 %v2728
        %v2995 = vunpack.c.h.b16 %v2728
        %v2996 = vunpack.c.l.b16 %v2729
        %v2997 = vunpack.c.h.b16 %v2729
        %v2998 = vunpack.c.l.b16 %v2730
        %v2999 = vunpack.c.h.b16 %v2730
        %v3000 = vunpack.c.l.b16 %v2731
        %v3001 = vunpack.c.h.b16 %v2731
        %v3002 = vunpack.c.l.b16 %v2732
        %v3003 = vunpack.c.h.b16 %v2732
        %v3004 = vpack.c.b16 %v2880, %v2876
        %v3005 = vpack.c.b16 %v2881, %v2877
        %v3006 = vpack.c.b16 %v2882, %v2878
        %v3007 = vpack.c.b16 %v2883, %v2879
        %v3008 = vpack.c.b16 %v2888, %v2884
        %v3009 = vpack.c.b16 %v2889, %v2885
        %v3010 = vpack.c.b16 %v2890, %v2886
        %v3011 = vpack.c.b16 %v2891, %v2887
        %v3012 = vpack.c.b16 %v2896, %v2892
        %v3013 = vpack.c.b16 %v2897, %v2893
        %v3014 = vpack.c.b16 %v2898, %v2894
        %v3015 = vpack.c.b16 %v2899, %v2895
        %v3016 = vpack.c.b16 %v2904, %v2900
        %v3017 = vpack.c.b16 %v2905, %v2901
        %v3018 = vpack.c.b16 %v2906, %v2902
        %v3019 = vpack.c.b16 %v2907, %v2903
        %v3020 = vpack.c.b16 %v2912, %v2908
        %v3021 = vpack.c.b16 %v2913, %v2909
        %v3022 = vpack.c.b16 %v2914, %v2910
        %v3023 = vpack.c.b16 %v2915, %v2911
        %v3024 = vpack.c.b16 %v2920, %v2916
        %v3025 = vpack.c.b16 %v2921, %v2917
        %v3026 = vpack.c.b16 %v2922, %v2918
        %v3027 = vpack.c.b16 %v2923, %v2919
        %v3028 = vpack.c.b16 %v2928, %v2924
        %v3029 = vpack.c.b16 %v2929, %v2925
        %v3030 = vpack.c.b16 %v2930, %v2926
        %v3031 = vpack.c.b16 %v2931, %v2927
        %v3032 = vpack.c.b16 %v2936, %v2932
        %v3033 = vpack.c.b16 %v2937, %v2933
        %v3034 = vpack.c.b16 %v2938, %v2934
        %v3035 = vpack.c.b16 %v2939, %v2935
        %v3036 = vpack.c.b16 %v2944, %v2940
        %v3037 = vpack.c.b16 %v2945, %v2941
        %v3038 = vpack.c.b16 %v2946, %v2942
        %v3039 = vpack.c.b16 %v2947, %v2943
        %v3040 = vpack.c.b16 %v2952, %v2948
        %v3041 = vpack.c.b16 %v2953, %v2949
        %v3042 = vpack.c.b16 %v2954, %v2950
        %v3043 = vpack.c.b16 %v2955, %v2951
        %v3044 = vpack.c.b16 %v2960, %v2956
        %v3045 = vpack.c.b16 %v2961, %v2957
        %v3046 = vpack.c.b16 %v2962, %v2958
        %v3047 = vpack.c.b16 %v2963, %v2959
        %v3048 = vpack.c.b16 %v2968, %v2964
        %v3049 = vpack.c.b16 %v2969, %v2965
        %v3050 = vpack.c.b16 %v2970, %v2966
        %v3051 = vpack.c.b16 %v2971, %v2967
        %v3052 = vpack.c.b16 %v2976, %v2972
        %v3053 = vpack.c.b16 %v2977, %v2973
        %v3054 = vpack.c.b16 %v2978, %v2974
        %v3055 = vpack.c.b16 %v2979, %v2975
        %v3056 = vpack.c.b16 %v2984, %v2980
        %v3057 = vpack.c.b16 %v2985, %v2981
        %v3058 = vpack.c.b16 %v2986, %v2982
        %v3059 = vpack.c.b16 %v2987, %v2983
        %v3060 = vpack.c.b16 %v2992, %v2988
        %v3061 = vpack.c.b16 %v2993, %v2989
        %v3062 = vpack.c.b16 %v2994, %v2990
        %v3063 = vpack.c.b16 %v2995, %v2991
        %v3064 = vpack.c.b16 %v3000, %v2996
        %v3065 = vpack.c.b16 %v3001, %v2997
        %v3066 = vpack.c.b16 %v3002, %v2998
        %v3067 = vpack.c.b16 %v3003, %v2999
        %3132 = vmatprep.subr.bf16.mxu0 %v3005
        %3133 = vmatpush1.bf16.msra.mxu0 %v3004
        %3134 = vmatprep.subr.bf16.mxu0 %v3009
        %3135 = vmatpush1.bf16.msra.mxu0 %v3008
        %3136 = vmatprep.subr.bf16.mxu0 %v3013
        %3137 = vmatpush1.bf16.msra.mxu0 %v3012
        %3138 = vmatprep.subr.bf16.mxu0 %v3017
        %3139 = vmatpush1.bf16.msra.mxu0 %v3016
        %3140 = vmatprep.subr.bf16.mxu0 %v3021
        %3141 = vmatpush1.bf16.msra.mxu0 %v3020
        %3142 = vmatprep.subr.bf16.mxu0 %v3025
        %3143 = vmatpush1.bf16.msra.mxu0 %v3024
        %3144 = vmatprep.subr.bf16.mxu0 %v3029
        %3145 = vmatpush1.bf16.msra.mxu0 %v3028
        %3146 = vmatprep.subr.bf16.mxu0 %v3033
        %3147 = vmatpush1.bf16.msra.mxu0 %v3032
        %3148 = vmatprep.subr.bf16.mxu0 %v3037
        %3149 = vmatpush1.bf16.msra.mxu0 %v3036
        %3150 = vmatprep.subr.bf16.mxu0 %v3041
        %3151 = vmatpush1.bf16.msra.mxu0 %v3040
        %3152 = vmatprep.subr.bf16.mxu0 %v3045
        %3153 = vmatpush1.bf16.msra.mxu0 %v3044
        %3154 = vmatprep.subr.bf16.mxu0 %v3049
        %3155 = vmatpush1.bf16.msra.mxu0 %v3048
        %3156 = vmatprep.subr.bf16.mxu0 %v3053
        %3157 = vmatpush1.bf16.msra.mxu0 %v3052
        %3158 = vmatprep.subr.bf16.mxu0 %v3057
        %3159 = vmatpush1.bf16.msra.mxu0 %v3056
        %3160 = vmatprep.subr.bf16.mxu0 %v3061
        %3161 = vmatpush1.bf16.msra.mxu0 %v3060
        %3162 = vmatprep.subr.bf16.mxu0 %v3065
        %3163 = vmatpush1.bf16.msra.mxu0 %v3064
        %3164 = vmatprep.mubr.bf16.mxu0 %v2809
        %3165 = vmatmul.mubr.bf16.gmra.mrb[0].mxu0 %v2808
        %v3166 = vpop.f32.mrb[0].mxu0
        %v3167 = vadd.f32 %v2738, %v3166
        %v3168 = vpop.f32.mrb[0].mxu0
        %v3169 = vadd.f32 %v2742, %v3168
        %v3170 = vpop.f32.mrb[0].mxu0
        %v3171 = vpop.f32.mrb[0].mxu0
        %3172 = vdwg.mxu0
        %3173 = vmatprep.subr.bf16.mxu0 %v3007
        %3174 = vmatpush1.bf16.msra.mxu0 %v3006
        %3175 = vmatprep.subr.bf16.mxu0 %v3011
        %3176 = vmatpush1.bf16.msra.mxu0 %v3010
        %3177 = vmatprep.subr.bf16.mxu0 %v3015
        %3178 = vmatpush1.bf16.msra.mxu0 %v3014
        %3179 = vmatprep.subr.bf16.mxu0 %v3019
        %3180 = vmatpush1.bf16.msra.mxu0 %v3018
        %3181 = vmatprep.subr.bf16.mxu0 %v3023
        %3182 = vmatpush1.bf16.msra.mxu0 %v3022
        %3183 = vmatprep.subr.bf16.mxu0 %v3027
        %3184 = vmatpush1.bf16.msra.mxu0 %v3026
        %3185 = vmatprep.subr.bf16.mxu0 %v3031
        %3186 = vmatpush1.bf16.msra.mxu0 %v3030
        %3187 = vmatprep.subr.bf16.mxu0 %v3035
        %3188 = vmatpush1.bf16.msra.mxu0 %v3034
        %3189 = vmatprep.subr.bf16.mxu0 %v3039
        %3190 = vmatpush1.bf16.msra.mxu0 %v3038
        %3191 = vmatprep.subr.bf16.mxu0 %v3043
        %3192 = vmatpush1.bf16.msra.mxu0 %v3042
        %3193 = vmatprep.subr.bf16.mxu0 %v3047
        %3194 = vmatpush1.bf16.msra.mxu0 %v3046
        %3195 = vmatprep.subr.bf16.mxu0 %v3051
        %3196 = vmatpush1.bf16.msra.mxu0 %v3050
        %3197 = vmatprep.subr.bf16.mxu0 %v3055
        %3198 = vmatpush1.bf16.msra.mxu0 %v3054
        %3199 = vmatprep.subr.bf16.mxu0 %v3059
        %3200 = vmatpush1.bf16.msra.mxu0 %v3058
        %3201 = vmatprep.subr.bf16.mxu0 %v3063
        %3202 = vmatpush1.bf16.msra.mxu0 %v3062
        %3203 = vmatprep.subr.bf16.mxu0 %v3067
        %3204 = vmatpush1.bf16.msra.mxu0 %v3066
        %3205 = vmatprep.mubr.bf16.mxu0 %v2809
        %3206 = vmatmul.mubr.bf16.gmra.mrb[0].mxu0 %v2808
        %v3207 = vpop.f32.mrb[0].mxu0
        %v3208 = vadd.f32 %v2746, %v3207
        %v3209 = vpop.f32.mrb[0].mxu0
        %v3210 = vadd.f32 %v2750, %v3209
        %v3211 = vpop.f32.mrb[0].mxu0
        %v3212 = vpop.f32.mrb[0].mxu0
        %3213 = vdwg.mxu0
        %v3218 = vcombine.low %v3167, %v3169
        %v3219 = vcombine.high %v3167, %v3169
        %v3220 = vcombine.low %v3208, %v3210
        %v3221 = vcombine.high %v3208, %v3210
        %v3223 = vunpack.c.l.s4 1966171168
        %v3224 = vunpack.c.0.s8 %v3223
        %v3225 = vlaneseq
        %v3226 = vshrl.u32 %v3225, 7
        %v3227 = vsub.s32 %v3224, %v3226
        %v3228 = vrot.slane %v3218, %v3227
        %v3230 = vunpack.c.l.s4 1966171168
        %v3231 = vunpack.c.0.s8 %v3230
        %v3232 = vlaneseq
        %v3233 = vshrl.u32 %v3232, 7
        %v3234 = vsub.s32 %v3231, %v3233
        %v3235 = vrot.slane %v3219, %v3234
        %v3237 = vunpack.c.l.s4 1966171168
        %v3238 = vunpack.c.0.s8 %v3237
        %v3239 = vlaneseq
        %v3240 = vshrl.u32 %v3239, 7
        %v3241 = vsub.s32 %v3238, %v3240
        %v3242 = vrot.slane %v3220, %v3241
        %v3244 = vunpack.c.l.s4 1966171168
        %v3245 = vunpack.c.0.s8 %v3244
        %v3246 = vlaneseq
        %v3247 = vshrl.u32 %v3246, 7
        %v3248 = vsub.s32 %v3245, %v3247
        %v3249 = vrot.slane %v3221, %v3248
        %v3250 = vcombine.low %v3228, %v3242
        %v3251 = vcombine.high %v3228, %v3242
        %v3252 = vcombine.low %v3235, %v3249
        %v3253 = vcombine.high %v3235, %v3249
        %v3255 = vunpack.c.l.s4 1966171168
        %v3256 = vunpack.c.0.s8 %v3255
        %v3257 = vlaneseq
        %v3258 = vshrl.u32 %v3257, 7
        %v3259 = vsub.s32 %v3256, %v3258
        %v3260 = vrot.slane %v3250, %v3259
        %v3262 = vunpack.c.l.s4 1966171168
        %v3263 = vunpack.c.0.s8 %v3262
        %v3264 = vlaneseq
        %v3265 = vshrl.u32 %v3264, 7
        %v3266 = vsub.s32 %v3263, %v3265
        %v3267 = vrot.slane %v3252, %v3266
        %v3269 = vunpack.c.l.s4 1966171168
        %v3270 = vunpack.c.0.s8 %v3269
        %v3271 = vlaneseq
        %v3272 = vshrl.u32 %v3271, 7
        %v3273 = vsub.s32 %v3270, %v3272
        %v3274 = vrot.slane %v3251, %v3273
        %v3276 = vunpack.c.l.s4 1966171168
        %v3277 = vunpack.c.0.s8 %v3276
        %v3278 = vlaneseq
        %v3279 = vshrl.u32 %v3278, 7
        %v3280 = vsub.s32 %v3277, %v3279
        %v3281 = vrot.slane %v3253, %v3280
        %v3282 = vcombine.high %v3260, %v3260
        %v3283 = vcombine.high %v3267, %v3267
        %v3284 = vcombine.high %v3274, %v3274
        %v3285 = vcombine.high %v3281, %v3281
        %v3286 = vlaneseq
        %v3287 = vshrl.u32 %v3286, 7
        %v3288 = vsub.s32 0, %v3287
        %v3289 = vrot.slane %v3260, %v3288
        %v3290 = vlaneseq
        %v3291 = vshrl.u32 %v3290, 7
        %v3292 = vsub.s32 1, %v3291
        %v3293 = vrot.slane %v3260, %v3292
        %v3294 = vlaneseq
        %v3295 = vshrl.u32 %v3294, 7
        %v3296 = vsub.s32 2, %v3295
        %v3297 = vrot.slane %v3260, %v3296
        %v3298 = vlaneseq
        %v3299 = vshrl.u32 %v3298, 7
        %v3300 = vsub.s32 3, %v3299
        %v3301 = vrot.slane %v3260, %v3300
        %v3302 = vlaneseq
        %v3303 = vshrl.u32 %v3302, 7
        %v3304 = vsub.s32 0, %v3303
        %v3305 = vrot.slane %v3274, %v3304
        %v3306 = vlaneseq
        %v3307 = vshrl.u32 %v3306, 7
        %v3308 = vsub.s32 1, %v3307
        %v3309 = vrot.slane %v3274, %v3308
        %v3310 = vlaneseq
        %v3311 = vshrl.u32 %v3310, 7
        %v3312 = vsub.s32 2, %v3311
        %v3313 = vrot.slane %v3274, %v3312
        %v3314 = vlaneseq
        %v3315 = vshrl.u32 %v3314, 7
        %v3316 = vsub.s32 3, %v3315
        %v3317 = vrot.slane %v3274, %v3316
        %v3318 = vlaneseq
        %v3319 = vshrl.u32 %v3318, 7
        %v3320 = vsub.s32 0, %v3319
        %v3321 = vrot.slane %v3282, %v3320
        %v3322 = vlaneseq
        %v3323 = vshrl.u32 %v3322, 7
        %v3324 = vsub.s32 1, %v3323
        %v3325 = vrot.slane %v3282, %v3324
        %v3326 = vlaneseq
        %v3327 = vshrl.u32 %v3326, 7
        %v3328 = vsub.s32 2, %v3327
        %v3329 = vrot.slane %v3282, %v3328
        %v3330 = vlaneseq
        %v3331 = vshrl.u32 %v3330, 7
        %v3332 = vsub.s32 3, %v3331
        %v3333 = vrot.slane %v3282, %v3332
        %v3334 = vlaneseq
        %v3335 = vshrl.u32 %v3334, 7
        %v3336 = vsub.s32 0, %v3335
        %v3337 = vrot.slane %v3284, %v3336
        %v3338 = vlaneseq
        %v3339 = vshrl.u32 %v3338, 7
        %v3340 = vsub.s32 1, %v3339
        %v3341 = vrot.slane %v3284, %v3340
        %v3342 = vlaneseq
        %v3343 = vshrl.u32 %v3342, 7
        %v3344 = vsub.s32 2, %v3343
        %v3345 = vrot.slane %v3284, %v3344
        %v3346 = vlaneseq
        %v3347 = vshrl.u32 %v3346, 7
        %v3348 = vsub.s32 3, %v3347
        %v3349 = vrot.slane %v3284, %v3348
        %v3350 = vlaneseq
        %v3351 = vshrl.u32 %v3350, 7
        %v3352 = vsub.s32 0, %v3351
        %v3353 = vrot.slane %v3267, %v3352
        %v3354 = vlaneseq
        %v3355 = vshrl.u32 %v3354, 7
        %v3356 = vsub.s32 1, %v3355
        %v3357 = vrot.slane %v3267, %v3356
        %v3358 = vlaneseq
        %v3359 = vshrl.u32 %v3358, 7
        %v3360 = vsub.s32 2, %v3359
        %v3361 = vrot.slane %v3267, %v3360
        %v3362 = vlaneseq
        %v3363 = vshrl.u32 %v3362, 7
        %v3364 = vsub.s32 3, %v3363
        %v3365 = vrot.slane %v3267, %v3364
        %v3366 = vlaneseq
        %v3367 = vshrl.u32 %v3366, 7
        %v3368 = vsub.s32 0, %v3367
        %v3369 = vrot.slane %v3281, %v3368
        %v3370 = vlaneseq
        %v3371 = vshrl.u32 %v3370, 7
        %v3372 = vsub.s32 1, %v3371
        %v3373 = vrot.slane %v3281, %v3372
        %v3374 = vlaneseq
        %v3375 = vshrl.u32 %v3374, 7
        %v3376 = vsub.s32 2, %v3375
        %v3377 = vrot.slane %v3281, %v3376
        %v3378 = vlaneseq
        %v3379 = vshrl.u32 %v3378, 7
        %v3380 = vsub.s32 3, %v3379
        %v3381 = vrot.slane %v3281, %v3380
        %v3382 = vlaneseq
        %v3383 = vshrl.u32 %v3382, 7
        %v3384 = vsub.s32 0, %v3383
        %v3385 = vrot.slane %v3283, %v3384
        %v3386 = vlaneseq
        %v3387 = vshrl.u32 %v3386, 7
        %v3388 = vsub.s32 1, %v3387
        %v3389 = vrot.slane %v3283, %v3388
        %v3390 = vlaneseq
        %v3391 = vshrl.u32 %v3390, 7
        %v3392 = vsub.s32 2, %v3391
        %v3393 = vrot.slane %v3283, %v3392
        %v3394 = vlaneseq
        %v3395 = vshrl.u32 %v3394, 7
        %v3396 = vsub.s32 3, %v3395
        %v3397 = vrot.slane %v3283, %v3396
        %v3398 = vlaneseq
        %v3399 = vshrl.u32 %v3398, 7
        %v3400 = vsub.s32 0, %v3399
        %v3401 = vrot.slane %v3285, %v3400
        %v3402 = vlaneseq
        %v3403 = vshrl.u32 %v3402, 7
        %v3404 = vsub.s32 1, %v3403
        %v3405 = vrot.slane %v3285, %v3404
        %v3406 = vlaneseq
        %v3407 = vshrl.u32 %v3406, 7
        %v3408 = vsub.s32 2, %v3407
        %v3409 = vrot.slane %v3285, %v3408
        %v3410 = vlaneseq
        %v3411 = vshrl.u32 %v3410, 7
        %v3412 = vsub.s32 3, %v3411
        %v3413 = vrot.slane %v3285, %v3412
        %v3446 = vadd.f32 %v2462, %v3289
        %v3447 = vadd.f32 %v2464, %v3293
        %v3448 = vadd.f32 %v2575, %v3297
        %v3449 = vadd.f32 %v2577, %v3301
        %v3450 = vadd.f32 %v2466, %v3289
        %v3451 = vadd.f32 %v2468, %v3293
        %v3452 = vadd.f32 %v2579, %v3297
        %v3453 = vadd.f32 %v2581, %v3301
        %v3454 = vadd.f32 %v2472, %v3305
        %v3455 = vadd.f32 %v2474, %v3309
        %v3456 = vadd.f32 %v2585, %v3313
        %v3457 = vadd.f32 %v2587, %v3317
        %v3458 = vadd.f32 %v2476, %v3305
        %v3459 = vadd.f32 %v2478, %v3309
        %v3460 = vadd.f32 %v2589, %v3313
        %v3461 = vadd.f32 %v2591, %v3317
        %v3462 = vadd.f32 %v2482, %v3321
        %v3463 = vadd.f32 %v2484, %v3325
        %v3464 = vadd.f32 %v2595, %v3329
        %v3465 = vadd.f32 %v2597, %v3333
        %v3466 = vadd.f32 %v2486, %v3321
        %v3467 = vadd.f32 %v2488, %v3325
        %v3468 = vadd.f32 %v2599, %v3329
        %v3469 = vadd.f32 %v2601, %v3333
        %v3470 = vadd.f32 %v2492, %v3337
        %v3471 = vadd.f32 %v2494, %v3341
        %v3472 = vadd.f32 %v2605, %v3345
        %v3473 = vadd.f32 %v2607, %v3349
        %v3474 = vadd.f32 %v2496, %v3337
        %v3475 = vadd.f32 %v2498, %v3341
        %v3476 = vadd.f32 %v2609, %v3345
        %v3477 = vadd.f32 %v2611, %v3349
        %v3478 = vadd.f32 %v2502, %v3353
        %v3479 = vadd.f32 %v2504, %v3357
        %v3480 = vadd.f32 %v2615, %v3361
        %v3481 = vadd.f32 %v2617, %v3365
        %v3482 = vadd.f32 %v2506, %v3353
        %v3483 = vadd.f32 %v2508, %v3357
        %v3484 = vadd.f32 %v2619, %v3361
        %v3485 = vadd.f32 %v2621, %v3365
        %v3486 = vadd.f32 %v2512, %v3369
        %v3487 = vadd.f32 %v2514, %v3373
        %v3488 = vadd.f32 %v2625, %v3377
        %v3489 = vadd.f32 %v2627, %v3381
        %v3490 = vadd.f32 %v2516, %v3369
        %v3491 = vadd.f32 %v2518, %v3373
        %v3492 = vadd.f32 %v2629, %v3377
        %v3493 = vadd.f32 %v2631, %v3381
        %v3494 = vadd.f32 %v2522, %v3385
        %v3495 = vadd.f32 %v2524, %v3389
        %v3496 = vadd.f32 %v2635, %v3393
        %v3497 = vadd.f32 %v2637, %v3397
        %v3498 = vadd.f32 %v2526, %v3385
        %v3499 = vadd.f32 %v2528, %v3389
        %v3500 = vadd.f32 %v2639, %v3393
        %v3501 = vadd.f32 %v2641, %v3397
        %v3502 = vadd.f32 %v2532, %v3401
        %v3503 = vadd.f32 %v2534, %v3405
        %v3504 = vadd.f32 %v2645, %v3409
        %v3505 = vadd.f32 %v2647, %v3413
        %v3506 = vadd.f32 %v2536, %v3401
        %v3507 = vadd.f32 %v2538, %v3405
        %v3508 = vadd.f32 %v2649, %v3409
        %v3509 = vadd.f32 %v2651, %v3413
        %v3510 = vmax.f32 %v3446, 0.0
        %v3511 = vmax.f32 %v3447, 0.0
        %v3512 = vmax.f32 %v3448, 0.0
        %v3513 = vmax.f32 %v3449, 0.0
        %v3514 = vmax.f32 %v3450, 0.0
        %v3515 = vmax.f32 %v3451, 0.0
        %v3516 = vmax.f32 %v3452, 0.0
        %v3517 = vmax.f32 %v3453, 0.0
        %v3518 = vmax.f32 %v3454, 0.0
        %v3519 = vmax.f32 %v3455, 0.0
        %v3520 = vmax.f32 %v3456, 0.0
        %v3521 = vmax.f32 %v3457, 0.0
        %v3522 = vmax.f32 %v3458, 0.0
        %v3523 = vmax.f32 %v3459, 0.0
        %v3524 = vmax.f32 %v3460, 0.0
        %v3525 = vmax.f32 %v3461, 0.0
        %v3526 = vmax.f32 %v3462, 0.0
        %v3527 = vmax.f32 %v3463, 0.0
        %v3528 = vmax.f32 %v3464, 0.0
        %v3529 = vmax.f32 %v3465, 0.0
        %v3530 = vmax.f32 %v3466, 0.0
        %v3531 = vmax.f32 %v3467, 0.0
        %v3532 = vmax.f32 %v3468, 0.0
        %v3533 = vmax.f32 %v3469, 0.0
        %v3534 = vmax.f32 %v3470, 0.0
        %v3535 = vmax.f32 %v3471, 0.0
        %v3536 = vmax.f32 %v3472, 0.0
        %v3537 = vmax.f32 %v3473, 0.0
        %v3538 = vmax.f32 %v3474, 0.0
        %v3539 = vmax.f32 %v3475, 0.0
        %v3540 = vmax.f32 %v3476, 0.0
        %v3541 = vmax.f32 %v3477, 0.0
        %v3542 = vmax.f32 %v3478, 0.0
        %v3543 = vmax.f32 %v3479, 0.0
        %v3544 = vmax.f32 %v3480, 0.0
        %v3545 = vmax.f32 %v3481, 0.0
        %v3546 = vmax.f32 %v3482, 0.0
        %v3547 = vmax.f32 %v3483, 0.0
        %v3548 = vmax.f32 %v3484, 0.0
        %v3549 = vmax.f32 %v3485, 0.0
        %v3550 = vmax.f32 %v3486, 0.0
        %v3551 = vmax.f32 %v3487, 0.0
        %v3552 = vmax.f32 %v3488, 0.0
        %v3553 = vmax.f32 %v3489, 0.0
        %v3554 = vmax.f32 %v3490, 0.0
        %v3555 = vmax.f32 %v3491, 0.0
        %v3556 = vmax.f32 %v3492, 0.0
        %v3557 = vmax.f32 %v3493, 0.0
        %v3558 = vmax.f32 %v3494, 0.0
        %v3559 = vmax.f32 %v3495, 0.0
        %v3560 = vmax.f32 %v3496, 0.0
        %v3561 = vmax.f32 %v3497, 0.0
        %v3562 = vmax.f32 %v3498, 0.0
        %v3563 = vmax.f32 %v3499, 0.0
        %v3564 = vmax.f32 %v3500, 0.0
        %v3565 = vmax.f32 %v3501, 0.0
        %v3566 = vmax.f32 %v3502, 0.0
        %v3567 = vmax.f32 %v3503, 0.0
        %v3568 = vmax.f32 %v3504, 0.0
        %v3569 = vmax.f32 %v3505, 0.0
        %v3570 = vmax.f32 %v3506, 0.0
        %v3571 = vmax.f32 %v3507, 0.0
        %v3572 = vmax.f32 %v3508, 0.0
        %v3573 = vmax.f32 %v3509, 0.0
        %v3574 = vpack.c.bf16 %v3514, %v3510
        %v3575 = vpack.c.bf16 %v3515, %v3511
        %v3576 = vpack.c.bf16 %v3516, %v3512
        %v3577 = vpack.c.bf16 %v3517, %v3513
        %v3578 = vpack.c.bf16 %v3522, %v3518
        %v3579 = vpack.c.bf16 %v3523, %v3519
        %v3580 = vpack.c.bf16 %v3524, %v3520
        %v3581 = vpack.c.bf16 %v3525, %v3521
        %v3582 = vpack.c.bf16 %v3530, %v3526
        %v3583 = vpack.c.bf16 %v3531, %v3527
        %v3584 = vpack.c.bf16 %v3532, %v3528
        %v3585 = vpack.c.bf16 %v3533, %v3529
        %v3586 = vpack.c.bf16 %v3538, %v3534
        %v3587 = vpack.c.bf16 %v3539, %v3535
        %v3588 = vpack.c.bf16 %v3540, %v3536
        %v3589 = vpack.c.bf16 %v3541, %v3537
        %v3590 = vpack.c.bf16 %v3546, %v3542
        %v3591 = vpack.c.bf16 %v3547, %v3543
        %v3592 = vpack.c.bf16 %v3548, %v3544
        %v3593 = vpack.c.bf16 %v3549, %v3545
        %v3594 = vpack.c.bf16 %v3554, %v3550
        %v3595 = vpack.c.bf16 %v3555, %v3551
        %v3596 = vpack.c.bf16 %v3556, %v3552
        %v3597 = vpack.c.bf16 %v3557, %v3553
        %v3598 = vpack.c.bf16 %v3562, %v3558
        %v3599 = vpack.c.bf16 %v3563, %v3559
        %v3600 = vpack.c.bf16 %v3564, %v3560
        %v3601 = vpack.c.bf16 %v3565, %v3561
        %v3602 = vpack.c.bf16 %v3570, %v3566
        %v3603 = vpack.c.bf16 %v3571, %v3567
        %v3604 = vpack.c.bf16 %v3572, %v3568
        %v3605 = vpack.c.bf16 %v3573, %v3569
        %v3606 = vld [vmem:[%s19] sm:$0xf]
        %v3607 = vld [vmem:[%s19 + $0x4] sm:$0xf]
        %v3608 = vld [vmem:[%s19 + $0x8] sm:$0xf]
        %v3609 = vld [vmem:[%s19 + $0xc] sm:$0xf]
        %v3610 = vld [vmem:[%s19 + $0x10] sm:$0xf]
        %v3611 = vld [vmem:[%s19 + $0x14] sm:$0xf]
        %v3612 = vld [vmem:[%s19 + $0x18] sm:$0xf]
        %v3613 = vld [vmem:[%s19 + $0x1c] sm:$0xf]
        %v3614 = vld [vmem:[%s19 + $0x20] sm:$0xf]
        %v3615 = vld [vmem:[%s19 + $0x24] sm:$0xf]
        %v3616 = vld [vmem:[%s19 + $0x28] sm:$0xf]
        %v3617 = vld [vmem:[%s19 + $0x2c] sm:$0xf]
        %v3618 = vld [vmem:[%s19 + $0x30] sm:$0xf]
        %v3619 = vld [vmem:[%s19 + $0x34] sm:$0xf]
        %v3620 = vld [vmem:[%s19 + $0x38] sm:$0xf]
        %v3621 = vld [vmem:[%s19 + $0x3c] sm:$0xf]
        %v3622 = vld [vmem:[%s19 + $0x40] sm:$0xf]
        %v3623 = vld [vmem:[%s19 + $0x44] sm:$0xf]
        %v3624 = vld [vmem:[%s19 + $0x48] sm:$0xf]
        %v3625 = vld [vmem:[%s19 + $0x4c] sm:$0xf]
        %v3626 = vld [vmem:[%s19 + $0x50] sm:$0xf]
        %v3627 = vld [vmem:[%s19 + $0x54] sm:$0xf]
        %v3628 = vld [vmem:[%s19 + $0x58] sm:$0xf]
        %v3629 = vld [vmem:[%s19 + $0x5c] sm:$0xf]
        %v3630 = vld [vmem:[%s19 + $0x60] sm:$0xf]
        %v3631 = vld [vmem:[%s19 + $0x64] sm:$0xf]
        %v3632 = vld [vmem:[%s19 + $0x68] sm:$0xf]
        %v3633 = vld [vmem:[%s19 + $0x6c] sm:$0xf]
        %v3634 = vld [vmem:[%s19 + $0x70] sm:$0xf]
        %v3635 = vld [vmem:[%s19 + $0x74] sm:$0xf]
        %v3636 = vld [vmem:[%s19 + $0x78] sm:$0xf]
        %v3637 = vld [vmem:[%s19 + $0x7c] sm:$0xf]
        %v3638 = vld [vmem:[%s19 + $0x80] sm:$0xf]
        %v3639 = vld [vmem:[%s19 + $0x84] sm:$0xf]
        %v3640 = vld [vmem:[%s19 + $0x88] sm:$0xf]
        %v3641 = vld [vmem:[%s19 + $0x8c] sm:$0xf]
        %v3642 = vld [vmem:[%s19 + $0x90] sm:$0xf]
        %v3643 = vld [vmem:[%s19 + $0x94] sm:$0xf]
        %v3644 = vld [vmem:[%s19 + $0x98] sm:$0xf]
        %v3645 = vld [vmem:[%s19 + $0x9c] sm:$0xf]
        %v3646 = vld [vmem:[%s19 + $0xa0] sm:$0xf]
        %v3647 = vld [vmem:[%s19 + $0xa4] sm:$0xf]
        %v3648 = vld [vmem:[%s19 + $0xa8] sm:$0xf]
        %v3649 = vld [vmem:[%s19 + $0xac] sm:$0xf]
        %v3650 = vld [vmem:[%s19 + $0xb0] sm:$0xf]
        %v3651 = vld [vmem:[%s19 + $0xb4] sm:$0xf]
        %v3652 = vld [vmem:[%s19 + $0xb8] sm:$0xf]
        %v3653 = vld [vmem:[%s19 + $0xbc] sm:$0xf]
        %v3654 = vld [vmem:[%s19 + $0xc0] sm:$0xf]
        %v3655 = vld [vmem:[%s19 + $0xc4] sm:$0xf]
        %v3656 = vld [vmem:[%s19 + $0xc8] sm:$0xf]
        %v3657 = vld [vmem:[%s19 + $0xcc] sm:$0xf]
        %v3658 = vld [vmem:[%s19 + $0xd0] sm:$0xf]
        %v3659 = vld [vmem:[%s19 + $0xd4] sm:$0xf]
        %v3660 = vld [vmem:[%s19 + $0xd8] sm:$0xf]
        %v3661 = vld [vmem:[%s19 + $0xdc] sm:$0xf]
        %v3662 = vld [vmem:[%s19 + $0xe0] sm:$0xf]
        %v3663 = vld [vmem:[%s19 + $0xe4] sm:$0xf]
        %v3664 = vld [vmem:[%s19 + $0xe8] sm:$0xf]
        %v3665 = vld [vmem:[%s19 + $0xec] sm:$0xf]
        %v3666 = vld [vmem:[%s19 + $0xf0] sm:$0xf]
        %v3667 = vld [vmem:[%s19 + $0xf4] sm:$0xf]
        %v3668 = vld [vmem:[%s19 + $0xf8] sm:$0xf]
        %v3669 = vld [vmem:[%s19 + $0xfc] sm:$0xf]
        %v3670 = vld [vmem:[%s21] sm:$0x1]
        %v3672 = vlaneseq
        %v3673 = vshrl.u32 %v3672, 7
        %v3674 = vsub.s32 0, %v3673
        %v3675 = vrot.slane %v3670, %v3674
        %v3741 = vunpack.c.l.b16 %v3606
        %v3742 = vunpack.c.l.b16 %v3607
        %v3743 = vunpack.c.l.b16 %v3608
        %v3744 = vunpack.c.l.b16 %v3609
        %v3745 = vunpack.c.l.b16 %v3610
        %v3746 = vunpack.c.l.b16 %v3611
        %v3747 = vunpack.c.l.b16 %v3612
        %v3748 = vunpack.c.l.b16 %v3613
        %v3749 = vunpack.c.l.b16 %v3614
        %v3750 = vunpack.c.l.b16 %v3615
        %v3751 = vunpack.c.l.b16 %v3616
        %v3752 = vunpack.c.l.b16 %v3617
        %v3753 = vunpack.c.l.b16 %v3618
        %v3754 = vunpack.c.l.b16 %v3619
        %v3755 = vunpack.c.l.b16 %v3620
        %v3756 = vunpack.c.l.b16 %v3621
        %v3757 = vunpack.c.l.b16 %v3622
        %v3758 = vunpack.c.l.b16 %v3623
        %v3759 = vunpack.c.l.b16 %v3624
        %v3760 = vunpack.c.l.b16 %v3625
        %v3761 = vunpack.c.l.b16 %v3626
        %v3762 = vunpack.c.l.b16 %v3627
        %v3763 = vunpack.c.l.b16 %v3628
        %v3764 = vunpack.c.l.b16 %v3629
        %v3765 = vunpack.c.l.b16 %v3630
        %v3766 = vunpack.c.l.b16 %v3631
        %v3767 = vunpack.c.l.b16 %v3632
        %v3768 = vunpack.c.l.b16 %v3633
        %v3769 = vunpack.c.l.b16 %v3634
        %v3770 = vunpack.c.l.b16 %v3635
        %v3771 = vunpack.c.l.b16 %v3636
        %v3772 = vunpack.c.l.b16 %v3637
        %v3773 = vunpack.c.l.b16 %v3638
        %v3774 = vunpack.c.l.b16 %v3639
        %v3775 = vunpack.c.l.b16 %v3640
        %v3776 = vunpack.c.l.b16 %v3641
        %v3777 = vunpack.c.l.b16 %v3642
        %v3778 = vunpack.c.l.b16 %v3643
        %v3779 = vunpack.c.l.b16 %v3644
        %v3780 = vunpack.c.l.b16 %v3645
        %v3781 = vunpack.c.l.b16 %v3646
        %v3782 = vunpack.c.l.b16 %v3647
        %v3783 = vunpack.c.l.b16 %v3648
        %v3784 = vunpack.c.l.b16 %v3649
        %v3785 = vunpack.c.l.b16 %v3650
        %v3786 = vunpack.c.l.b16 %v3651
        %v3787 = vunpack.c.l.b16 %v3652
        %v3788 = vunpack.c.l.b16 %v3653
        %v3789 = vunpack.c.l.b16 %v3654
        %v3790 = vunpack.c.l.b16 %v3655
        %v3791 = vunpack.c.l.b16 %v3656
        %v3792 = vunpack.c.l.b16 %v3657
        %v3793 = vunpack.c.l.b16 %v3658
        %v3794 = vunpack.c.l.b16 %v3659
        %v3795 = vunpack.c.l.b16 %v3660
        %v3796 = vunpack.c.l.b16 %v3661
        %v3797 = vunpack.c.l.b16 %v3662
        %v3798 = vunpack.c.l.b16 %v3663
        %v3799 = vunpack.c.l.b16 %v3664
        %v3800 = vunpack.c.l.b16 %v3665
        %v3801 = vunpack.c.l.b16 %v3666
        %v3802 = vunpack.c.l.b16 %v3667
        %v3803 = vunpack.c.l.b16 %v3668
        %v3804 = vunpack.c.l.b16 %v3669
        %v3805 = vpack.c.b16 %v3742, %v3741
        %v3806 = vpack.c.b16 %v3744, %v3743
        %v3807 = vpack.c.b16 %v3746, %v3745
        %v3808 = vpack.c.b16 %v3748, %v3747
        %v3809 = vpack.c.b16 %v3750, %v3749
        %v3810 = vpack.c.b16 %v3752, %v3751
        %v3811 = vpack.c.b16 %v3754, %v3753
        %v3812 = vpack.c.b16 %v3756, %v3755
        %v3813 = vpack.c.b16 %v3758, %v3757
        %v3814 = vpack.c.b16 %v3760, %v3759
        %v3815 = vpack.c.b16 %v3762, %v3761
        %v3816 = vpack.c.b16 %v3764, %v3763
        %v3817 = vpack.c.b16 %v3766, %v3765
        %v3818 = vpack.c.b16 %v3768, %v3767
        %v3819 = vpack.c.b16 %v3770, %v3769
        %v3820 = vpack.c.b16 %v3772, %v3771
        %v3821 = vpack.c.b16 %v3774, %v3773
        %v3822 = vpack.c.b16 %v3776, %v3775
        %v3823 = vpack.c.b16 %v3778, %v3777
        %v3824 = vpack.c.b16 %v3780, %v3779
        %v3825 = vpack.c.b16 %v3782, %v3781
        %v3826 = vpack.c.b16 %v3784, %v3783
        %v3827 = vpack.c.b16 %v3786, %v3785
        %v3828 = vpack.c.b16 %v3788, %v3787
        %v3829 = vpack.c.b16 %v3790, %v3789
        %v3830 = vpack.c.b16 %v3792, %v3791
        %v3831 = vpack.c.b16 %v3794, %v3793
        %v3832 = vpack.c.b16 %v3796, %v3795
        %v3833 = vpack.c.b16 %v3798, %v3797
        %v3834 = vpack.c.b16 %v3800, %v3799
        %v3835 = vpack.c.b16 %v3802, %v3801
        %v3836 = vpack.c.b16 %v3804, %v3803
        %3869 = vmatprep.subr.bf16.mxu0 0
        %3870 = vmatpush1.bf16.msra.mxu0 %v3805
        %3871 = vmatprep.subr.bf16.mxu0 0
        %3872 = vmatpush1.bf16.msra.mxu0 %v3806
        %3873 = vmatprep.subr.bf16.mxu0 0
        %3874 = vmatpush1.bf16.msra.mxu0 %v3807
        %3875 = vmatprep.subr.bf16.mxu0 0
        %3876 = vmatpush1.bf16.msra.mxu0 %v3808
        %3877 = vmatprep.subr.bf16.mxu0 0
        %3878 = vmatpush1.bf16.msra.mxu0 %v3809
        %3879 = vmatprep.subr.bf16.mxu0 0
        %3880 = vmatpush1.bf16.msra.mxu0 %v3810
        %3881 = vmatprep.subr.bf16.mxu0 0
        %3882 = vmatpush1.bf16.msra.mxu0 %v3811
        %3883 = vmatprep.subr.bf16.mxu0 0
        %3884 = vmatpush1.bf16.msra.mxu0 %v3812
        %3885 = vmatprep.subr.bf16.mxu0 0
        %3886 = vmatpush1.bf16.msra.mxu0 %v3813
        %3887 = vmatprep.subr.bf16.mxu0 0
        %3888 = vmatpush1.bf16.msra.mxu0 %v3814
        %3889 = vmatprep.subr.bf16.mxu0 0
        %3890 = vmatpush1.bf16.msra.mxu0 %v3815
        %3891 = vmatprep.subr.bf16.mxu0 0
        %3892 = vmatpush1.bf16.msra.mxu0 %v3816
        %3893 = vmatprep.subr.bf16.mxu0 0
        %3894 = vmatpush1.bf16.msra.mxu0 %v3817
        %3895 = vmatprep.subr.bf16.mxu0 0
        %3896 = vmatpush1.bf16.msra.mxu0 %v3818
        %3897 = vmatprep.subr.bf16.mxu0 0
        %3898 = vmatpush1.bf16.msra.mxu0 %v3819
        %3899 = vmatprep.subr.bf16.mxu0 0
        %3900 = vmatpush1.bf16.msra.mxu0 %v3820
        %3901 = vmatprep.mubr.bf16.mxu0 %v3575
        %3902 = vmatmul.mubr.bf16.gmra.mrb[0].mxu0 %v3574
        %v3903 = vpop.f32.mrb[0].mxu0
        %v3904 = vadd.f32 %v3675, %v3903
        %v3905 = vpop.f32.mrb[0].mxu0
        %v3906 = vpop.f32.mrb[0].mxu0
        %v3907 = vadd.f32 %v3675, %v3906
        %v3908 = vpop.f32.mrb[0].mxu0
        %3909 = vmatprep.mubr.bf16.mxu0 %v3579
        %3910 = vmatmul.mubr.bf16.gmra.mrb[0].mxu0 %v3578
        %v3911 = vpop.f32.mrb[0].mxu0
        %v3912 = vadd.f32 %v3675, %v3911
        %v3913 = vpop.f32.mrb[0].mxu0
        %v3914 = vpop.f32.mrb[0].mxu0
        %v3915 = vadd.f32 %v3675, %v3914
        %v3916 = vpop.f32.mrb[0].mxu0
        %3917 = vmatprep.mubr.bf16.mxu0 %v3583
        %3918 = vmatmul.mubr.bf16.gmra.mrb[0].mxu0 %v3582
        %v3919 = vpop.f32.mrb[0].mxu0
        %v3920 = vadd.f32 %v3675, %v3919
        %v3921 = vpop.f32.mrb[0].mxu0
        %v3922 = vpop.f32.mrb[0].mxu0
        %v3923 = vadd.f32 %v3675, %v3922
        %v3924 = vpop.f32.mrb[0].mxu0
        %3925 = vmatprep.mubr.bf16.mxu0 %v3587
        %3926 = vmatmul.mubr.bf16.gmra.mrb[0].mxu0 %v3586
        %v3927 = vpop.f32.mrb[0].mxu0
        %v3928 = vadd.f32 %v3675, %v3927
        %v3929 = vpop.f32.mrb[0].mxu0
        %v3930 = vpop.f32.mrb[0].mxu0
        %v3931 = vadd.f32 %v3675, %v3930
        %v3932 = vpop.f32.mrb[0].mxu0
        %3933 = vmatprep.mubr.bf16.mxu0 %v3591
        %3934 = vmatmul.mubr.bf16.gmra.mrb[0].mxu0 %v3590
        %v3935 = vpop.f32.mrb[0].mxu0
        %v3936 = vadd.f32 %v3675, %v3935
        %v3937 = vpop.f32.mrb[0].mxu0
        %v3938 = vpop.f32.mrb[0].mxu0
        %v3939 = vadd.f32 %v3675, %v3938
        %v3940 = vpop.f32.mrb[0].mxu0
        %3941 = vmatprep.mubr.bf16.mxu0 %v3595
        %3942 = vmatmul.mubr.bf16.gmra.mrb[0].mxu0 %v3594
        %v3943 = vpop.f32.mrb[0].mxu0
        %v3944 = vadd.f32 %v3675, %v3943
        %v3945 = vpop.f32.mrb[0].mxu0
        %v3946 = vpop.f32.mrb[0].mxu0
        %v3947 = vadd.f32 %v3675, %v3946
        %v3948 = vpop.f32.mrb[0].mxu0
        %3949 = vmatprep.mubr.bf16.mxu0 %v3599
        %3950 = vmatmul.mubr.bf16.gmra.mrb[0].mxu0 %v3598
        %v3951 = vpop.f32.mrb[0].mxu0
        %v3952 = vadd.f32 %v3675, %v3951
        %v3953 = vpop.f32.mrb[0].mxu0
        %v3954 = vpop.f32.mrb[0].mxu0
        %v3955 = vadd.f32 %v3675, %v3954
        %v3956 = vpop.f32.mrb[0].mxu0
        %3957 = vmatprep.mubr.bf16.mxu0 %v3603
        %3958 = vmatmul.mubr.bf16.gmra.mrb[0].mxu0 %v3602
        %v3959 = vpop.f32.mrb[0].mxu0
        %v3960 = vadd.f32 %v3675, %v3959
        %v3961 = vpop.f32.mrb[0].mxu0
        %v3962 = vpop.f32.mrb[0].mxu0
        %v3963 = vadd.f32 %v3675, %v3962
        %v3964 = vpop.f32.mrb[0].mxu0
        %3965 = vdwg.mxu0
        %3966 = vmatprep.subr.bf16.mxu0 0
        %3967 = vmatpush1.bf16.msra.mxu0 %v3821
        %3968 = vmatprep.subr.bf16.mxu0 0
        %3969 = vmatpush1.bf16.msra.mxu0 %v3822
        %3970 = vmatprep.subr.bf16.mxu0 0
        %3971 = vmatpush1.bf16.msra.mxu0 %v3823
        %3972 = vmatprep.subr.bf16.mxu0 0
        %3973 = vmatpush1.bf16.msra.mxu0 %v3824
        %3974 = vmatprep.subr.bf16.mxu0 0
        %3975 = vmatpush1.bf16.msra.mxu0 %v3825
        %3976 = vmatprep.subr.bf16.mxu0 0
        %3977 = vmatpush1.bf16.msra.mxu0 %v3826
        %3978 = vmatprep.subr.bf16.mxu0 0
        %3979 = vmatpush1.bf16.msra.mxu0 %v3827
        %3980 = vmatprep.subr.bf16.mxu0 0
        %3981 = vmatpush1.bf16.msra.mxu0 %v3828
        %3982 = vmatprep.subr.bf16.mxu0 0
        %3983 = vmatpush1.bf16.msra.mxu0 %v3829
        %3984 = vmatprep.subr.bf16.mxu0 0
        %3985 = vmatpush1.bf16.msra.mxu0 %v3830
        %3986 = vmatprep.subr.bf16.mxu0 0
        %3987 = vmatpush1.bf16.msra.mxu0 %v3831
        %3988 = vmatprep.subr.bf16.mxu0 0
        %3989 = vmatpush1.bf16.msra.mxu0 %v3832
        %3990 = vmatprep.subr.bf16.mxu0 0
        %3991 = vmatpush1.bf16.msra.mxu0 %v3833
        %3992 = vmatprep.subr.bf16.mxu0 0
        %3993 = vmatpush1.bf16.msra.mxu0 %v3834
        %3994 = vmatprep.subr.bf16.mxu0 0
        %3995 = vmatpush1.bf16.msra.mxu0 %v3835
        %3996 = vmatprep.subr.bf16.mxu0 0
        %3997 = vmatpush1.bf16.msra.mxu0 %v3836
        %3998 = vmatprep.mubr.bf16.mxu0 %v3577
        %3999 = vmatmul.mubr.bf16.gmra.mrb[0].mxu0 %v3576
        %v4000 = vpop.f32.mrb[0].mxu0
        %v4001 = vadd.f32 %v3904, %v4000
        %v4002 = vpop.f32.mrb[0].mxu0
        %v4003 = vpop.f32.mrb[0].mxu0
        %v4004 = vadd.f32 %v3907, %v4003
        %v4005 = vpop.f32.mrb[0].mxu0
        %4006 = vmatprep.mubr.bf16.mxu0 %v3581
        %4007 = vmatmul.mubr.bf16.gmra.mrb[0].mxu0 %v3580
        %v4008 = vpop.f32.mrb[0].mxu0
        %v4009 = vadd.f32 %v3912, %v4008
        %v4010 = vpop.f32.mrb[0].mxu0
        %v4011 = vpop.f32.mrb[0].mxu0
        %v4012 = vadd.f32 %v3915, %v4011
        %v4013 = vpop.f32.mrb[0].mxu0
        %4014 = vmatprep.mubr.bf16.mxu0 %v3585
        %4015 = vmatmul.mubr.bf16.gmra.mrb[0].mxu0 %v3584
        %v4016 = vpop.f32.mrb[0].mxu0
        %v4017 = vadd.f32 %v3920, %v4016
        %v4018 = vpop.f32.mrb[0].mxu0
        %v4019 = vpop.f32.mrb[0].mxu0
        %v4020 = vadd.f32 %v3923, %v4019
        %v4021 = vpop.f32.mrb[0].mxu0
        %4022 = vmatprep.mubr.bf16.mxu0 %v3589
        %4023 = vmatmul.mubr.bf16.gmra.mrb[0].mxu0 %v3588
        %v4024 = vpop.f32.mrb[0].mxu0
        %v4025 = vadd.f32 %v3928, %v4024
        %v4026 = vpop.f32.mrb[0].mxu0
        %v4027 = vpop.f32.mrb[0].mxu0
        %v4028 = vadd.f32 %v3931, %v4027
        %v4029 = vpop.f32.mrb[0].mxu0
        %4030 = vmatprep.mubr.bf16.mxu0 %v3593
        %4031 = vmatmul.mubr.bf16.gmra.mrb[0].mxu0 %v3592
        %v4032 = vpop.f32.mrb[0].mxu0
        %v4033 = vadd.f32 %v3936, %v4032
        %v4034 = vpop.f32.mrb[0].mxu0
        %v4035 = vpop.f32.mrb[0].mxu0
        %v4036 = vadd.f32 %v3939, %v4035
        %v4037 = vpop.f32.mrb[0].mxu0
        %4038 = vmatprep.mubr.bf16.mxu0 %v3597
        %4039 = vmatmul.mubr.bf16.gmra.mrb[0].mxu0 %v3596
        %v4040 = vpop.f32.mrb[0].mxu0
        %v4041 = vadd.f32 %v3944, %v4040
        %v4042 = vpop.f32.mrb[0].mxu0
        %v4043 = vpop.f32.mrb[0].mxu0
        %v4044 = vadd.f32 %v3947, %v4043
        %v4045 = vpop.f32.mrb[0].mxu0
        %4046 = vmatprep.mubr.bf16.mxu0 %v3601
        %4047 = vmatmul.mubr.bf16.gmra.mrb[0].mxu0 %v3600
        %v4048 = vpop.f32.mrb[0].mxu0
        %v4049 = vadd.f32 %v3952, %v4048
        %v4050 = vpop.f32.mrb[0].mxu0
        %v4051 = vpop.f32.mrb[0].mxu0
        %v4052 = vadd.f32 %v3955, %v4051
        %v4053 = vpop.f32.mrb[0].mxu0
        %4054 = vmatprep.mubr.bf16.mxu0 %v3605
        %4055 = vmatmul.mubr.bf16.gmra.mrb[0].mxu0 %v3604
        %v4056 = vpop.f32.mrb[0].mxu0
        %v4057 = vadd.f32 %v3960, %v4056
        %v4058 = vpop.f32.mrb[0].mxu0
        %v4059 = vpop.f32.mrb[0].mxu0
        %v4060 = vadd.f32 %v3963, %v4059
        %v4061 = vpop.f32.mrb[0].mxu0
        %4062 = vdwg.mxu0
        %vm4063 = vcmask 523264
        %v4064 = vsel %vm4063, %v4001, -inf
        %v4065 = vsel %vm4063, %v4004, -inf
        %v4066 = vmax.f32 %v4064, %v4065
        %v4067 = vrot.slane %v4066, 4
        %v4068 = vmax.f32 %v4066, %v4067
        %v4069 = vrot.slane %v4068, 2
        %v4070 = vmax.f32 %v4068, %v4069
        %v4071 = vrot.slane %v4070, 1
        %v4072 = vmax.f32 %v4070, %v4071
        %v4073 = vsel %vm4063, %v4009, -inf
        %v4074 = vsel %vm4063, %v4012, -inf
        %v4075 = vmax.f32 %v4073, %v4074
        %v4076 = vrot.slane %v4075, 4
        %v4077 = vmax.f32 %v4075, %v4076
        %v4078 = vrot.slane %v4077, 2
        %v4079 = vmax.f32 %v4077, %v4078
        %v4080 = vrot.slane %v4079, 1
        %v4081 = vmax.f32 %v4079, %v4080
        %v4082 = vsel %vm4063, %v4017, -inf
        %v4083 = vsel %vm4063, %v4020, -inf
        %v4084 = vmax.f32 %v4082, %v4083
        %v4085 = vrot.slane %v4084, 4
        %v4086 = vmax.f32 %v4084, %v4085
        %v4087 = vrot.slane %v4086, 2
        %v4088 = vmax.f32 %v4086, %v4087
        %v4089 = vrot.slane %v4088, 1
        %v4090 = vmax.f32 %v4088, %v4089
        %v4091 = vsel %vm4063, %v4025, -inf
        %v4092 = vsel %vm4063, %v4028, -inf
        %v4093 = vmax.f32 %v4091, %v4092
        %v4094 = vrot.slane %v4093, 4
        %v4095 = vmax.f32 %v4093, %v4094
        %v4096 = vrot.slane %v4095, 2
        %v4097 = vmax.f32 %v4095, %v4096
        %v4098 = vrot.slane %v4097, 1
        %v4099 = vmax.f32 %v4097, %v4098
        %v4100 = vsel %vm4063, %v4033, -inf
        %v4101 = vsel %vm4063, %v4036, -inf
        %v4102 = vmax.f32 %v4100, %v4101
        %v4103 = vrot.slane %v4102, 4
        %v4104 = vmax.f32 %v4102, %v4103
        %v4105 = vrot.slane %v4104, 2
        %v4106 = vmax.f32 %v4104, %v4105
        %v4107 = vrot.slane %v4106, 1
        %v4108 = vmax.f32 %v4106, %v4107
        %v4109 = vsel %vm4063, %v4041, -inf
        %v4110 = vsel %vm4063, %v4044, -inf
        %v4111 = vmax.f32 %v4109, %v4110
        %v4112 = vrot.slane %v4111, 4
        %v4113 = vmax.f32 %v4111, %v4112
        %v4114 = vrot.slane %v4113, 2
        %v4115 = vmax.f32 %v4113, %v4114
        %v4116 = vrot.slane %v4115, 1
        %v4117 = vmax.f32 %v4115, %v4116
        %v4118 = vsel %vm4063, %v4049, -inf
        %v4119 = vsel %vm4063, %v4052, -inf
        %v4120 = vmax.f32 %v4118, %v4119
        %v4121 = vrot.slane %v4120, 4
        %v4122 = vmax.f32 %v4120, %v4121
        %v4123 = vrot.slane %v4122, 2
        %v4124 = vmax.f32 %v4122, %v4123
        %v4125 = vrot.slane %v4124, 1
        %v4126 = vmax.f32 %v4124, %v4125
        %v4127 = vsel %vm4063, %v4057, -inf
        %v4128 = vsel %vm4063, %v4060, -inf
        %v4129 = vmax.f32 %v4127, %v4128
        %v4130 = vrot.slane %v4129, 4
        %v4131 = vmax.f32 %v4129, %v4130
        %v4132 = vrot.slane %v4131, 2
        %v4133 = vmax.f32 %v4131, %v4132
        %v4134 = vrot.slane %v4133, 1
        %v4135 = vmax.f32 %v4133, %v4134
        %v4136 = vpack.c.bf16 %v4072, %v4072
        %v4137 = vpack.c.bf16 %v4081, %v4081
        %v4138 = vpack.c.bf16 %v4090, %v4090
        %v4139 = vpack.c.bf16 %v4099, %v4099
        %v4140 = vpack.c.bf16 %v4108, %v4108
        %v4141 = vpack.c.bf16 %v4117, %v4117
        %v4142 = vpack.c.bf16 %v4126, %v4126
        %v4143 = vpack.c.bf16 %v4135, %v4135
        %v4144 = vld [vmem:[%s23] sm:$0xf]
        %v4145 = vld [vmem:[%s23 + $0x4] sm:$0xf]
        %v4146 = vld [vmem:[%s23 + $0x8] sm:$0xf]
        %v4147 = vld [vmem:[%s23 + $0xc] sm:$0xf]
        %v4148 = vld [vmem:[%s23 + $0x10] sm:$0xf]
        %v4149 = vld [vmem:[%s23 + $0x14] sm:$0xf]
        %v4150 = vld [vmem:[%s23 + $0x18] sm:$0xf]
        %v4151 = vld [vmem:[%s23 + $0x1c] sm:$0xf]
        %v4152 = vld [vmem:[%s25] sm:$0x1]
        %v4154 = vlaneseq
        %v4155 = vshrl.u32 %v4154, 7
        %v4156 = vsub.s32 0, %v4155
        %v4157 = vrot.slane %v4152, %v4156
        %v4167 = vunpack.c.l.b16 %v4136
        %v4168 = vunpack.c.l.b16 %v4137
        %v4169 = vunpack.c.l.b16 %v4138
        %v4170 = vunpack.c.l.b16 %v4139
        %v4171 = vunpack.c.l.b16 %v4140
        %v4172 = vunpack.c.l.b16 %v4141
        %v4173 = vunpack.c.l.b16 %v4142
        %v4174 = vunpack.c.l.b16 %v4143
        %v4175 = vsel %vm2787, %v4168, %v4167
        %v4176 = vsel %vm2789, %v4169, %v4175
        %v4177 = vsel %vm2791, %v4170, %v4176
        %v4178 = vsel %vm2793, %v4171, %v4177
        %v4179 = vsel %vm2795, %v4172, %v4178
        %v4180 = vsel %vm2797, %v4173, %v4179
        %v4181 = vsel %vm2799, %v4174, %v4180
        %v4182 = vpack.c.b16 %v4181, %v4181
        %v4191 = vunpack.c.l.b16 %v4144
        %v4192 = vunpack.c.l.b16 %v4145
        %v4193 = vunpack.c.l.b16 %v4146
        %v4194 = vunpack.c.l.b16 %v4147
        %v4195 = vunpack.c.l.b16 %v4148
        %v4196 = vunpack.c.l.b16 %v4149
        %v4197 = vunpack.c.l.b16 %v4150
        %v4198 = vunpack.c.l.b16 %v4151
        %v4199 = vpack.c.b16 %v4192, %v4191
        %v4200 = vpack.c.b16 %v4194, %v4193
        %v4201 = vpack.c.b16 %v4196, %v4195
        %v4202 = vpack.c.b16 %v4198, %v4197
        %v4208 = vsel %vm4063, %v4182, 0
        %4210 = vmatprep.subr.bf16.mxu0 0
        %4211 = vmatpush1.bf16.msra.mxu0 %v4199
        %4212 = vmatprep.subr.bf16.mxu0 0
        %4213 = vmatpush1.bf16.msra.mxu0 %v4200
        %4214 = vmatprep.subr.bf16.mxu0 0
        %4215 = vmatpush1.bf16.msra.mxu0 %v4201
        %4216 = vmatprep.subr.bf16.mxu0 0
        %4217 = vmatpush1.bf16.msra.mxu0 %v4202
        %4218 = vmatprep.subr.bf16.mxu0 0
        %4219 = vmatpush1.bf16.msra.mxu0 0
        %4220 = vmatprep.subr.bf16.mxu0 0
        %4221 = vmatpush1.bf16.msra.mxu0 0
        %4222 = vmatprep.subr.bf16.mxu0 0
        %4223 = vmatpush1.bf16.msra.mxu0 0
        %4224 = vmatprep.subr.bf16.mxu0 0
        %4225 = vmatpush1.bf16.msra.mxu0 0
        %4226 = vmatprep.subr.bf16.mxu0 0
        %4227 = vmatpush1.bf16.msra.mxu0 0
        %4228 = vmatprep.subr.bf16.mxu0 0
        %4229 = vmatpush1.bf16.msra.mxu0 0
        %4230 = vmatprep.subr.bf16.mxu0 0
        %4231 = vmatpush1.bf16.msra.mxu0 0
        %4232 = vmatprep.subr.bf16.mxu0 0
        %4233 = vmatpush1.bf16.msra.mxu0 0
        %4234 = vmatprep.subr.bf16.mxu0 0
        %4235 = vmatpush1.bf16.msra.mxu0 0
        %4236 = vmatprep.subr.bf16.mxu0 0
        %4237 = vmatpush1.bf16.msra.mxu0 0
        %4238 = vmatprep.subr.bf16.mxu0 0
        %4239 = vmatpush1.bf16.msra.mxu0 0
        %4240 = vmatprep.subr.bf16.mxu0 0
        %4241 = vmatpush1.bf16.msra.mxu0 0
        %4242 = vmatprep.mubr.bf16.mxu0 0
        %4243 = vmatmul.mubr.bf16.gmra.mrb[0].mxu0 %v4208
        %v4244 = vpop.f32.mrb[0].mxu0
        %v4245 = vadd.f32 %v4157, %v4244
        %v4246 = vpop.f32.mrb[0].mxu0
        %v4247 = vpop.f32.mrb[0].mxu0
        %v4248 = vpop.f32.mrb[0].mxu0
        %4249 = vdwg.mxu0
        %v4250 = vld [vmem:[%s1446] sm:$0xff]
        %v4251 = vld [vmem:[%s31] sm:$0x7]
        %v4252 = vld [vmem:[%s33] sm:$0x1]
        %v4254 = vlaneseq
        %v4255 = vshrl.u32 %v4254, 7
        %v4256 = vsub.s32 0, %v4255
        %v4257 = vrot.slane %v4252, %v4256
        %v4260 = vsel %vm1472, %v4250, 0
        %v4263 = vsel %vm1521, %v4251, 0
        %4265 = vmatprep.subr.mxu0 0.0
        %4266 = vmatpush1.msra.mxu0 %v4263
        %4267 = vmatprep.subr.mxu0 0.0
        %4268 = vmatpush1.msra.mxu0 0.0
        %4269 = vmatprep.subr.mxu0 0.0
        %4270 = vmatpush1.msra.mxu0 0.0
        %4271 = vmatprep.subr.mxu0 0.0
        %4272 = vmatpush1.msra.mxu0 0.0
        %4273 = vmatprep.subr.mxu0 0.0
        %4274 = vmatpush1.msra.mxu0 0.0
        %4275 = vmatprep.subr.mxu0 0.0
        %4276 = vmatpush1.msra.mxu0 0.0
        %4277 = vmatprep.subr.mxu0 0.0
        %4278 = vmatpush1.msra.mxu0 0.0
        %4279 = vmatprep.subr.mxu0 0.0
        %4280 = vmatpush1.msra.mxu0 0.0
        %4281 = vmatprep.subr.mxu0 0.0
        %4282 = vmatpush1.msra.mxu0 0.0
        %4283 = vmatprep.subr.mxu0 0.0
        %4284 = vmatpush1.msra.mxu0 0.0
        %4285 = vmatprep.subr.mxu0 0.0
        %4286 = vmatpush1.msra.mxu0 0.0
        %4287 = vmatprep.subr.mxu0 0.0
        %4288 = vmatpush1.msra.mxu0 0.0
        %4289 = vmatprep.subr.mxu0 0.0
        %4290 = vmatpush1.msra.mxu0 0.0
        %4291 = vmatprep.subr.mxu0 0.0
        %4292 = vmatpush1.msra.mxu0 0.0
        %4293 = vmatprep.subr.mxu0 0.0
        %4294 = vmatpush1.msra.mxu0 0.0
        %4295 = vmatprep.subr.mxu0 0.0
        %4296 = vmatpush1.msra.mxu0 0.0
        %4297 = vmatprep.subr.mxu0 0.0
        %4298 = vmatpush1.msra.mxu0 0.0
        %4299 = vmatprep.subr.mxu0 0.0
        %4300 = vmatpush1.msra.mxu0 0.0
        %4301 = vmatprep.subr.mxu0 0.0
        %4302 = vmatpush1.msra.mxu0 0.0
        %4303 = vmatprep.subr.mxu0 0.0
        %4304 = vmatpush1.msra.mxu0 0.0
        %4305 = vmatprep.subr.mxu0 0.0
        %4306 = vmatpush1.msra.mxu0 0.0
        %4307 = vmatprep.subr.mxu0 0.0
        %4308 = vmatpush1.msra.mxu0 0.0
        %4309 = vmatprep.subr.mxu0 0.0
        %4310 = vmatpush1.msra.mxu0 0.0
        %4311 = vmatprep.subr.mxu0 0.0
        %4312 = vmatpush1.msra.mxu0 0.0
        %4313 = vmatprep.subr.mxu0 0.0
        %4314 = vmatpush1.msra.mxu0 0.0
        %4315 = vmatprep.subr.mxu0 0.0
        %4316 = vmatpush1.msra.mxu0 0.0
        %4317 = vmatprep.subr.mxu0 0.0
        %4318 = vmatpush1.msra.mxu0 0.0
        %4319 = vmatprep.subr.mxu0 0.0
        %4320 = vmatpush1.msra.mxu0 0.0
        %4321 = vmatprep.subr.mxu0 0.0
        %4322 = vmatpush1.msra.mxu0 0.0
        %4323 = vmatprep.subr.mxu0 0.0
        %4324 = vmatpush1.msra.mxu0 0.0
        %4325 = vmatprep.subr.mxu0 0.0
        %4326 = vmatpush1.msra.mxu0 0.0
        %4327 = vmatprep.subr.mxu0 0.0
        %4328 = vmatpush1.msra.mxu0 0.0
        %4329 = vmatprep.mubr.f32.mxu0 0.0
        %4330 = vmatmul.mubr.f32.gmra.mrb[0].mxu0 %v4260
        %v4331 = vpop.f32.mrb[0].mxu0
        %v4332 = vadd.f32 %v4257, %v4331
        %v4333 = vpop.f32.mrb[0].mxu0
        %4334 = vdwg.mxu0
        %v4335 = vmul.f32 %v4332, 0.5
        %v4336 = vmul.f32 %v4332, 0.044715
        %v4337 = vmul.f32 %v4336, %v4332
        %v4338 = vmul.f32 %v4337, %v4332
        %v4339 = vadd.f32 %v4332, %v4338
        %v4340 = vmul.f32 %v4339, 0.7978846
        %v4341 = vtanh.pop %v4340
        %v4342 = vadd.f32 %v4341, 1.0
        %v4343 = vmul.f32 %v4335, %v4342
        %v4344 = vpack.c.bf16 %v4343, %v4343
        %v4345 = vld [vmem:[%s35] sm:$0xf]
        %v4346 = vld [vmem:[%s35 + $0x4] sm:$0xf]
        %v4347 = vld [vmem:[%s35 + $0x8] sm:$0xf]
        %v4348 = vld [vmem:[%s35 + $0xc] sm:$0xf]
        %v4349 = vld [vmem:[%s35 + $0x10] sm:$0xf]
        %v4350 = vld [vmem:[%s35 + $0x14] sm:$0xf]
        %v4351 = vld [vmem:[%s35 + $0x18] sm:$0xf]
        %v4352 = vld [vmem:[%s35 + $0x1c] sm:$0xf]
        %v4353 = vld [vmem:[%s35 + $0x20] sm:$0xf]
        %v4354 = vld [vmem:[%s35 + $0x24] sm:$0xf]
        %v4355 = vld [vmem:[%s35 + $0x28] sm:$0xf]
        %v4356 = vld [vmem:[%s35 + $0x2c] sm:$0xf]
        %v4357 = vld [vmem:[%s35 + $0x30] sm:$0xf]
        %v4358 = vld [vmem:[%s35 + $0x34] sm:$0xf]
        %v4359 = vld [vmem:[%s35 + $0x38] sm:$0xf]
        %v4360 = vld [vmem:[%s35 + $0x3c] sm:$0xf]
        %v4361 = vld [vmem:[%s37] sm:$0x1]
        %v4363 = vlaneseq
        %v4364 = vshrl.u32 %v4363, 7
        %v4365 = vsub.s32 0, %v4364
        %v4366 = vrot.slane %v4361, %v4365
        %v4384 = vunpack.c.l.b16 %v4345
        %v4385 = vunpack.c.l.b16 %v4346
        %v4386 = vunpack.c.l.b16 %v4347
        %v4387 = vunpack.c.l.b16 %v4348
        %v4388 = vunpack.c.l.b16 %v4349
        %v4389 = vunpack.c.l.b16 %v4350
        %v4390 = vunpack.c.l.b16 %v4351
        %v4391 = vunpack.c.l.b16 %v4352
        %v4392 = vunpack.c.l.b16 %v4353
        %v4393 = vunpack.c.l.b16 %v4354
        %v4394 = vunpack.c.l.b16 %v4355
        %v4395 = vunpack.c.l.b16 %v4356
        %v4396 = vunpack.c.l.b16 %v4357
        %v4397 = vunpack.c.l.b16 %v4358
        %v4398 = vunpack.c.l.b16 %v4359
        %v4399 = vunpack.c.l.b16 %v4360
        %v4400 = vpack.c.b16 %v4385, %v4384
        %v4401 = vpack.c.b16 %v4387, %v4386
        %v4402 = vpack.c.b16 %v4389, %v4388
        %v4403 = vpack.c.b16 %v4391, %v4390
        %v4404 = vpack.c.b16 %v4393, %v4392
        %v4405 = vpack.c.b16 %v4395, %v4394
        %v4406 = vpack.c.b16 %v4397, %v4396
        %v4407 = vpack.c.b16 %v4399, %v4398
        %4416 = vmatprep.subr.bf16.mxu0 0
        %4417 = vmatpush1.bf16.msra.mxu0 %v4400
        %4418 = vmatprep.subr.bf16.mxu0 0
        %4419 = vmatpush1.bf16.msra.mxu0 %v4401
        %4420 = vmatprep.subr.bf16.mxu0 0
        %4421 = vmatpush1.bf16.msra.mxu0 %v4402
        %4422 = vmatprep.subr.bf16.mxu0 0
        %4423 = vmatpush1.bf16.msra.mxu0 %v4403
        %4424 = vmatprep.subr.bf16.mxu0 0
        %4425 = vmatpush1.bf16.msra.mxu0 %v4404
        %4426 = vmatprep.subr.bf16.mxu0 0
        %4427 = vmatpush1.bf16.msra.mxu0 %v4405
        %4428 = vmatprep.subr.bf16.mxu0 0
        %4429 = vmatpush1.bf16.msra.mxu0 %v4406
        %4430 = vmatprep.subr.bf16.mxu0 0
        %4431 = vmatpush1.bf16.msra.mxu0 %v4407
        %4432 = vmatprep.subr.bf16.mxu0 0
        %4433 = vmatpush1.bf16.msra.mxu0 0
        %4434 = vmatprep.subr.bf16.mxu0 0
        %4435 = vmatpush1.bf16.msra.mxu0 0
        %4436 = vmatprep.subr.bf16.mxu0 0
        %4437 = vmatpush1.bf16.msra.mxu0 0
        %4438 = vmatprep.subr.bf16.mxu0 0
        %4439 = vmatpush1.bf16.msra.mxu0 0
        %4440 = vmatprep.subr.bf16.mxu0 0
        %4441 = vmatpush1.bf16.msra.mxu0 0
        %4442 = vmatprep.subr.bf16.mxu0 0
        %4443 = vmatpush1.bf16.msra.mxu0 0
        %4444 = vmatprep.subr.bf16.mxu0 0
        %4445 = vmatpush1.bf16.msra.mxu0 0
        %4446 = vmatprep.subr.bf16.mxu0 0
        %4447 = vmatpush1.bf16.msra.mxu0 0
        %4448 = vmatprep.mubr.bf16.mxu0 0
        %4449 = vmatmul.mubr.bf16.gmra.mrb[0].mxu0 %v4344
        %v4450 = vpop.f32.mrb[0].mxu0
        %v4451 = vadd.f32 %v4366, %v4450
        %v4452 = vpop.f32.mrb[0].mxu0
        %v4453 = vpop.f32.mrb[0].mxu0
        %v4454 = vpop.f32.mrb[0].mxu0
        %4455 = vdwg.mxu0
        %v4456 = vld [vmem:[%s27] sm:$0x1]
        %vm4457 = vcmask 253952
        %4458 = vst.msk [vmem:[#allocation2] sm:$0x1] %vm4457, %v4456
        %vm4459 = vcmask 261120
        %4460 = vst.msk [vmem:[#allocation2 + $0x1] sm:$0xff] %vm4459, %v4245
        %v4461 = vld [vmem:[%s29] sm:$0x1]
        %4462 = vst.msk [vmem:[#allocation3] sm:$0x1] %vm4457, %v4461
        %4463 = vst.msk [vmem:[#allocation3 + $0x1] sm:$0xff] %vm4459, %v4451
        %v4464 = vld [vmem:[#allocation2] sm:$0xff]
        %v4465 = vld [vmem:[#allocation2 + $0x8] sm:$0x1]
        %v4466 = vld [vmem:[#allocation3] sm:$0xff]
        %v4467 = vld [vmem:[#allocation3 + $0x8] sm:$0x1]
        %v4468 = vadd.f32 %v4464, %v4466
        %v4469 = vadd.f32 %v4465, %v4467
        %v4470 = vld [vmem:[%s39] sm:$0x1]
        %v4471 = vld [vmem:[%s41] sm:$0x1]
        %v4472 = vsel %vm4459, %v4468, 0.0
        %4473 = vadd.xlane.f32.xlu0 %v4472
        %v4474 = vpop.xlane.xlu0 %4473
        %v4475 = vsel %vm4457, %v4469, 0.0
        %4476 = vadd.xlane.f32.xlu0 %v4475
        %v4477 = vpop.xlane.xlu0 %4476
        %v4478 = vrcp.pop 32.0
        %v4479 = vmul.f32 %v4474, %v4478
        %v4480 = vmul.f32 %v4477, %v4478
        %v4481 = vsub.f32 %v4468, %v4479
        %v4482 = vsub.f32 %v4469, %v4480
        %v4483 = vmul.f32 %v4481, %v4481
        %v4484 = vmul.f32 %v4482, %v4482
        %v4485 = vsel %vm4459, %v4483, 0.0
        %4486 = vadd.xlane.f32.xlu0 %v4485
        %v4487 = vpop.xlane.xlu0 %4486
        %v4488 = vsel %vm4457, %v4484, 0.0
        %4489 = vadd.xlane.f32.xlu0 %v4488
        %v4490 = vpop.xlane.xlu0 %4489
        %v4491 = vmul.f32 %v4487, %v4478
        %v4492 = vmul.f32 %v4490, %v4478
        %v4493 = vadd.f32 %v4491, 1e-05
        %v4494 = vadd.f32 %v4492, 1e-05
        %v4495 = vrsqrt.pop %v4493
        %v4496 = vrsqrt.pop %v4494
        %v4497 = vmul.f32 %v4481, %v4495
        %v4498 = vmul.f32 %v4482, %v4496
        %v4500 = vlaneseq
        %v4501 = vshrl.u32 %v4500, 7
        %v4502 = vsub.s32 0, %v4501
        %v4503 = vrot.slane %v4470, %v4502
        %v4505 = vmul.f32 %v4497, %v4503
        %v4506 = vmul.f32 %v4498, %v4503
        %v4508 = vlaneseq
        %v4509 = vshrl.u32 %v4508, 7
        %v4510 = vsub.s32 0, %v4509
        %v4511 = vrot.slane %v4471, %v4510
        %v4513 = vadd.f32 %v4505, %v4511
        %v4514 = vadd.f32 %v4506, %v4511
        %v4515 = vpack.c.bf16 %v4514, %v4513
        %v4516 = vld [vmem:[%s43] sm:$0xf]
        %v4517 = vld [vmem:[%s43 + $0x4] sm:$0xf]
        %v4518 = vld [vmem:[%s43 + $0x8] sm:$0xf]
        %v4519 = vld [vmem:[%s43 + $0xc] sm:$0xf]
        %v4520 = vld [vmem:[%s43 + $0x10] sm:$0xf]
        %v4521 = vld [vmem:[%s43 + $0x14] sm:$0xf]
        %v4522 = vld [vmem:[%s43 + $0x18] sm:$0xf]
        %v4523 = vld [vmem:[%s43 + $0x1c] sm:$0xf]
        %v4528 = vunpack.c.l.b16 %v4516
        %v4529 = vunpack.c.l.b16 %v4517
        %v4530 = vunpack.c.l.b16 %v4518
        %v4531 = vunpack.c.l.b16 %v4519
        %v4532 = vpack.c.b16 %v4529, %v4528
        %v4533 = vpack.c.b16 %v4531, %v4530
        %v4537 = vsel %vm4459, %v4515, 0
        %4539 = vmatprep.subr.bf16.mxu0 0
        %4540 = vmatpush1.bf16.msra.mxu0 %v4532
        %4541 = vmatprep.subr.bf16.mxu0 0
        %4542 = vmatpush1.bf16.msra.mxu0 %v4533
        %4543 = vmatprep.subr.bf16.mxu0 0
        %4544 = vmatpush1.bf16.msra.mxu0 0
        %4545 = vmatprep.subr.bf16.mxu0 0
        %4546 = vmatpush1.bf16.msra.mxu0 0
        %4547 = vmatprep.subr.bf16.mxu0 0
        %4548 = vmatpush1.bf16.msra.mxu0 0
        %4549 = vmatprep.subr.bf16.mxu0 0
        %4550 = vmatpush1.bf16.msra.mxu0 0
        %4551 = vmatprep.subr.bf16.mxu0 0
        %4552 = vmatpush1.bf16.msra.mxu0 0
        %4553 = vmatprep.subr.bf16.mxu0 0
        %4554 = vmatpush1.bf16.msra.mxu0 0
        %4555 = vmatprep.subr.bf16.mxu0 0
        %4556 = vmatpush1.bf16.msra.mxu0 0
        %4557 = vmatprep.subr.bf16.mxu0 0
        %4558 = vmatpush1.bf16.msra.mxu0 0
        %4559 = vmatprep.subr.bf16.mxu0 0
        %4560 = vmatpush1.bf16.msra.mxu0 0
        %4561 = vmatprep.subr.bf16.mxu0 0
        %4562 = vmatpush1.bf16.msra.mxu0 0
        %4563 = vmatprep.subr.bf16.mxu0 0
        %4564 = vmatpush1.bf16.msra.mxu0 0
        %4565 = vmatprep.subr.bf16.mxu0 0
        %4566 = vmatpush1.bf16.msra.mxu0 0
        %4567 = vmatprep.subr.bf16.mxu0 0
        %4568 = vmatpush1.bf16.msra.mxu0 0
        %4569 = vmatprep.subr.bf16.mxu0 0
        %4570 = vmatpush1.bf16.msra.mxu0 0
        %4571 = vmatprep.mubr.bf16.mxu0 0
        %4572 = vmatmul.mubr.bf16.gmra.mrb[0].mxu0 %v4537
        %v4573 = vpop.f32.mrb[0].mxu0
        %v4574 = vadd.f32 0.0, %v4573
        %v4575 = vpop.f32.mrb[0].mxu0
        %v4576 = vpop.f32.mrb[0].mxu0
        %v4577 = vadd.f32 0.0, %v4576
        %v4578 = vpop.f32.mrb[0].mxu0
        %4579 = vdwg.mxu0
        %v4584 = vunpack.c.l.b16 %v4520
        %v4585 = vunpack.c.l.b16 %v4521
        %v4586 = vunpack.c.l.b16 %v4522
        %v4587 = vunpack.c.l.b16 %v4523
        %v4588 = vpack.c.b16 %v4585, %v4584
        %v4589 = vpack.c.b16 %v4587, %v4586
        %4592 = vmatprep.subr.bf16.mxu0 0
        %4593 = vmatpush1.bf16.msra.mxu0 %v4588
        %4594 = vmatprep.subr.bf16.mxu0 0
        %4595 = vmatpush1.bf16.msra.mxu0 %v4589
        %4596 = vmatprep.subr.bf16.mxu0 0
        %4597 = vmatpush1.bf16.msra.mxu0 0
        %4598 = vmatprep.subr.bf16.mxu0 0
        %4599 = vmatpush1.bf16.msra.mxu0 0
        %4600 = vmatprep.subr.bf16.mxu0 0
        %4601 = vmatpush1.bf16.msra.mxu0 0
        %4602 = vmatprep.subr.bf16.mxu0 0
        %4603 = vmatpush1.bf16.msra.mxu0 0
        %4604 = vmatprep.subr.bf16.mxu0 0
        %4605 = vmatpush1.bf16.msra.mxu0 0
        %4606 = vmatprep.subr.bf16.mxu0 0
        %4607 = vmatpush1.bf16.msra.mxu0 0
        %4608 = vmatprep.subr.bf16.mxu0 0
        %4609 = vmatpush1.bf16.msra.mxu0 0
        %4610 = vmatprep.subr.bf16.mxu0 0
        %4611 = vmatpush1.bf16.msra.mxu0 0
        %4612 = vmatprep.subr.bf16.mxu0 0
        %4613 = vmatpush1.bf16.msra.mxu0 0
        %4614 = vmatprep.subr.bf16.mxu0 0
        %4615 = vmatpush1.bf16.msra.mxu0 0
        %4616 = vmatprep.subr.bf16.mxu0 0
        %4617 = vmatpush1.bf16.msra.mxu0 0
        %4618 = vmatprep.subr.bf16.mxu0 0
        %4619 = vmatpush1.bf16.msra.mxu0 0
        %4620 = vmatprep.subr.bf16.mxu0 0
        %4621 = vmatpush1.bf16.msra.mxu0 0
        %4622 = vmatprep.subr.bf16.mxu0 0
        %4623 = vmatpush1.bf16.msra.mxu0 0
        %4624 = vmatprep.mubr.bf16.mxu0 0
        %4625 = vmatmul.mubr.bf16.gmra.mrb[0].mxu0 %v4537
        %v4626 = vpop.f32.mrb[0].mxu0
        %v4627 = vadd.f32 0.0, %v4626
        %v4628 = vpop.f32.mrb[0].mxu0
        %v4629 = vpop.f32.mrb[0].mxu0
        %v4630 = vadd.f32 0.0, %v4629
        %v4631 = vpop.f32.mrb[0].mxu0
        %4632 = vdwg.mxu0
        %v4633 = vld [vmem:[%s45] sm:$0xf]
        %v4634 = vld [vmem:[%s45 + $0x4] sm:$0xf]
        %v4635 = vld [vmem:[%s45 + $0x8] sm:$0xf]
        %v4636 = vld [vmem:[%s45 + $0xc] sm:$0xf]
        %v4637 = vld [vmem:[%s45 + $0x10] sm:$0xf]
        %v4638 = vld [vmem:[%s45 + $0x14] sm:$0xf]
        %v4639 = vld [vmem:[%s45 + $0x18] sm:$0xf]
        %v4640 = vld [vmem:[%s45 + $0x1c] sm:$0xf]
        %v4645 = vunpack.c.l.b16 %v4633
        %v4646 = vunpack.c.l.b16 %v4634
        %v4647 = vunpack.c.l.b16 %v4635
        %v4648 = vunpack.c.l.b16 %v4636
        %v4649 = vpack.c.b16 %v4646, %v4645
        %v4650 = vpack.c.b16 %v4648, %v4647
        %4653 = vmatprep.subr.bf16.mxu0 0
        %4654 = vmatpush1.bf16.msra.mxu0 %v4649
        %4655 = vmatprep.subr.bf16.mxu0 0
        %4656 = vmatpush1.bf16.msra.mxu0 %v4650
        %4657 = vmatprep.subr.bf16.mxu0 0
        %4658 = vmatpush1.bf16.msra.mxu0 0
        %4659 = vmatprep.subr.bf16.mxu0 0
        %4660 = vmatpush1.bf16.msra.mxu0 0
        %4661 = vmatprep.subr.bf16.mxu0 0
        %4662 = vmatpush1.bf16.msra.mxu0 0
        %4663 = vmatprep.subr.bf16.mxu0 0
        %4664 = vmatpush1.bf16.msra.mxu0 0
        %4665 = vmatprep.subr.bf16.mxu0 0
        %4666 = vmatpush1.bf16.msra.mxu0 0
        %4667 = vmatprep.subr.bf16.mxu0 0
        %4668 = vmatpush1.bf16.msra.mxu0 0
        %4669 = vmatprep.subr.bf16.mxu0 0
        %4670 = vmatpush1.bf16.msra.mxu0 0
        %4671 = vmatprep.subr.bf16.mxu0 0
        %4672 = vmatpush1.bf16.msra.mxu0 0
        %4673 = vmatprep.subr.bf16.mxu0 0
        %4674 = vmatpush1.bf16.msra.mxu0 0
        %4675 = vmatprep.subr.bf16.mxu0 0
        %4676 = vmatpush1.bf16.msra.mxu0 0
        %4677 = vmatprep.subr.bf16.mxu0 0
        %4678 = vmatpush1.bf16.msra.mxu0 0
        %4679 = vmatprep.subr.bf16.mxu0 0
        %4680 = vmatpush1.bf16.msra.mxu0 0
        %4681 = vmatprep.subr.bf16.mxu0 0
        %4682 = vmatpush1.bf16.msra.mxu0 0
        %4683 = vmatprep.subr.bf16.mxu0 0
        %4684 = vmatpush1.bf16.msra.mxu0 0
        %4685 = vmatprep.mubr.bf16.mxu0 0
        %4686 = vmatmul.mubr.bf16.gmra.mrb[0].mxu0 %v4537
        %v4687 = vpop.f32.mrb[0].mxu0
        %v4688 = vadd.f32 0.0, %v4687
        %v4689 = vpop.f32.mrb[0].mxu0
        %v4690 = vpop.f32.mrb[0].mxu0
        %v4691 = vadd.f32 0.0, %v4690
        %v4692 = vpop.f32.mrb[0].mxu0
        %4693 = vdwg.mxu0
        %v4698 = vunpack.c.l.b16 %v4637
        %v4699 = vunpack.c.l.b16 %v4638
        %v4700 = vunpack.c.l.b16 %v4639
        %v4701 = vunpack.c.l.b16 %v4640
        %v4702 = vpack.c.b16 %v4699, %v4698
        %v4703 = vpack.c.b16 %v4701, %v4700
        %4706 = vmatprep.subr.bf16.mxu0 0
        %4707 = vmatpush1.bf16.msra.mxu0 %v4702
        %4708 = vmatprep.subr.bf16.mxu0 0
        %4709 = vmatpush1.bf16.msra.mxu0 %v4703
        %4710 = vmatprep.subr.bf16.mxu0 0
        %4711 = vmatpush1.bf16.msra.mxu0 0
        %4712 = vmatprep.subr.bf16.mxu0 0
        %4713 = vmatpush1.bf16.msra.mxu0 0
        %4714 = vmatprep.subr.bf16.mxu0 0
        %4715 = vmatpush1.bf16.msra.mxu0 0
        %4716 = vmatprep.subr.bf16.mxu0 0
        %4717 = vmatpush1.bf16.msra.mxu0 0
        %4718 = vmatprep.subr.bf16.mxu0 0
        %4719 = vmatpush1.bf16.msra.mxu0 0
        %4720 = vmatprep.subr.bf16.mxu0 0
        %4721 = vmatpush1.bf16.msra.mxu0 0
        %4722 = vmatprep.subr.bf16.mxu0 0
        %4723 = vmatpush1.bf16.msra.mxu0 0
        %4724 = vmatprep.subr.bf16.mxu0 0
        %4725 = vmatpush1.bf16.msra.mxu0 0
        %4726 = vmatprep.subr.bf16.mxu0 0
        %4727 = vmatpush1.bf16.msra.mxu0 0
        %4728 = vmatprep.subr.bf16.mxu0 0
        %4729 = vmatpush1.bf16.msra.mxu0 0
        %4730 = vmatprep.subr.bf16.mxu0 0
        %4731 = vmatpush1.bf16.msra.mxu0 0
        %4732 = vmatprep.subr.bf16.mxu0 0
        %4733 = vmatpush1.bf16.msra.mxu0 0
        %4734 = vmatprep.subr.bf16.mxu0 0
        %4735 = vmatpush1.bf16.msra.mxu0 0
        %4736 = vmatprep.subr.bf16.mxu0 0
        %4737 = vmatpush1.bf16.msra.mxu0 0
        %4738 = vmatprep.mubr.bf16.mxu0 0
        %4739 = vmatmul.mubr.bf16.gmra.mrb[0].mxu0 %v4537
        %v4740 = vpop.f32.mrb[0].mxu0
        %v4741 = vadd.f32 0.0, %v4740
        %v4742 = vpop.f32.mrb[0].mxu0
        %v4743 = vpop.f32.mrb[0].mxu0
        %v4744 = vadd.f32 0.0, %v4743
        %v4745 = vpop.f32.mrb[0].mxu0
        %4746 = vdwg.mxu0
        %v4747 = vld [vmem:[%s47] sm:$0xf]
        %v4748 = vld [vmem:[%s47 + $0x4] sm:$0xf]
        %v4749 = vld [vmem:[%s47 + $0x8] sm:$0xf]
        %v4750 = vld [vmem:[%s47 + $0xc] sm:$0xf]
        %v4751 = vld [vmem:[%s47 + $0x10] sm:$0xf]
        %v4752 = vld [vmem:[%s47 + $0x14] sm:$0xf]
        %v4753 = vld [vmem:[%s47 + $0x18] sm:$0xf]
        %v4754 = vld [vmem:[%s47 + $0x1c] sm:$0xf]
        %v4759 = vunpack.c.l.b16 %v4747
        %v4760 = vunpack.c.l.b16 %v4748
        %v4761 = vunpack.c.l.b16 %v4749
        %v4762 = vunpack.c.l.b16 %v4750
        %v4763 = vpack.c.b16 %v4760, %v4759
        %v4764 = vpack.c.b16 %v4762, %v4761
        %4767 = vmatprep.subr.bf16.mxu0 0
        %4768 = vmatpush1.bf16.msra.mxu0 %v4763
        %4769 = vmatprep.subr.bf16.mxu0 0
        %4770 = vmatpush1.bf16.msra.mxu0 %v4764
        %4771 = vmatprep.subr.bf16.mxu0 0
        %4772 = vmatpush1.bf16.msra.mxu0 0
        %4773 = vmatprep.subr.bf16.mxu0 0
        %4774 = vmatpush1.bf16.msra.mxu0 0
        %4775 = vmatprep.subr.bf16.mxu0 0
        %4776 = vmatpush1.bf16.msra.mxu0 0
        %4777 = vmatprep.subr.bf16.mxu0 0
        %4778 = vmatpush1.bf16.msra.mxu0 0
        %4779 = vmatprep.subr.bf16.mxu0 0
        %4780 = vmatpush1.bf16.msra.mxu0 0
        %4781 = vmatprep.subr.bf16.mxu0 0
        %4782 = vmatpush1.bf16.msra.mxu0 0
        %4783 = vmatprep.subr.bf16.mxu0 0
        %4784 = vmatpush1.bf16.msra.mxu0 0
        %4785 = vmatprep.subr.bf16.mxu0 0
        %4786 = vmatpush1.bf16.msra.mxu0 0
        %4787 = vmatprep.subr.bf16.mxu0 0
        %4788 = vmatpush1.bf16.msra.mxu0 0
        %4789 = vmatprep.subr.bf16.mxu0 0
        %4790 = vmatpush1.bf16.msra.mxu0 0
        %4791 = vmatprep.subr.bf16.mxu0 0
        %4792 = vmatpush1.bf16.msra.mxu0 0
        %4793 = vmatprep.subr.bf16.mxu0 0
        %4794 = vmatpush1.bf16.msra.mxu0 0
        %4795 = vmatprep.subr.bf16.mxu0 0
        %4796 = vmatpush1.bf16.msra.mxu0 0
        %4797 = vmatprep.subr.bf16.mxu0 0
        %4798 = vmatpush1.bf16.msra.mxu0 0
        %4799 = vmatprep.mubr.bf16.mxu0 0
        %4800 = vmatmul.mubr.bf16.gmra.mrb[0].mxu0 %v4537
        %v4801 = vpop.f32.mrb[0].mxu0
        %v4802 = vadd.f32 0.0, %v4801
        %v4803 = vpop.f32.mrb[0].mxu0
        %v4804 = vpop.f32.mrb[0].mxu0
        %v4805 = vadd.f32 0.0, %v4804
        %v4806 = vpop.f32.mrb[0].mxu0
        %4807 = vdwg.mxu0
        %v4812 = vunpack.c.l.b16 %v4751
        %v4813 = vunpack.c.l.b16 %v4752
        %v4814 = vunpack.c.l.b16 %v4753
        %v4815 = vunpack.c.l.b16 %v4754
        %v4816 = vpack.c.b16 %v4813, %v4812
        %v4817 = vpack.c.b16 %v4815, %v4814
        %4820 = vmatprep.subr.bf16.mxu0 0
        %4821 = vmatpush1.bf16.msra.mxu0 %v4816
        %4822 = vmatprep.subr.bf16.mxu0 0
        %4823 = vmatpush1.bf16.msra.mxu0 %v4817
        %4824 = vmatprep.subr.bf16.mxu0 0
        %4825 = vmatpush1.bf16.msra.mxu0 0
        %4826 = vmatprep.subr.bf16.mxu0 0
        %4827 = vmatpush1.bf16.msra.mxu0 0
        %4828 = vmatprep.subr.bf16.mxu0 0
        %4829 = vmatpush1.bf16.msra.mxu0 0
        %4830 = vmatprep.subr.bf16.mxu0 0
        %4831 = vmatpush1.bf16.msra.mxu0 0
        %4832 = vmatprep.subr.bf16.mxu0 0
        %4833 = vmatpush1.bf16.msra.mxu0 0
        %4834 = vmatprep.subr.bf16.mxu0 0
        %4835 = vmatpush1.bf16.msra.mxu0 0
        %4836 = vmatprep.subr.bf16.mxu0 0
        %4837 = vmatpush1.bf16.msra.mxu0 0
        %4838 = vmatprep.subr.bf16.mxu0 0
        %4839 = vmatpush1.bf16.msra.mxu0 0
        %4840 = vmatprep.subr.bf16.mxu0 0
        %4841 = vmatpush1.bf16.msra.mxu0 0
        %4842 = vmatprep.subr.bf16.mxu0 0
        %4843 = vmatpush1.bf16.msra.mxu0 0
        %4844 = vmatprep.subr.bf16.mxu0 0
        %4845 = vmatpush1.bf16.msra.mxu0 0
        %4846 = vmatprep.subr.bf16.mxu0 0
        %4847 = vmatpush1.bf16.msra.mxu0 0
        %4848 = vmatprep.subr.bf16.mxu0 0
        %4849 = vmatpush1.bf16.msra.mxu0 0
        %4850 = vmatprep.subr.bf16.mxu0 0
        %4851 = vmatpush1.bf16.msra.mxu0 0
        %4852 = vmatprep.mubr.bf16.mxu0 0
        %4853 = vmatmul.mubr.bf16.gmra.mrb[0].mxu0 %v4537
        %v4854 = vpop.f32.mrb[0].mxu0
        %v4855 = vadd.f32 0.0, %v4854
        %v4856 = vpop.f32.mrb[0].mxu0
        %v4857 = vpop.f32.mrb[0].mxu0
        %v4858 = vadd.f32 0.0, %v4857
        %v4859 = vpop.f32.mrb[0].mxu0
        %4860 = vdwg.mxu0
        %vm4861 = vcmask 130048
        %v4863 = vsel %vm4861, %v4574, 0
        %v4866 = vsel %vm4861, %v4577, 0
        %v4869 = vsel %vm4861, %v4688, 0
        %v4872 = vsel %vm4861, %v4691, 0
        %4874 = vmatprep.subr.mxu0 0.0
        %4875 = vmatpush1.xpose.msra.mxu0 %v4869
        %4876 = vmatprep.subr.mxu0 0.0
        %4877 = vmatpush1.xpose.msra.mxu0 %v4872
        %4878 = vmatprep.subr.mxu0 0.0
        %4879 = vmatpush1.xpose.msra.mxu0 0.0
        %4880 = vmatprep.subr.mxu0 0.0
        %4881 = vmatpush1.xpose.msra.mxu0 0.0
        %4882 = vmatprep.subr.mxu0 0.0
        %4883 = vmatpush1.xpose.msra.mxu0 0.0
        %4884 = vmatprep.subr.mxu0 0.0
        %4885 = vmatpush1.xpose.msra.mxu0 0.0
        %4886 = vmatprep.subr.mxu0 0.0
        %4887 = vmatpush1.xpose.msra.mxu0 0.0
        %4888 = vmatprep.subr.mxu0 0.0
        %4889 = vmatpush1.xpose.msra.mxu0 0.0
        %4890 = vmatprep.subr.mxu0 0.0
        %4891 = vmatpush1.xpose.msra.mxu0 0.0
        %4892 = vmatprep.subr.mxu0 0.0
        %4893 = vmatpush1.xpose.msra.mxu0 0.0
        %4894 = vmatprep.subr.mxu0 0.0
        %4895 = vmatpush1.xpose.msra.mxu0 0.0
        %4896 = vmatprep.subr.mxu0 0.0
        %4897 = vmatpush1.xpose.msra.mxu0 0.0
        %4898 = vmatprep.subr.mxu0 0.0
        %4899 = vmatpush1.xpose.msra.mxu0 0.0
        %4900 = vmatprep.subr.mxu0 0.0
        %4901 = vmatpush1.xpose.msra.mxu0 0.0
        %4902 = vmatprep.subr.mxu0 0.0
        %4903 = vmatpush1.xpose.msra.mxu0 0.0
        %4904 = vmatprep.subr.mxu0 0.0
        %4905 = vmatpush1.xpose.msra.mxu0 0.0
        %4906 = vmatprep.subr.mxu0 0.0
        %4907 = vmatpush1.xpose.msra.mxu0 0.0
        %4908 = vmatprep.subr.mxu0 0.0
        %4909 = vmatpush1.xpose.msra.mxu0 0.0
        %4910 = vmatprep.subr.mxu0 0.0
        %4911 = vmatpush1.xpose.msra.mxu0 0.0
        %4912 = vmatprep.subr.mxu0 0.0
        %4913 = vmatpush1.xpose.msra.mxu0 0.0
        %4914 = vmatprep.subr.mxu0 0.0
        %4915 = vmatpush1.xpose.msra.mxu0 0.0
        %4916 = vmatprep.subr.mxu0 0.0
        %4917 = vmatpush1.xpose.msra.mxu0 0.0
        %4918 = vmatprep.subr.mxu0 0.0
        %4919 = vmatpush1.xpose.msra.mxu0 0.0
        %4920 = vmatprep.subr.mxu0 0.0
        %4921 = vmatpush1.xpose.msra.mxu0 0.0
        %4922 = vmatprep.subr.mxu0 0.0
        %4923 = vmatpush1.xpose.msra.mxu0 0.0
        %4924 = vmatprep.subr.mxu0 0.0
        %4925 = vmatpush1.xpose.msra.mxu0 0.0
        %4926 = vmatprep.subr.mxu0 0.0
        %4927 = vmatpush1.xpose.msra.mxu0 0.0
        %4928 = vmatprep.subr.mxu0 0.0
        %4929 = vmatpush1.xpose.msra.mxu0 0.0
        %4930 = vmatprep.subr.mxu0 0.0
        %4931 = vmatpush1.xpose.msra.mxu0 0.0
        %4932 = vmatprep.subr.mxu0 0.0
        %4933 = vmatpush1.xpose.msra.mxu0 0.0
        %4934 = vmatprep.subr.mxu0 0.0
        %4935 = vmatpush1.xpose.msra.mxu0 0.0
        %4936 = vmatprep.subr.mxu0 0.0
        %4937 = vmatpush1.xpose.msra.mxu0 0.0
        %4938 = vmatprep.mubr.f32.mxu0 0.0
        %4939 = vmatmul.mubr.f32.gmra.mrb[0].mxu0 %v4863
        %v4940 = vpop.f32.mrb[0].mxu0
        %v4941 = vadd.f32 0.0, %v4940
        %v4942 = vpop.f32.mrb[0].mxu0
        %4943 = vmatprep.mubr.f32.mxu0 0.0
        %4944 = vmatmul.mubr.f32.gmra.mrb[0].mxu0 %v4866
        %v4945 = vpop.f32.mrb[0].mxu0
        %v4946 = vadd.f32 0.0, %v4945
        %v4947 = vpop.f32.mrb[0].mxu0
        %4948 = vdwg.mxu0
        %v4950 = vsel %vm4861, %v4627, 0
        %v4953 = vsel %vm4861, %v4630, 0
        %v4956 = vsel %vm4861, %v4741, 0
        %v4959 = vsel %vm4861, %v4744, 0
        %4961 = vmatprep.subr.mxu0 0.0
        %4962 = vmatpush1.xpose.msra.mxu0 %v4956
        %4963 = vmatprep.subr.mxu0 0.0
        %4964 = vmatpush1.xpose.msra.mxu0 %v4959
        %4965 = vmatprep.subr.mxu0 0.0
        %4966 = vmatpush1.xpose.msra.mxu0 0.0
        %4967 = vmatprep.subr.mxu0 0.0
        %4968 = vmatpush1.xpose.msra.mxu0 0.0
        %4969 = vmatprep.subr.mxu0 0.0
        %4970 = vmatpush1.xpose.msra.mxu0 0.0
        %4971 = vmatprep.subr.mxu0 0.0
        %4972 = vmatpush1.xpose.msra.mxu0 0.0
        %4973 = vmatprep.subr.mxu0 0.0
        %4974 = vmatpush1.xpose.msra.mxu0 0.0
        %4975 = vmatprep.subr.mxu0 0.0
        %4976 = vmatpush1.xpose.msra.mxu0 0.0
        %4977 = vmatprep.subr.mxu0 0.0
        %4978 = vmatpush1.xpose.msra.mxu0 0.0
        %4979 = vmatprep.subr.mxu0 0.0
        %4980 = vmatpush1.xpose.msra.mxu0 0.0
        %4981 = vmatprep.subr.mxu0 0.0
        %4982 = vmatpush1.xpose.msra.mxu0 0.0
        %4983 = vmatprep.subr.mxu0 0.0
        %4984 = vmatpush1.xpose.msra.mxu0 0.0
        %4985 = vmatprep.subr.mxu0 0.0
        %4986 = vmatpush1.xpose.msra.mxu0 0.0
        %4987 = vmatprep.subr.mxu0 0.0
        %4988 = vmatpush1.xpose.msra.mxu0 0.0
        %4989 = vmatprep.subr.mxu0 0.0
        %4990 = vmatpush1.xpose.msra.mxu0 0.0
        %4991 = vmatprep.subr.mxu0 0.0
        %4992 = vmatpush1.xpose.msra.mxu0 0.0
        %4993 = vmatprep.subr.mxu0 0.0
        %4994 = vmatpush1.xpose.msra.mxu0 0.0
        %4995 = vmatprep.subr.mxu0 0.0
        %4996 = vmatpush1.xpose.msra.mxu0 0.0
        %4997 = vmatprep.subr.mxu0 0.0
        %4998 = vmatpush1.xpose.msra.mxu0 0.0
        %4999 = vmatprep.subr.mxu0 0.0
        %5000 = vmatpush1.xpose.msra.mxu0 0.0
        %5001 = vmatprep.subr.mxu0 0.0
        %5002 = vmatpush1.xpose.msra.mxu0 0.0
        %5003 = vmatprep.subr.mxu0 0.0
        %5004 = vmatpush1.xpose.msra.mxu0 0.0
        %5005 = vmatprep.subr.mxu0 0.0
        %5006 = vmatpush1.xpose.msra.mxu0 0.0
        %5007 = vmatprep.subr.mxu0 0.0
        %5008 = vmatpush1.xpose.msra.mxu0 0.0
        %5009 = vmatprep.subr.mxu0 0.0
        %5010 = vmatpush1.xpose.msra.mxu0 0.0
        %5011 = vmatprep.subr.mxu0 0.0
        %5012 = vmatpush1.xpose.msra.mxu0 0.0
        %5013 = vmatprep.subr.mxu0 0.0
        %5014 = vmatpush1.xpose.msra.mxu0 0.0
        %5015 = vmatprep.subr.mxu0 0.0
        %5016 = vmatpush1.xpose.msra.mxu0 0.0
        %5017 = vmatprep.subr.mxu0 0.0
        %5018 = vmatpush1.xpose.msra.mxu0 0.0
        %5019 = vmatprep.subr.mxu0 0.0
        %5020 = vmatpush1.xpose.msra.mxu0 0.0
        %5021 = vmatprep.subr.mxu0 0.0
        %5022 = vmatpush1.xpose.msra.mxu0 0.0
        %5023 = vmatprep.subr.mxu0 0.0
        %5024 = vmatpush1.xpose.msra.mxu0 0.0
        %5025 = vmatprep.mubr.f32.mxu0 0.0
        %5026 = vmatmul.mubr.f32.gmra.mrb[0].mxu0 %v4950
        %v5027 = vpop.f32.mrb[0].mxu0
        %v5028 = vadd.f32 0.0, %v5027
        %v5029 = vpop.f32.mrb[0].mxu0
        %5030 = vmatprep.mubr.f32.mxu0 0.0
        %5031 = vmatmul.mubr.f32.gmra.mrb[0].mxu0 %v4953
        %v5032 = vpop.f32.mrb[0].mxu0
        %v5033 = vadd.f32 0.0, %v5032
        %v5034 = vpop.f32.mrb[0].mxu0
        %5035 = vdwg.mxu0
        %v5036 = vmul.f32 %v4941, 0.25
        %v5037 = vmul.f32 %v4946, 0.25
        %v5038 = vmul.f32 %v5028, 0.25
        %v5039 = vmul.f32 %v5033, 0.25
        %vm5040 = vcmask 72704
        %v5041 = vsel %vm5040, %v5036, -inf
        %5042 = vmax.xlane.f32.xlu0 %v5041
        %v5043 = vpop.xlane.xlu0 %5042
        %vm5044 = vcmask 65536
        %v5045 = vsel %vm5044, %v5037, -inf
        %5046 = vmax.xlane.f32.xlu0 %v5045
        %v5047 = vpop.xlane.xlu0 %5046
        %v5048 = vsel %vm5040, %v5038, -inf
        %5049 = vmax.xlane.f32.xlu0 %v5048
        %v5050 = vpop.xlane.xlu0 %5049
        %v5051 = vsel %vm5044, %v5039, -inf
        %5052 = vmax.xlane.f32.xlu0 %v5051
        %v5053 = vpop.xlane.xlu0 %5052
        %v5054 = vsub.f32 %v5036, %v5043
        %v5055 = vsub.f32 %v5037, %v5047
        %v5056 = vsub.f32 %v5038, %v5050
        %v5057 = vsub.f32 %v5039, %v5053
        %v5058 = vmul.f32 %v5054, 1.442695
        %v5059 = vpow.pop %v5058
        %v5060 = vmul.f32 %v5055, 1.442695
        %v5061 = vpow.pop %v5060
        %v5062 = vmul.f32 %v5056, 1.442695
        %v5063 = vpow.pop %v5062
        %v5064 = vmul.f32 %v5057, 1.442695
        %v5065 = vpow.pop %v5064
        %v5066 = vsel %vm5040, %v5059, 0.0
        %5067 = vadd.xlane.f32.xlu0 %v5066
        %v5068 = vpop.xlane.xlu0 %5067
        %v5069 = vsel %vm5044, %v5061, 0.0
        %5070 = vadd.xlane.f32.xlu0 %v5069
        %v5071 = vpop.xlane.xlu0 %5070
        %v5072 = vsel %vm5040, %v5063, 0.0
        %5073 = vadd.xlane.f32.xlu0 %v5072
        %v5074 = vpop.xlane.xlu0 %5073
        %v5075 = vsel %vm5044, %v5065, 0.0
        %5076 = vadd.xlane.f32.xlu0 %v5075
        %v5077 = vpop.xlane.xlu0 %5076
        %v5078 = vrcp.pop %v5068
        %v5079 = vrcp.pop %v5071
        %v5080 = vrcp.pop %v5074
        %v5081 = vrcp.pop %v5077
        %v5082 = vmul.f32 %v5059, %v5078
        %v5083 = vmul.f32 %v5061, %v5079
        %v5084 = vmul.f32 %v5063, %v5080
        %v5085 = vmul.f32 %v5065, %v5081
        %v5087 = vsel %vm5040, %v5082, 0
        %v5090 = vsel %vm5040, %v5083, 0
        %vm5092 = vcmask 1040384
        %v5094 = vsel %vm5092, %v4805, 0
        %5096 = vmatprep.subr.mxu0 0.0
        %5097 = vmatpush1.msra.mxu0 %v4802
        %5098 = vmatprep.subr.mxu0 0.0
        %5099 = vmatpush1.msra.mxu0 %v5094
        %5100 = vmatprep.subr.mxu0 0.0
        %5101 = vmatpush1.msra.mxu0 0.0
        %5102 = vmatprep.subr.mxu0 0.0
        %5103 = vmatpush1.msra.mxu0 0.0
        %5104 = vmatprep.subr.mxu0 0.0
        %5105 = vmatpush1.msra.mxu0 0.0
        %5106 = vmatprep.subr.mxu0 0.0
        %5107 = vmatpush1.msra.mxu0 0.0
        %5108 = vmatprep.subr.mxu0 0.0
        %5109 = vmatpush1.msra.mxu0 0.0
        %5110 = vmatprep.subr.mxu0 0.0
        %5111 = vmatpush1.msra.mxu0 0.0
        %5112 = vmatprep.subr.mxu0 0.0
        %5113 = vmatpush1.msra.mxu0 0.0
        %5114 = vmatprep.subr.mxu0 0.0
        %5115 = vmatpush1.msra.mxu0 0.0
        %5116 = vmatprep.subr.mxu0 0.0
        %5117 = vmatpush1.msra.mxu0 0.0
        %5118 = vmatprep.subr.mxu0 0.0
        %5119 = vmatpush1.msra.mxu0 0.0
        %5120 = vmatprep.subr.mxu0 0.0
        %5121 = vmatpush1.msra.mxu0 0.0
        %5122 = vmatprep.subr.mxu0 0.0
        %5123 = vmatpush1.msra.mxu0 0.0
        %5124 = vmatprep.subr.mxu0 0.0
        %5125 = vmatpush1.msra.mxu0 0.0
        %5126 = vmatprep.subr.mxu0 0.0
        %5127 = vmatpush1.msra.mxu0 0.0
        %5128 = vmatprep.subr.mxu0 0.0
        %5129 = vmatpush1.msra.mxu0 0.0
        %5130 = vmatprep.subr.mxu0 0.0
        %5131 = vmatpush1.msra.mxu0 0.0
        %5132 = vmatprep.subr.mxu0 0.0
        %5133 = vmatpush1.msra.mxu0 0.0
        %5134 = vmatprep.subr.mxu0 0.0
        %5135 = vmatpush1.msra.mxu0 0.0
        %5136 = vmatprep.subr.mxu0 0.0
        %5137 = vmatpush1.msra.mxu0 0.0
        %5138 = vmatprep.subr.mxu0 0.0
        %5139 = vmatpush1.msra.mxu0 0.0
        %5140 = vmatprep.subr.mxu0 0.0
        %5141 = vmatpush1.msra.mxu0 0.0
        %5142 = vmatprep.subr.mxu0 0.0
        %5143 = vmatpush1.msra.mxu0 0.0
        %5144 = vmatprep.subr.mxu0 0.0
        %5145 = vmatpush1.msra.mxu0 0.0
        %5146 = vmatprep.subr.mxu0 0.0
        %5147 = vmatpush1.msra.mxu0 0.0
        %5148 = vmatprep.subr.mxu0 0.0
        %5149 = vmatpush1.msra.mxu0 0.0
        %5150 = vmatprep.subr.mxu0 0.0
        %5151 = vmatpush1.msra.mxu0 0.0
        %5152 = vmatprep.subr.mxu0 0.0
        %5153 = vmatpush1.msra.mxu0 0.0
        %5154 = vmatprep.subr.mxu0 0.0
        %5155 = vmatpush1.msra.mxu0 0.0
        %5156 = vmatprep.subr.mxu0 0.0
        %5157 = vmatpush1.msra.mxu0 0.0
        %5158 = vmatprep.subr.mxu0 0.0
        %5159 = vmatpush1.msra.mxu0 0.0
        %5160 = vmatprep.mubr.f32.mxu0 0.0
        %5161 = vmatmul.mubr.f32.gmra.mrb[0].mxu0 %v5087
        %v5162 = vpop.f32.mrb[0].mxu0
        %v5163 = vadd.f32 0.0, %v5162
        %v5164 = vpop.f32.mrb[0].mxu0
        %5165 = vmatprep.mubr.f32.mxu0 0.0
        %5166 = vmatmul.mubr.f32.gmra.mrb[0].mxu0 %v5090
        %v5167 = vpop.f32.mrb[0].mxu0
        %v5168 = vadd.f32 0.0, %v5167
        %v5169 = vpop.f32.mrb[0].mxu0
        %5170 = vdwg.mxu0
        %v5172 = vsel %vm5040, %v5084, 0
        %v5175 = vsel %vm5040, %v5085, 0
        %v5178 = vsel %vm5092, %v4858, 0
        %5180 = vmatprep.subr.mxu0 0.0
        %5181 = vmatpush1.msra.mxu0 %v4855
        %5182 = vmatprep.subr.mxu0 0.0
        %5183 = vmatpush1.msra.mxu0 %v5178
        %5184 = vmatprep.subr.mxu0 0.0
        %5185 = vmatpush1.msra.mxu0 0.0
        %5186 = vmatprep.subr.mxu0 0.0
        %5187 = vmatpush1.msra.mxu0 0.0
        %5188 = vmatprep.subr.mxu0 0.0
        %5189 = vmatpush1.msra.mxu0 0.0
        %5190 = vmatprep.subr.mxu0 0.0
        %5191 = vmatpush1.msra.mxu0 0.0
        %5192 = vmatprep.subr.mxu0 0.0
        %5193 = vmatpush1.msra.mxu0 0.0
        %5194 = vmatprep.subr.mxu0 0.0
        %5195 = vmatpush1.msra.mxu0 0.0
        %5196 = vmatprep.subr.mxu0 0.0
        %5197 = vmatpush1.msra.mxu0 0.0
        %5198 = vmatprep.subr.mxu0 0.0
        %5199 = vmatpush1.msra.mxu0 0.0
        %5200 = vmatprep.subr.mxu0 0.0
        %5201 = vmatpush1.msra.mxu0 0.0
        %5202 = vmatprep.subr.mxu0 0.0
        %5203 = vmatpush1.msra.mxu0 0.0
        %5204 = vmatprep.subr.mxu0 0.0
        %5205 = vmatpush1.msra.mxu0 0.0
        %5206 = vmatprep.subr.mxu0 0.0
        %5207 = vmatpush1.msra.mxu0 0.0
        %5208 = vmatprep.subr.mxu0 0.0
        %5209 = vmatpush1.msra.mxu0 0.0
        %5210 = vmatprep.subr.mxu0 0.0
        %5211 = vmatpush1.msra.mxu0 0.0
        %5212 = vmatprep.subr.mxu0 0.0
        %5213 = vmatpush1.msra.mxu0 0.0
        %5214 = vmatprep.subr.mxu0 0.0
        %5215 = vmatpush1.msra.mxu0 0.0
        %5216 = vmatprep.subr.mxu0 0.0
        %5217 = vmatpush1.msra.mxu0 0.0
        %5218 = vmatprep.subr.mxu0 0.0
        %5219 = vmatpush1.msra.mxu0 0.0
        %5220 = vmatprep.subr.mxu0 0.0
        %5221 = vmatpush1.msra.mxu0 0.0
        %5222 = vmatprep.subr.mxu0 0.0
        %5223 = vmatpush1.msra.mxu0 0.0
        %5224 = vmatprep.subr.mxu0 0.0
        %5225 = vmatpush1.msra.mxu0 0.0
        %5226 = vmatprep.subr.mxu0 0.0
        %5227 = vmatpush1.msra.mxu0 0.0
        %5228 = vmatprep.subr.mxu0 0.0
        %5229 = vmatpush1.msra.mxu0 0.0
        %5230 = vmatprep.subr.mxu0 0.0
        %5231 = vmatpush1.msra.mxu0 0.0
        %5232 = vmatprep.subr.mxu0 0.0
        %5233 = vmatpush1.msra.mxu0 0.0
        %5234 = vmatprep.subr.mxu0 0.0
        %5235 = vmatpush1.msra.mxu0 0.0
        %5236 = vmatprep.subr.mxu0 0.0
        %5237 = vmatpush1.msra.mxu0 0.0
        %5238 = vmatprep.subr.mxu0 0.0
        %5239 = vmatpush1.msra.mxu0 0.0
        %5240 = vmatprep.subr.mxu0 0.0
        %5241 = vmatpush1.msra.mxu0 0.0
        %5242 = vmatprep.subr.mxu0 0.0
        %5243 = vmatpush1.msra.mxu0 0.0
        %5244 = vmatprep.mubr.f32.mxu0 0.0
        %5245 = vmatmul.mubr.f32.gmra.mrb[0].mxu0 %v5172
        %v5246 = vpop.f32.mrb[0].mxu0
        %v5247 = vadd.f32 0.0, %v5246
        %v5248 = vpop.f32.mrb[0].mxu0
        %5249 = vmatprep.mubr.f32.mxu0 0.0
        %5250 = vmatmul.mubr.f32.gmra.mrb[0].mxu0 %v5175
        %v5251 = vpop.f32.mrb[0].mxu0
        %v5252 = vadd.f32 0.0, %v5251
        %v5253 = vpop.f32.mrb[0].mxu0
        %5254 = vdwg.mxu0
        %v5255 = vpack.c.bf16 %v5168, %v5163
        %v5256 = vpack.c.bf16 %v5252, %v5247
        %v5257 = vld [vmem:[%s49] sm:$0xf]
        %v5258 = vld [vmem:[%s49 + $0x4] sm:$0xf]
        %v5259 = vld [vmem:[%s49 + $0x8] sm:$0xf]
        %v5260 = vld [vmem:[%s49 + $0xc] sm:$0xf]
        %v5263 = vunpack.c.l.b16 %v5257
        %v5264 = vunpack.c.l.b16 %v5258
        %v5265 = vpack.c.b16 %v5264, %v5263
        %v5268 = vsel %vm4861, %v5255, 0
        %5270 = vmatprep.subr.bf16.mxu0 0
        %5271 = vmatpush1.bf16.msra.mxu0 %v5265
        %5272 = vmatprep.subr.bf16.mxu0 0
        %5273 = vmatpush1.bf16.msra.mxu0 0
        %5274 = vmatprep.subr.bf16.mxu0 0
        %5275 = vmatpush1.bf16.msra.mxu0 0
        %5276 = vmatprep.subr.bf16.mxu0 0
        %5277 = vmatpush1.bf16.msra.mxu0 0
        %5278 = vmatprep.subr.bf16.mxu0 0
        %5279 = vmatpush1.bf16.msra.mxu0 0
        %5280 = vmatprep.subr.bf16.mxu0 0
        %5281 = vmatpush1.bf16.msra.mxu0 0
        %5282 = vmatprep.subr.bf16.mxu0 0
        %5283 = vmatpush1.bf16.msra.mxu0 0
        %5284 = vmatprep.subr.bf16.mxu0 0
        %5285 = vmatpush1.bf16.msra.mxu0 0
        %5286 = vmatprep.subr.bf16.mxu0 0
        %5287 = vmatpush1.bf16.msra.mxu0 0
        %5288 = vmatprep.subr.bf16.mxu0 0
        %5289 = vmatpush1.bf16.msra.mxu0 0
        %5290 = vmatprep.subr.bf16.mxu0 0
        %5291 = vmatpush1.bf16.msra.mxu0 0
        %5292 = vmatprep.subr.bf16.mxu0 0
        %5293 = vmatpush1.bf16.msra.mxu0 0
        %5294 = vmatprep.subr.bf16.mxu0 0
        %5295 = vmatpush1.bf16.msra.mxu0 0
        %5296 = vmatprep.subr.bf16.mxu0 0
        %5297 = vmatpush1.bf16.msra.mxu0 0
        %5298 = vmatprep.subr.bf16.mxu0 0
        %5299 = vmatpush1.bf16.msra.mxu0 0
        %5300 = vmatprep.subr.bf16.mxu0 0
        %5301 = vmatpush1.bf16.msra.mxu0 0
        %5302 = vmatprep.mubr.bf16.mxu0 0
        %5303 = vmatmul.mubr.bf16.gmra.mrb[0].mxu0 %v5268
        %v5304 = vpop.f32.mrb[0].mxu0
        %v5305 = vadd.f32 0.0, %v5304
        %v5306 = vpop.f32.mrb[0].mxu0
        %v5307 = vpop.f32.mrb[0].mxu0
        %v5308 = vadd.f32 0.0, %v5307
        %v5309 = vpop.f32.mrb[0].mxu0
        %5310 = vdwg.mxu0
        %v5313 = vunpack.c.l.b16 %v5259
        %v5314 = vunpack.c.l.b16 %v5260
        %v5315 = vpack.c.b16 %v5314, %v5313
        %v5318 = vsel %vm4861, %v5256, 0
        %5320 = vmatprep.subr.bf16.mxu0 0
        %5321 = vmatpush1.bf16.msra.mxu0 %v5315
        %5322 = vmatprep.subr.bf16.mxu0 0
        %5323 = vmatpush1.bf16.msra.mxu0 0
        %5324 = vmatprep.subr.bf16.mxu0 0
        %5325 = vmatpush1.bf16.msra.mxu0 0
        %5326 = vmatprep.subr.bf16.mxu0 0
        %5327 = vmatpush1.bf16.msra.mxu0 0
        %5328 = vmatprep.subr.bf16.mxu0 0
        %5329 = vmatpush1.bf16.msra.mxu0 0
        %5330 = vmatprep.subr.bf16.mxu0 0
        %5331 = vmatpush1.bf16.msra.mxu0 0
        %5332 = vmatprep.subr.bf16.mxu0 0
        %5333 = vmatpush1.bf16.msra.mxu0 0
        %5334 = vmatprep.subr.bf16.mxu0 0
        %5335 = vmatpush1.bf16.msra.mxu0 0
        %5336 = vmatprep.subr.bf16.mxu0 0
        %5337 = vmatpush1.bf16.msra.mxu0 0
        %5338 = vmatprep.subr.bf16.mxu0 0
        %5339 = vmatpush1.bf16.msra.mxu0 0
        %5340 = vmatprep.subr.bf16.mxu0 0
        %5341 = vmatpush1.bf16.msra.mxu0 0
        %5342 = vmatprep.subr.bf16.mxu0 0
        %5343 = vmatpush1.bf16.msra.mxu0 0
        %5344 = vmatprep.subr.bf16.mxu0 0
        %5345 = vmatpush1.bf16.msra.mxu0 0
        %5346 = vmatprep.subr.bf16.mxu0 0
        %5347 = vmatpush1.bf16.msra.mxu0 0
        %5348 = vmatprep.subr.bf16.mxu0 0
        %5349 = vmatpush1.bf16.msra.mxu0 0
        %5350 = vmatprep.subr.bf16.mxu0 0
        %5351 = vmatpush1.bf16.msra.mxu0 0
        %5352 = vmatprep.mubr.bf16.mxu0 0
        %5353 = vmatmul.mubr.bf16.gmra.mrb[0].mxu0 %v5318
        %v5354 = vpop.f32.mrb[0].mxu0
        %v5355 = vadd.f32 0.0, %v5354
        %v5356 = vpop.f32.mrb[0].mxu0
        %v5357 = vpop.f32.mrb[0].mxu0
        %v5358 = vadd.f32 0.0, %v5357
        %v5359 = vpop.f32.mrb[0].mxu0
        %5360 = vdwg.mxu0
        %v5361 = vsel %vm4459, %v5305, 0.0
        %v5362 = vsel %vm4459, %v5355, 0.0
        %v5363 = vadd.f32 %v5361, %v5362
        %v5364 = vsel %vm4457, %v5308, 0.0
        %v5365 = vsel %vm4457, %v5358, 0.0
        %v5366 = vadd.f32 %v5364, %v5365
        %v5367 = vadd.f32 %v4468, %v5363
        %v5368 = vadd.f32 %v4469, %v5366
        %v5369 = vld [vmem:[%s51] sm:$0x1]
        %v5371 = vlaneseq
        %v5372 = vshrl.u32 %v5371, 7
        %v5373 = vsub.s32 0, %v5372
        %v5374 = vrot.slane %v5369, %v5373
        %v5376 = vadd.f32 %v5367, %v5374
        %v5377 = vadd.f32 %v5368, %v5374
        %v5378 = vld [vmem:[%s53] sm:$0x1]
        %v5379 = vld [vmem:[%s55] sm:$0x1]
        %v5380 = vsel %vm4459, %v5376, 0.0
        %5381 = vadd.xlane.f32.xlu0 %v5380
        %v5382 = vpop.xlane.xlu0 %5381
        %v5383 = vsel %vm4457, %v5377, 0.0
        %5384 = vadd.xlane.f32.xlu0 %v5383
        %v5385 = vpop.xlane.xlu0 %5384
        %v5386 = vmul.f32 %v5382, %v4478
        %v5387 = vmul.f32 %v5385, %v4478
        %v5388 = vsub.f32 %v5376, %v5386
        %v5389 = vsub.f32 %v5377, %v5387
        %v5390 = vmul.f32 %v5388, %v5388
        %v5391 = vmul.f32 %v5389, %v5389
        %v5392 = vsel %vm4459, %v5390, 0.0
        %5393 = vadd.xlane.f32.xlu0 %v5392
        %v5394 = vpop.xlane.xlu0 %5393
        %v5395 = vsel %vm4457, %v5391, 0.0
        %5396 = vadd.xlane.f32.xlu0 %v5395
        %v5397 = vpop.xlane.xlu0 %5396
        %v5398 = vmul.f32 %v5394, %v4478
        %v5399 = vmul.f32 %v5397, %v4478
        %v5400 = vadd.f32 %v5398, 1e-05
        %v5401 = vadd.f32 %v5399, 1e-05
        %v5402 = vrsqrt.pop %v5400
        %v5403 = vrsqrt.pop %v5401
        %v5404 = vmul.f32 %v5388, %v5402
        %v5405 = vmul.f32 %v5389, %v5403
        %v5407 = vlaneseq
        %v5408 = vshrl.u32 %v5407, 7
        %v5409 = vsub.s32 0, %v5408
        %v5410 = vrot.slane %v5378, %v5409
        %v5412 = vmul.f32 %v5404, %v5410
        %v5413 = vmul.f32 %v5405, %v5410
        %v5415 = vlaneseq
        %v5416 = vshrl.u32 %v5415, 7
        %v5417 = vsub.s32 0, %v5416
        %v5418 = vrot.slane %v5379, %v5417
        %v5420 = vadd.f32 %v5412, %v5418
        %v5421 = vadd.f32 %v5413, %v5418
        %v5422 = vpack.c.bf16 %v5421, %v5420
        %v5423 = vld [vmem:[%s57] sm:$0xf]
        %v5424 = vld [vmem:[%s57 + $0x4] sm:$0xf]
        %v5425 = vld [vmem:[%s57 + $0x8] sm:$0xf]
        %v5426 = vld [vmem:[%s57 + $0xc] sm:$0xf]
        %v5427 = vld [vmem:[%s59] sm:$0x1]
        %v5429 = vlaneseq
        %v5430 = vshrl.u32 %v5429, 7
        %v5431 = vsub.s32 0, %v5430
        %v5432 = vrot.slane %v5427, %v5431
        %v5438 = vunpack.c.l.b16 %v5423
        %v5439 = vunpack.c.l.b16 %v5424
        %v5440 = vunpack.c.l.b16 %v5425
        %v5441 = vunpack.c.l.b16 %v5426
        %v5442 = vpack.c.b16 %v5439, %v5438
        %v5443 = vpack.c.b16 %v5441, %v5440
        %v5447 = vsel %vm4459, %v5422, 0
        %5449 = vmatprep.subr.bf16.mxu0 0
        %5450 = vmatpush1.bf16.msra.mxu0 %v5442
        %5451 = vmatprep.subr.bf16.mxu0 0
        %5452 = vmatpush1.bf16.msra.mxu0 %v5443
        %5453 = vmatprep.subr.bf16.mxu0 0
        %5454 = vmatpush1.bf16.msra.mxu0 0
        %5455 = vmatprep.subr.bf16.mxu0 0
        %5456 = vmatpush1.bf16.msra.mxu0 0
        %5457 = vmatprep.subr.bf16.mxu0 0
        %5458 = vmatpush1.bf16.msra.mxu0 0
        %5459 = vmatprep.subr.bf16.mxu0 0
        %5460 = vmatpush1.bf16.msra.mxu0 0
        %5461 = vmatprep.subr.bf16.mxu0 0
        %5462 = vmatpush1.bf16.msra.mxu0 0
        %5463 = vmatprep.subr.bf16.mxu0 0
        %5464 = vmatpush1.bf16.msra.mxu0 0
        %5465 = vmatprep.subr.bf16.mxu0 0
        %5466 = vmatpush1.bf16.msra.mxu0 0
        %5467 = vmatprep.subr.bf16.mxu0 0
        %5468 = vmatpush1.bf16.msra.mxu0 0
        %5469 = vmatprep.subr.bf16.mxu0 0
        %5470 = vmatpush1.bf16.msra.mxu0 0
        %5471 = vmatprep.subr.bf16.mxu0 0
        %5472 = vmatpush1.bf16.msra.mxu0 0
        %5473 = vmatprep.subr.bf16.mxu0 0
        %5474 = vmatpush1.bf16.msra.mxu0 0
        %5475 = vmatprep.subr.bf16.mxu0 0
        %5476 = vmatpush1.bf16.msra.mxu0 0
        %5477 = vmatprep.subr.bf16.mxu0 0
        %5478 = vmatpush1.bf16.msra.mxu0 0
        %5479 = vmatprep.subr.bf16.mxu0 0
        %5480 = vmatpush1.bf16.msra.mxu0 0
        %5481 = vmatprep.mubr.bf16.mxu0 0
        %5482 = vmatmul.mubr.bf16.gmra.mrb[0].mxu0 %v5447
        %v5483 = vpop.f32.mrb[0].mxu0
        %v5484 = vadd.f32 %v5432, %v5483
        %v5485 = vpop.f32.mrb[0].mxu0
        %v5486 = vpop.f32.mrb[0].mxu0
        %v5487 = vadd.f32 %v5432, %v5486
        %v5488 = vpop.f32.mrb[0].mxu0
        %5489 = vdwg.mxu0
        %v5490 = vmul.f32 %v5484, 0.5
        %v5491 = vmul.f32 %v5487, 0.5
        %v5492 = vmul.f32 %v5484, 0.044715
        %v5493 = vmul.f32 %v5487, 0.044715
        %v5494 = vmul.f32 %v5492, %v5484
        %v5495 = vmul.f32 %v5493, %v5487
        %v5496 = vmul.f32 %v5494, %v5484
        %v5497 = vmul.f32 %v5495, %v5487
        %v5498 = vadd.f32 %v5484, %v5496
        %v5499 = vadd.f32 %v5487, %v5497
        %v5500 = vmul.f32 %v5498, 0.7978846
        %v5501 = vmul.f32 %v5499, 0.7978846
        %v5502 = vtanh.pop %v5500
        %v5503 = vtanh.pop %v5501
        %v5504 = vadd.f32 %v5502, 1.0
        %v5505 = vadd.f32 %v5503, 1.0
        %v5506 = vmul.f32 %v5490, %v5504
        %v5507 = vmul.f32 %v5491, %v5505
        %v5508 = vpack.c.bf16 %v5507, %v5506
        %v5509 = vld [vmem:[%s61] sm:$0xf]
        %v5510 = vld [vmem:[%s61 + $0x4] sm:$0xf]
        %v5511 = vld [vmem:[%s61 + $0x8] sm:$0xf]
        %v5512 = vld [vmem:[%s61 + $0xc] sm:$0xf]
        %v5513 = vld [vmem:[%s61 + $0x10] sm:$0xf]
        %v5514 = vld [vmem:[%s61 + $0x14] sm:$0xf]
        %v5515 = vld [vmem:[%s61 + $0x18] sm:$0xf]
        %v5516 = vld [vmem:[%s61 + $0x1c] sm:$0xf]
        %v5517 = vld [vmem:[%s61 + $0x20] sm:$0xf]
        %v5518 = vld [vmem:[%s61 + $0x24] sm:$0xf]
        %v5519 = vld [vmem:[%s61 + $0x28] sm:$0xf]
        %v5520 = vld [vmem:[%s61 + $0x2c] sm:$0xf]
        %v5521 = vld [vmem:[%s61 + $0x30] sm:$0xf]
        %v5522 = vld [vmem:[%s61 + $0x34] sm:$0xf]
        %v5523 = vld [vmem:[%s61 + $0x38] sm:$0xf]
        %v5524 = vld [vmem:[%s61 + $0x3c] sm:$0xf]
        %v5525 = vld [vmem:[%s63] sm:$0x1]
        %v5527 = vlaneseq
        %v5528 = vshrl.u32 %v5527, 7
        %v5529 = vsub.s32 0, %v5528
        %v5530 = vrot.slane %v5525, %v5529
        %v5548 = vunpack.c.l.b16 %v5509
        %v5549 = vunpack.c.l.b16 %v5510
        %v5550 = vunpack.c.l.b16 %v5511
        %v5551 = vunpack.c.l.b16 %v5512
        %v5552 = vunpack.c.l.b16 %v5513
        %v5553 = vunpack.c.l.b16 %v5514
        %v5554 = vunpack.c.l.b16 %v5515
        %v5555 = vunpack.c.l.b16 %v5516
        %v5556 = vunpack.c.l.b16 %v5517
        %v5557 = vunpack.c.l.b16 %v5518
        %v5558 = vunpack.c.l.b16 %v5519
        %v5559 = vunpack.c.l.b16 %v5520
        %v5560 = vunpack.c.l.b16 %v5521
        %v5561 = vunpack.c.l.b16 %v5522
        %v5562 = vunpack.c.l.b16 %v5523
        %v5563 = vunpack.c.l.b16 %v5524
        %v5564 = vpack.c.b16 %v5549, %v5548
        %v5565 = vpack.c.b16 %v5551, %v5550
        %v5566 = vpack.c.b16 %v5553, %v5552
        %v5567 = vpack.c.b16 %v5555, %v5554
        %v5568 = vpack.c.b16 %v5557, %v5556
        %v5569 = vpack.c.b16 %v5559, %v5558
        %v5570 = vpack.c.b16 %v5561, %v5560
        %v5571 = vpack.c.b16 %v5563, %v5562
        %5580 = vmatprep.subr.bf16.mxu0 0
        %5581 = vmatpush1.bf16.msra.mxu0 %v5564
        %5582 = vmatprep.subr.bf16.mxu0 0
        %5583 = vmatpush1.bf16.msra.mxu0 %v5565
        %5584 = vmatprep.subr.bf16.mxu0 0
        %5585 = vmatpush1.bf16.msra.mxu0 %v5566
        %5586 = vmatprep.subr.bf16.mxu0 0
        %5587 = vmatpush1.bf16.msra.mxu0 %v5567
        %5588 = vmatprep.subr.bf16.mxu0 0
        %5589 = vmatpush1.bf16.msra.mxu0 %v5568
        %5590 = vmatprep.subr.bf16.mxu0 0
        %5591 = vmatpush1.bf16.msra.mxu0 %v5569
        %5592 = vmatprep.subr.bf16.mxu0 0
        %5593 = vmatpush1.bf16.msra.mxu0 %v5570
        %5594 = vmatprep.subr.bf16.mxu0 0
        %5595 = vmatpush1.bf16.msra.mxu0 %v5571
        %5596 = vmatprep.subr.bf16.mxu0 0
        %5597 = vmatpush1.bf16.msra.mxu0 0
        %5598 = vmatprep.subr.bf16.mxu0 0
        %5599 = vmatpush1.bf16.msra.mxu0 0
        %5600 = vmatprep.subr.bf16.mxu0 0
        %5601 = vmatpush1.bf16.msra.mxu0 0
        %5602 = vmatprep.subr.bf16.mxu0 0
        %5603 = vmatpush1.bf16.msra.mxu0 0
        %5604 = vmatprep.subr.bf16.mxu0 0
        %5605 = vmatpush1.bf16.msra.mxu0 0
        %5606 = vmatprep.subr.bf16.mxu0 0
        %5607 = vmatpush1.bf16.msra.mxu0 0
        %5608 = vmatprep.subr.bf16.mxu0 0
        %5609 = vmatpush1.bf16.msra.mxu0 0
        %5610 = vmatprep.subr.bf16.mxu0 0
        %5611 = vmatpush1.bf16.msra.mxu0 0
        %5612 = vmatprep.mubr.bf16.mxu0 0
        %5613 = vmatmul.mubr.bf16.gmra.mrb[0].mxu0 %v5508
        %v5614 = vpop.f32.mrb[0].mxu0
        %v5615 = vadd.f32 %v5530, %v5614
        %v5616 = vpop.f32.mrb[0].mxu0
        %v5617 = vpop.f32.mrb[0].mxu0
        %v5618 = vadd.f32 %v5530, %v5617
        %v5619 = vpop.f32.mrb[0].mxu0
        %5620 = vdwg.mxu0
        %v5621 = vadd.f32 %v5376, %v5615
        %v5622 = vadd.f32 %v5377, %v5618
        %v5623 = vadd.f32 %v5621, %v4466
        %v5624 = vadd.f32 %v5622, %v4467
        %v5625 = vld [vmem:[%s65] sm:$0x1]
        %v5626 = vld [vmem:[%s67] sm:$0x1]
        %v5627 = vsel %vm4459, %v5623, 0.0
        %5628 = vadd.xlane.f32.xlu0 %v5627
        %v5629 = vpop.xlane.xlu0 %5628
        %v5630 = vsel %vm4457, %v5624, 0.0
        %5631 = vadd.xlane.f32.xlu0 %v5630
        %v5632 = vpop.xlane.xlu0 %5631
        %v5633 = vmul.f32 %v5629, %v4478
        %v5634 = vmul.f32 %v5632, %v4478
        %v5635 = vsub.f32 %v5623, %v5633
        %v5636 = vsub.f32 %v5624, %v5634
        %v5637 = vmul.f32 %v5635, %v5635
        %v5638 = vmul.f32 %v5636, %v5636
        %v5639 = vsel %vm4459, %v5637, 0.0
        %5640 = vadd.xlane.f32.xlu0 %v5639
        %v5641 = vpop.xlane.xlu0 %5640
        %v5642 = vsel %vm4457, %v5638, 0.0
        %5643 = vadd.xlane.f32.xlu0 %v5642
        %v5644 = vpop.xlane.xlu0 %5643
        %v5645 = vmul.f32 %v5641, %v4478
        %v5646 = vmul.f32 %v5644, %v4478
        %v5647 = vadd.f32 %v5645, 1e-05
        %v5648 = vadd.f32 %v5646, 1e-05
        %v5649 = vrsqrt.pop %v5647
        %v5650 = vrsqrt.pop %v5648
        %v5651 = vmul.f32 %v5635, %v5649
        %v5652 = vmul.f32 %v5636, %v5650
        %v5654 = vlaneseq
        %v5655 = vshrl.u32 %v5654, 7
        %v5656 = vsub.s32 0, %v5655
        %v5657 = vrot.slane %v5625, %v5656
        %v5659 = vmul.f32 %v5651, %v5657
        %v5660 = vmul.f32 %v5652, %v5657
        %v5662 = vlaneseq
        %v5663 = vshrl.u32 %v5662, 7
        %v5664 = vsub.s32 0, %v5663
        %v5665 = vrot.slane %v5626, %v5664
        %v5667 = vadd.f32 %v5659, %v5665
        %v5668 = vadd.f32 %v5660, %v5665
        %v5669 = vpack.c.bf16 %v5668, %v5667
        %v5670 = vld [vmem:[%s69] sm:$0xf]
        %v5671 = vld [vmem:[%s69 + $0x4] sm:$0xf]
        %v5672 = vld [vmem:[%s69 + $0x8] sm:$0xf]
        %v5673 = vld [vmem:[%s69 + $0xc] sm:$0xf]
        %v5674 = vld [vmem:[%s69 + $0x10] sm:$0xf]
        %v5675 = vld [vmem:[%s69 + $0x14] sm:$0xf]
        %v5676 = vld [vmem:[%s69 + $0x18] sm:$0xf]
        %v5677 = vld [vmem:[%s69 + $0x1c] sm:$0xf]
        %v5682 = vunpack.c.l.b16 %v5670
        %v5683 = vunpack.c.l.b16 %v5671
        %v5684 = vunpack.c.l.b16 %v5672
        %v5685 = vunpack.c.l.b16 %v5673
        %v5686 = vpack.c.b16 %v5683, %v5682
        %v5687 = vpack.c.b16 %v5685, %v5684
        %v5691 = vsel %vm4459, %v5669, 0
        %5693 = vmatprep.subr.bf16.mxu0 0
        %5694 = vmatpush1.bf16.msra.mxu0 %v5686
        %5695 = vmatprep.subr.bf16.mxu0 0
        %5696 = vmatpush1.bf16.msra.mxu0 %v5687
        %5697 = vmatprep.subr.bf16.mxu0 0
        %5698 = vmatpush1.bf16.msra.mxu0 0
        %5699 = vmatprep.subr.bf16.mxu0 0
        %5700 = vmatpush1.bf16.msra.mxu0 0
        %5701 = vmatprep.subr.bf16.mxu0 0
        %5702 = vmatpush1.bf16.msra.mxu0 0
        %5703 = vmatprep.subr.bf16.mxu0 0
        %5704 = vmatpush1.bf16.msra.mxu0 0
        %5705 = vmatprep.subr.bf16.mxu0 0
        %5706 = vmatpush1.bf16.msra.mxu0 0
        %5707 = vmatprep.subr.bf16.mxu0 0
        %5708 = vmatpush1.bf16.msra.mxu0 0
        %5709 = vmatprep.subr.bf16.mxu0 0
        %5710 = vmatpush1.bf16.msra.mxu0 0
        %5711 = vmatprep.subr.bf16.mxu0 0
        %5712 = vmatpush1.bf16.msra.mxu0 0
        %5713 = vmatprep.subr.bf16.mxu0 0
        %5714 = vmatpush1.bf16.msra.mxu0 0
        %5715 = vmatprep.subr.bf16.mxu0 0
        %5716 = vmatpush1.bf16.msra.mxu0 0
        %5717 = vmatprep.subr.bf16.mxu0 0
        %5718 = vmatpush1.bf16.msra.mxu0 0
        %5719 = vmatprep.subr.bf16.mxu0 0
        %5720 = vmatpush1.bf16.msra.mxu0 0
        %5721 = vmatprep.subr.bf16.mxu0 0
        %5722 = vmatpush1.bf16.msra.mxu0 0
        %5723 = vmatprep.subr.bf16.mxu0 0
        %5724 = vmatpush1.bf16.msra.mxu0 0
        %5725 = vmatprep.mubr.bf16.mxu0 0
        %5726 = vmatmul.mubr.bf16.gmra.mrb[0].mxu0 %v5691
        %v5727 = vpop.f32.mrb[0].mxu0
        %v5728 = vadd.f32 0.0, %v5727
        %v5729 = vpop.f32.mrb[0].mxu0
        %v5730 = vpop.f32.mrb[0].mxu0
        %v5731 = vadd.f32 0.0, %v5730
        %v5732 = vpop.f32.mrb[0].mxu0
        %5733 = vdwg.mxu0
        %v5738 = vunpack.c.l.b16 %v5674
        %v5739 = vunpack.c.l.b16 %v5675
        %v5740 = vunpack.c.l.b16 %v5676
        %v5741 = vunpack.c.l.b16 %v5677
        %v5742 = vpack.c.b16 %v5739, %v5738
        %v5743 = vpack.c.b16 %v5741, %v5740
        %5746 = vmatprep.subr.bf16.mxu0 0
        %5747 = vmatpush1.bf16.msra.mxu0 %v5742
        %5748 = vmatprep.subr.bf16.mxu0 0
        %5749 = vmatpush1.bf16.msra.mxu0 %v5743
        %5750 = vmatprep.subr.bf16.mxu0 0
        %5751 = vmatpush1.bf16.msra.mxu0 0
        %5752 = vmatprep.subr.bf16.mxu0 0
        %5753 = vmatpush1.bf16.msra.mxu0 0
        %5754 = vmatprep.subr.bf16.mxu0 0
        %5755 = vmatpush1.bf16.msra.mxu0 0
        %5756 = vmatprep.subr.bf16.mxu0 0
        %5757 = vmatpush1.bf16.msra.mxu0 0
        %5758 = vmatprep.subr.bf16.mxu0 0
        %5759 = vmatpush1.bf16.msra.mxu0 0
        %5760 = vmatprep.subr.bf16.mxu0 0
        %5761 = vmatpush1.bf16.msra.mxu0 0
        %5762 = vmatprep.subr.bf16.mxu0 0
        %5763 = vmatpush1.bf16.msra.mxu0 0
        %5764 = vmatprep.subr.bf16.mxu0 0
        %5765 = vmatpush1.bf16.msra.mxu0 0
        %5766 = vmatprep.subr.bf16.mxu0 0
        %5767 = vmatpush1.bf16.msra.mxu0 0
        %5768 = vmatprep.subr.bf16.mxu0 0
        %5769 = vmatpush1.bf16.msra.mxu0 0
        %5770 = vmatprep.subr.bf16.mxu0 0
        %5771 = vmatpush1.bf16.msra.mxu0 0
        %5772 = vmatprep.subr.bf16.mxu0 0
        %5773 = vmatpush1.bf16.msra.mxu0 0
        %5774 = vmatprep.subr.bf16.mxu0 0
        %5775 = vmatpush1.bf16.msra.mxu0 0
        %5776 = vmatprep.subr.bf16.mxu0 0
        %5777 = vmatpush1.bf16.msra.mxu0 0
        %5778 = vmatprep.mubr.bf16.mxu0 0
        %5779 = vmatmul.mubr.bf16.gmra.mrb[0].mxu0 %v5691
        %v5780 = vpop.f32.mrb[0].mxu0
        %v5781 = vadd.f32 0.0, %v5780
        %v5782 = vpop.f32.mrb[0].mxu0
        %v5783 = vpop.f32.mrb[0].mxu0
        %v5784 = vadd.f32 0.0, %v5783
        %v5785 = vpop.f32.mrb[0].mxu0
        %5786 = vdwg.mxu0
        %v5787 = vld [vmem:[%s71] sm:$0xf]
        %v5788 = vld [vmem:[%s71 + $0x4] sm:$0xf]
        %v5789 = vld [vmem:[%s71 + $0x8] sm:$0xf]
        %v5790 = vld [vmem:[%s71 + $0xc] sm:$0xf]
        %v5791 = vld [vmem:[%s71 + $0x10] sm:$0xf]
        %v5792 = vld [vmem:[%s71 + $0x14] sm:$0xf]
        %v5793 = vld [vmem:[%s71 + $0x18] sm:$0xf]
        %v5794 = vld [vmem:[%s71 + $0x1c] sm:$0xf]
        %v5799 = vunpack.c.l.b16 %v5787
        %v5800 = vunpack.c.l.b16 %v5788
        %v5801 = vunpack.c.l.b16 %v5789
        %v5802 = vunpack.c.l.b16 %v5790
        %v5803 = vpack.c.b16 %v5800, %v5799
        %v5804 = vpack.c.b16 %v5802, %v5801
        %5807 = vmatprep.subr.bf16.mxu0 0
        %5808 = vmatpush1.bf16.msra.mxu0 %v5803
        %5809 = vmatprep.subr.bf16.mxu0 0
        %5810 = vmatpush1.bf16.msra.mxu0 %v5804
        %5811 = vmatprep.subr.bf16.mxu0 0
        %5812 = vmatpush1.bf16.msra.mxu0 0
        %5813 = vmatprep.subr.bf16.mxu0 0
        %5814 = vmatpush1.bf16.msra.mxu0 0
        %5815 = vmatprep.subr.bf16.mxu0 0
        %5816 = vmatpush1.bf16.msra.mxu0 0
        %5817 = vmatprep.subr.bf16.mxu0 0
        %5818 = vmatpush1.bf16.msra.mxu0 0
        %5819 = vmatprep.subr.bf16.mxu0 0
        %5820 = vmatpush1.bf16.msra.mxu0 0
        %5821 = vmatprep.subr.bf16.mxu0 0
        %5822 = vmatpush1.bf16.msra.mxu0 0
        %5823 = vmatprep.subr.bf16.mxu0 0
        %5824 = vmatpush1.bf16.msra.mxu0 0
        %5825 = vmatprep.subr.bf16.mxu0 0
        %5826 = vmatpush1.bf16.msra.mxu0 0
        %5827 = vmatprep.subr.bf16.mxu0 0
        %5828 = vmatpush1.bf16.msra.mxu0 0
        %5829 = vmatprep.subr.bf16.mxu0 0
        %5830 = vmatpush1.bf16.msra.mxu0 0
        %5831 = vmatprep.subr.bf16.mxu0 0
        %5832 = vmatpush1.bf16.msra.mxu0 0
        %5833 = vmatprep.subr.bf16.mxu0 0
        %5834 = vmatpush1.bf16.msra.mxu0 0
        %5835 = vmatprep.subr.bf16.mxu0 0
        %5836 = vmatpush1.bf16.msra.mxu0 0
        %5837 = vmatprep.subr.bf16.mxu0 0
        %5838 = vmatpush1.bf16.msra.mxu0 0
        %5839 = vmatprep.mubr.bf16.mxu0 0
        %5840 = vmatmul.mubr.bf16.gmra.mrb[0].mxu0 %v5691
        %v5841 = vpop.f32.mrb[0].mxu0
        %v5842 = vadd.f32 0.0, %v5841
        %v5843 = vpop.f32.mrb[0].mxu0
        %v5844 = vpop.f32.mrb[0].mxu0
        %v5845 = vadd.f32 0.0, %v5844
        %v5846 = vpop.f32.mrb[0].mxu0
        %5847 = vdwg.mxu0
        %v5852 = vunpack.c.l.b16 %v5791
        %v5853 = vunpack.c.l.b16 %v5792
        %v5854 = vunpack.c.l.b16 %v5793
        %v5855 = vunpack.c.l.b16 %v5794
        %v5856 = vpack.c.b16 %v5853, %v5852
        %v5857 = vpack.c.b16 %v5855, %v5854
        %5860 = vmatprep.subr.bf16.mxu0 0
        %5861 = vmatpush1.bf16.msra.mxu0 %v5856
        %5862 = vmatprep.subr.bf16.mxu0 0
        %5863 = vmatpush1.bf16.msra.mxu0 %v5857
        %5864 = vmatprep.subr.bf16.mxu0 0
        %5865 = vmatpush1.bf16.msra.mxu0 0
        %5866 = vmatprep.subr.bf16.mxu0 0
        %5867 = vmatpush1.bf16.msra.mxu0 0
        %5868 = vmatprep.subr.bf16.mxu0 0
        %5869 = vmatpush1.bf16.msra.mxu0 0
        %5870 = vmatprep.subr.bf16.mxu0 0
        %5871 = vmatpush1.bf16.msra.mxu0 0
        %5872 = vmatprep.subr.bf16.mxu0 0
        %5873 = vmatpush1.bf16.msra.mxu0 0
        %5874 = vmatprep.subr.bf16.mxu0 0
        %5875 = vmatpush1.bf16.msra.mxu0 0
        %5876 = vmatprep.subr.bf16.mxu0 0
        %5877 = vmatpush1.bf16.msra.mxu0 0
        %5878 = vmatprep.subr.bf16.mxu0 0
        %5879 = vmatpush1.bf16.msra.mxu0 0
        %5880 = vmatprep.subr.bf16.mxu0 0
        %5881 = vmatpush1.bf16.msra.mxu0 0
        %5882 = vmatprep.subr.bf16.mxu0 0
        %5883 = vmatpush1.bf16.msra.mxu0 0
        %5884 = vmatprep.subr.bf16.mxu0 0
        %5885 = vmatpush1.bf16.msra.mxu0 0
        %5886 = vmatprep.subr.bf16.mxu0 0
        %5887 = vmatpush1.bf16.msra.mxu0 0
        %5888 = vmatprep.subr.bf16.mxu0 0
        %5889 = vmatpush1.bf16.msra.mxu0 0
        %5890 = vmatprep.subr.bf16.mxu0 0
        %5891 = vmatpush1.bf16.msra.mxu0 0
        %5892 = vmatprep.mubr.bf16.mxu0 0
        %5893 = vmatmul.mubr.bf16.gmra.mrb[0].mxu0 %v5691
        %v5894 = vpop.f32.mrb[0].mxu0
        %v5895 = vadd.f32 0.0, %v5894
        %v5896 = vpop.f32.mrb[0].mxu0
        %v5897 = vpop.f32.mrb[0].mxu0
        %v5898 = vadd.f32 0.0, %v5897
        %v5899 = vpop.f32.mrb[0].mxu0
        %5900 = vdwg.mxu0
        %v5901 = vld [vmem:[%s73] sm:$0xf]
        %v5902 = vld [vmem:[%s73 + $0x4] sm:$0xf]
        %v5903 = vld [vmem:[%s73 + $0x8] sm:$0xf]
        %v5904 = vld [vmem:[%s73 + $0xc] sm:$0xf]
        %v5905 = vld [vmem:[%s73 + $0x10] sm:$0xf]
        %v5906 = vld [vmem:[%s73 + $0x14] sm:$0xf]
        %v5907 = vld [vmem:[%s73 + $0x18] sm:$0xf]
        %v5908 = vld [vmem:[%s73 + $0x1c] sm:$0xf]
        %v5913 = vunpack.c.l.b16 %v5901
        %v5914 = vunpack.c.l.b16 %v5902
        %v5915 = vunpack.c.l.b16 %v5903
        %v5916 = vunpack.c.l.b16 %v5904
        %v5917 = vpack.c.b16 %v5914, %v5913
        %v5918 = vpack.c.b16 %v5916, %v5915
        %5921 = vmatprep.subr.bf16.mxu0 0
        %5922 = vmatpush1.bf16.msra.mxu0 %v5917
        %5923 = vmatprep.subr.bf16.mxu0 0
        %5924 = vmatpush1.bf16.msra.mxu0 %v5918
        %5925 = vmatprep.subr.bf16.mxu0 0
        %5926 = vmatpush1.bf16.msra.mxu0 0
        %5927 = vmatprep.subr.bf16.mxu0 0
        %5928 = vmatpush1.bf16.msra.mxu0 0
        %5929 = vmatprep.subr.bf16.mxu0 0
        %5930 = vmatpush1.bf16.msra.mxu0 0
        %5931 = vmatprep.subr.bf16.mxu0 0
        %5932 = vmatpush1.bf16.msra.mxu0 0
        %5933 = vmatprep.subr.bf16.mxu0 0
        %5934 = vmatpush1.bf16.msra.mxu0 0
        %5935 = vmatprep.subr.bf16.mxu0 0
        %5936 = vmatpush1.bf16.msra.mxu0 0
        %5937 = vmatprep.subr.bf16.mxu0 0
        %5938 = vmatpush1.bf16.msra.mxu0 0
        %5939 = vmatprep.subr.bf16.mxu0 0
        %5940 = vmatpush1.bf16.msra.mxu0 0
        %5941 = vmatprep.subr.bf16.mxu0 0
        %5942 = vmatpush1.bf16.msra.mxu0 0
        %5943 = vmatprep.subr.bf16.mxu0 0
        %5944 = vmatpush1.bf16.msra.mxu0 0
        %5945 = vmatprep.subr.bf16.mxu0 0
        %5946 = vmatpush1.bf16.msra.mxu0 0
        %5947 = vmatprep.subr.bf16.mxu0 0
        %5948 = vmatpush1.bf16.msra.mxu0 0
        %5949 = vmatprep.subr.bf16.mxu0 0
        %5950 = vmatpush1.bf16.msra.mxu0 0
        %5951 = vmatprep.subr.bf16.mxu0 0
        %5952 = vmatpush1.bf16.msra.mxu0 0
        %5953 = vmatprep.mubr.bf16.mxu0 0
        %5954 = vmatmul.mubr.bf16.gmra.mrb[0].mxu0 %v5691
        %v5955 = vpop.f32.mrb[0].mxu0
        %v5956 = vadd.f32 0.0, %v5955
        %v5957 = vpop.f32.mrb[0].mxu0
        %v5958 = vpop.f32.mrb[0].mxu0
        %v5959 = vadd.f32 0.0, %v5958
        %v5960 = vpop.f32.mrb[0].mxu0
        %5961 = vdwg.mxu0
        %v5966 = vunpack.c.l.b16 %v5905
        %v5967 = vunpack.c.l.b16 %v5906
        %v5968 = vunpack.c.l.b16 %v5907
        %v5969 = vunpack.c.l.b16 %v5908
        %v5970 = vpack.c.b16 %v5967, %v5966
        %v5971 = vpack.c.b16 %v5969, %v5968
        %5974 = vmatprep.subr.bf16.mxu0 0
        %5975 = vmatpush1.bf16.msra.mxu0 %v5970
        %5976 = vmatprep.subr.bf16.mxu0 0
        %5977 = vmatpush1.bf16.msra.mxu0 %v5971
        %5978 = vmatprep.subr.bf16.mxu0 0
        %5979 = vmatpush1.bf16.msra.mxu0 0
        %5980 = vmatprep.subr.bf16.mxu0 0
        %5981 = vmatpush1.bf16.msra.mxu0 0
        %5982 = vmatprep.subr.bf16.mxu0 0
        %5983 = vmatpush1.bf16.msra.mxu0 0
        %5984 = vmatprep.subr.bf16.mxu0 0
        %5985 = vmatpush1.bf16.msra.mxu0 0
        %5986 = vmatprep.subr.bf16.mxu0 0
        %5987 = vmatpush1.bf16.msra.mxu0 0
        %5988 = vmatprep.subr.bf16.mxu0 0
        %5989 = vmatpush1.bf16.msra.mxu0 0
        %5990 = vmatprep.subr.bf16.mxu0 0
        %5991 = vmatpush1.bf16.msra.mxu0 0
        %5992 = vmatprep.subr.bf16.mxu0 0
        %5993 = vmatpush1.bf16.msra.mxu0 0
        %5994 = vmatprep.subr.bf16.mxu0 0
        %5995 = vmatpush1.bf16.msra.mxu0 0
        %5996 = vmatprep.subr.bf16.mxu0 0
        %5997 = vmatpush1.bf16.msra.mxu0 0
        %5998 = vmatprep.subr.bf16.mxu0 0
        %5999 = vmatpush1.bf16.msra.mxu0 0
        %6000 = vmatprep.subr.bf16.mxu0 0
        %6001 = vmatpush1.bf16.msra.mxu0 0
        %6002 = vmatprep.subr.bf16.mxu0 0
        %6003 = vmatpush1.bf16.msra.mxu0 0
        %6004 = vmatprep.subr.bf16.mxu0 0
        %6005 = vmatpush1.bf16.msra.mxu0 0
        %6006 = vmatprep.mubr.bf16.mxu0 0
        %6007 = vmatmul.mubr.bf16.gmra.mrb[0].mxu0 %v5691
        %v6008 = vpop.f32.mrb[0].mxu0
        %v6009 = vadd.f32 0.0, %v6008
        %v6010 = vpop.f32.mrb[0].mxu0
        %v6011 = vpop.f32.mrb[0].mxu0
        %v6012 = vadd.f32 0.0, %v6011
        %v6013 = vpop.f32.mrb[0].mxu0
        %6014 = vdwg.mxu0
        %v6016 = vsel %vm4861, %v5728, 0
        %v6019 = vsel %vm4861, %v5731, 0
        %v6022 = vsel %vm4861, %v5842, 0
        %v6025 = vsel %vm4861, %v5845, 0
        %6027 = vmatprep.subr.mxu0 0.0
        %6028 = vmatpush1.xpose.msra.mxu0 %v6022
        %6029 = vmatprep.subr.mxu0 0.0
        %6030 = vmatpush1.xpose.msra.mxu0 %v6025
        %6031 = vmatprep.subr.mxu0 0.0
        %6032 = vmatpush1.xpose.msra.mxu0 0.0
        %6033 = vmatprep.subr.mxu0 0.0
        %6034 = vmatpush1.xpose.msra.mxu0 0.0
        %6035 = vmatprep.subr.mxu0 0.0
        %6036 = vmatpush1.xpose.msra.mxu0 0.0
        %6037 = vmatprep.subr.mxu0 0.0
        %6038 = vmatpush1.xpose.msra.mxu0 0.0
        %6039 = vmatprep.subr.mxu0 0.0
        %6040 = vmatpush1.xpose.msra.mxu0 0.0
        %6041 = vmatprep.subr.mxu0 0.0
        %6042 = vmatpush1.xpose.msra.mxu0 0.0
        %6043 = vmatprep.subr.mxu0 0.0
        %6044 = vmatpush1.xpose.msra.mxu0 0.0
        %6045 = vmatprep.subr.mxu0 0.0
        %6046 = vmatpush1.xpose.msra.mxu0 0.0
        %6047 = vmatprep.subr.mxu0 0.0
        %6048 = vmatpush1.xpose.msra.mxu0 0.0
        %6049 = vmatprep.subr.mxu0 0.0
        %6050 = vmatpush1.xpose.msra.mxu0 0.0
        %6051 = vmatprep.subr.mxu0 0.0
        %6052 = vmatpush1.xpose.msra.mxu0 0.0
        %6053 = vmatprep.subr.mxu0 0.0
        %6054 = vmatpush1.xpose.msra.mxu0 0.0
        %6055 = vmatprep.subr.mxu0 0.0
        %6056 = vmatpush1.xpose.msra.mxu0 0.0
        %6057 = vmatprep.subr.mxu0 0.0
        %6058 = vmatpush1.xpose.msra.mxu0 0.0
        %6059 = vmatprep.subr.mxu0 0.0
        %6060 = vmatpush1.xpose.msra.mxu0 0.0
        %6061 = vmatprep.subr.mxu0 0.0
        %6062 = vmatpush1.xpose.msra.mxu0 0.0
        %6063 = vmatprep.subr.mxu0 0.0
        %6064 = vmatpush1.xpose.msra.mxu0 0.0
        %6065 = vmatprep.subr.mxu0 0.0
        %6066 = vmatpush1.xpose.msra.mxu0 0.0
        %6067 = vmatprep.subr.mxu0 0.0
        %6068 = vmatpush1.xpose.msra.mxu0 0.0
        %6069 = vmatprep.subr.mxu0 0.0
        %6070 = vmatpush1.xpose.msra.mxu0 0.0
        %6071 = vmatprep.subr.mxu0 0.0
        %6072 = vmatpush1.xpose.msra.mxu0 0.0
        %6073 = vmatprep.subr.mxu0 0.0
        %6074 = vmatpush1.xpose.msra.mxu0 0.0
        %6075 = vmatprep.subr.mxu0 0.0
        %6076 = vmatpush1.xpose.msra.mxu0 0.0
        %6077 = vmatprep.subr.mxu0 0.0
        %6078 = vmatpush1.xpose.msra.mxu0 0.0
        %6079 = vmatprep.subr.mxu0 0.0
        %6080 = vmatpush1.xpose.msra.mxu0 0.0
        %6081 = vmatprep.subr.mxu0 0.0
        %6082 = vmatpush1.xpose.msra.mxu0 0.0
        %6083 = vmatprep.subr.mxu0 0.0
        %6084 = vmatpush1.xpose.msra.mxu0 0.0
        %6085 = vmatprep.subr.mxu0 0.0
        %6086 = vmatpush1.xpose.msra.mxu0 0.0
        %6087 = vmatprep.subr.mxu0 0.0
        %6088 = vmatpush1.xpose.msra.mxu0 0.0
        %6089 = vmatprep.subr.mxu0 0.0
        %6090 = vmatpush1.xpose.msra.mxu0 0.0
        %6091 = vmatprep.mubr.f32.mxu0 0.0
        %6092 = vmatmul.mubr.f32.gmra.mrb[0].mxu0 %v6016
        %v6093 = vpop.f32.mrb[0].mxu0
        %v6094 = vadd.f32 0.0, %v6093
        %v6095 = vpop.f32.mrb[0].mxu0
        %6096 = vmatprep.mubr.f32.mxu0 0.0
        %6097 = vmatmul.mubr.f32.gmra.mrb[0].mxu0 %v6019
        %v6098 = vpop.f32.mrb[0].mxu0
        %v6099 = vadd.f32 0.0, %v6098
        %v6100 = vpop.f32.mrb[0].mxu0
        %6101 = vdwg.mxu0
        %v6103 = vsel %vm4861, %v5781, 0
        %v6106 = vsel %vm4861, %v5784, 0
        %v6109 = vsel %vm4861, %v5895, 0
        %v6112 = vsel %vm4861, %v5898, 0
        %6114 = vmatprep.subr.mxu0 0.0
        %6115 = vmatpush1.xpose.msra.mxu0 %v6109
        %6116 = vmatprep.subr.mxu0 0.0
        %6117 = vmatpush1.xpose.msra.mxu0 %v6112
        %6118 = vmatprep.subr.mxu0 0.0
        %6119 = vmatpush1.xpose.msra.mxu0 0.0
        %6120 = vmatprep.subr.mxu0 0.0
        %6121 = vmatpush1.xpose.msra.mxu0 0.0
        %6122 = vmatprep.subr.mxu0 0.0
        %6123 = vmatpush1.xpose.msra.mxu0 0.0
        %6124 = vmatprep.subr.mxu0 0.0
        %6125 = vmatpush1.xpose.msra.mxu0 0.0
        %6126 = vmatprep.subr.mxu0 0.0
        %6127 = vmatpush1.xpose.msra.mxu0 0.0
        %6128 = vmatprep.subr.mxu0 0.0
        %6129 = vmatpush1.xpose.msra.mxu0 0.0
        %6130 = vmatprep.subr.mxu0 0.0
        %6131 = vmatpush1.xpose.msra.mxu0 0.0
        %6132 = vmatprep.subr.mxu0 0.0
        %6133 = vmatpush1.xpose.msra.mxu0 0.0
        %6134 = vmatprep.subr.mxu0 0.0
        %6135 = vmatpush1.xpose.msra.mxu0 0.0
        %6136 = vmatprep.subr.mxu0 0.0
        %6137 = vmatpush1.xpose.msra.mxu0 0.0
        %6138 = vmatprep.subr.mxu0 0.0
        %6139 = vmatpush1.xpose.msra.mxu0 0.0
        %6140 = vmatprep.subr.mxu0 0.0
        %6141 = vmatpush1.xpose.msra.mxu0 0.0
        %6142 = vmatprep.subr.mxu0 0.0
        %6143 = vmatpush1.xpose.msra.mxu0 0.0
        %6144 = vmatprep.subr.mxu0 0.0
        %6145 = vmatpush1.xpose.msra.mxu0 0.0
        %6146 = vmatprep.subr.mxu0 0.0
        %6147 = vmatpush1.xpose.msra.mxu0 0.0
        %6148 = vmatprep.subr.mxu0 0.0
        %6149 = vmatpush1.xpose.msra.mxu0 0.0
        %6150 = vmatprep.subr.mxu0 0.0
        %6151 = vmatpush1.xpose.msra.mxu0 0.0
        %6152 = vmatprep.subr.mxu0 0.0
        %6153 = vmatpush1.xpose.msra.mxu0 0.0
        %6154 = vmatprep.subr.mxu0 0.0
        %6155 = vmatpush1.xpose.msra.mxu0 0.0
        %6156 = vmatprep.subr.mxu0 0.0
        %6157 = vmatpush1.xpose.msra.mxu0 0.0
        %6158 = vmatprep.subr.mxu0 0.0
        %6159 = vmatpush1.xpose.msra.mxu0 0.0
        %6160 = vmatprep.subr.mxu0 0.0
        %6161 = vmatpush1.xpose.msra.mxu0 0.0
        %6162 = vmatprep.subr.mxu0 0.0
        %6163 = vmatpush1.xpose.msra.mxu0 0.0
        %6164 = vmatprep.subr.mxu0 0.0
        %6165 = vmatpush1.xpose.msra.mxu0 0.0
        %6166 = vmatprep.subr.mxu0 0.0
        %6167 = vmatpush1.xpose.msra.mxu0 0.0
        %6168 = vmatprep.subr.mxu0 0.0
        %6169 = vmatpush1.xpose.msra.mxu0 0.0
        %6170 = vmatprep.subr.mxu0 0.0
        %6171 = vmatpush1.xpose.msra.mxu0 0.0
        %6172 = vmatprep.subr.mxu0 0.0
        %6173 = vmatpush1.xpose.msra.mxu0 0.0
        %6174 = vmatprep.subr.mxu0 0.0
        %6175 = vmatpush1.xpose.msra.mxu0 0.0
        %6176 = vmatprep.subr.mxu0 0.0
        %6177 = vmatpush1.xpose.msra.mxu0 0.0
        %6178 = vmatprep.mubr.f32.mxu0 0.0
        %6179 = vmatmul.mubr.f32.gmra.mrb[0].mxu0 %v6103
        %v6180 = vpop.f32.mrb[0].mxu0
        %v6181 = vadd.f32 0.0, %v6180
        %v6182 = vpop.f32.mrb[0].mxu0
        %6183 = vmatprep.mubr.f32.mxu0 0.0
        %6184 = vmatmul.mubr.f32.gmra.mrb[0].mxu0 %v6106
        %v6185 = vpop.f32.mrb[0].mxu0
        %v6186 = vadd.f32 0.0, %v6185
        %v6187 = vpop.f32.mrb[0].mxu0
        %6188 = vdwg.mxu0
        %v6189 = vmul.f32 %v6094, 0.25
        %v6190 = vmul.f32 %v6099, 0.25
        %v6191 = vmul.f32 %v6181, 0.25
        %v6192 = vmul.f32 %v6186, 0.25
        %v6193 = vsel %vm5040, %v6189, -inf
        %6194 = vmax.xlane.f32.xlu0 %v6193
        %v6195 = vpop.xlane.xlu0 %6194
        %v6196 = vsel %vm5044, %v6190, -inf
        %6197 = vmax.xlane.f32.xlu0 %v6196
        %v6198 = vpop.xlane.xlu0 %6197
        %v6199 = vsel %vm5040, %v6191, -inf
        %6200 = vmax.xlane.f32.xlu0 %v6199
        %v6201 = vpop.xlane.xlu0 %6200
        %v6202 = vsel %vm5044, %v6192, -inf
        %6203 = vmax.xlane.f32.xlu0 %v6202
        %v6204 = vpop.xlane.xlu0 %6203
        %v6205 = vsub.f32 %v6189, %v6195
        %v6206 = vsub.f32 %v6190, %v6198
        %v6207 = vsub.f32 %v6191, %v6201
        %v6208 = vsub.f32 %v6192, %v6204
        %v6209 = vmul.f32 %v6205, 1.442695
        %v6210 = vpow.pop %v6209
        %v6211 = vmul.f32 %v6206, 1.442695
        %v6212 = vpow.pop %v6211
        %v6213 = vmul.f32 %v6207, 1.442695
        %v6214 = vpow.pop %v6213
        %v6215 = vmul.f32 %v6208, 1.442695
        %v6216 = vpow.pop %v6215
        %v6217 = vsel %vm5040, %v6210, 0.0
        %6218 = vadd.xlane.f32.xlu0 %v6217
        %v6219 = vpop.xlane.xlu0 %6218
        %v6220 = vsel %vm5044, %v6212, 0.0
        %6221 = vadd.xlane.f32.xlu0 %v6220
        %v6222 = vpop.xlane.xlu0 %6221
        %v6223 = vsel %vm5040, %v6214, 0.0
        %6224 = vadd.xlane.f32.xlu0 %v6223
        %v6225 = vpop.xlane.xlu0 %6224
        %v6226 = vsel %vm5044, %v6216, 0.0
        %6227 = vadd.xlane.f32.xlu0 %v6226
        %v6228 = vpop.xlane.xlu0 %6227
        %v6229 = vrcp.pop %v6219
        %v6230 = vrcp.pop %v6222
        %v6231 = vrcp.pop %v6225
        %v6232 = vrcp.pop %v6228
        %v6233 = vmul.f32 %v6210, %v6229
        %v6234 = vmul.f32 %v6212, %v6230
        %v6235 = vmul.f32 %v6214, %v6231
        %v6236 = vmul.f32 %v6216, %v6232
        %v6238 = vsel %vm5040, %v6233, 0
        %v6241 = vsel %vm5040, %v6234, 0
        %v6244 = vsel %vm5092, %v5959, 0
        %6246 = vmatprep.subr.mxu0 0.0
        %6247 = vmatpush1.msra.mxu0 %v5956
        %6248 = vmatprep.subr.mxu0 0.0
        %6249 = vmatpush1.msra.mxu0 %v6244
        %6250 = vmatprep.subr.mxu0 0.0
        %6251 = vmatpush1.msra.mxu0 0.0
        %6252 = vmatprep.subr.mxu0 0.0
        %6253 = vmatpush1.msra.mxu0 0.0
        %6254 = vmatprep.subr.mxu0 0.0
        %6255 = vmatpush1.msra.mxu0 0.0
        %6256 = vmatprep.subr.mxu0 0.0
        %6257 = vmatpush1.msra.mxu0 0.0
        %6258 = vmatprep.subr.mxu0 0.0
        %6259 = vmatpush1.msra.mxu0 0.0
        %6260 = vmatprep.subr.mxu0 0.0
        %6261 = vmatpush1.msra.mxu0 0.0
        %6262 = vmatprep.subr.mxu0 0.0
        %6263 = vmatpush1.msra.mxu0 0.0
        %6264 = vmatprep.subr.mxu0 0.0
        %6265 = vmatpush1.msra.mxu0 0.0
        %6266 = vmatprep.subr.mxu0 0.0
        %6267 = vmatpush1.msra.mxu0 0.0
        %6268 = vmatprep.subr.mxu0 0.0
        %6269 = vmatpush1.msra.mxu0 0.0
        %6270 = vmatprep.subr.mxu0 0.0
        %6271 = vmatpush1.msra.mxu0 0.0
        %6272 = vmatprep.subr.mxu0 0.0
        %6273 = vmatpush1.msra.mxu0 0.0
        %6274 = vmatprep.subr.mxu0 0.0
        %6275 = vmatpush1.msra.mxu0 0.0
        %6276 = vmatprep.subr.mxu0 0.0
        %6277 = vmatpush1.msra.mxu0 0.0
        %6278 = vmatprep.subr.mxu0 0.0
        %6279 = vmatpush1.msra.mxu0 0.0
        %6280 = vmatprep.subr.mxu0 0.0
        %6281 = vmatpush1.msra.mxu0 0.0
        %6282 = vmatprep.subr.mxu0 0.0
        %6283 = vmatpush1.msra.mxu0 0.0
        %6284 = vmatprep.subr.mxu0 0.0
        %6285 = vmatpush1.msra.mxu0 0.0
        %6286 = vmatprep.subr.mxu0 0.0
        %6287 = vmatpush1.msra.mxu0 0.0
        %6288 = vmatprep.subr.mxu0 0.0
        %6289 = vmatpush1.msra.mxu0 0.0
        %6290 = vmatprep.subr.mxu0 0.0
        %6291 = vmatpush1.msra.mxu0 0.0
        %6292 = vmatprep.subr.mxu0 0.0
        %6293 = vmatpush1.msra.mxu0 0.0
        %6294 = vmatprep.subr.mxu0 0.0
        %6295 = vmatpush1.msra.mxu0 0.0
        %6296 = vmatprep.subr.mxu0 0.0
        %6297 = vmatpush1.msra.mxu0 0.0
        %6298 = vmatprep.subr.mxu0 0.0
        %6299 = vmatpush1.msra.mxu0 0.0
        %6300 = vmatprep.subr.mxu0 0.0
        %6301 = vmatpush1.msra.mxu0 0.0
        %6302 = vmatprep.subr.mxu0 0.0
        %6303 = vmatpush1.msra.mxu0 0.0
        %6304 = vmatprep.subr.mxu0 0.0
        %6305 = vmatpush1.msra.mxu0 0.0
        %6306 = vmatprep.subr.mxu0 0.0
        %6307 = vmatpush1.msra.mxu0 0.0
        %6308 = vmatprep.subr.mxu0 0.0
        %6309 = vmatpush1.msra.mxu0 0.0
        %6310 = vmatprep.mubr.f32.mxu0 0.0
        %6311 = vmatmul.mubr.f32.gmra.mrb[0].mxu0 %v6238
        %v6312 = vpop.f32.mrb[0].mxu0
        %v6313 = vadd.f32 0.0, %v6312
        %v6314 = vpop.f32.mrb[0].mxu0
        %6315 = vmatprep.mubr.f32.mxu0 0.0
        %6316 = vmatmul.mubr.f32.gmra.mrb[0].mxu0 %v6241
        %v6317 = vpop.f32.mrb[0].mxu0
        %v6318 = vadd.f32 0.0, %v6317
        %v6319 = vpop.f32.mrb[0].mxu0
        %6320 = vdwg.mxu0
        %v6322 = vsel %vm5040, %v6235, 0
        %v6325 = vsel %vm5040, %v6236, 0
        %v6328 = vsel %vm5092, %v6012, 0
        %6330 = vmatprep.subr.mxu0 0.0
        %6331 = vmatpush1.msra.mxu0 %v6009
        %6332 = vmatprep.subr.mxu0 0.0
        %6333 = vmatpush1.msra.mxu0 %v6328
        %6334 = vmatprep.subr.mxu0 0.0
        %6335 = vmatpush1.msra.mxu0 0.0
        %6336 = vmatprep.subr.mxu0 0.0
        %6337 = vmatpush1.msra.mxu0 0.0
        %6338 = vmatprep.subr.mxu0 0.0
        %6339 = vmatpush1.msra.mxu0 0.0
        %6340 = vmatprep.subr.mxu0 0.0
        %6341 = vmatpush1.msra.mxu0 0.0
        %6342 = vmatprep.subr.mxu0 0.0
        %6343 = vmatpush1.msra.mxu0 0.0
        %6344 = vmatprep.subr.mxu0 0.0
        %6345 = vmatpush1.msra.mxu0 0.0
        %6346 = vmatprep.subr.mxu0 0.0
        %6347 = vmatpush1.msra.mxu0 0.0
        %6348 = vmatprep.subr.mxu0 0.0
        %6349 = vmatpush1.msra.mxu0 0.0
        %6350 = vmatprep.subr.mxu0 0.0
        %6351 = vmatpush1.msra.mxu0 0.0
        %6352 = vmatprep.subr.mxu0 0.0
        %6353 = vmatpush1.msra.mxu0 0.0
        %6354 = vmatprep.subr.mxu0 0.0
        %6355 = vmatpush1.msra.mxu0 0.0
        %6356 = vmatprep.subr.mxu0 0.0
        %6357 = vmatpush1.msra.mxu0 0.0
        %6358 = vmatprep.subr.mxu0 0.0
        %6359 = vmatpush1.msra.mxu0 0.0
        %6360 = vmatprep.subr.mxu0 0.0
        %6361 = vmatpush1.msra.mxu0 0.0
        %6362 = vmatprep.subr.mxu0 0.0
        %6363 = vmatpush1.msra.mxu0 0.0
        %6364 = vmatprep.subr.mxu0 0.0
        %6365 = vmatpush1.msra.mxu0 0.0
        %6366 = vmatprep.subr.mxu0 0.0
        %6367 = vmatpush1.msra.mxu0 0.0
        %6368 = vmatprep.subr.mxu0 0.0
        %6369 = vmatpush1.msra.mxu0 0.0
        %6370 = vmatprep.subr.mxu0 0.0
        %6371 = vmatpush1.msra.mxu0 0.0
        %6372 = vmatprep.subr.mxu0 0.0
        %6373 = vmatpush1.msra.mxu0 0.0
        %6374 = vmatprep.subr.mxu0 0.0
        %6375 = vmatpush1.msra.mxu0 0.0
        %6376 = vmatprep.subr.mxu0 0.0
        %6377 = vmatpush1.msra.mxu0 0.0
        %6378 = vmatprep.subr.mxu0 0.0
        %6379 = vmatpush1.msra.mxu0 0.0
        %6380 = vmatprep.subr.mxu0 0.0
        %6381 = vmatpush1.msra.mxu0 0.0
        %6382 = vmatprep.subr.mxu0 0.0
        %6383 = vmatpush1.msra.mxu0 0.0
        %6384 = vmatprep.subr.mxu0 0.0
        %6385 = vmatpush1.msra.mxu0 0.0
        %6386 = vmatprep.subr.mxu0 0.0
        %6387 = vmatpush1.msra.mxu0 0.0
        %6388 = vmatprep.subr.mxu0 0.0
        %6389 = vmatpush1.msra.mxu0 0.0
        %6390 = vmatprep.subr.mxu0 0.0
        %6391 = vmatpush1.msra.mxu0 0.0
        %6392 = vmatprep.subr.mxu0 0.0
        %6393 = vmatpush1.msra.mxu0 0.0
        %6394 = vmatprep.mubr.f32.mxu0 0.0
        %6395 = vmatmul.mubr.f32.gmra.mrb[0].mxu0 %v6322
        %v6396 = vpop.f32.mrb[0].mxu0
        %v6397 = vadd.f32 0.0, %v6396
        %v6398 = vpop.f32.mrb[0].mxu0
        %6399 = vmatprep.mubr.f32.mxu0 0.0
        %6400 = vmatmul.mubr.f32.gmra.mrb[0].mxu0 %v6325
        %v6401 = vpop.f32.mrb[0].mxu0
        %v6402 = vadd.f32 0.0, %v6401
        %v6403 = vpop.f32.mrb[0].mxu0
        %6404 = vdwg.mxu0
        %v6405 = vpack.c.bf16 %v6318, %v6313
        %v6406 = vpack.c.bf16 %v6402, %v6397
        %v6407 = vld [vmem:[%s75] sm:$0xf]
        %v6408 = vld [vmem:[%s75 + $0x4] sm:$0xf]
        %v6409 = vld [vmem:[%s75 + $0x8] sm:$0xf]
        %v6410 = vld [vmem:[%s75 + $0xc] sm:$0xf]
        %v6413 = vunpack.c.l.b16 %v6407
        %v6414 = vunpack.c.l.b16 %v6408
        %v6415 = vpack.c.b16 %v6414, %v6413
        %v6418 = vsel %vm4861, %v6405, 0
        %6420 = vmatprep.subr.bf16.mxu0 0
        %6421 = vmatpush1.bf16.msra.mxu0 %v6415
        %6422 = vmatprep.subr.bf16.mxu0 0
        %6423 = vmatpush1.bf16.msra.mxu0 0
        %6424 = vmatprep.subr.bf16.mxu0 0
        %6425 = vmatpush1.bf16.msra.mxu0 0
        %6426 = vmatprep.subr.bf16.mxu0 0
        %6427 = vmatpush1.bf16.msra.mxu0 0
        %6428 = vmatprep.subr.bf16.mxu0 0
        %6429 = vmatpush1.bf16.msra.mxu0 0
        %6430 = vmatprep.subr.bf16.mxu0 0
        %6431 = vmatpush1.bf16.msra.mxu0 0
        %6432 = vmatprep.subr.bf16.mxu0 0
        %6433 = vmatpush1.bf16.msra.mxu0 0
        %6434 = vmatprep.subr.bf16.mxu0 0
        %6435 = vmatpush1.bf16.msra.mxu0 0
        %6436 = vmatprep.subr.bf16.mxu0 0
        %6437 = vmatpush1.bf16.msra.mxu0 0
        %6438 = vmatprep.subr.bf16.mxu0 0
        %6439 = vmatpush1.bf16.msra.mxu0 0
        %6440 = vmatprep.subr.bf16.mxu0 0
        %6441 = vmatpush1.bf16.msra.mxu0 0
        %6442 = vmatprep.subr.bf16.mxu0 0
        %6443 = vmatpush1.bf16.msra.mxu0 0
        %6444 = vmatprep.subr.bf16.mxu0 0
        %6445 = vmatpush1.bf16.msra.mxu0 0
        %6446 = vmatprep.subr.bf16.mxu0 0
        %6447 = vmatpush1.bf16.msra.mxu0 0
        %6448 = vmatprep.subr.bf16.mxu0 0
        %6449 = vmatpush1.bf16.msra.mxu0 0
        %6450 = vmatprep.subr.bf16.mxu0 0
        %6451 = vmatpush1.bf16.msra.mxu0 0
        %6452 = vmatprep.mubr.bf16.mxu0 0
        %6453 = vmatmul.mubr.bf16.gmra.mrb[0].mxu0 %v6418
        %v6454 = vpop.f32.mrb[0].mxu0
        %v6455 = vadd.f32 0.0, %v6454
        %v6456 = vpop.f32.mrb[0].mxu0
        %v6457 = vpop.f32.mrb[0].mxu0
        %v6458 = vadd.f32 0.0, %v6457
        %v6459 = vpop.f32.mrb[0].mxu0
        %6460 = vdwg.mxu0
        %v6463 = vunpack.c.l.b16 %v6409
        %v6464 = vunpack.c.l.b16 %v6410
        %v6465 = vpack.c.b16 %v6464, %v6463
        %v6468 = vsel %vm4861, %v6406, 0
        %6470 = vmatprep.subr.bf16.mxu0 0
        %6471 = vmatpush1.bf16.msra.mxu0 %v6465
        %6472 = vmatprep.subr.bf16.mxu0 0
        %6473 = vmatpush1.bf16.msra.mxu0 0
        %6474 = vmatprep.subr.bf16.mxu0 0
        %6475 = vmatpush1.bf16.msra.mxu0 0
        %6476 = vmatprep.subr.bf16.mxu0 0
        %6477 = vmatpush1.bf16.msra.mxu0 0
        %6478 = vmatprep.subr.bf16.mxu0 0
        %6479 = vmatpush1.bf16.msra.mxu0 0
        %6480 = vmatprep.subr.bf16.mxu0 0
        %6481 = vmatpush1.bf16.msra.mxu0 0
        %6482 = vmatprep.subr.bf16.mxu0 0
        %6483 = vmatpush1.bf16.msra.mxu0 0
        %6484 = vmatprep.subr.bf16.mxu0 0
        %6485 = vmatpush1.bf16.msra.mxu0 0
        %6486 = vmatprep.subr.bf16.mxu0 0
        %6487 = vmatpush1.bf16.msra.mxu0 0
        %6488 = vmatprep.subr.bf16.mxu0 0
        %6489 = vmatpush1.bf16.msra.mxu0 0
        %6490 = vmatprep.subr.bf16.mxu0 0
        %6491 = vmatpush1.bf16.msra.mxu0 0
        %6492 = vmatprep.subr.bf16.mxu0 0
        %6493 = vmatpush1.bf16.msra.mxu0 0
        %6494 = vmatprep.subr.bf16.mxu0 0
        %6495 = vmatpush1.bf16.msra.mxu0 0
        %6496 = vmatprep.subr.bf16.mxu0 0
        %6497 = vmatpush1.bf16.msra.mxu0 0
        %6498 = vmatprep.subr.bf16.mxu0 0
        %6499 = vmatpush1.bf16.msra.mxu0 0
        %6500 = vmatprep.subr.bf16.mxu0 0
        %6501 = vmatpush1.bf16.msra.mxu0 0
        %6502 = vmatprep.mubr.bf16.mxu0 0
        %6503 = vmatmul.mubr.bf16.gmra.mrb[0].mxu0 %v6468
        %v6504 = vpop.f32.mrb[0].mxu0
        %v6505 = vadd.f32 0.0, %v6504
        %v6506 = vpop.f32.mrb[0].mxu0
        %v6507 = vpop.f32.mrb[0].mxu0
        %v6508 = vadd.f32 0.0, %v6507
        %v6509 = vpop.f32.mrb[0].mxu0
        %6510 = vdwg.mxu0
        %v6511 = vsel %vm4459, %v6455, 0.0
        %v6512 = vsel %vm4459, %v6505, 0.0
        %v6513 = vadd.f32 %v6511, %v6512
        %v6514 = vsel %vm4457, %v6458, 0.0
        %v6515 = vsel %vm4457, %v6508, 0.0
        %v6516 = vadd.f32 %v6514, %v6515
        %v6517 = vadd.f32 %v5623, %v6513
        %v6518 = vadd.f32 %v5624, %v6516
        %v6519 = vld [vmem:[%s77] sm:$0x1]
        %v6521 = vlaneseq
        %v6522 = vshrl.u32 %v6521, 7
        %v6523 = vsub.s32 0, %v6522
        %v6524 = vrot.slane %v6519, %v6523
        %v6526 = vadd.f32 %v6517, %v6524
        %v6527 = vadd.f32 %v6518, %v6524
        %v6528 = vld [vmem:[%s79] sm:$0x1]
        %v6529 = vld [vmem:[%s81] sm:$0x1]
        %v6530 = vsel %vm4459, %v6526, 0.0
        %6531 = vadd.xlane.f32.xlu0 %v6530
        %v6532 = vpop.xlane.xlu0 %6531
        %v6533 = vsel %vm4457, %v6527, 0.0
        %6534 = vadd.xlane.f32.xlu0 %v6533
        %v6535 = vpop.xlane.xlu0 %6534
        %v6536 = vmul.f32 %v6532, %v4478
        %v6537 = vmul.f32 %v6535, %v4478
        %v6538 = vsub.f32 %v6526, %v6536
        %v6539 = vsub.f32 %v6527, %v6537
        %v6540 = vmul.f32 %v6538, %v6538
        %v6541 = vmul.f32 %v6539, %v6539
        %v6542 = vsel %vm4459, %v6540, 0.0
        %6543 = vadd.xlane.f32.xlu0 %v6542
        %v6544 = vpop.xlane.xlu0 %6543
        %v6545 = vsel %vm4457, %v6541, 0.0
        %6546 = vadd.xlane.f32.xlu0 %v6545
        %v6547 = vpop.xlane.xlu0 %6546
        %v6548 = vmul.f32 %v6544, %v4478
        %v6549 = vmul.f32 %v6547, %v4478
        %v6550 = vadd.f32 %v6548, 1e-05
        %v6551 = vadd.f32 %v6549, 1e-05
        %v6552 = vrsqrt.pop %v6550
        %v6553 = vrsqrt.pop %v6551
        %v6554 = vmul.f32 %v6538, %v6552
        %v6555 = vmul.f32 %v6539, %v6553
        %v6557 = vlaneseq
        %v6558 = vshrl.u32 %v6557, 7
        %v6559 = vsub.s32 0, %v6558
        %v6560 = vrot.slane %v6528, %v6559
        %v6562 = vmul.f32 %v6554, %v6560
        %v6563 = vmul.f32 %v6555, %v6560
        %v6565 = vlaneseq
        %v6566 = vshrl.u32 %v6565, 7
        %v6567 = vsub.s32 0, %v6566
        %v6568 = vrot.slane %v6529, %v6567
        %v6570 = vadd.f32 %v6562, %v6568
        %v6571 = vadd.f32 %v6563, %v6568
        %v6572 = vpack.c.bf16 %v6571, %v6570
        %v6573 = vld [vmem:[%s83] sm:$0xf]
        %v6574 = vld [vmem:[%s83 + $0x4] sm:$0xf]
        %v6575 = vld [vmem:[%s83 + $0x8] sm:$0xf]
        %v6576 = vld [vmem:[%s83 + $0xc] sm:$0xf]
        %v6577 = vld [vmem:[%s85] sm:$0x1]
        %v6579 = vlaneseq
        %v6580 = vshrl.u32 %v6579, 7
        %v6581 = vsub.s32 0, %v6580
        %v6582 = vrot.slane %v6577, %v6581
        %v6588 = vunpack.c.l.b16 %v6573
        %v6589 = vunpack.c.l.b16 %v6574
        %v6590 = vunpack.c.l.b16 %v6575
        %v6591 = vunpack.c.l.b16 %v6576
        %v6592 = vpack.c.b16 %v6589, %v6588
        %v6593 = vpack.c.b16 %v6591, %v6590
        %v6597 = vsel %vm4459, %v6572, 0
        %6599 = vmatprep.subr.bf16.mxu0 0
        %6600 = vmatpush1.bf16.msra.mxu0 %v6592
        %6601 = vmatprep.subr.bf16.mxu0 0
        %6602 = vmatpush1.bf16.msra.mxu0 %v6593
        %6603 = vmatprep.subr.bf16.mxu0 0
        %6604 = vmatpush1.bf16.msra.mxu0 0
        %6605 = vmatprep.subr.bf16.mxu0 0
        %6606 = vmatpush1.bf16.msra.mxu0 0
        %6607 = vmatprep.subr.bf16.mxu0 0
        %6608 = vmatpush1.bf16.msra.mxu0 0
        %6609 = vmatprep.subr.bf16.mxu0 0
        %6610 = vmatpush1.bf16.msra.mxu0 0
        %6611 = vmatprep.subr.bf16.mxu0 0
        %6612 = vmatpush1.bf16.msra.mxu0 0
        %6613 = vmatprep.subr.bf16.mxu0 0
        %6614 = vmatpush1.bf16.msra.mxu0 0
        %6615 = vmatprep.subr.bf16.mxu0 0
        %6616 = vmatpush1.bf16.msra.mxu0 0
        %6617 = vmatprep.subr.bf16.mxu0 0
        %6618 = vmatpush1.bf16.msra.mxu0 0
        %6619 = vmatprep.subr.bf16.mxu0 0
        %6620 = vmatpush1.bf16.msra.mxu0 0
        %6621 = vmatprep.subr.bf16.mxu0 0
        %6622 = vmatpush1.bf16.msra.mxu0 0
        %6623 = vmatprep.subr.bf16.mxu0 0
        %6624 = vmatpush1.bf16.msra.mxu0 0
        %6625 = vmatprep.subr.bf16.mxu0 0
        %6626 = vmatpush1.bf16.msra.mxu0 0
        %6627 = vmatprep.subr.bf16.mxu0 0
        %6628 = vmatpush1.bf16.msra.mxu0 0
        %6629 = vmatprep.subr.bf16.mxu0 0
        %6630 = vmatpush1.bf16.msra.mxu0 0
        %6631 = vmatprep.mubr.bf16.mxu0 0
        %6632 = vmatmul.mubr.bf16.gmra.mrb[0].mxu0 %v6597
        %v6633 = vpop.f32.mrb[0].mxu0
        %v6634 = vadd.f32 %v6582, %v6633
        %v6635 = vpop.f32.mrb[0].mxu0
        %v6636 = vpop.f32.mrb[0].mxu0
        %v6637 = vadd.f32 %v6582, %v6636
        %v6638 = vpop.f32.mrb[0].mxu0
        %6639 = vdwg.mxu0
        %v6640 = vmul.f32 %v6634, 0.5
        %v6641 = vmul.f32 %v6637, 0.5
        %v6642 = vmul.f32 %v6634, 0.044715
        %v6643 = vmul.f32 %v6637, 0.044715
        %v6644 = vmul.f32 %v6642, %v6634
        %v6645 = vmul.f32 %v6643, %v6637
        %v6646 = vmul.f32 %v6644, %v6634
        %v6647 = vmul.f32 %v6645, %v6637
        %v6648 = vadd.f32 %v6634, %v6646
        %v6649 = vadd.f32 %v6637, %v6647
        %v6650 = vmul.f32 %v6648, 0.7978846
        %v6651 = vmul.f32 %v6649, 0.7978846
        %v6652 = vtanh.pop %v6650
        %v6653 = vtanh.pop %v6651
        %v6654 = vadd.f32 %v6652, 1.0
        %v6655 = vadd.f32 %v6653, 1.0
        %v6656 = vmul.f32 %v6640, %v6654
        %v6657 = vmul.f32 %v6641, %v6655
        %v6658 = vpack.c.bf16 %v6657, %v6656
        %v6659 = vld [vmem:[%s87] sm:$0xf]
        %v6660 = vld [vmem:[%s87 + $0x4] sm:$0xf]
        %v6661 = vld [vmem:[%s87 + $0x8] sm:$0xf]
        %v6662 = vld [vmem:[%s87 + $0xc] sm:$0xf]
        %v6663 = vld [vmem:[%s87 + $0x10] sm:$0xf]
        %v6664 = vld [vmem:[%s87 + $0x14] sm:$0xf]
        %v6665 = vld [vmem:[%s87 + $0x18] sm:$0xf]
        %v6666 = vld [vmem:[%s87 + $0x1c] sm:$0xf]
        %v6667 = vld [vmem:[%s87 + $0x20] sm:$0xf]
        %v6668 = vld [vmem:[%s87 + $0x24] sm:$0xf]
        %v6669 = vld [vmem:[%s87 + $0x28] sm:$0xf]
        %v6670 = vld [vmem:[%s87 + $0x2c] sm:$0xf]
        %v6671 = vld [vmem:[%s87 + $0x30] sm:$0xf]
        %v6672 = vld [vmem:[%s87 + $0x34] sm:$0xf]
        %v6673 = vld [vmem:[%s87 + $0x38] sm:$0xf]
        %v6674 = vld [vmem:[%s87 + $0x3c] sm:$0xf]
        %v6675 = vld [vmem:[%s89] sm:$0x1]
        %v6677 = vlaneseq
        %v6678 = vshrl.u32 %v6677, 7
        %v6679 = vsub.s32 0, %v6678
        %v6680 = vrot.slane %v6675, %v6679
        %v6698 = vunpack.c.l.b16 %v6659
        %v6699 = vunpack.c.l.b16 %v6660
        %v6700 = vunpack.c.l.b16 %v6661
        %v6701 = vunpack.c.l.b16 %v6662
        %v6702 = vunpack.c.l.b16 %v6663
        %v6703 = vunpack.c.l.b16 %v6664
        %v6704 = vunpack.c.l.b16 %v6665
        %v6705 = vunpack.c.l.b16 %v6666
        %v6706 = vunpack.c.l.b16 %v6667
        %v6707 = vunpack.c.l.b16 %v6668
        %v6708 = vunpack.c.l.b16 %v6669
        %v6709 = vunpack.c.l.b16 %v6670
        %v6710 = vunpack.c.l.b16 %v6671
        %v6711 = vunpack.c.l.b16 %v6672
        %v6712 = vunpack.c.l.b16 %v6673
        %v6713 = vunpack.c.l.b16 %v6674
        %v6714 = vpack.c.b16 %v6699, %v6698
        %v6715 = vpack.c.b16 %v6701, %v6700
        %v6716 = vpack.c.b16 %v6703, %v6702
        %v6717 = vpack.c.b16 %v6705, %v6704
        %v6718 = vpack.c.b16 %v6707, %v6706
        %v6719 = vpack.c.b16 %v6709, %v6708
        %v6720 = vpack.c.b16 %v6711, %v6710
        %v6721 = vpack.c.b16 %v6713, %v6712
        %6730 = vmatprep.subr.bf16.mxu0 0
        %6731 = vmatpush1.bf16.msra.mxu0 %v6714
        %6732 = vmatprep.subr.bf16.mxu0 0
        %6733 = vmatpush1.bf16.msra.mxu0 %v6715
        %6734 = vmatprep.subr.bf16.mxu0 0
        %6735 = vmatpush1.bf16.msra.mxu0 %v6716
        %6736 = vmatprep.subr.bf16.mxu0 0
        %6737 = vmatpush1.bf16.msra.mxu0 %v6717
        %6738 = vmatprep.subr.bf16.mxu0 0
        %6739 = vmatpush1.bf16.msra.mxu0 %v6718
        %6740 = vmatprep.subr.bf16.mxu0 0
        %6741 = vmatpush1.bf16.msra.mxu0 %v6719
        %6742 = vmatprep.subr.bf16.mxu0 0
        %6743 = vmatpush1.bf16.msra.mxu0 %v6720
        %6744 = vmatprep.subr.bf16.mxu0 0
        %6745 = vmatpush1.bf16.msra.mxu0 %v6721
        %6746 = vmatprep.subr.bf16.mxu0 0
        %6747 = vmatpush1.bf16.msra.mxu0 0
        %6748 = vmatprep.subr.bf16.mxu0 0
        %6749 = vmatpush1.bf16.msra.mxu0 0
        %6750 = vmatprep.subr.bf16.mxu0 0
        %6751 = vmatpush1.bf16.msra.mxu0 0
        %6752 = vmatprep.subr.bf16.mxu0 0
        %6753 = vmatpush1.bf16.msra.mxu0 0
        %6754 = vmatprep.subr.bf16.mxu0 0
        %6755 = vmatpush1.bf16.msra.mxu0 0
        %6756 = vmatprep.subr.bf16.mxu0 0
        %6757 = vmatpush1.bf16.msra.mxu0 0
        %6758 = vmatprep.subr.bf16.mxu0 0
        %6759 = vmatpush1.bf16.msra.mxu0 0
        %6760 = vmatprep.subr.bf16.mxu0 0
        %6761 = vmatpush1.bf16.msra.mxu0 0
        %6762 = vmatprep.mubr.bf16.mxu0 0
        %6763 = vmatmul.mubr.bf16.gmra.mrb[0].mxu0 %v6658
        %v6764 = vpop.f32.mrb[0].mxu0
        %v6765 = vadd.f32 %v6680, %v6764
        %v6766 = vpop.f32.mrb[0].mxu0
        %v6767 = vpop.f32.mrb[0].mxu0
        %v6768 = vadd.f32 %v6680, %v6767
        %v6769 = vpop.f32.mrb[0].mxu0
        %6770 = vdwg.mxu0
        %v6771 = vadd.f32 %v6526, %v6765
        %v6772 = vadd.f32 %v6527, %v6768
        %v6773 = vld [vmem:[#allocation4] sm:$0x1]
        %v6774 = vld [vmem:[#allocation7] sm:$0x1]
        %v6775 = vsel %vm4459, %v6771, 0.0
        %6776 = vadd.xlane.f32.xlu0 %v6775
        %v6777 = vpop.xlane.xlu0 %6776
        %v6778 = vsel %vm4457, %v6772, 0.0
        %6779 = vadd.xlane.f32.xlu0 %v6778
        %v6780 = vpop.xlane.xlu0 %6779
        %v6781 = vmul.f32 %v6777, %v4478
        %v6782 = vmul.f32 %v6780, %v4478
        %v6783 = vsub.f32 %v6771, %v6781
        %v6784 = vsub.f32 %v6772, %v6782
        %v6785 = vmul.f32 %v6783, %v6783
        %v6786 = vmul.f32 %v6784, %v6784
        %v6787 = vsel %vm4459, %v6785, 0.0
        %6788 = vadd.xlane.f32.xlu0 %v6787
        %v6789 = vpop.xlane.xlu0 %6788
        %v6790 = vsel %vm4457, %v6786, 0.0
        %6791 = vadd.xlane.f32.xlu0 %v6790
        %v6792 = vpop.xlane.xlu0 %6791
        %v6793 = vmul.f32 %v6789, %v4478
        %v6794 = vmul.f32 %v6792, %v4478
        %v6795 = vadd.f32 %v6793, 1e-05
        %v6796 = vadd.f32 %v6794, 1e-05
        %v6797 = vrsqrt.pop %v6795
        %v6798 = vrsqrt.pop %v6796
        %v6799 = vmul.f32 %v6783, %v6797
        %v6800 = vmul.f32 %v6784, %v6798
        %v6802 = vlaneseq
        %v6803 = vshrl.u32 %v6802, 7
        %v6804 = vsub.s32 0, %v6803
        %v6805 = vrot.slane %v6773, %v6804
        %v6807 = vmul.f32 %v6799, %v6805
        %v6808 = vmul.f32 %v6800, %v6805
        %v6810 = vlaneseq
        %v6811 = vshrl.u32 %v6810, 7
        %v6812 = vsub.s32 0, %v6811
        %v6813 = vrot.slane %v6774, %v6812
        %v6815 = vadd.f32 %v6807, %v6813
        %v6816 = vadd.f32 %v6808, %v6813
        %vm6817 = vcmask 261121
        %v6818 = vsel %vm6817, %v6815, -inf
        %v6819 = vsel %vm4457, %v6816, -inf
        %v6820 = vmax.f32 %v6818, %v6819
        %v6821 = vrot.slane %v6820, 4
        %v6822 = vmax.f32 %v6820, %v6821
        %v6823 = vrot.slane %v6822, 2
        %v6824 = vmax.f32 %v6822, %v6823
        %v6825 = vrot.slane %v6824, 1
        %v6826 = vmax.f32 %v6824, %v6825
        %6828 = vrot.lane.b32.xlu0 %v6826, 32
        %v6829 = vpop.permute.xlu0 %6828
        %v6831 = vsel %vm4459, %v6815, %v6829
        %vm6832 = vcmask 516096
        %6833 = vst.msk [vmem:[%s1437] sm:$0x1] %vm6832, %v6831
        %s6834 = sand.u32 %s1116, 1
        %s6835 = scalar_lea.sflag [#allocation6], %s6834
        %s6836 = sand.u32 %s1116, 1
        %s6837 = scalar_lea.vmem [#allocation9], %s6836
        // Predicated region
        $region217: #{_lambda_.1} parent=207 // pred_check
          %p6838 = pneg %p1126
        $region218: #{_lambda_.1} parent=207 // pred_check_branch
          %6840 = sbr.rel (%p6838) target = $region220
        $region219: #{_lambda_.1} parent=207 // pred_region
          %s6842 = ssub.s32 16, 16
          %6843 = vsyncadd %s6835, %s6842
          %s6844 = smul.addr %s111, 16
          %s6845 = scalar_lea.hbm %s95, %s6844
          %s6847 = sshll.u32 %s6837, 4
          %s6848 = int_to_ptr.vmem [resolvable:$true] %s6847
          %6850 = dma.vmem_to_hbm [thread:$0]  %s6848, 16, %s6845, %s6835
        $region220: #{_lambda_.1} parent=207 // pred_fallthru
          _
      $region208: #{_lambda_.1} parent=5 // pred_fallthru
        _
      %p6851 = scmp.le.s32.totalorder 2, %s106
      // Predicated region
      $region221: #{_lambda_.1} parent=5 // pred_check
        %p6852 = pneg %p6851
      $region222: #{_lambda_.1} parent=5 // pred_check_branch
        %6854 = sbr.rel (%p6852) target = $region224
      $region223: #{_lambda_.1} parent=5 // pred_region
        %s6855 = ssub.s32 %s106, 2
        // Predicated region
        $region225: #{_lambda_.1} parent=223 // pred_check
          %p6856 = pneg %p1132
        $region226: #{_lambda_.1} parent=223 // pred_check_branch
          %6858 = sbr.rel (%p6856) target = $region228
        $region227: #{_lambda_.1} parent=223 // pred_region
          %s6859 = sand.u32 %s1117, 1
          %s6860 = scalar_lea.sflag [#allocation6], %s6859
          %s6861 = sand.u32 %s1117, 1
          %s6862 = scalar_lea.vmem [#allocation9], %s6861
          %6863 = dma.done %s6860, 16
        $region228: #{_lambda_.1} parent=223 // pred_fallthru
          _
      $region224: #{_lambda_.1} parent=5 // pred_fallthru
        _
    $region6: #{_lambda_.1} parent=1 // loop_footer
      %s110 = sadd.s32 1, %s106
    $region7: #{_lambda_.1} parent=1 // loop_footer_branch
      %105 = sbr.rel target = $region3
    $region8: #{_lambda_.1} parent=1 // loop_exit
      _
    %6864 = vsyncpa [#allocation5], 1
    %s6865 = scalar_lea.sflag [#allocation5], 1
    %6866 = vsyncpa %s6865, 1
    %6867 = vsyncpa [#allocation8], 1
    %6868 = vsyncpa [#allocation6], 1
    %s6869 = scalar_lea.sflag [#allocation6], 1
    %6870 = vsyncpa %s6869, 1

</llo_original>
